<compile_context>
chip_gen: v7x
topology: tpu7x:2x2x1
jax: 0.10.0
libtpu: 0.0.40
codegen_flags: <defaults>
</compile_context>

<pallas_src>
import jax
import jax.numpy as jnp
from jax import lax
from jax.experimental import pallas as pl
from jax.experimental.pallas import tpu as pltpu


HIDDEN = 64  # detail_net hidden width (fixed in the PyTorch module)


def _round_up(v, m):
    return (v + m - 1) // m * m


def _enhancer_kernel(x_ref, w1_ref, b1_ref, w2_ref, b2_ref, w3_ref, b3_ref,
                     o_ref, xbuf, slab):
    # x_ref  : (1, C, H*W)      f32  channel-major input (conv1 source + residual)
    # w1_ref : (9, C, 64)       bf16 conv1 tap weights, tap t = dh*3 + dw
    # b1_ref : (1, 64)          f32
    # w2_ref : (192, 192)       bf16 wide-packed conv2: [dh*64+ci, dw*64+co]
    # b2_ref : (1, 64)          f32
    # w3_ref : (3, 192, C)      bf16 conv3 per-dw (rows dh*64+ci); factor folded in
    # b3_ref : (1, C)           f32  factor folded in
    # o_ref  : (1, C, H*W)      f32  channel-major output (lane-dense)
    # xbuf   : (H+2, W+2, C)    bf16 scratch: zero-padded input image
    # slab   : (H, WP2, 192)    bf16 scratch: dh-stacked, zero-bordered activations
    C = o_ref.shape[1]
    H = xbuf.shape[0] - 2
    W = xbuf.shape[1] - 2
    WP2 = slab.shape[1]            # W+2 rounded up to a sublane multiple of 8
    M = H * W
    K3 = 3 * HIDDEN                # 192

    x_cm = x_ref[0]                                     # (C, M) f32

    # ---------------- conv1 + ReLU: 9 accumulating K=C taps -----------------
    # (in-kernel "im2col": x is read exactly once from HBM; conv1 is a tiny
    #  fraction of the FLOPs so shallow-K matmuls are fine.)
    x_img = jnp.transpose(x_cm).reshape(H, W, C).astype(jnp.bfloat16)
    xbuf[...] = jnp.zeros_like(xbuf)          # per-step: per-core scratch safe
    xbuf[1:H + 1, 1:W + 1, :] = x_img

    acc1 = jnp.zeros((M, HIDDEN), jnp.float32)
    for dh in range(3):
        for dw in range(3):
            tap = xbuf[dh:dh + H, dw:dw + W, :].reshape(M, C)
            acc1 = acc1 + jnp.dot(tap, w1_ref[dh * 3 + dw],
                                  preferred_element_type=jnp.float32)
    h1 = jnp.maximum(acc1 + b1_ref[...], 0.0)           # (M, 64) f32

    # ----- dh-stacked slab build: borders fused into full-width stores ------
    def store_slab(h_img):
        # h_img: (H, W, 64) bf16.  slab[h, w', dh*64:(dh+1)*64] = h_pad[h+dh, w', :]
        zc_l = jnp.zeros((H, 1, HIDDEN), jnp.bfloat16)
        zc_r = jnp.zeros((H, WP2 - W - 1, HIDDEN), jnp.bfloat16)
        hp = jnp.concatenate([zc_l, h_img, zc_r], axis=1)           # (H, WP2, 64)
        zr = jnp.zeros((1, WP2, HIDDEN), jnp.bfloat16)
        slab[:, :, 0:HIDDEN] = jnp.concatenate([zr, hp[0:H - 1]], axis=0)       # dh=0
        slab[:, :, HIDDEN:2 * HIDDEN] = hp                                      # dh=1
        slab[:, :, 2 * HIDDEN:3 * HIDDEN] = jnp.concatenate([hp[1:H], zr], axis=0)  # dh=2

    store_slab(h1.reshape(H, W, HIDDEN).astype(jnp.bfloat16))

    # ---------------- conv2 + ReLU: one widened N=192 matmul ----------------
    z = jnp.dot(slab[...].reshape(H * WP2, K3), w2_ref[...],
                preferred_element_type=jnp.float32).reshape(H, WP2, K3)
    y2 = (z[:, 0:W, 0:HIDDEN]
          + z[:, 1:W + 1, HIDDEN:2 * HIDDEN]
          + z[:, 2:W + 2, 2 * HIDDEN:3 * HIDDEN])
    h2 = jnp.maximum(y2 + b2_ref[...], 0.0)             # (H, W, 64) f32

    store_slab(h2.astype(jnp.bfloat16))

    # ---------------- conv3 (residual details): 3 x K=192 matmuls -----------
    res = jnp.zeros((M, C), jnp.float32)
    for dw in range(3):
        res = res + jnp.dot(slab[:, dw:dw + W, :].reshape(M, K3), w3_ref[dw],
                            preferred_element_type=jnp.float32)
    res = res + b3_ref[...]                             # enhance_factor already folded in

    # residual add + clamp, lane-dense channel-major store
    out = x_cm + jnp.transpose(res)                     # (C, M)
    o_ref[0] = jnp.clip(out, 0.0, 1.0)


def residual_detail_enhancer(x_nchw, params):
    """x_nchw: (N, C, H, W) float32 in [0,1]. Returns (N, C, H, W)."""
    w1, b1, w2, b2, w3, b3, factor = params
    N, C, H, W = x_nchw.shape
    M = H * W
    WP2 = _round_up(W + 2, 8)

    # The ONLY x stream: free reshape to channel-major (lane = H*W, dense).
    x_cm = x_nchw.reshape(N, C, M)

    # Repack weights for the kernel's matmul shapes (bf16 for the MXU);
    # fold enhance_factor into conv3's weights/bias (f32 bias, bf16 weights).
    w1_r = w1.reshape(9, C, HIDDEN).astype(jnp.bfloat16)                    # (9, C, 64)
    b1_r = b1.reshape(1, HIDDEN).astype(jnp.float32)
    w2_r = jnp.transpose(w2, (0, 2, 1, 3)).reshape(
        3 * HIDDEN, 3 * HIDDEN).astype(jnp.bfloat16)                        # (192, 192)
    b2_r = b2.reshape(1, HIDDEN).astype(jnp.float32)
    w3_r = jnp.transpose(w3 * factor, (1, 0, 2, 3)).reshape(
        3, 3 * HIDDEN, C).astype(jnp.bfloat16)                              # (3, 192, C)
    b3_r = (b3 * factor).reshape(1, C).astype(jnp.float32)

    out_cm = pl.pallas_call(
        _enhancer_kernel,
        out_shape=jax.ShapeDtypeStruct((N, C, M), jnp.float32),
        grid_spec=pltpu.PrefetchScalarGridSpec(
            num_scalar_prefetch=0,
            grid=(N,),
            in_specs=[
                pl.BlockSpec((1, C, M), lambda n: (n, 0, 0)),               # x (CM)
                pl.BlockSpec((9, C, HIDDEN), lambda n: (0, 0, 0)),          # w1
                pl.BlockSpec((1, HIDDEN), lambda n: (0, 0)),                # b1
                pl.BlockSpec((3 * HIDDEN, 3 * HIDDEN), lambda n: (0, 0)),   # w2 (wide)
                pl.BlockSpec((1, HIDDEN), lambda n: (0, 0)),                # b2
                pl.BlockSpec((3, 3 * HIDDEN, C), lambda n: (0, 0, 0)),      # w3*factor
                pl.BlockSpec((1, C), lambda n: (0, 0)),                     # b3*factor
            ],
            out_specs=pl.BlockSpec((1, C, M), lambda n: (n, 0, 0)),
            scratch_shapes=[
                pltpu.VMEM((H + 2, W + 2, C), jnp.bfloat16),       # padded input image
                pltpu.VMEM((H, WP2, 3 * HIDDEN), jnp.bfloat16),    # dh-stacked slab
            ],
        ),
        compiler_params=pltpu.CompilerParams(
            dimension_semantics=("parallel",),
            # Far below need at these shapes; also within v7x's 64 MiB budget.
            vmem_limit_bytes=32 * 1024 * 1024),
    )(x_cm, w1_r, b1_r, w2_r, b2_r, w3_r, b3_r)

    return out_cm.reshape(N, C, H, W)


def _reference(x_nchw, params):
    """Plain-JAX f32 reference (NHWC convs) for correctness checking."""
    w1, b1, w2, b2, w3, b3, factor = params
    x = jnp.transpose(x_nchw, (0, 2, 3, 1))
    dn = ('NHWC', 'HWIO', 'NHWC')

    def conv(h, w, b):
        return lax.conv_general_dilated(h, w, (1, 1), 'SAME',
                                        dimension_numbers=dn) + b

    h = jax.nn.relu(conv(x, w1, b1))
    h = jax.nn.relu(conv(h, w2, b2))
    res = conv(h, w3, b3)
    out = jnp.clip(x + factor * res, 0.0, 1.0)
    return jnp.transpose(out, (0, 3, 1, 2))


def _init_params(key, channels):
    """Deterministic synthetic parameters (HWIO conv weights)."""
    k1, k2, k3, k4, k5, k6 = jax.random.split(key, 6)
    w1 = 0.1 * jax.random.normal(k1, (3, 3, channels, HIDDEN), jnp.float32)
    b1 = 0.01 * jax.random.normal(k2, (HIDDEN,), jnp.float32)
    w2 = 0.1 * jax.random.normal(k3, (3, 3, HIDDEN, HIDDEN), jnp.float32)
    b2 = 0.01 * jax.random.normal(k4, (HIDDEN,), jnp.float32)
    w3 = 0.1 * jax.random.normal(k5, (3, 3, HIDDEN, channels), jnp.float32)
    b3 = 0.01 * jax.random.normal(k6, (channels,), jnp.float32)
    factor = jnp.array(0.1, jnp.float32)  # nn.Parameter(torch.tensor(0.1))
    return (w1, b1, w2, b2, w3, b3, factor)


if __name__ == "__main__":
    N, C, H, W = 2, 3, 16, 16  # channels=3 (module default), small spatial
    key = jax.random.PRNGKey(0)
    kx, kp = jax.random.split(key)
    x = jax.random.uniform(kx, (N, C, H, W), jnp.float32)  # image-like, in [0,1]
    params = _init_params(kp, C)

    out = jax.block_until_ready(residual_detail_enhancer(x, params))
    ref = jax.block_until_ready(_reference(x, params))

    assert out.shape == (N, C, H, W)
    # bf16 MXU path with f32 accumulation -> relaxed tolerance vs f32 reference.
    assert jnp.allclose(out, ref, atol=2e-2, rtol=2e-2), "mismatch vs reference"
    print("KERNEL_OK")
</pallas_src>

<mosaic_0001>
module attributes {stable_mosaic.version = 11 : i64} {
  func.func @_enhancer_kernel(%arg0: i32, %arg1: memref<1x3x256xf32, #tpu.memory_space<vmem>>, %arg2: memref<9x3x64xbf16, #tpu.memory_space<vmem>>, %arg3: memref<1x64xf32, #tpu.memory_space<vmem>>, %arg4: memref<192x192xbf16, #tpu.memory_space<vmem>>, %arg5: memref<1x64xf32, #tpu.memory_space<vmem>>, %arg6: memref<3x192x3xbf16, #tpu.memory_space<vmem>>, %arg7: memref<1x3xf32, #tpu.memory_space<vmem>>, %arg8: memref<1x3x256xf32, #tpu.memory_space<vmem>>, %arg9: memref<18x18x3xbf16, #tpu.memory_space<vmem>>, %arg10: memref<16x24x192xbf16, #tpu.memory_space<vmem>>) attributes {dimension_semantics = [#tpu.dimension_semantics<parallel>], iteration_bounds = array<i64: 2>, scalar_prefetch = 0 : i64, scratch_operands = 2 : i64, tpu.core_type = #tpu.core_type<tc>, window_params = [{transform_indices = @transform_0, window_bounds = array<i64: 1, 3, 256>}, {pipeline_mode = #tpu.pipeline_mode<synchronous>, transform_indices = @transform_1, window_bounds = array<i64: 9, 3, 64>}, {pipeline_mode = #tpu.pipeline_mode<synchronous>, transform_indices = @transform_2, window_bounds = array<i64: 1, 64>}, {pipeline_mode = #tpu.pipeline_mode<synchronous>, transform_indices = @transform_3, window_bounds = array<i64: 192, 192>}, {pipeline_mode = #tpu.pipeline_mode<synchronous>, transform_indices = @transform_4, window_bounds = array<i64: 1, 64>}, {pipeline_mode = #tpu.pipeline_mode<synchronous>, transform_indices = @transform_5, window_bounds = array<i64: 3, 192, 3>}, {pipeline_mode = #tpu.pipeline_mode<synchronous>, transform_indices = @transform_6, window_bounds = array<i64: 1, 3>}, {transform_indices = @transform_7, window_bounds = array<i64: 1, 3, 256>}]} {
    %c0 = arith.constant 0 : index
    %c0_0 = arith.constant 0 : index
    %c0_1 = arith.constant 0 : index
    %0 = vector.load %arg1[%c0, %c0_0, %c0_1] : memref<1x3x256xf32, #tpu.memory_space<vmem>>, vector<1x3x256xf32>
    %1 = vector.shape_cast %0 : vector<1x3x256xf32> to vector<3x256xf32>
    %2 = tpu.transpose %1, [1, 0] : vector<3x256xf32> -> vector<256x3xf32>
    %3 = vector.shape_cast %2 : vector<256x3xf32> to vector<16x16x3xf32>
    %4 = arith.truncf %3 : vector<16x16x3xf32> to vector<16x16x3xbf16>
    %cst = arith.constant 0.000000e+00 : bf16
    %5 = vector.broadcast %cst : bf16 to vector<18x18x3xbf16>
    %c0_2 = arith.constant 0 : index
    %c0_3 = arith.constant 0 : index
    %c0_4 = arith.constant 0 : index
    %6 = vector.load %arg9[%c0_2, %c0_3, %c0_4] : memref<18x18x3xbf16, #tpu.memory_space<vmem>>, vector<18x18x3xbf16>
    tpu.vector_store %arg9[%c0_2, %c0_3, %c0_4], %5 {strides = array<i32>} : memref<18x18x3xbf16, #tpu.memory_space<vmem>>, vector<18x18x3xbf16>,
    %c1 = arith.constant 1 : index
    %c1_5 = arith.constant 1 : index
    %c0_6 = arith.constant 0 : index
    %7 = vector.load %arg9[%c1, %c1_5, %c0_6] : memref<18x18x3xbf16, #tpu.memory_space<vmem>>, vector<16x16x3xbf16>
    tpu.vector_store %arg9[%c1, %c1_5, %c0_6], %4 {strides = array<i32>} : memref<18x18x3xbf16, #tpu.memory_space<vmem>>, vector<16x16x3xbf16>,
    %cst_7 = arith.constant 0.000000e+00 : f32
    %8 = vector.broadcast %cst_7 : f32 to vector<256x64xf32>
    %c0_8 = arith.constant 0 : index
    %c0_9 = arith.constant 0 : index
    %c0_10 = arith.constant 0 : index
    %9 = vector.load %arg9[%c0_8, %c0_9, %c0_10] : memref<18x18x3xbf16, #tpu.memory_space<vmem>>, vector<16x16x3xbf16>
    %10 = vector.shape_cast %9 : vector<16x16x3xbf16> to vector<256x3xbf16>
    %c0_11 = arith.constant 0 : index
    %c0_12 = arith.constant 0 : index
    %c0_13 = arith.constant 0 : index
    %11 = vector.load %arg2[%c0_11, %c0_12, %c0_13] : memref<9x3x64xbf16, #tpu.memory_space<vmem>>, vector<1x3x64xbf16>
    %12 = vector.shape_cast %11 : vector<1x3x64xbf16> to vector<3x64xbf16>
    %cst_14 = arith.constant dense<0.000000e+00> : vector<256x64xf32>
    %13 = tpu.matmul %10, %12, %cst_14 {dimension_numbers = #tpu.dot_dimension_numbers<[1], [0], [0], [1], [0, 0, 1, 1], [], []>} : vector<256x3xbf16>, vector<3x64xbf16>, vector<256x64xf32> -> vector<256x64xf32>
    %14 = arith.addf %8, %13 : vector<256x64xf32>
    %c0_15 = arith.constant 0 : index
    %c1_16 = arith.constant 1 : index
    %c0_17 = arith.constant 0 : index
    %15 = vector.load %arg9[%c0_15, %c1_16, %c0_17] : memref<18x18x3xbf16, #tpu.memory_space<vmem>>, vector<16x16x3xbf16>
    %16 = vector.shape_cast %15 : vector<16x16x3xbf16> to vector<256x3xbf16>
    %c1_18 = arith.constant 1 : index
    %c0_19 = arith.constant 0 : index
    %c0_20 = arith.constant 0 : index
    %17 = vector.load %arg2[%c1_18, %c0_19, %c0_20] : memref<9x3x64xbf16, #tpu.memory_space<vmem>>, vector<1x3x64xbf16>
    %18 = vector.shape_cast %17 : vector<1x3x64xbf16> to vector<3x64xbf16>
    %cst_21 = arith.constant dense<0.000000e+00> : vector<256x64xf32>
    %19 = tpu.matmul %16, %18, %cst_21 {dimension_numbers = #tpu.dot_dimension_numbers<[1], [0], [0], [1], [0, 0, 1, 1], [], []>} : vector<256x3xbf16>, vector<3x64xbf16>, vector<256x64xf32> -> vector<256x64xf32>
    %20 = arith.addf %14, %19 : vector<256x64xf32>
    %c0_22 = arith.constant 0 : index
    %c2 = arith.constant 2 : index
    %c0_23 = arith.constant 0 : index
    %21 = vector.load %arg9[%c0_22, %c2, %c0_23] : memref<18x18x3xbf16, #tpu.memory_space<vmem>>, vector<16x16x3xbf16>
    %22 = vector.shape_cast %21 : vector<16x16x3xbf16> to vector<256x3xbf16>
    %c2_24 = arith.constant 2 : index
    %c0_25 = arith.constant 0 : index
    %c0_26 = arith.constant 0 : index
    %23 = vector.load %arg2[%c2_24, %c0_25, %c0_26] : memref<9x3x64xbf16, #tpu.memory_space<vmem>>, vector<1x3x64xbf16>
    %24 = vector.shape_cast %23 : vector<1x3x64xbf16> to vector<3x64xbf16>
    %cst_27 = arith.constant dense<0.000000e+00> : vector<256x64xf32>
    %25 = tpu.matmul %22, %24, %cst_27 {dimension_numbers = #tpu.dot_dimension_numbers<[1], [0], [0], [1], [0, 0, 1, 1], [], []>} : vector<256x3xbf16>, vector<3x64xbf16>, vector<256x64xf32> -> vector<256x64xf32>
    %26 = arith.addf %20, %25 : vector<256x64xf32>
    %c1_28 = arith.constant 1 : index
    %c0_29 = arith.constant 0 : index
    %c0_30 = arith.constant 0 : index
    %27 = vector.load %arg9[%c1_28, %c0_29, %c0_30] : memref<18x18x3xbf16, #tpu.memory_space<vmem>>, vector<16x16x3xbf16>
    %28 = vector.shape_cast %27 : vector<16x16x3xbf16> to vector<256x3xbf16>
    %c3 = arith.constant 3 : index
    %c0_31 = arith.constant 0 : index
    %c0_32 = arith.constant 0 : index
    %29 = vector.load %arg2[%c3, %c0_31, %c0_32] : memref<9x3x64xbf16, #tpu.memory_space<vmem>>, vector<1x3x64xbf16>
    %30 = vector.shape_cast %29 : vector<1x3x64xbf16> to vector<3x64xbf16>
    %cst_33 = arith.constant dense<0.000000e+00> : vector<256x64xf32>
    %31 = tpu.matmul %28, %30, %cst_33 {dimension_numbers = #tpu.dot_dimension_numbers<[1], [0], [0], [1], [0, 0, 1, 1], [], []>} : vector<256x3xbf16>, vector<3x64xbf16>, vector<256x64xf32> -> vector<256x64xf32>
    %32 = arith.addf %26, %31 : vector<256x64xf32>
    %c1_34 = arith.constant 1 : index
    %c1_35 = arith.constant 1 : index
    %c0_36 = arith.constant 0 : index
    %33 = vector.load %arg9[%c1_34, %c1_35, %c0_36] : memref<18x18x3xbf16, #tpu.memory_space<vmem>>, vector<16x16x3xbf16>
    %34 = vector.shape_cast %33 : vector<16x16x3xbf16> to vector<256x3xbf16>
    %c4 = arith.constant 4 : index
    %c0_37 = arith.constant 0 : index
    %c0_38 = arith.constant 0 : index
    %35 = vector.load %arg2[%c4, %c0_37, %c0_38] : memref<9x3x64xbf16, #tpu.memory_space<vmem>>, vector<1x3x64xbf16>
    %36 = vector.shape_cast %35 : vector<1x3x64xbf16> to vector<3x64xbf16>
    %cst_39 = arith.constant dense<0.000000e+00> : vector<256x64xf32>
    %37 = tpu.matmul %34, %36, %cst_39 {dimension_numbers = #tpu.dot_dimension_numbers<[1], [0], [0], [1], [0, 0, 1, 1], [], []>} : vector<256x3xbf16>, vector<3x64xbf16>, vector<256x64xf32> -> vector<256x64xf32>
    %38 = arith.addf %32, %37 : vector<256x64xf32>
    %c1_40 = arith.constant 1 : index
    %c2_41 = arith.constant 2 : index
    %c0_42 = arith.constant 0 : index
    %39 = vector.load %arg9[%c1_40, %c2_41, %c0_42] : memref<18x18x3xbf16, #tpu.memory_space<vmem>>, vector<16x16x3xbf16>
    %40 = vector.shape_cast %39 : vector<16x16x3xbf16> to vector<256x3xbf16>
    %c5 = arith.constant 5 : index
    %c0_43 = arith.constant 0 : index
    %c0_44 = arith.constant 0 : index
    %41 = vector.load %arg2[%c5, %c0_43, %c0_44] : memref<9x3x64xbf16, #tpu.memory_space<vmem>>, vector<1x3x64xbf16>
    %42 = vector.shape_cast %41 : vector<1x3x64xbf16> to vector<3x64xbf16>
    %cst_45 = arith.constant dense<0.000000e+00> : vector<256x64xf32>
    %43 = tpu.matmul %40, %42, %cst_45 {dimension_numbers = #tpu.dot_dimension_numbers<[1], [0], [0], [1], [0, 0, 1, 1], [], []>} : vector<256x3xbf16>, vector<3x64xbf16>, vector<256x64xf32> -> vector<256x64xf32>
    %44 = arith.addf %38, %43 : vector<256x64xf32>
    %c2_46 = arith.constant 2 : index
    %c0_47 = arith.constant 0 : index
    %c0_48 = arith.constant 0 : index
    %45 = vector.load %arg9[%c2_46, %c0_47, %c0_48] : memref<18x18x3xbf16, #tpu.memory_space<vmem>>, vector<16x16x3xbf16>
    %46 = vector.shape_cast %45 : vector<16x16x3xbf16> to vector<256x3xbf16>
    %c6 = arith.constant 6 : index
    %c0_49 = arith.constant 0 : index
    %c0_50 = arith.constant 0 : index
    %47 = vector.load %arg2[%c6, %c0_49, %c0_50] : memref<9x3x64xbf16, #tpu.memory_space<vmem>>, vector<1x3x64xbf16>
    %48 = vector.shape_cast %47 : vector<1x3x64xbf16> to vector<3x64xbf16>
    %cst_51 = arith.constant dense<0.000000e+00> : vector<256x64xf32>
    %49 = tpu.matmul %46, %48, %cst_51 {dimension_numbers = #tpu.dot_dimension_numbers<[1], [0], [0], [1], [0, 0, 1, 1], [], []>} : vector<256x3xbf16>, vector<3x64xbf16>, vector<256x64xf32> -> vector<256x64xf32>
    %50 = arith.addf %44, %49 : vector<256x64xf32>
    %c2_52 = arith.constant 2 : index
    %c1_53 = arith.constant 1 : index
    %c0_54 = arith.constant 0 : index
    %51 = vector.load %arg9[%c2_52, %c1_53, %c0_54] : memref<18x18x3xbf16, #tpu.memory_space<vmem>>, vector<16x16x3xbf16>
    %52 = vector.shape_cast %51 : vector<16x16x3xbf16> to vector<256x3xbf16>
    %c7 = arith.constant 7 : index
    %c0_55 = arith.constant 0 : index
    %c0_56 = arith.constant 0 : index
    %53 = vector.load %arg2[%c7, %c0_55, %c0_56] : memref<9x3x64xbf16, #tpu.memory_space<vmem>>, vector<1x3x64xbf16>
    %54 = vector.shape_cast %53 : vector<1x3x64xbf16> to vector<3x64xbf16>
    %cst_57 = arith.constant dense<0.000000e+00> : vector<256x64xf32>
    %55 = tpu.matmul %52, %54, %cst_57 {dimension_numbers = #tpu.dot_dimension_numbers<[1], [0], [0], [1], [0, 0, 1, 1], [], []>} : vector<256x3xbf16>, vector<3x64xbf16>, vector<256x64xf32> -> vector<256x64xf32>
    %56 = arith.addf %50, %55 : vector<256x64xf32>
    %c2_58 = arith.constant 2 : index
    %c2_59 = arith.constant 2 : index
    %c0_60 = arith.constant 0 : index
    %57 = vector.load %arg9[%c2_58, %c2_59, %c0_60] : memref<18x18x3xbf16, #tpu.memory_space<vmem>>, vector<16x16x3xbf16>
    %58 = vector.shape_cast %57 : vector<16x16x3xbf16> to vector<256x3xbf16>
    %c8 = arith.constant 8 : index
    %c0_61 = arith.constant 0 : index
    %c0_62 = arith.constant 0 : index
    %59 = vector.load %arg2[%c8, %c0_61, %c0_62] : memref<9x3x64xbf16, #tpu.memory_space<vmem>>, vector<1x3x64xbf16>
    %60 = vector.shape_cast %59 : vector<1x3x64xbf16> to vector<3x64xbf16>
    %cst_63 = arith.constant dense<0.000000e+00> : vector<256x64xf32>
    %61 = tpu.matmul %58, %60, %cst_63 {dimension_numbers = #tpu.dot_dimension_numbers<[1], [0], [0], [1], [0, 0, 1, 1], [], []>} : vector<256x3xbf16>, vector<3x64xbf16>, vector<256x64xf32> -> vector<256x64xf32>
    %62 = arith.addf %56, %61 : vector<256x64xf32>
    %c0_64 = arith.constant 0 : index
    %c0_65 = arith.constant 0 : index
    %63 = vector.load %arg3[%c0_64, %c0_65] : memref<1x64xf32, #tpu.memory_space<vmem>>, vector<1x64xf32>
    %64 = vector.broadcast %63 : vector<1x64xf32> to vector<256x64xf32>
    %65 = arith.addf %62, %64 : vector<256x64xf32>
    %cst_66 = arith.constant 0.000000e+00 : f32
    %66 = vector.broadcast %cst_66 : f32 to vector<256x64xf32>
    %67 = arith.maximumf %65, %66 : vector<256x64xf32>
    %68 = vector.shape_cast %67 : vector<256x64xf32> to vector<16x16x64xf32>
    %69 = arith.truncf %68 : vector<16x16x64xf32> to vector<16x16x64xbf16>
    %cst_67 = arith.constant 0.000000e+00 : bf16
    %70 = vector.broadcast %cst_67 : bf16 to vector<16x1x64xbf16>
    %cst_68 = arith.constant 0.000000e+00 : bf16
    %71 = vector.broadcast %cst_68 : bf16 to vector<16x7x64xbf16>
    %72 = tpu.concatenate %70, %69, %71 in 1 : vector<16x1x64xbf16>, vector<16x16x64xbf16>, vector<16x7x64xbf16> -> vector<16x24x64xbf16>
    %cst_69 = arith.constant 0.000000e+00 : bf16
    %73 = vector.broadcast %cst_69 : bf16 to vector<1x24x64xbf16>
    %74 = vector.extract_strided_slice %72 {offsets = [0, 0, 0], sizes = [15, 24, 64], strides = [1, 1, 1]} : vector<16x24x64xbf16> to vector<15x24x64xbf16>
    %75 = tpu.concatenate %73, %74 in 0 : vector<1x24x64xbf16>, vector<15x24x64xbf16> -> vector<16x24x64xbf16>
    %c0_70 = arith.constant 0 : index
    %c0_71 = arith.constant 0 : index
    %c0_72 = arith.constant 0 : index
    %76 = vector.load %arg10[%c0_70, %c0_71, %c0_72] : memref<16x24x192xbf16, #tpu.memory_space<vmem>>, vector<16x24x64xbf16>
    tpu.vector_store %arg10[%c0_70, %c0_71, %c0_72], %75 {strides = array<i32>} : memref<16x24x192xbf16, #tpu.memory_space<vmem>>, vector<16x24x64xbf16>,
    %c0_73 = arith.constant 0 : index
    %c0_74 = arith.constant 0 : index
    %c64 = arith.constant 64 : index
    %77 = vector.load %arg10[%c0_73, %c0_74, %c64] : memref<16x24x192xbf16, #tpu.memory_space<vmem>>, vector<16x24x64xbf16>
    tpu.vector_store %arg10[%c0_73, %c0_74, %c64], %72 {strides = array<i32>} : memref<16x24x192xbf16, #tpu.memory_space<vmem>>, vector<16x24x64xbf16>,
    %78 = vector.extract_strided_slice %72 {offsets = [1, 0, 0], sizes = [15, 24, 64], strides = [1, 1, 1]} : vector<16x24x64xbf16> to vector<15x24x64xbf16>
    %79 = tpu.concatenate %78, %73 in 0 : vector<15x24x64xbf16>, vector<1x24x64xbf16> -> vector<16x24x64xbf16>
    %c0_75 = arith.constant 0 : index
    %c0_76 = arith.constant 0 : index
    %c128 = arith.constant 128 : index
    %80 = vector.load %arg10[%c0_75, %c0_76, %c128] : memref<16x24x192xbf16, #tpu.memory_space<vmem>>, vector<16x24x64xbf16>
    tpu.vector_store %arg10[%c0_75, %c0_76, %c128], %79 {strides = array<i32>} : memref<16x24x192xbf16, #tpu.memory_space<vmem>>, vector<16x24x64xbf16>,
    %c0_77 = arith.constant 0 : index
    %c0_78 = arith.constant 0 : index
    %c0_79 = arith.constant 0 : index
    %81 = vector.load %arg10[%c0_77, %c0_78, %c0_79] : memref<16x24x192xbf16, #tpu.memory_space<vmem>>, vector<16x24x192xbf16>
    %82 = vector.shape_cast %81 : vector<16x24x192xbf16> to vector<384x192xbf16>
    %c0_80 = arith.constant 0 : index
    %c0_81 = arith.constant 0 : index
    %83 = vector.load %arg4[%c0_80, %c0_81] : memref<192x192xbf16, #tpu.memory_space<vmem>>, vector<192x192xbf16>
    %cst_82 = arith.constant dense<0.000000e+00> : vector<384x192xf32>
    %84 = tpu.matmul %82, %83, %cst_82 {dimension_numbers = #tpu.dot_dimension_numbers<[1], [0], [0], [1], [0, 0, 1, 1], [], []>} : vector<384x192xbf16>, vector<192x192xbf16>, vector<384x192xf32> -> vector<384x192xf32>
    %85 = vector.shape_cast %84 : vector<384x192xf32> to vector<16x24x192xf32>
    %86 = vector.extract_strided_slice %85 {offsets = [0, 0, 0], sizes = [16, 16, 64], strides = [1, 1, 1]} : vector<16x24x192xf32> to vector<16x16x64xf32>
    %87 = vector.extract_strided_slice %85 {offsets = [0, 1, 64], sizes = [16, 16, 64], strides = [1, 1, 1]} : vector<16x24x192xf32> to vector<16x16x64xf32>
    %88 = arith.addf %86, %87 : vector<16x16x64xf32>
    %89 = vector.extract_strided_slice %85 {offsets = [0, 2, 128], sizes = [16, 16, 64], strides = [1, 1, 1]} : vector<16x24x192xf32> to vector<16x16x64xf32>
    %90 = arith.addf %88, %89 : vector<16x16x64xf32>
    %c0_83 = arith.constant 0 : index
    %c0_84 = arith.constant 0 : index
    %91 = vector.load %arg5[%c0_83, %c0_84] : memref<1x64xf32, #tpu.memory_space<vmem>>, vector<1x64xf32>
    %92 = vector.shape_cast %91 : vector<1x64xf32> to vector<1x1x64xf32>
    %93 = vector.broadcast %92 : vector<1x1x64xf32> to vector<16x16x64xf32>
    %94 = arith.addf %90, %93 : vector<16x16x64xf32>
    %cst_85 = arith.constant 0.000000e+00 : f32
    %95 = vector.broadcast %cst_85 : f32 to vector<16x16x64xf32>
    %96 = arith.maximumf %94, %95 : vector<16x16x64xf32>
    %97 = arith.truncf %96 : vector<16x16x64xf32> to vector<16x16x64xbf16>
    %cst_86 = arith.constant 0.000000e+00 : bf16
    %98 = vector.broadcast %cst_86 : bf16 to vector<16x1x64xbf16>
    %cst_87 = arith.constant 0.000000e+00 : bf16
    %99 = vector.broadcast %cst_87 : bf16 to vector<16x7x64xbf16>
    %100 = tpu.concatenate %98, %97, %99 in 1 : vector<16x1x64xbf16>, vector<16x16x64xbf16>, vector<16x7x64xbf16> -> vector<16x24x64xbf16>
    %cst_88 = arith.constant 0.000000e+00 : bf16
    %101 = vector.broadcast %cst_88 : bf16 to vector<1x24x64xbf16>
    %102 = vector.extract_strided_slice %100 {offsets = [0, 0, 0], sizes = [15, 24, 64], strides = [1, 1, 1]} : vector<16x24x64xbf16> to vector<15x24x64xbf16>
    %103 = tpu.concatenate %101, %102 in 0 : vector<1x24x64xbf16>, vector<15x24x64xbf16> -> vector<16x24x64xbf16>
    %c0_89 = arith.constant 0 : index
    %c0_90 = arith.constant 0 : index
    %c0_91 = arith.constant 0 : index
    %104 = vector.load %arg10[%c0_89, %c0_90, %c0_91] : memref<16x24x192xbf16, #tpu.memory_space<vmem>>, vector<16x24x64xbf16>
    tpu.vector_store %arg10[%c0_89, %c0_90, %c0_91], %103 {strides = array<i32>} : memref<16x24x192xbf16, #tpu.memory_space<vmem>>, vector<16x24x64xbf16>,
    %c0_92 = arith.constant 0 : index
    %c0_93 = arith.constant 0 : index
    %c64_94 = arith.constant 64 : index
    %105 = vector.load %arg10[%c0_92, %c0_93, %c64_94] : memref<16x24x192xbf16, #tpu.memory_space<vmem>>, vector<16x24x64xbf16>
    tpu.vector_store %arg10[%c0_92, %c0_93, %c64_94], %100 {strides = array<i32>} : memref<16x24x192xbf16, #tpu.memory_space<vmem>>, vector<16x24x64xbf16>,
    %106 = vector.extract_strided_slice %100 {offsets = [1, 0, 0], sizes = [15, 24, 64], strides = [1, 1, 1]} : vector<16x24x64xbf16> to vector<15x24x64xbf16>
    %107 = tpu.concatenate %106, %101 in 0 : vector<15x24x64xbf16>, vector<1x24x64xbf16> -> vector<16x24x64xbf16>
    %c0_95 = arith.constant 0 : index
    %c0_96 = arith.constant 0 : index
    %c128_97 = arith.constant 128 : index
    %108 = vector.load %arg10[%c0_95, %c0_96, %c128_97] : memref<16x24x192xbf16, #tpu.memory_space<vmem>>, vector<16x24x64xbf16>
    tpu.vector_store %arg10[%c0_95, %c0_96, %c128_97], %107 {strides = array<i32>} : memref<16x24x192xbf16, #tpu.memory_space<vmem>>, vector<16x24x64xbf16>,
    %cst_98 = arith.constant 0.000000e+00 : f32
    %109 = vector.broadcast %cst_98 : f32 to vector<256x3xf32>
    %c0_99 = arith.constant 0 : index
    %c0_100 = arith.constant 0 : index
    %c0_101 = arith.constant 0 : index
    %110 = vector.load %arg10[%c0_99, %c0_100, %c0_101] : memref<16x24x192xbf16, #tpu.memory_space<vmem>>, vector<16x16x192xbf16>
    %111 = vector.shape_cast %110 : vector<16x16x192xbf16> to vector<256x192xbf16>
    %c0_102 = arith.constant 0 : index
    %c0_103 = arith.constant 0 : index
    %c0_104 = arith.constant 0 : index
    %112 = vector.load %arg6[%c0_102, %c0_103, %c0_104] : memref<3x192x3xbf16, #tpu.memory_space<vmem>>, vector<1x192x3xbf16>
    %113 = vector.shape_cast %112 : vector<1x192x3xbf16> to vector<192x3xbf16>
    %cst_105 = arith.constant dense<0.000000e+00> : vector<256x3xf32>
    %114 = tpu.matmul %111, %113, %cst_105 {dimension_numbers = #tpu.dot_dimension_numbers<[1], [0], [0], [1], [0, 0, 1, 1], [], []>} : vector<256x192xbf16>, vector<192x3xbf16>, vector<256x3xf32> -> vector<256x3xf32>
    %115 = arith.addf %109, %114 : vector<256x3xf32>
    %c0_106 = arith.constant 0 : index
    %c1_107 = arith.constant 1 : index
    %c0_108 = arith.constant 0 : index
    %116 = vector.load %arg10[%c0_106, %c1_107, %c0_108] : memref<16x24x192xbf16, #tpu.memory_space<vmem>>, vector<16x16x192xbf16>
    %117 = vector.shape_cast %116 : vector<16x16x192xbf16> to vector<256x192xbf16>
    %c1_109 = arith.constant 1 : index
    %c0_110 = arith.constant 0 : index
    %c0_111 = arith.constant 0 : index
    %118 = vector.load %arg6[%c1_109, %c0_110, %c0_111] : memref<3x192x3xbf16, #tpu.memory_space<vmem>>, vector<1x192x3xbf16>
    %119 = vector.shape_cast %118 : vector<1x192x3xbf16> to vector<192x3xbf16>
    %cst_112 = arith.constant dense<0.000000e+00> : vector<256x3xf32>
    %120 = tpu.matmul %117, %119, %cst_112 {dimension_numbers = #tpu.dot_dimension_numbers<[1], [0], [0], [1], [0, 0, 1, 1], [], []>} : vector<256x192xbf16>, vector<192x3xbf16>, vector<256x3xf32> -> vector<256x3xf32>
    %121 = arith.addf %115, %120 : vector<256x3xf32>
    %c0_113 = arith.constant 0 : index
    %c2_114 = arith.constant 2 : index
    %c0_115 = arith.constant 0 : index
    %122 = vector.load %arg10[%c0_113, %c2_114, %c0_115] : memref<16x24x192xbf16, #tpu.memory_space<vmem>>, vector<16x16x192xbf16>
    %123 = vector.shape_cast %122 : vector<16x16x192xbf16> to vector<256x192xbf16>
    %c2_116 = arith.constant 2 : index
    %c0_117 = arith.constant 0 : index
    %c0_118 = arith.constant 0 : index
    %124 = vector.load %arg6[%c2_116, %c0_117, %c0_118] : memref<3x192x3xbf16, #tpu.memory_space<vmem>>, vector<1x192x3xbf16>
    %125 = vector.shape_cast %124 : vector<1x192x3xbf16> to vector<192x3xbf16>
    %cst_119 = arith.constant dense<0.000000e+00> : vector<256x3xf32>
    %126 = tpu.matmul %123, %125, %cst_119 {dimension_numbers = #tpu.dot_dimension_numbers<[1], [0], [0], [1], [0, 0, 1, 1], [], []>} : vector<256x192xbf16>, vector<192x3xbf16>, vector<256x3xf32> -> vector<256x3xf32>
    %127 = arith.addf %121, %126 : vector<256x3xf32>
    %c0_120 = arith.constant 0 : index
    %c0_121 = arith.constant 0 : index
    %128 = vector.load %arg7[%c0_120, %c0_121] : memref<1x3xf32, #tpu.memory_space<vmem>>, vector<1x3xf32>
    %129 = vector.broadcast %128 : vector<1x3xf32> to vector<256x3xf32>
    %130 = arith.addf %127, %129 : vector<256x3xf32>
    %131 = tpu.transpose %130, [1, 0] : vector<256x3xf32> -> vector<3x256xf32>
    %132 = arith.addf %1, %131 : vector<3x256xf32>
    %cst_122 = arith.constant 0.000000e+00 : f32
    %cst_123 = arith.constant 1.000000e+00 : f32
    %133 = vector.broadcast %cst_122 : f32 to vector<3x256xf32>
    %134 = arith.maximumf %133, %132 : vector<3x256xf32>
    %135 = vector.broadcast %cst_123 : f32 to vector<3x256xf32>
    %136 = arith.minimumf %135, %134 : vector<3x256xf32>
    %c0_124 = arith.constant 0 : index
    %c0_125 = arith.constant 0 : index
    %c0_126 = arith.constant 0 : index
    %137 = vector.load %arg8[%c0_124, %c0_125, %c0_126] : memref<1x3x256xf32, #tpu.memory_space<vmem>>, vector<1x3x256xf32>
    %138 = vector.shape_cast %137 : vector<1x3x256xf32> to vector<3x256xf32>
    %139 = vector.shape_cast %136 : vector<3x256xf32> to vector<1x3x256xf32>
    tpu.vector_store %arg8[%c0_124, %c0_125, %c0_126], %139 {strides = array<i32>} : memref<1x3x256xf32, #tpu.memory_space<vmem>>, vector<1x3x256xf32>,
    return
  }
  func.func @transform_0(%arg0: i32) -> (i32, i32, i32) {
    %c0_i32 = arith.constant 0 : i32
    %c0_i32_0 = arith.constant 0 : i32
    %c0_i32_1 = arith.constant 0 : i32
    return %arg0, %c0_i32, %c0_i32_0 : i32, i32, i32
  }
  func.func @transform_1(%arg0: i32) -> (i32, i32, i32) {
    %c0_i32 = arith.constant 0 : i32
    %c0_i32_0 = arith.constant 0 : i32
    %c0_i32_1 = arith.constant 0 : i32
    %c0_i32_2 = arith.constant 0 : i32
    return %c0_i32, %c0_i32_0, %c0_i32_1 : i32, i32, i32
  }
  func.func @transform_2(%arg0: i32) -> (i32, i32) {
    %c0_i32 = arith.constant 0 : i32
    %c0_i32_0 = arith.constant 0 : i32
    %c0_i32_1 = arith.constant 0 : i32
    return %c0_i32, %c0_i32_0 : i32, i32
  }
  func.func @transform_3(%arg0: i32) -> (i32, i32) {
    %c0_i32 = arith.constant 0 : i32
    %c0_i32_0 = arith.constant 0 : i32
    %c0_i32_1 = arith.constant 0 : i32
    return %c0_i32, %c0_i32_0 : i32, i32
  }
  func.func @transform_4(%arg0: i32) -> (i32, i32) {
    %c0_i32 = arith.constant 0 : i32
    %c0_i32_0 = arith.constant 0 : i32
    %c0_i32_1 = arith.constant 0 : i32
    return %c0_i32, %c0_i32_0 : i32, i32
  }
  func.func @transform_5(%arg0: i32) -> (i32, i32, i32) {
    %c0_i32 = arith.constant 0 : i32
    %c0_i32_0 = arith.constant 0 : i32
    %c0_i32_1 = arith.constant 0 : i32
    %c0_i32_2 = arith.constant 0 : i32
    return %c0_i32, %c0_i32_0, %c0_i32_1 : i32, i32, i32
  }
  func.func @transform_6(%arg0: i32) -> (i32, i32) {
    %c0_i32 = arith.constant 0 : i32
    %c0_i32_0 = arith.constant 0 : i32
    %c0_i32_1 = arith.constant 0 : i32
    return %c0_i32, %c0_i32_0 : i32, i32
  }
  func.func @transform_7(%arg0: i32) -> (i32, i32, i32) {
    %c0_i32 = arith.constant 0 : i32
    %c0_i32_0 = arith.constant 0 : i32
    %c0_i32_1 = arith.constant 0 : i32
    return %arg0, %c0_i32, %c0_i32_0 : i32, i32, i32
  }
}

</mosaic_0001>

<llo_original>
// kernel: tpu_custom_call.1
$region0: #{tpu_custom_call.1}
  #allocation0 [shape = 'u32[]', space=smem, size = 0x4, offset = 0x4, fixed_abs, tag = 'smem constant byte address 0x4 - core index']
  #allocation1 [shape = 'u32[144,128]{1,0:T(1,128)}', space=vmem, size = 0x12000, scoped, tag = 'internal scratch']
  #allocation2 [shape = 'bf16[18,18,3]{2,1,0:T(8,128)(2,1)}', space=vmem, size = 0x1b000, scoped, tag = 'scratch operand']
  #allocation3 [shape = 'bf16[16,24,192]{2,1,0:T(8,128)(2,1)}', space=vmem, size = 0x30000, scoped, tag = 'scratch operand']
  %s0 = inlined_call_operand.vmem [shape: f32[2,3,256], index: 0, kind: input, shape index: {}]
  %s1 = inlined_call_operand.vmem [shape: bf16[9,3,64], index: 1, kind: input, shape index: {}]
  %s2 = inlined_call_operand.vmem [shape: f32[1,64], index: 2, kind: input, shape index: {}]
  %s3 = inlined_call_operand.vmem [shape: bf16[192,192], index: 3, kind: input, shape index: {}]
  %s4 = inlined_call_operand.vmem [shape: f32[1,64], index: 4, kind: input, shape index: {}]
  %s5 = inlined_call_operand.vmem [shape: bf16[3,192,3], index: 5, kind: input, shape index: {}]
  %s6 = inlined_call_operand.vmem [shape: f32[1,3], index: 6, kind: input, shape index: {}]
  %s7 = inlined_call_operand.vmem [shape: f32[2,3,256], index: 7, kind: output, shape index: {}]
  %s8 = sld [smem:[#allocation0]]
  $region61: #{tpu_custom_call.1} parent=0
    _
  %s10 = ssub.s32 1, %s8
  %s11 = scalar_select 0, %s10, %s8
  loop: start=0, step=1, limit=4
  $region2: #{tpu_custom_call.1} parent=0 // loop_pre_header
    _
  $region3: #{tpu_custom_call.1} parent=0 // loop_header
    %s13 = sphi 0, %s17
    %p14 = scmp.ge.s32.totalorder %s13, 4
    %s23 = sphi 0, %s25
    %s26 = sphi 0, %s23
    %s27 = sphi 0, %s26
    %s43 = sphi 0, %s27
    %s47 = sphi 0, %s47
    %s49 = sphi 0, %s47
    %s50 = sphi 0, %s49
    %s64 = sphi 0, %s50
    %s68 = sphi 0, %s68
    %s70 = sphi 0, %s68
    %s71 = sphi 0, %s70
    %s85 = sphi 0, %s71
    %s89 = sphi 0, %s89
    %s91 = sphi 0, %s89
    %s92 = sphi 0, %s91
    %s106 = sphi 0, %s92
    %s110 = sphi 0, %s110
    %s112 = sphi 0, %s110
    %s113 = sphi 0, %s112
    %s127 = sphi 0, %s113
    %s131 = sphi 0, %s131
    %s133 = sphi 0, %s131
    %s134 = sphi 0, %s133
    %s148 = sphi 0, %s134
    %s152 = sphi 0, %s152
    %s154 = sphi 0, %s152
    %s155 = sphi 0, %s154
    %s169 = sphi 0, %s155
    %s175 = sphi 0, %s177
    %s178 = sphi 0, %s175
    %s179 = sphi 0, %s178
    %s195 = sphi 0, %s179
  $region4: #{tpu_custom_call.1} parent=0 // loop_header_branch
    %16 = sbr.rel (%p14) target = $region8
  $region5: #{tpu_custom_call.1} parent=0 // loop_body
    %s18 = ssub.s32 %s13, 1
    %s19 = ssub.s32 %s13, 2
    %s20 = sadd.s32 %s13, 1
    %s21 = ssub.s32 %s13, %s20
    %p22 = scmp.eq.s32.totalorder %s21, 0
    %s24 = sadd.s32 %s23, 1
    %s25 = scalar_select %p22, %s23, %s24
    %p28 = pneg %p22
    %p29 = scmp.eq.s32.totalorder %s13, 1
    %p30 = por %p28, %p29
    %p31 = scmp.ne.s32.totalorder %s23, %s26
    %p32 = scmp.eq.s32.totalorder %s13, 0
    %p33 = por %p31, %p32
    %p34 = scmp.ne.s32.totalorder %s23, %s26
    %p35 = scmp.eq.s32.totalorder %s18, 1
    %p36 = por %p34, %p35
    %p37 = scmp.ne.s32.totalorder %s26, %s27
    %p38 = scmp.eq.s32.totalorder %s18, 0
    %p39 = por %p37, %p38
    %p40 = scmp.ne.s32.totalorder %s26, %s27
    %p41 = scmp.eq.s32.totalorder %s19, 1
    %p42 = por %p40, %p41
    %p44 = scmp.ne.s32.totalorder %s27, %s43
    %p45 = scmp.eq.s32.totalorder %s19, 0
    %p46 = por %p44, %p45
    %s48 = sadd.s32 %s47, 1
    %p51 = scmp.eq.s32.totalorder %s13, 1
    %p52 = scmp.ne.s32.totalorder %s47, %s49
    %p53 = scmp.eq.s32.totalorder %s13, 0
    %p54 = por %p52, %p53
    %p55 = scmp.ne.s32.totalorder %s47, %s49
    %p56 = scmp.eq.s32.totalorder %s18, 1
    %p57 = por %p55, %p56
    %p58 = scmp.ne.s32.totalorder %s49, %s50
    %p59 = scmp.eq.s32.totalorder %s18, 0
    %p60 = por %p58, %p59
    %p61 = scmp.ne.s32.totalorder %s49, %s50
    %p62 = scmp.eq.s32.totalorder %s19, 1
    %p63 = por %p61, %p62
    %p65 = scmp.ne.s32.totalorder %s50, %s64
    %p66 = scmp.eq.s32.totalorder %s19, 0
    %p67 = por %p65, %p66
    %s69 = sadd.s32 %s68, 1
    %p72 = scmp.eq.s32.totalorder %s13, 1
    %p73 = scmp.ne.s32.totalorder %s68, %s70
    %p74 = scmp.eq.s32.totalorder %s13, 0
    %p75 = por %p73, %p74
    %p76 = scmp.ne.s32.totalorder %s68, %s70
    %p77 = scmp.eq.s32.totalorder %s18, 1
    %p78 = por %p76, %p77
    %p79 = scmp.ne.s32.totalorder %s70, %s71
    %p80 = scmp.eq.s32.totalorder %s18, 0
    %p81 = por %p79, %p80
    %p82 = scmp.ne.s32.totalorder %s70, %s71
    %p83 = scmp.eq.s32.totalorder %s19, 1
    %p84 = por %p82, %p83
    %p86 = scmp.ne.s32.totalorder %s71, %s85
    %p87 = scmp.eq.s32.totalorder %s19, 0
    %p88 = por %p86, %p87
    %s90 = sadd.s32 %s89, 1
    %p93 = scmp.eq.s32.totalorder %s13, 1
    %p94 = scmp.ne.s32.totalorder %s89, %s91
    %p95 = scmp.eq.s32.totalorder %s13, 0
    %p96 = por %p94, %p95
    %p97 = scmp.ne.s32.totalorder %s89, %s91
    %p98 = scmp.eq.s32.totalorder %s18, 1
    %p99 = por %p97, %p98
    %p100 = scmp.ne.s32.totalorder %s91, %s92
    %p101 = scmp.eq.s32.totalorder %s18, 0
    %p102 = por %p100, %p101
    %p103 = scmp.ne.s32.totalorder %s91, %s92
    %p104 = scmp.eq.s32.totalorder %s19, 1
    %p105 = por %p103, %p104
    %p107 = scmp.ne.s32.totalorder %s92, %s106
    %p108 = scmp.eq.s32.totalorder %s19, 0
    %p109 = por %p107, %p108
    %s111 = sadd.s32 %s110, 1
    %p114 = scmp.eq.s32.totalorder %s13, 1
    %p115 = scmp.ne.s32.totalorder %s110, %s112
    %p116 = scmp.eq.s32.totalorder %s13, 0
    %p117 = por %p115, %p116
    %p118 = scmp.ne.s32.totalorder %s110, %s112
    %p119 = scmp.eq.s32.totalorder %s18, 1
    %p120 = por %p118, %p119
    %p121 = scmp.ne.s32.totalorder %s112, %s113
    %p122 = scmp.eq.s32.totalorder %s18, 0
    %p123 = por %p121, %p122
    %p124 = scmp.ne.s32.totalorder %s112, %s113
    %p125 = scmp.eq.s32.totalorder %s19, 1
    %p126 = por %p124, %p125
    %p128 = scmp.ne.s32.totalorder %s113, %s127
    %p129 = scmp.eq.s32.totalorder %s19, 0
    %p130 = por %p128, %p129
    %s132 = sadd.s32 %s131, 1
    %p135 = scmp.eq.s32.totalorder %s13, 1
    %p136 = scmp.ne.s32.totalorder %s131, %s133
    %p137 = scmp.eq.s32.totalorder %s13, 0
    %p138 = por %p136, %p137
    %p139 = scmp.ne.s32.totalorder %s131, %s133
    %p140 = scmp.eq.s32.totalorder %s18, 1
    %p141 = por %p139, %p140
    %p142 = scmp.ne.s32.totalorder %s133, %s134
    %p143 = scmp.eq.s32.totalorder %s18, 0
    %p144 = por %p142, %p143
    %p145 = scmp.ne.s32.totalorder %s133, %s134
    %p146 = scmp.eq.s32.totalorder %s19, 1
    %p147 = por %p145, %p146
    %p149 = scmp.ne.s32.totalorder %s134, %s148
    %p150 = scmp.eq.s32.totalorder %s19, 0
    %p151 = por %p149, %p150
    %s153 = sadd.s32 %s152, 1
    %p156 = scmp.eq.s32.totalorder %s13, 1
    %p157 = scmp.ne.s32.totalorder %s152, %s154
    %p158 = scmp.eq.s32.totalorder %s13, 0
    %p159 = por %p157, %p158
    %p160 = scmp.ne.s32.totalorder %s152, %s154
    %p161 = scmp.eq.s32.totalorder %s18, 1
    %p162 = por %p160, %p161
    %p163 = scmp.ne.s32.totalorder %s154, %s155
    %p164 = scmp.eq.s32.totalorder %s18, 0
    %p165 = por %p163, %p164
    %p166 = scmp.ne.s32.totalorder %s154, %s155
    %p167 = scmp.eq.s32.totalorder %s19, 1
    %p168 = por %p166, %p167
    %p170 = scmp.ne.s32.totalorder %s155, %s169
    %p171 = scmp.eq.s32.totalorder %s19, 0
    %p172 = por %p170, %p171
    %s173 = ssub.s32 %s13, %s20
    %p174 = scmp.eq.s32.totalorder %s173, 0
    %s176 = sadd.s32 %s175, 1
    %s177 = scalar_select %p174, %s175, %s176
    %p180 = pneg %p174
    %p181 = scmp.eq.s32.totalorder %s13, 1
    %p182 = por %p180, %p181
    %p183 = scmp.ne.s32.totalorder %s175, %s178
    %p184 = scmp.eq.s32.totalorder %s13, 0
    %p185 = por %p183, %p184
    %p186 = scmp.ne.s32.totalorder %s175, %s178
    %p187 = scmp.eq.s32.totalorder %s18, 1
    %p188 = por %p186, %p187
    %p189 = scmp.ne.s32.totalorder %s178, %s179
    %p190 = scmp.eq.s32.totalorder %s18, 0
    %p191 = por %p189, %p190
    %p192 = scmp.ne.s32.totalorder %s178, %s179
    %p193 = scmp.eq.s32.totalorder %s19, 1
    %p194 = por %p192, %p193
    %p196 = scmp.ne.s32.totalorder %s179, %s195
    %p197 = scmp.eq.s32.totalorder %s19, 0
    %p198 = por %p196, %p197
    %p199 = scmp.le.s32.totalorder 1, %s13
    %p200 = scmp.lt.s32.totalorder %s13, 3
    %p201 = pnand %p199, %p200
    %p202 = pneg %p201
    // Predicated region
    $region9: #{tpu_custom_call.1} parent=5 // pred_check
      _
    $region10: #{tpu_custom_call.1} parent=5 // pred_check_branch
      %204 = sbr.rel (%p201) target = $region12
    $region11: #{tpu_custom_call.1} parent=5 // pred_region
      %s205 = ssub.s32 %s13, 1
      // Predicated region
      $region13: #{tpu_custom_call.1} parent=11 // pred_check
        %p206 = pneg %p60
      $region14: #{tpu_custom_call.1} parent=11 // pred_check_branch
        %208 = sbr.rel (%p206) target = $region16
      $region15: #{tpu_custom_call.1} parent=11 // pred_region
        _
      $region16: #{tpu_custom_call.1} parent=11 // pred_fallthru
        _
      // Predicated region
      $region17: #{tpu_custom_call.1} parent=11 // pred_check
        %p209 = pneg %p81
      $region18: #{tpu_custom_call.1} parent=11 // pred_check_branch
        %211 = sbr.rel (%p209) target = $region20
      $region19: #{tpu_custom_call.1} parent=11 // pred_region
        _
      $region20: #{tpu_custom_call.1} parent=11 // pred_fallthru
        _
      // Predicated region
      $region21: #{tpu_custom_call.1} parent=11 // pred_check
        %p212 = pneg %p102
      $region22: #{tpu_custom_call.1} parent=11 // pred_check_branch
        %214 = sbr.rel (%p212) target = $region24
      $region23: #{tpu_custom_call.1} parent=11 // pred_region
        _
      $region24: #{tpu_custom_call.1} parent=11 // pred_fallthru
        _
      // Predicated region
      $region25: #{tpu_custom_call.1} parent=11 // pred_check
        %p215 = pneg %p123
      $region26: #{tpu_custom_call.1} parent=11 // pred_check_branch
        %217 = sbr.rel (%p215) target = $region28
      $region27: #{tpu_custom_call.1} parent=11 // pred_region
        _
      $region28: #{tpu_custom_call.1} parent=11 // pred_fallthru
        _
      // Predicated region
      $region29: #{tpu_custom_call.1} parent=11 // pred_check
        %p218 = pneg %p144
      $region30: #{tpu_custom_call.1} parent=11 // pred_check_branch
        %220 = sbr.rel (%p218) target = $region32
      $region31: #{tpu_custom_call.1} parent=11 // pred_region
        _
      $region32: #{tpu_custom_call.1} parent=11 // pred_fallthru
        _
      // Predicated region
      $region33: #{tpu_custom_call.1} parent=11 // pred_check
        %p221 = pneg %p165
      $region34: #{tpu_custom_call.1} parent=11 // pred_check_branch
        %223 = sbr.rel (%p221) target = $region36
      $region35: #{tpu_custom_call.1} parent=11 // pred_region
        _
      $region36: #{tpu_custom_call.1} parent=11 // pred_fallthru
        _
    $region12: #{tpu_custom_call.1} parent=5 // pred_fallthru
      _
    %p224 = scmp.lt.s32.totalorder %s13, 2
    // Predicated region
    $region37: #{tpu_custom_call.1} parent=5 // pred_check
      %p225 = pneg %p224
    $region38: #{tpu_custom_call.1} parent=5 // pred_check_branch
      %227 = sbr.rel (%p225) target = $region40
    $region39: #{tpu_custom_call.1} parent=5 // pred_region
      // Predicated region
      $region41: #{tpu_custom_call.1} parent=39 // pred_check
        %p228 = pneg %p33
      $region42: #{tpu_custom_call.1} parent=39 // pred_check_branch
        %230 = sbr.rel (%p228) target = $region44
      $region43: #{tpu_custom_call.1} parent=39 // pred_region
        %p231 = scmp.lt.s32.totalorder %s13, 1
        %s232 = scalar_select %p231, %s13, 1
        %s233 = smul.addr %s232, 2
        %s234 = smul.addr %s233, 4
        %s235 = scalar_lea.vmem %s0, %s234
      $region44: #{tpu_custom_call.1} parent=39 // pred_fallthru
        _
    $region40: #{tpu_custom_call.1} parent=5 // pred_fallthru
      _
    %p236 = scmp.le.s32.totalorder 1, %s13
    %p237 = scmp.lt.s32.totalorder %s13, 3
    %p238 = pnand %p236, %p237
    %p239 = pneg %p238
    // Predicated region
    $region45: #{tpu_custom_call.1} parent=5 // pred_check
      _
    $region46: #{tpu_custom_call.1} parent=5 // pred_check_branch
      %241 = sbr.rel (%p238) target = $region48
    $region47: #{tpu_custom_call.1} parent=5 // pred_region
      %s242 = ssub.s32 %s13, 1
      %p243 = scmp.lt.s32.totalorder %s18, 1
      %s244 = scalar_select %p243, %s18, 1
      %s245 = smul.addr %s244, 2
      %s246 = smul.addr %s245, 4
      %s247 = scalar_lea.vmem %s0, %s246
      %p248 = pneg %p39
      %p249 = pneg %p36
      %p250 = pneg %p60
      %p251 = pneg %p57
      %p252 = pneg %p81
      %p253 = pneg %p78
      %p254 = pneg %p102
      %p255 = pneg %p99
      %p256 = pneg %p123
      %p257 = pneg %p120
      %p258 = pneg %p144
      %p259 = pneg %p141
      %p260 = pneg %p165
      %p261 = pneg %p162
      %p262 = pneg %p191
      %p263 = pneg %p188
      %p264 = scmp.lt.s32.totalorder %s18, 1
      %s265 = scalar_select %p264, %s18, 1
      %s266 = smul.addr %s265, 2
      %s267 = smul.addr %s266, 4
      %s268 = scalar_lea.vmem %s7, %s267
      %p269 = scmp.lt.s32.totalorder %s18, 1
      %s270 = scalar_select %p269, %s18, 1
      %s271 = smul.addr %s270, 2
      %s272 = smul.addr %s271, 4
      %s273 = scalar_lea.vmem %s0, %s272
      %p274 = scmp.lt.s32.totalorder %s18, 1
      %s275 = scalar_select %p274, %s18, 1
      %s276 = smul.addr %s275, 2
      %s277 = smul.addr %s276, 4
      %s278 = scalar_lea.vmem %s7, %s277
      %v280 = vld [vmem:[%s273] sm:$0x77]
      %v282 = vcombine.high %v280, %v280
      %284 = vxpose.xlu0.b32.start [1/16] %v280, 128
      %285 = vxpose.xlu0.b32.cont [2/16] 0.0, 128
      %286 = vxpose.xlu0.b32.cont [3/16] 0.0, 128
      %287 = vxpose.xlu0.b32.cont [4/16] 0.0, 128
      %288 = vxpose.xlu0.b32.cont [5/16] 0.0, 128
      %289 = vxpose.xlu0.b32.cont [6/16] 0.0, 128
      %290 = vxpose.xlu0.b32.cont [7/16] 0.0, 128
      %291 = vxpose.xlu0.b32.cont [8/16] 0.0, 128
      %292 = vxpose.xlu0.b32.cont [9/16] 0.0, 128
      %293 = vxpose.xlu0.b32.cont [10/16] 0.0, 128
      %294 = vxpose.xlu0.b32.cont [11/16] 0.0, 128
      %295 = vxpose.xlu0.b32.cont [12/16] 0.0, 128
      %296 = vxpose.xlu0.b32.cont [13/16] 0.0, 128
      %297 = vxpose.xlu0.b32.cont [14/16] 0.0, 128
      %298 = vxpose.xlu0.b32.cont [15/16] 0.0, 128
      %299 = vxpose.xlu0.b32.end [16/16] 0.0, 128
      %v300 = vpop.trf.xlu0
      %v301 = vpop.trf.xlu0
      %v302 = vpop.trf.xlu0
      %v303 = vpop.trf.xlu0
      %v304 = vpop.trf.xlu0
      %v305 = vpop.trf.xlu0
      %v306 = vpop.trf.xlu0
      %v307 = vpop.trf.xlu0
      %v308 = vpop.trf.xlu0
      %v309 = vpop.trf.xlu0
      %v310 = vpop.trf.xlu0
      %v311 = vpop.trf.xlu0
      %v312 = vpop.trf.xlu0
      %v313 = vpop.trf.xlu0
      %v314 = vpop.trf.xlu0
      %v315 = vpop.trf.xlu0
      %316 = vxpose.xlu0.b32.start [1/16] %v282, 128
      %317 = vxpose.xlu0.b32.cont [2/16] 0.0, 128
      %318 = vxpose.xlu0.b32.cont [3/16] 0.0, 128
      %319 = vxpose.xlu0.b32.cont [4/16] 0.0, 128
      %320 = vxpose.xlu0.b32.cont [5/16] 0.0, 128
      %321 = vxpose.xlu0.b32.cont [6/16] 0.0, 128
      %322 = vxpose.xlu0.b32.cont [7/16] 0.0, 128
      %323 = vxpose.xlu0.b32.cont [8/16] 0.0, 128
      %324 = vxpose.xlu0.b32.cont [9/16] 0.0, 128
      %325 = vxpose.xlu0.b32.cont [10/16] 0.0, 128
      %326 = vxpose.xlu0.b32.cont [11/16] 0.0, 128
      %327 = vxpose.xlu0.b32.cont [12/16] 0.0, 128
      %328 = vxpose.xlu0.b32.cont [13/16] 0.0, 128
      %329 = vxpose.xlu0.b32.cont [14/16] 0.0, 128
      %330 = vxpose.xlu0.b32.cont [15/16] 0.0, 128
      %331 = vxpose.xlu0.b32.end [16/16] 0.0, 128
      %v332 = vpop.trf.xlu0
      %v333 = vpop.trf.xlu0
      %v334 = vpop.trf.xlu0
      %v335 = vpop.trf.xlu0
      %v336 = vpop.trf.xlu0
      %v337 = vpop.trf.xlu0
      %v338 = vpop.trf.xlu0
      %v339 = vpop.trf.xlu0
      %v340 = vpop.trf.xlu0
      %v341 = vpop.trf.xlu0
      %v342 = vpop.trf.xlu0
      %v343 = vpop.trf.xlu0
      %v344 = vpop.trf.xlu0
      %v345 = vpop.trf.xlu0
      %v346 = vpop.trf.xlu0
      %v347 = vpop.trf.xlu0
      %v348 = vpack.c.bf16 %v301, %v300
      %v349 = vpack.c.bf16 %v303, %v302
      %v350 = vpack.c.bf16 %v305, %v304
      %v351 = vpack.c.bf16 %v307, %v306
      %v352 = vpack.c.bf16 %v309, %v308
      %v353 = vpack.c.bf16 %v311, %v310
      %v354 = vpack.c.bf16 %v313, %v312
      %v355 = vpack.c.bf16 %v315, %v314
      %v356 = vpack.c.bf16 %v333, %v332
      %v357 = vpack.c.bf16 %v335, %v334
      %v358 = vpack.c.bf16 %v337, %v336
      %v359 = vpack.c.bf16 %v339, %v338
      %v360 = vpack.c.bf16 %v341, %v340
      %v361 = vpack.c.bf16 %v343, %v342
      %v362 = vpack.c.bf16 %v345, %v344
      %v363 = vpack.c.bf16 %v347, %v346
      %vm364 = vcmask 19456
      %365 = vst.msk [vmem:[#allocation2] sm:$0xf] %vm364, 0
      %366 = vst.msk [vmem:[#allocation2 + $0x4] sm:$0xf] %vm364, 0
      %vm367 = vcmask 16384
      %368 = vst.msk [vmem:[#allocation2 + $0x8] sm:$0x1] %vm367, 0
      %369 = vst.msk [vmem:[#allocation2 + $0xc] sm:$0xf] %vm364, 0
      %370 = vst.msk [vmem:[#allocation2 + $0x10] sm:$0xf] %vm364, 0
      %371 = vst.msk [vmem:[#allocation2 + $0x14] sm:$0x1] %vm367, 0
      %372 = vst.msk [vmem:[#allocation2 + $0x18] sm:$0xf] %vm364, 0
      %373 = vst.msk [vmem:[#allocation2 + $0x1c] sm:$0xf] %vm364, 0
      %374 = vst.msk [vmem:[#allocation2 + $0x20] sm:$0x1] %vm367, 0
      %375 = vst.msk [vmem:[#allocation2 + $0x24] sm:$0xf] %vm364, 0
      %376 = vst.msk [vmem:[#allocation2 + $0x28] sm:$0xf] %vm364, 0
      %377 = vst.msk [vmem:[#allocation2 + $0x2c] sm:$0x1] %vm367, 0
      %378 = vst.msk [vmem:[#allocation2 + $0x30] sm:$0xf] %vm364, 0
      %379 = vst.msk [vmem:[#allocation2 + $0x34] sm:$0xf] %vm364, 0
      %380 = vst.msk [vmem:[#allocation2 + $0x38] sm:$0x1] %vm367, 0
      %381 = vst.msk [vmem:[#allocation2 + $0x3c] sm:$0xf] %vm364, 0
      %382 = vst.msk [vmem:[#allocation2 + $0x40] sm:$0xf] %vm364, 0
      %383 = vst.msk [vmem:[#allocation2 + $0x44] sm:$0x1] %vm367, 0
      %384 = vst.msk [vmem:[#allocation2 + $0x48] sm:$0xf] %vm364, 0
      %385 = vst.msk [vmem:[#allocation2 + $0x4c] sm:$0xf] %vm364, 0
      %386 = vst.msk [vmem:[#allocation2 + $0x50] sm:$0x1] %vm367, 0
      %387 = vst.msk [vmem:[#allocation2 + $0x54] sm:$0xf] %vm364, 0
      %388 = vst.msk [vmem:[#allocation2 + $0x58] sm:$0xf] %vm364, 0
      %389 = vst.msk [vmem:[#allocation2 + $0x5c] sm:$0x1] %vm367, 0
      %390 = vst.msk [vmem:[#allocation2 + $0x60] sm:$0xf] %vm364, 0
      %391 = vst.msk [vmem:[#allocation2 + $0x64] sm:$0xf] %vm364, 0
      %392 = vst.msk [vmem:[#allocation2 + $0x68] sm:$0x1] %vm367, 0
      %393 = vst.msk [vmem:[#allocation2 + $0x6c] sm:$0xf] %vm364, 0
      %394 = vst.msk [vmem:[#allocation2 + $0x70] sm:$0xf] %vm364, 0
      %395 = vst.msk [vmem:[#allocation2 + $0x74] sm:$0x1] %vm367, 0
      %396 = vst.msk [vmem:[#allocation2 + $0x78] sm:$0xf] %vm364, 0
      %397 = vst.msk [vmem:[#allocation2 + $0x7c] sm:$0xf] %vm364, 0
      %398 = vst.msk [vmem:[#allocation2 + $0x80] sm:$0x1] %vm367, 0
      %399 = vst.msk [vmem:[#allocation2 + $0x84] sm:$0xf] %vm364, 0
      %400 = vst.msk [vmem:[#allocation2 + $0x88] sm:$0xf] %vm364, 0
      %401 = vst.msk [vmem:[#allocation2 + $0x8c] sm:$0x1] %vm367, 0
      %402 = vst.msk [vmem:[#allocation2 + $0x90] sm:$0xf] %vm364, 0
      %403 = vst.msk [vmem:[#allocation2 + $0x94] sm:$0xf] %vm364, 0
      %404 = vst.msk [vmem:[#allocation2 + $0x98] sm:$0x1] %vm367, 0
      %405 = vst.msk [vmem:[#allocation2 + $0x9c] sm:$0xf] %vm364, 0
      %406 = vst.msk [vmem:[#allocation2 + $0xa0] sm:$0xf] %vm364, 0
      %407 = vst.msk [vmem:[#allocation2 + $0xa4] sm:$0x1] %vm367, 0
      %408 = vst.msk [vmem:[#allocation2 + $0xa8] sm:$0xf] %vm364, 0
      %409 = vst.msk [vmem:[#allocation2 + $0xac] sm:$0xf] %vm364, 0
      %410 = vst.msk [vmem:[#allocation2 + $0xb0] sm:$0x1] %vm367, 0
      %411 = vst.msk [vmem:[#allocation2 + $0xb4] sm:$0xf] %vm364, 0
      %412 = vst.msk [vmem:[#allocation2 + $0xb8] sm:$0xf] %vm364, 0
      %413 = vst.msk [vmem:[#allocation2 + $0xbc] sm:$0x1] %vm367, 0
      %414 = vst.msk [vmem:[#allocation2 + $0xc0] sm:$0xf] %vm364, 0
      %415 = vst.msk [vmem:[#allocation2 + $0xc4] sm:$0xf] %vm364, 0
      %416 = vst.msk [vmem:[#allocation2 + $0xc8] sm:$0x1] %vm367, 0
      %417 = vst.msk [vmem:[#allocation2 + $0xcc] sm:$0xf] %vm364, 0
      %418 = vst.msk [vmem:[#allocation2 + $0xd0] sm:$0xf] %vm364, 0
      %419 = vst.msk [vmem:[#allocation2 + $0xd4] sm:$0x1] %vm367, 0
      %v436 = vunpack.c.l.b16 %v348
      %v437 = vunpack.c.h.b16 %v348
      %v438 = vunpack.c.l.b16 %v349
      %v439 = vunpack.c.h.b16 %v349
      %v440 = vunpack.c.l.b16 %v350
      %v441 = vunpack.c.h.b16 %v350
      %v442 = vunpack.c.l.b16 %v351
      %v443 = vunpack.c.h.b16 %v351
      %v444 = vunpack.c.l.b16 %v352
      %v445 = vunpack.c.h.b16 %v352
      %v446 = vunpack.c.l.b16 %v353
      %v447 = vunpack.c.h.b16 %v353
      %v448 = vunpack.c.l.b16 %v354
      %v449 = vunpack.c.h.b16 %v354
      %v450 = vunpack.c.l.b16 %v355
      %v451 = vunpack.c.h.b16 %v355
      %v452 = vunpack.c.l.b16 %v356
      %v453 = vunpack.c.h.b16 %v356
      %v454 = vunpack.c.l.b16 %v357
      %v455 = vunpack.c.h.b16 %v357
      %v456 = vunpack.c.l.b16 %v358
      %v457 = vunpack.c.h.b16 %v358
      %v458 = vunpack.c.l.b16 %v359
      %v459 = vunpack.c.h.b16 %v359
      %v460 = vunpack.c.l.b16 %v360
      %v461 = vunpack.c.h.b16 %v360
      %v462 = vunpack.c.l.b16 %v361
      %v463 = vunpack.c.h.b16 %v361
      %v464 = vunpack.c.l.b16 %v362
      %v465 = vunpack.c.h.b16 %v362
      %v466 = vunpack.c.l.b16 %v363
      %v467 = vunpack.c.h.b16 %v363
      %v468 = vpack.c.b16 %v436, %v436
      %v469 = vpack.c.b16 %v437, %v437
      %v470 = vpack.c.b16 %v438, %v438
      %v471 = vpack.c.b16 %v439, %v439
      %v472 = vpack.c.b16 %v440, %v440
      %v473 = vpack.c.b16 %v441, %v441
      %v474 = vpack.c.b16 %v442, %v442
      %v475 = vpack.c.b16 %v443, %v443
      %v476 = vpack.c.b16 %v444, %v444
      %v477 = vpack.c.b16 %v445, %v445
      %v478 = vpack.c.b16 %v446, %v446
      %v479 = vpack.c.b16 %v447, %v447
      %v480 = vpack.c.b16 %v448, %v448
      %v481 = vpack.c.b16 %v449, %v449
      %v482 = vpack.c.b16 %v450, %v450
      %v483 = vpack.c.b16 %v451, %v451
      %v484 = vpack.c.b16 %v452, %v452
      %v485 = vpack.c.b16 %v453, %v453
      %v486 = vpack.c.b16 %v454, %v454
      %v487 = vpack.c.b16 %v455, %v455
      %v488 = vpack.c.b16 %v456, %v456
      %v489 = vpack.c.b16 %v457, %v457
      %v490 = vpack.c.b16 %v458, %v458
      %v491 = vpack.c.b16 %v459, %v459
      %v492 = vpack.c.b16 %v460, %v460
      %v493 = vpack.c.b16 %v461, %v461
      %v494 = vpack.c.b16 %v462, %v462
      %v495 = vpack.c.b16 %v463, %v463
      %v496 = vpack.c.b16 %v464, %v464
      %v497 = vpack.c.b16 %v465, %v465
      %v498 = vpack.c.b16 %v466, %v466
      %v499 = vpack.c.b16 %v467, %v467
      %vm500 = vsmask.f32 256
      %vm501 = vsmask.f32 4368
      %vm502 = vmor %vm500, %vm501
      %v504 = vshrl.u32 %v468, 16
      %v506 = vrot.slane %v504, 7
      %v507 = vshll.u32 %v468, 16
      %v509 = vor.u32 %v506, %v507
      %v510 = vrot.slane %v506, 4
      %v512 = vshrl.u32 %v469, 16
      %v514 = vrot.slane %v512, 7
      %v515 = vshll.u32 %v469, 16
      %v517 = vor.u32 %v514, %v515
      %v518 = vsel %vm502, %v510, %v517
      %v519 = vrot.slane %v514, 4
      %v521 = vshrl.u32 %v470, 16
      %v523 = vrot.slane %v521, 7
      %v524 = vshll.u32 %v470, 16
      %v526 = vor.u32 %v523, %v524
      %v527 = vrot.slane %v523, 4
      %v529 = vshrl.u32 %v471, 16
      %v531 = vrot.slane %v529, 7
      %v532 = vshll.u32 %v471, 16
      %v534 = vor.u32 %v531, %v532
      %v535 = vsel %vm502, %v527, %v534
      %v536 = vrot.slane %v531, 4
      %v538 = vshrl.u32 %v472, 16
      %v540 = vrot.slane %v538, 7
      %v541 = vshll.u32 %v472, 16
      %v543 = vor.u32 %v540, %v541
      %v544 = vrot.slane %v540, 4
      %v546 = vshrl.u32 %v473, 16
      %v548 = vrot.slane %v546, 7
      %v549 = vshll.u32 %v473, 16
      %v551 = vor.u32 %v548, %v549
      %v552 = vsel %vm502, %v544, %v551
      %v553 = vrot.slane %v548, 4
      %v555 = vshrl.u32 %v474, 16
      %v557 = vrot.slane %v555, 7
      %v558 = vshll.u32 %v474, 16
      %v560 = vor.u32 %v557, %v558
      %v561 = vrot.slane %v557, 4
      %v563 = vshrl.u32 %v475, 16
      %v565 = vrot.slane %v563, 7
      %v566 = vshll.u32 %v475, 16
      %v568 = vor.u32 %v565, %v566
      %v569 = vsel %vm502, %v561, %v568
      %v570 = vrot.slane %v565, 4
      %v572 = vshrl.u32 %v476, 16
      %v574 = vrot.slane %v572, 7
      %v575 = vshll.u32 %v476, 16
      %v577 = vor.u32 %v574, %v575
      %v578 = vrot.slane %v574, 4
      %v580 = vshrl.u32 %v477, 16
      %v582 = vrot.slane %v580, 7
      %v583 = vshll.u32 %v477, 16
      %v585 = vor.u32 %v582, %v583
      %v586 = vsel %vm502, %v578, %v585
      %v587 = vrot.slane %v582, 4
      %v589 = vshrl.u32 %v478, 16
      %v591 = vrot.slane %v589, 7
      %v592 = vshll.u32 %v478, 16
      %v594 = vor.u32 %v591, %v592
      %v595 = vrot.slane %v591, 4
      %v597 = vshrl.u32 %v479, 16
      %v599 = vrot.slane %v597, 7
      %v600 = vshll.u32 %v479, 16
      %v602 = vor.u32 %v599, %v600
      %v603 = vsel %vm502, %v595, %v602
      %v604 = vrot.slane %v599, 4
      %v606 = vshrl.u32 %v480, 16
      %v608 = vrot.slane %v606, 7
      %v609 = vshll.u32 %v480, 16
      %v611 = vor.u32 %v608, %v609
      %v612 = vrot.slane %v608, 4
      %v614 = vshrl.u32 %v481, 16
      %v616 = vrot.slane %v614, 7
      %v617 = vshll.u32 %v481, 16
      %v619 = vor.u32 %v616, %v617
      %v620 = vsel %vm502, %v612, %v619
      %v621 = vrot.slane %v616, 4
      %v623 = vshrl.u32 %v482, 16
      %v625 = vrot.slane %v623, 7
      %v626 = vshll.u32 %v482, 16
      %v628 = vor.u32 %v625, %v626
      %v629 = vrot.slane %v625, 4
      %v631 = vshrl.u32 %v483, 16
      %v633 = vrot.slane %v631, 7
      %v634 = vshll.u32 %v483, 16
      %v636 = vor.u32 %v633, %v634
      %v637 = vsel %vm502, %v629, %v636
      %v638 = vrot.slane %v633, 4
      %v640 = vshrl.u32 %v484, 16
      %v642 = vrot.slane %v640, 7
      %v643 = vshll.u32 %v484, 16
      %v645 = vor.u32 %v642, %v643
      %v646 = vrot.slane %v642, 4
      %v648 = vshrl.u32 %v485, 16
      %v650 = vrot.slane %v648, 7
      %v651 = vshll.u32 %v485, 16
      %v653 = vor.u32 %v650, %v651
      %v654 = vsel %vm502, %v646, %v653
      %v655 = vrot.slane %v650, 4
      %v657 = vshrl.u32 %v486, 16
      %v659 = vrot.slane %v657, 7
      %v660 = vshll.u32 %v486, 16
      %v662 = vor.u32 %v659, %v660
      %v663 = vrot.slane %v659, 4
      %v665 = vshrl.u32 %v487, 16
      %v667 = vrot.slane %v665, 7
      %v668 = vshll.u32 %v487, 16
      %v670 = vor.u32 %v667, %v668
      %v671 = vsel %vm502, %v663, %v670
      %v672 = vrot.slane %v667, 4
      %v674 = vshrl.u32 %v488, 16
      %v676 = vrot.slane %v674, 7
      %v677 = vshll.u32 %v488, 16
      %v679 = vor.u32 %v676, %v677
      %v680 = vrot.slane %v676, 4
      %v682 = vshrl.u32 %v489, 16
      %v684 = vrot.slane %v682, 7
      %v685 = vshll.u32 %v489, 16
      %v687 = vor.u32 %v684, %v685
      %v688 = vsel %vm502, %v680, %v687
      %v689 = vrot.slane %v684, 4
      %v691 = vshrl.u32 %v490, 16
      %v693 = vrot.slane %v691, 7
      %v694 = vshll.u32 %v490, 16
      %v696 = vor.u32 %v693, %v694
      %v697 = vrot.slane %v693, 4
      %v699 = vshrl.u32 %v491, 16
      %v701 = vrot.slane %v699, 7
      %v702 = vshll.u32 %v491, 16
      %v704 = vor.u32 %v701, %v702
      %v705 = vsel %vm502, %v697, %v704
      %v706 = vrot.slane %v701, 4
      %v708 = vshrl.u32 %v492, 16
      %v710 = vrot.slane %v708, 7
      %v711 = vshll.u32 %v492, 16
      %v713 = vor.u32 %v710, %v711
      %v714 = vrot.slane %v710, 4
      %v716 = vshrl.u32 %v493, 16
      %v718 = vrot.slane %v716, 7
      %v719 = vshll.u32 %v493, 16
      %v721 = vor.u32 %v718, %v719
      %v722 = vsel %vm502, %v714, %v721
      %v723 = vrot.slane %v718, 4
      %v725 = vshrl.u32 %v494, 16
      %v727 = vrot.slane %v725, 7
      %v728 = vshll.u32 %v494, 16
      %v730 = vor.u32 %v727, %v728
      %v731 = vrot.slane %v727, 4
      %v733 = vshrl.u32 %v495, 16
      %v735 = vrot.slane %v733, 7
      %v736 = vshll.u32 %v495, 16
      %v738 = vor.u32 %v735, %v736
      %v739 = vsel %vm502, %v731, %v738
      %v740 = vrot.slane %v735, 4
      %v742 = vshrl.u32 %v496, 16
      %v744 = vrot.slane %v742, 7
      %v745 = vshll.u32 %v496, 16
      %v747 = vor.u32 %v744, %v745
      %v748 = vrot.slane %v744, 4
      %v750 = vshrl.u32 %v497, 16
      %v752 = vrot.slane %v750, 7
      %v753 = vshll.u32 %v497, 16
      %v755 = vor.u32 %v752, %v753
      %v756 = vsel %vm502, %v748, %v755
      %v757 = vrot.slane %v752, 4
      %v759 = vshrl.u32 %v498, 16
      %v761 = vrot.slane %v759, 7
      %v762 = vshll.u32 %v498, 16
      %v764 = vor.u32 %v761, %v762
      %v765 = vrot.slane %v761, 4
      %v767 = vshrl.u32 %v499, 16
      %v769 = vrot.slane %v767, 7
      %v770 = vshll.u32 %v499, 16
      %v772 = vor.u32 %v769, %v770
      %v773 = vsel %vm502, %v765, %v772
      %v774 = vrot.slane %v769, 4
      %s823 = scalar_lea.vmem [#allocation2], 12
      %vm824 = vcmask 19456
      %vm825 = vsmask.f32 7938
      %vm826 = vmand %vm824, %vm825
      %v827 = vld [vmem:[%s823] sm:$0xf]
      %v828 = vsel %vm826, %v509, %v827
      %829 = vst [vmem:[%s823] sm:$0xf] %v828
      %830 = vst.msk [vmem:[%s823 + $0x4] sm:$0xf] %vm364, %v518
      %vm831 = vcmask 16384
      %vm832 = vmand %vm831, %vm500
      %v833 = vld [vmem:[%s823 + $0x8] sm:$0x1]
      %v834 = vsel %vm832, %v519, %v833
      %835 = vst [vmem:[%s823 + $0x8] sm:$0x1] %v834
      %v836 = vld [vmem:[%s823 + $0xc] sm:$0xf]
      %v837 = vsel %vm826, %v526, %v836
      %838 = vst [vmem:[%s823 + $0xc] sm:$0xf] %v837
      %839 = vst.msk [vmem:[%s823 + $0x10] sm:$0xf] %vm364, %v535
      %v840 = vld [vmem:[%s823 + $0x14] sm:$0x1]
      %v841 = vsel %vm832, %v536, %v840
      %842 = vst [vmem:[%s823 + $0x14] sm:$0x1] %v841
      %v843 = vld [vmem:[%s823 + $0x18] sm:$0xf]
      %v844 = vsel %vm826, %v543, %v843
      %845 = vst [vmem:[%s823 + $0x18] sm:$0xf] %v844
      %846 = vst.msk [vmem:[%s823 + $0x1c] sm:$0xf] %vm364, %v552
      %v847 = vld [vmem:[%s823 + $0x20] sm:$0x1]
      %v848 = vsel %vm832, %v553, %v847
      %849 = vst [vmem:[%s823 + $0x20] sm:$0x1] %v848
      %v850 = vld [vmem:[%s823 + $0x24] sm:$0xf]
      %v851 = vsel %vm826, %v560, %v850
      %852 = vst [vmem:[%s823 + $0x24] sm:$0xf] %v851
      %853 = vst.msk [vmem:[%s823 + $0x28] sm:$0xf] %vm364, %v569
      %v854 = vld [vmem:[%s823 + $0x2c] sm:$0x1]
      %v855 = vsel %vm832, %v570, %v854
      %856 = vst [vmem:[%s823 + $0x2c] sm:$0x1] %v855
      %v857 = vld [vmem:[%s823 + $0x30] sm:$0xf]
      %v858 = vsel %vm826, %v577, %v857
      %859 = vst [vmem:[%s823 + $0x30] sm:$0xf] %v858
      %860 = vst.msk [vmem:[%s823 + $0x34] sm:$0xf] %vm364, %v586
      %v861 = vld [vmem:[%s823 + $0x38] sm:$0x1]
      %v862 = vsel %vm832, %v587, %v861
      %863 = vst [vmem:[%s823 + $0x38] sm:$0x1] %v862
      %v864 = vld [vmem:[%s823 + $0x3c] sm:$0xf]
      %v865 = vsel %vm826, %v594, %v864
      %866 = vst [vmem:[%s823 + $0x3c] sm:$0xf] %v865
      %867 = vst.msk [vmem:[%s823 + $0x40] sm:$0xf] %vm364, %v603
      %v868 = vld [vmem:[%s823 + $0x44] sm:$0x1]
      %v869 = vsel %vm832, %v604, %v868
      %870 = vst [vmem:[%s823 + $0x44] sm:$0x1] %v869
      %v871 = vld [vmem:[%s823 + $0x48] sm:$0xf]
      %v872 = vsel %vm826, %v611, %v871
      %873 = vst [vmem:[%s823 + $0x48] sm:$0xf] %v872
      %874 = vst.msk [vmem:[%s823 + $0x4c] sm:$0xf] %vm364, %v620
      %v875 = vld [vmem:[%s823 + $0x50] sm:$0x1]
      %v876 = vsel %vm832, %v621, %v875
      %877 = vst [vmem:[%s823 + $0x50] sm:$0x1] %v876
      %v878 = vld [vmem:[%s823 + $0x54] sm:$0xf]
      %v879 = vsel %vm826, %v628, %v878
      %880 = vst [vmem:[%s823 + $0x54] sm:$0xf] %v879
      %881 = vst.msk [vmem:[%s823 + $0x58] sm:$0xf] %vm364, %v637
      %v882 = vld [vmem:[%s823 + $0x5c] sm:$0x1]
      %v883 = vsel %vm832, %v638, %v882
      %884 = vst [vmem:[%s823 + $0x5c] sm:$0x1] %v883
      %v885 = vld [vmem:[%s823 + $0x60] sm:$0xf]
      %v886 = vsel %vm826, %v645, %v885
      %887 = vst [vmem:[%s823 + $0x60] sm:$0xf] %v886
      %888 = vst.msk [vmem:[%s823 + $0x64] sm:$0xf] %vm364, %v654
      %v889 = vld [vmem:[%s823 + $0x68] sm:$0x1]
      %v890 = vsel %vm832, %v655, %v889
      %891 = vst [vmem:[%s823 + $0x68] sm:$0x1] %v890
      %v892 = vld [vmem:[%s823 + $0x6c] sm:$0xf]
      %v893 = vsel %vm826, %v662, %v892
      %894 = vst [vmem:[%s823 + $0x6c] sm:$0xf] %v893
      %895 = vst.msk [vmem:[%s823 + $0x70] sm:$0xf] %vm364, %v671
      %v896 = vld [vmem:[%s823 + $0x74] sm:$0x1]
      %v897 = vsel %vm832, %v672, %v896
      %898 = vst [vmem:[%s823 + $0x74] sm:$0x1] %v897
      %v899 = vld [vmem:[%s823 + $0x78] sm:$0xf]
      %v900 = vsel %vm826, %v679, %v899
      %901 = vst [vmem:[%s823 + $0x78] sm:$0xf] %v900
      %902 = vst.msk [vmem:[%s823 + $0x7c] sm:$0xf] %vm364, %v688
      %v903 = vld [vmem:[%s823 + $0x80] sm:$0x1]
      %v904 = vsel %vm832, %v689, %v903
      %905 = vst [vmem:[%s823 + $0x80] sm:$0x1] %v904
      %v906 = vld [vmem:[%s823 + $0x84] sm:$0xf]
      %v907 = vsel %vm826, %v696, %v906
      %908 = vst [vmem:[%s823 + $0x84] sm:$0xf] %v907
      %909 = vst.msk [vmem:[%s823 + $0x88] sm:$0xf] %vm364, %v705
      %v910 = vld [vmem:[%s823 + $0x8c] sm:$0x1]
      %v911 = vsel %vm832, %v706, %v910
      %912 = vst [vmem:[%s823 + $0x8c] sm:$0x1] %v911
      %v913 = vld [vmem:[%s823 + $0x90] sm:$0xf]
      %v914 = vsel %vm826, %v713, %v913
      %915 = vst [vmem:[%s823 + $0x90] sm:$0xf] %v914
      %916 = vst.msk [vmem:[%s823 + $0x94] sm:$0xf] %vm364, %v722
      %v917 = vld [vmem:[%s823 + $0x98] sm:$0x1]
      %v918 = vsel %vm832, %v723, %v917
      %919 = vst [vmem:[%s823 + $0x98] sm:$0x1] %v918
      %v920 = vld [vmem:[%s823 + $0x9c] sm:$0xf]
      %v921 = vsel %vm826, %v730, %v920
      %922 = vst [vmem:[%s823 + $0x9c] sm:$0xf] %v921
      %923 = vst.msk [vmem:[%s823 + $0xa0] sm:$0xf] %vm364, %v739
      %v924 = vld [vmem:[%s823 + $0xa4] sm:$0x1]
      %v925 = vsel %vm832, %v740, %v924
      %926 = vst [vmem:[%s823 + $0xa4] sm:$0x1] %v925
      %v927 = vld [vmem:[%s823 + $0xa8] sm:$0xf]
      %v928 = vsel %vm826, %v747, %v927
      %929 = vst [vmem:[%s823 + $0xa8] sm:$0xf] %v928
      %930 = vst.msk [vmem:[%s823 + $0xac] sm:$0xf] %vm364, %v756
      %v931 = vld [vmem:[%s823 + $0xb0] sm:$0x1]
      %v932 = vsel %vm832, %v757, %v931
      %933 = vst [vmem:[%s823 + $0xb0] sm:$0x1] %v932
      %v934 = vld [vmem:[%s823 + $0xb4] sm:$0xf]
      %v935 = vsel %vm826, %v764, %v934
      %936 = vst [vmem:[%s823 + $0xb4] sm:$0xf] %v935
      %937 = vst.msk [vmem:[%s823 + $0xb8] sm:$0xf] %vm364, %v773
      %v938 = vld [vmem:[%s823 + $0xbc] sm:$0x1]
      %v939 = vsel %vm832, %v774, %v938
      %940 = vst [vmem:[%s823 + $0xbc] sm:$0x1] %v939
      %v941 = vld [vmem:[#allocation2] sm:$0xf]
      %v942 = vld [vmem:[#allocation2 + $0x4] sm:$0xf]
      %v943 = vld [vmem:[#allocation2 + $0xc] sm:$0xf]
      %v944 = vld [vmem:[#allocation2 + $0x10] sm:$0xf]
      %v945 = vld [vmem:[#allocation2 + $0x18] sm:$0xf]
      %v946 = vld [vmem:[#allocation2 + $0x1c] sm:$0xf]
      %v947 = vld [vmem:[#allocation2 + $0x24] sm:$0xf]
      %v948 = vld [vmem:[#allocation2 + $0x28] sm:$0xf]
      %v949 = vld [vmem:[#allocation2 + $0x30] sm:$0xf]
      %v950 = vld [vmem:[#allocation2 + $0x34] sm:$0xf]
      %v951 = vld [vmem:[#allocation2 + $0x3c] sm:$0xf]
      %v952 = vld [vmem:[#allocation2 + $0x40] sm:$0xf]
      %v953 = vld [vmem:[#allocation2 + $0x48] sm:$0xf]
      %v954 = vld [vmem:[#allocation2 + $0x4c] sm:$0xf]
      %v955 = vld [vmem:[#allocation2 + $0x54] sm:$0xf]
      %v956 = vld [vmem:[#allocation2 + $0x58] sm:$0xf]
      %v957 = vld [vmem:[#allocation2 + $0x60] sm:$0xf]
      %v958 = vld [vmem:[#allocation2 + $0x64] sm:$0xf]
      %v959 = vld [vmem:[#allocation2 + $0x6c] sm:$0xf]
      %v960 = vld [vmem:[#allocation2 + $0x70] sm:$0xf]
      %v961 = vld [vmem:[#allocation2 + $0x78] sm:$0xf]
      %v962 = vld [vmem:[#allocation2 + $0x7c] sm:$0xf]
      %v963 = vld [vmem:[#allocation2 + $0x84] sm:$0xf]
      %v964 = vld [vmem:[#allocation2 + $0x88] sm:$0xf]
      %v965 = vld [vmem:[#allocation2 + $0x90] sm:$0xf]
      %v966 = vld [vmem:[#allocation2 + $0x94] sm:$0xf]
      %v967 = vld [vmem:[#allocation2 + $0x9c] sm:$0xf]
      %v968 = vld [vmem:[#allocation2 + $0xa0] sm:$0xf]
      %v969 = vld [vmem:[#allocation2 + $0xa8] sm:$0xf]
      %v970 = vld [vmem:[#allocation2 + $0xac] sm:$0xf]
      %v971 = vld [vmem:[#allocation2 + $0xb4] sm:$0xf]
      %v972 = vld [vmem:[#allocation2 + $0xb8] sm:$0xf]
      %v973 = vld [vmem:[%s1] sm:$0x3]
      %v974 = vld [vmem:[#allocation2 + $0x8] sm:$0x1]
      %v975 = vld [vmem:[#allocation2 + $0x14] sm:$0x1]
      %v976 = vld [vmem:[#allocation2 + $0x20] sm:$0x1]
      %v977 = vld [vmem:[#allocation2 + $0x2c] sm:$0x1]
      %v978 = vld [vmem:[#allocation2 + $0x38] sm:$0x1]
      %v979 = vld [vmem:[#allocation2 + $0x44] sm:$0x1]
      %v980 = vld [vmem:[#allocation2 + $0x50] sm:$0x1]
      %v981 = vld [vmem:[#allocation2 + $0x5c] sm:$0x1]
      %v982 = vld [vmem:[#allocation2 + $0x68] sm:$0x1]
      %v983 = vld [vmem:[#allocation2 + $0x74] sm:$0x1]
      %v984 = vld [vmem:[#allocation2 + $0x80] sm:$0x1]
      %v985 = vld [vmem:[#allocation2 + $0x8c] sm:$0x1]
      %v986 = vld [vmem:[#allocation2 + $0x98] sm:$0x1]
      %v987 = vld [vmem:[#allocation2 + $0xa4] sm:$0x1]
      %v988 = vld [vmem:[#allocation2 + $0xb0] sm:$0x1]
      %v989 = vld [vmem:[#allocation2 + $0xbc] sm:$0x1]
      %vm990 = vsmask.f32 3328
      %vm991 = vsmask.f32 7440
      %vm992 = vmor %vm990, %vm991
      %v994 = vshrl.u32 %v941, 16
      %v996 = vrot.slane %v994, 4
      %v997 = vshll.u32 %v941, 16
      %v999 = vrot.slane %v997, 5
      %v1000 = vor.u32 %v996, %v999
      %v1001 = vrot.slane %v1000, 4
      %v1003 = vshll.u32 %v942, 16
      %v1005 = vrot.slane %v1003, 5
      %v1006 = vsel %vm992, %v1001, %v1005
      %v1007 = vshrl.u32 %v942, 16
      %v1009 = vrot.slane %v1007, 4
      %v1010 = vor.u32 %v1009, %v1005
      %v1011 = vrot.slane %v1010, 4
      %v1013 = vshll.u32 %v974, 16
      %v1015 = vrot.slane %v1013, 5
      %v1016 = vsel %vm992, %v1011, %v1015
      %v1018 = vshrl.u32 %v943, 16
      %v1020 = vrot.slane %v1018, 4
      %v1021 = vshll.u32 %v943, 16
      %v1023 = vrot.slane %v1021, 5
      %v1024 = vor.u32 %v1020, %v1023
      %v1025 = vrot.slane %v1024, 4
      %v1027 = vshll.u32 %v944, 16
      %v1029 = vrot.slane %v1027, 5
      %v1030 = vsel %vm992, %v1025, %v1029
      %v1031 = vshrl.u32 %v944, 16
      %v1033 = vrot.slane %v1031, 4
      %v1034 = vor.u32 %v1033, %v1029
      %v1035 = vrot.slane %v1034, 4
      %v1037 = vshll.u32 %v975, 16
      %v1039 = vrot.slane %v1037, 5
      %v1040 = vsel %vm992, %v1035, %v1039
      %v1042 = vshrl.u32 %v945, 16
      %v1044 = vrot.slane %v1042, 4
      %v1045 = vshll.u32 %v945, 16
      %v1047 = vrot.slane %v1045, 5
      %v1048 = vor.u32 %v1044, %v1047
      %v1049 = vrot.slane %v1048, 4
      %v1051 = vshll.u32 %v946, 16
      %v1053 = vrot.slane %v1051, 5
      %v1054 = vsel %vm992, %v1049, %v1053
      %v1055 = vshrl.u32 %v946, 16
      %v1057 = vrot.slane %v1055, 4
      %v1058 = vor.u32 %v1057, %v1053
      %v1059 = vrot.slane %v1058, 4
      %v1061 = vshll.u32 %v976, 16
      %v1063 = vrot.slane %v1061, 5
      %v1064 = vsel %vm992, %v1059, %v1063
      %v1066 = vshrl.u32 %v947, 16
      %v1068 = vrot.slane %v1066, 4
      %v1069 = vshll.u32 %v947, 16
      %v1071 = vrot.slane %v1069, 5
      %v1072 = vor.u32 %v1068, %v1071
      %v1073 = vrot.slane %v1072, 4
      %v1075 = vshll.u32 %v948, 16
      %v1077 = vrot.slane %v1075, 5
      %v1078 = vsel %vm992, %v1073, %v1077
      %v1079 = vshrl.u32 %v948, 16
      %v1081 = vrot.slane %v1079, 4
      %v1082 = vor.u32 %v1081, %v1077
      %v1083 = vrot.slane %v1082, 4
      %v1085 = vshll.u32 %v977, 16
      %v1087 = vrot.slane %v1085, 5
      %v1088 = vsel %vm992, %v1083, %v1087
      %v1090 = vshrl.u32 %v949, 16
      %v1092 = vrot.slane %v1090, 4
      %v1093 = vshll.u32 %v949, 16
      %v1095 = vrot.slane %v1093, 5
      %v1096 = vor.u32 %v1092, %v1095
      %v1097 = vrot.slane %v1096, 4
      %v1099 = vshll.u32 %v950, 16
      %v1101 = vrot.slane %v1099, 5
      %v1102 = vsel %vm992, %v1097, %v1101
      %v1103 = vshrl.u32 %v950, 16
      %v1105 = vrot.slane %v1103, 4
      %v1106 = vor.u32 %v1105, %v1101
      %v1107 = vrot.slane %v1106, 4
      %v1109 = vshll.u32 %v978, 16
      %v1111 = vrot.slane %v1109, 5
      %v1112 = vsel %vm992, %v1107, %v1111
      %v1114 = vshrl.u32 %v951, 16
      %v1116 = vrot.slane %v1114, 4
      %v1117 = vshll.u32 %v951, 16
      %v1119 = vrot.slane %v1117, 5
      %v1120 = vor.u32 %v1116, %v1119
      %v1121 = vrot.slane %v1120, 4
      %v1123 = vshll.u32 %v952, 16
      %v1125 = vrot.slane %v1123, 5
      %v1126 = vsel %vm992, %v1121, %v1125
      %v1127 = vshrl.u32 %v952, 16
      %v1129 = vrot.slane %v1127, 4
      %v1130 = vor.u32 %v1129, %v1125
      %v1131 = vrot.slane %v1130, 4
      %v1133 = vshll.u32 %v979, 16
      %v1135 = vrot.slane %v1133, 5
      %v1136 = vsel %vm992, %v1131, %v1135
      %v1138 = vshrl.u32 %v953, 16
      %v1140 = vrot.slane %v1138, 4
      %v1141 = vshll.u32 %v953, 16
      %v1143 = vrot.slane %v1141, 5
      %v1144 = vor.u32 %v1140, %v1143
      %v1145 = vrot.slane %v1144, 4
      %v1147 = vshll.u32 %v954, 16
      %v1149 = vrot.slane %v1147, 5
      %v1150 = vsel %vm992, %v1145, %v1149
      %v1151 = vshrl.u32 %v954, 16
      %v1153 = vrot.slane %v1151, 4
      %v1154 = vor.u32 %v1153, %v1149
      %v1155 = vrot.slane %v1154, 4
      %v1157 = vshll.u32 %v980, 16
      %v1159 = vrot.slane %v1157, 5
      %v1160 = vsel %vm992, %v1155, %v1159
      %v1162 = vshrl.u32 %v955, 16
      %v1164 = vrot.slane %v1162, 4
      %v1165 = vshll.u32 %v955, 16
      %v1167 = vrot.slane %v1165, 5
      %v1168 = vor.u32 %v1164, %v1167
      %v1169 = vrot.slane %v1168, 4
      %v1171 = vshll.u32 %v956, 16
      %v1173 = vrot.slane %v1171, 5
      %v1174 = vsel %vm992, %v1169, %v1173
      %v1175 = vshrl.u32 %v956, 16
      %v1177 = vrot.slane %v1175, 4
      %v1178 = vor.u32 %v1177, %v1173
      %v1179 = vrot.slane %v1178, 4
      %v1181 = vshll.u32 %v981, 16
      %v1183 = vrot.slane %v1181, 5
      %v1184 = vsel %vm992, %v1179, %v1183
      %v1186 = vshrl.u32 %v957, 16
      %v1188 = vrot.slane %v1186, 4
      %v1189 = vshll.u32 %v957, 16
      %v1191 = vrot.slane %v1189, 5
      %v1192 = vor.u32 %v1188, %v1191
      %v1193 = vrot.slane %v1192, 4
      %v1195 = vshll.u32 %v958, 16
      %v1197 = vrot.slane %v1195, 5
      %v1198 = vsel %vm992, %v1193, %v1197
      %v1199 = vshrl.u32 %v958, 16
      %v1201 = vrot.slane %v1199, 4
      %v1202 = vor.u32 %v1201, %v1197
      %v1203 = vrot.slane %v1202, 4
      %v1205 = vshll.u32 %v982, 16
      %v1207 = vrot.slane %v1205, 5
      %v1208 = vsel %vm992, %v1203, %v1207
      %v1210 = vshrl.u32 %v959, 16
      %v1212 = vrot.slane %v1210, 4
      %v1213 = vshll.u32 %v959, 16
      %v1215 = vrot.slane %v1213, 5
      %v1216 = vor.u32 %v1212, %v1215
      %v1217 = vrot.slane %v1216, 4
      %v1219 = vshll.u32 %v960, 16
      %v1221 = vrot.slane %v1219, 5
      %v1222 = vsel %vm992, %v1217, %v1221
      %v1223 = vshrl.u32 %v960, 16
      %v1225 = vrot.slane %v1223, 4
      %v1226 = vor.u32 %v1225, %v1221
      %v1227 = vrot.slane %v1226, 4
      %v1229 = vshll.u32 %v983, 16
      %v1231 = vrot.slane %v1229, 5
      %v1232 = vsel %vm992, %v1227, %v1231
      %v1234 = vshrl.u32 %v961, 16
      %v1236 = vrot.slane %v1234, 4
      %v1237 = vshll.u32 %v961, 16
      %v1239 = vrot.slane %v1237, 5
      %v1240 = vor.u32 %v1236, %v1239
      %v1241 = vrot.slane %v1240, 4
      %v1243 = vshll.u32 %v962, 16
      %v1245 = vrot.slane %v1243, 5
      %v1246 = vsel %vm992, %v1241, %v1245
      %v1247 = vshrl.u32 %v962, 16
      %v1249 = vrot.slane %v1247, 4
      %v1250 = vor.u32 %v1249, %v1245
      %v1251 = vrot.slane %v1250, 4
      %v1253 = vshll.u32 %v984, 16
      %v1255 = vrot.slane %v1253, 5
      %v1256 = vsel %vm992, %v1251, %v1255
      %v1258 = vshrl.u32 %v963, 16
      %v1260 = vrot.slane %v1258, 4
      %v1261 = vshll.u32 %v963, 16
      %v1263 = vrot.slane %v1261, 5
      %v1264 = vor.u32 %v1260, %v1263
      %v1265 = vrot.slane %v1264, 4
      %v1267 = vshll.u32 %v964, 16
      %v1269 = vrot.slane %v1267, 5
      %v1270 = vsel %vm992, %v1265, %v1269
      %v1271 = vshrl.u32 %v964, 16
      %v1273 = vrot.slane %v1271, 4
      %v1274 = vor.u32 %v1273, %v1269
      %v1275 = vrot.slane %v1274, 4
      %v1277 = vshll.u32 %v985, 16
      %v1279 = vrot.slane %v1277, 5
      %v1280 = vsel %vm992, %v1275, %v1279
      %v1282 = vshrl.u32 %v965, 16
      %v1284 = vrot.slane %v1282, 4
      %v1285 = vshll.u32 %v965, 16
      %v1287 = vrot.slane %v1285, 5
      %v1288 = vor.u32 %v1284, %v1287
      %v1289 = vrot.slane %v1288, 4
      %v1291 = vshll.u32 %v966, 16
      %v1293 = vrot.slane %v1291, 5
      %v1294 = vsel %vm992, %v1289, %v1293
      %v1295 = vshrl.u32 %v966, 16
      %v1297 = vrot.slane %v1295, 4
      %v1298 = vor.u32 %v1297, %v1293
      %v1299 = vrot.slane %v1298, 4
      %v1301 = vshll.u32 %v986, 16
      %v1303 = vrot.slane %v1301, 5
      %v1304 = vsel %vm992, %v1299, %v1303
      %v1306 = vshrl.u32 %v967, 16
      %v1308 = vrot.slane %v1306, 4
      %v1309 = vshll.u32 %v967, 16
      %v1311 = vrot.slane %v1309, 5
      %v1312 = vor.u32 %v1308, %v1311
      %v1313 = vrot.slane %v1312, 4
      %v1315 = vshll.u32 %v968, 16
      %v1317 = vrot.slane %v1315, 5
      %v1318 = vsel %vm992, %v1313, %v1317
      %v1319 = vshrl.u32 %v968, 16
      %v1321 = vrot.slane %v1319, 4
      %v1322 = vor.u32 %v1321, %v1317
      %v1323 = vrot.slane %v1322, 4
      %v1325 = vshll.u32 %v987, 16
      %v1327 = vrot.slane %v1325, 5
      %v1328 = vsel %vm992, %v1323, %v1327
      %v1330 = vshrl.u32 %v969, 16
      %v1332 = vrot.slane %v1330, 4
      %v1333 = vshll.u32 %v969, 16
      %v1335 = vrot.slane %v1333, 5
      %v1336 = vor.u32 %v1332, %v1335
      %v1337 = vrot.slane %v1336, 4
      %v1339 = vshll.u32 %v970, 16
      %v1341 = vrot.slane %v1339, 5
      %v1342 = vsel %vm992, %v1337, %v1341
      %v1343 = vshrl.u32 %v970, 16
      %v1345 = vrot.slane %v1343, 4
      %v1346 = vor.u32 %v1345, %v1341
      %v1347 = vrot.slane %v1346, 4
      %v1349 = vshll.u32 %v988, 16
      %v1351 = vrot.slane %v1349, 5
      %v1352 = vsel %vm992, %v1347, %v1351
      %v1354 = vshrl.u32 %v971, 16
      %v1356 = vrot.slane %v1354, 4
      %v1357 = vshll.u32 %v971, 16
      %v1359 = vrot.slane %v1357, 5
      %v1360 = vor.u32 %v1356, %v1359
      %v1361 = vrot.slane %v1360, 4
      %v1363 = vshll.u32 %v972, 16
      %v1365 = vrot.slane %v1363, 5
      %v1366 = vsel %vm992, %v1361, %v1365
      %v1367 = vshrl.u32 %v972, 16
      %v1369 = vrot.slane %v1367, 4
      %v1370 = vor.u32 %v1369, %v1365
      %v1371 = vrot.slane %v1370, 4
      %v1373 = vshll.u32 %v989, 16
      %v1375 = vrot.slane %v1373, 5
      %v1376 = vsel %vm992, %v1371, %v1375
      %s1377 = scalar_lea.vmem %s1, 2
      %v1378 = vld [vmem:[%s1377] sm:$0x3]
      %v1379 = vunpack.c.l.b16 %v1006
      %v1380 = vunpack.c.l.b16 %v1016
      %v1381 = vunpack.c.l.b16 %v1030
      %v1382 = vunpack.c.l.b16 %v1040
      %v1383 = vunpack.c.l.b16 %v1054
      %v1384 = vunpack.c.l.b16 %v1064
      %v1385 = vunpack.c.l.b16 %v1078
      %v1386 = vunpack.c.l.b16 %v1088
      %v1387 = vunpack.c.l.b16 %v1102
      %v1388 = vunpack.c.l.b16 %v1112
      %v1389 = vunpack.c.l.b16 %v1126
      %v1390 = vunpack.c.l.b16 %v1136
      %v1391 = vunpack.c.l.b16 %v1150
      %v1392 = vunpack.c.l.b16 %v1160
      %v1393 = vunpack.c.l.b16 %v1174
      %v1394 = vunpack.c.l.b16 %v1184
      %v1395 = vunpack.c.l.b16 %v1198
      %v1396 = vunpack.c.l.b16 %v1208
      %v1397 = vunpack.c.l.b16 %v1222
      %v1398 = vunpack.c.l.b16 %v1232
      %v1399 = vunpack.c.l.b16 %v1246
      %v1400 = vunpack.c.l.b16 %v1256
      %v1401 = vunpack.c.l.b16 %v1270
      %v1402 = vunpack.c.l.b16 %v1280
      %v1403 = vunpack.c.l.b16 %v1294
      %v1404 = vunpack.c.l.b16 %v1304
      %v1405 = vunpack.c.l.b16 %v1318
      %v1406 = vunpack.c.l.b16 %v1328
      %v1407 = vunpack.c.l.b16 %v1342
      %v1408 = vunpack.c.l.b16 %v1352
      %v1409 = vunpack.c.l.b16 %v1366
      %v1410 = vunpack.c.l.b16 %v1376
      %v1411 = vpack.c.b16 %v1380, %v1379
      %v1412 = vpack.c.b16 %v1382, %v1381
      %v1413 = vpack.c.b16 %v1384, %v1383
      %v1414 = vpack.c.b16 %v1386, %v1385
      %v1415 = vpack.c.b16 %v1388, %v1387
      %v1416 = vpack.c.b16 %v1390, %v1389
      %v1417 = vpack.c.b16 %v1392, %v1391
      %v1418 = vpack.c.b16 %v1394, %v1393
      %v1419 = vpack.c.b16 %v1396, %v1395
      %v1420 = vpack.c.b16 %v1398, %v1397
      %v1421 = vpack.c.b16 %v1400, %v1399
      %v1422 = vpack.c.b16 %v1402, %v1401
      %v1423 = vpack.c.b16 %v1404, %v1403
      %v1424 = vpack.c.b16 %v1406, %v1405
      %v1425 = vpack.c.b16 %v1408, %v1407
      %v1426 = vpack.c.b16 %v1410, %v1409
      %vm1427 = vcmask 23552
      %v1429 = vsel %vm1427, %v1411, 0
      %v1432 = vsel %vm1427, %v1412, 0
      %v1435 = vsel %vm1427, %v1413, 0
      %v1438 = vsel %vm1427, %v1414, 0
      %v1441 = vsel %vm1427, %v1415, 0
      %v1444 = vsel %vm1427, %v1416, 0
      %v1447 = vsel %vm1427, %v1417, 0
      %v1450 = vsel %vm1427, %v1418, 0
      %v1453 = vsel %vm1427, %v1419, 0
      %v1456 = vsel %vm1427, %v1420, 0
      %v1459 = vsel %vm1427, %v1421, 0
      %v1462 = vsel %vm1427, %v1422, 0
      %v1465 = vsel %vm1427, %v1423, 0
      %v1468 = vsel %vm1427, %v1424, 0
      %v1471 = vsel %vm1427, %v1425, 0
      %v1474 = vsel %vm1427, %v1426, 0
      %vm1476 = vcmask 1040384
      %vm1477 = vcmask 1041408
      %v1478 = vsel %vm1476, 4294967295, 65535
      %v1479 = vsel %vm1477, %v1478, 0
      %v1481 = vand.u32 %v1378, %v1479
      %1483 = vmatprep.subr.bf16.mxu0 0
      %1484 = vmatpush1.bf16.msra.mxu0 %v1481
      %1485 = vmatprep.subr.bf16.mxu0 0
      %1486 = vmatpush1.bf16.msra.mxu0 0
      %1487 = vmatprep.subr.bf16.mxu0 0
      %1488 = vmatpush1.bf16.msra.mxu0 0
      %1489 = vmatprep.subr.bf16.mxu0 0
      %1490 = vmatpush1.bf16.msra.mxu0 0
      %1491 = vmatprep.subr.bf16.mxu0 0
      %1492 = vmatpush1.bf16.msra.mxu0 0
      %1493 = vmatprep.subr.bf16.mxu0 0
      %1494 = vmatpush1.bf16.msra.mxu0 0
      %1495 = vmatprep.subr.bf16.mxu0 0
      %1496 = vmatpush1.bf16.msra.mxu0 0
      %1497 = vmatprep.subr.bf16.mxu0 0
      %1498 = vmatpush1.bf16.msra.mxu0 0
      %1499 = vmatprep.subr.bf16.mxu0 0
      %1500 = vmatpush1.bf16.msra.mxu0 0
      %1501 = vmatprep.subr.bf16.mxu0 0
      %1502 = vmatpush1.bf16.msra.mxu0 0
      %1503 = vmatprep.subr.bf16.mxu0 0
      %1504 = vmatpush1.bf16.msra.mxu0 0
      %1505 = vmatprep.subr.bf16.mxu0 0
      %1506 = vmatpush1.bf16.msra.mxu0 0
      %1507 = vmatprep.subr.bf16.mxu0 0
      %1508 = vmatpush1.bf16.msra.mxu0 0
      %1509 = vmatprep.subr.bf16.mxu0 0
      %1510 = vmatpush1.bf16.msra.mxu0 0
      %1511 = vmatprep.subr.bf16.mxu0 0
      %1512 = vmatpush1.bf16.msra.mxu0 0
      %1513 = vmatprep.subr.bf16.mxu0 0
      %1514 = vmatpush1.bf16.msra.mxu0 0
      %1515 = vmatprep.mubr.bf16.mxu0 0
      %1516 = vmatmul.mubr.bf16.gmra.mrb[0].mxu0 %v1429
      %v1517 = vpop.f32.mrb[0].mxu0
      %v1518 = vadd.f32 0.0, %v1517
      %v1519 = vpop.f32.mrb[0].mxu0
      %v1520 = vpop.f32.mrb[0].mxu0
      %v1521 = vadd.f32 0.0, %v1520
      %v1522 = vpop.f32.mrb[0].mxu0
      %1523 = vmatprep.mubr.bf16.mxu0 0
      %1524 = vmatmul.mubr.bf16.gmra.mrb[0].mxu0 %v1432
      %v1525 = vpop.f32.mrb[0].mxu0
      %v1526 = vadd.f32 0.0, %v1525
      %v1527 = vpop.f32.mrb[0].mxu0
      %v1528 = vpop.f32.mrb[0].mxu0
      %v1529 = vadd.f32 0.0, %v1528
      %v1530 = vpop.f32.mrb[0].mxu0
      %1531 = vmatprep.mubr.bf16.mxu0 0
      %1532 = vmatmul.mubr.bf16.gmra.mrb[0].mxu0 %v1435
      %v1533 = vpop.f32.mrb[0].mxu0
      %v1534 = vadd.f32 0.0, %v1533
      %v1535 = vpop.f32.mrb[0].mxu0
      %v1536 = vpop.f32.mrb[0].mxu0
      %v1537 = vadd.f32 0.0, %v1536
      %v1538 = vpop.f32.mrb[0].mxu0
      %1539 = vmatprep.mubr.bf16.mxu0 0
      %1540 = vmatmul.mubr.bf16.gmra.mrb[0].mxu0 %v1438
      %v1541 = vpop.f32.mrb[0].mxu0
      %v1542 = vadd.f32 0.0, %v1541
      %v1543 = vpop.f32.mrb[0].mxu0
      %v1544 = vpop.f32.mrb[0].mxu0
      %v1545 = vadd.f32 0.0, %v1544
      %v1546 = vpop.f32.mrb[0].mxu0
      %1547 = vmatprep.mubr.bf16.mxu0 0
      %1548 = vmatmul.mubr.bf16.gmra.mrb[0].mxu0 %v1441
      %v1549 = vpop.f32.mrb[0].mxu0
      %v1550 = vadd.f32 0.0, %v1549
      %v1551 = vpop.f32.mrb[0].mxu0
      %v1552 = vpop.f32.mrb[0].mxu0
      %v1553 = vadd.f32 0.0, %v1552
      %v1554 = vpop.f32.mrb[0].mxu0
      %1555 = vmatprep.mubr.bf16.mxu0 0
      %1556 = vmatmul.mubr.bf16.gmra.mrb[0].mxu0 %v1444
      %v1557 = vpop.f32.mrb[0].mxu0
      %v1558 = vadd.f32 0.0, %v1557
      %v1559 = vpop.f32.mrb[0].mxu0
      %v1560 = vpop.f32.mrb[0].mxu0
      %v1561 = vadd.f32 0.0, %v1560
      %v1562 = vpop.f32.mrb[0].mxu0
      %1563 = vmatprep.mubr.bf16.mxu0 0
      %1564 = vmatmul.mubr.bf16.gmra.mrb[0].mxu0 %v1447
      %v1565 = vpop.f32.mrb[0].mxu0
      %v1566 = vadd.f32 0.0, %v1565
      %v1567 = vpop.f32.mrb[0].mxu0
      %v1568 = vpop.f32.mrb[0].mxu0
      %v1569 = vadd.f32 0.0, %v1568
      %v1570 = vpop.f32.mrb[0].mxu0
      %1571 = vmatprep.mubr.bf16.mxu0 0
      %1572 = vmatmul.mubr.bf16.gmra.mrb[0].mxu0 %v1450
      %v1573 = vpop.f32.mrb[0].mxu0
      %v1574 = vadd.f32 0.0, %v1573
      %v1575 = vpop.f32.mrb[0].mxu0
      %v1576 = vpop.f32.mrb[0].mxu0
      %v1577 = vadd.f32 0.0, %v1576
      %v1578 = vpop.f32.mrb[0].mxu0
      %1579 = vmatprep.mubr.bf16.mxu0 0
      %1580 = vmatmul.mubr.bf16.gmra.mrb[0].mxu0 %v1453
      %v1581 = vpop.f32.mrb[0].mxu0
      %v1582 = vadd.f32 0.0, %v1581
      %v1583 = vpop.f32.mrb[0].mxu0
      %v1584 = vpop.f32.mrb[0].mxu0
      %v1585 = vadd.f32 0.0, %v1584
      %v1586 = vpop.f32.mrb[0].mxu0
      %1587 = vmatprep.mubr.bf16.mxu0 0
      %1588 = vmatmul.mubr.bf16.gmra.mrb[0].mxu0 %v1456
      %v1589 = vpop.f32.mrb[0].mxu0
      %v1590 = vadd.f32 0.0, %v1589
      %v1591 = vpop.f32.mrb[0].mxu0
      %v1592 = vpop.f32.mrb[0].mxu0
      %v1593 = vadd.f32 0.0, %v1592
      %v1594 = vpop.f32.mrb[0].mxu0
      %1595 = vmatprep.mubr.bf16.mxu0 0
      %1596 = vmatmul.mubr.bf16.gmra.mrb[0].mxu0 %v1459
      %v1597 = vpop.f32.mrb[0].mxu0
      %v1598 = vadd.f32 0.0, %v1597
      %v1599 = vpop.f32.mrb[0].mxu0
      %v1600 = vpop.f32.mrb[0].mxu0
      %v1601 = vadd.f32 0.0, %v1600
      %v1602 = vpop.f32.mrb[0].mxu0
      %1603 = vmatprep.mubr.bf16.mxu0 0
      %1604 = vmatmul.mubr.bf16.gmra.mrb[0].mxu0 %v1462
      %v1605 = vpop.f32.mrb[0].mxu0
      %v1606 = vadd.f32 0.0, %v1605
      %v1607 = vpop.f32.mrb[0].mxu0
      %v1608 = vpop.f32.mrb[0].mxu0
      %v1609 = vadd.f32 0.0, %v1608
      %v1610 = vpop.f32.mrb[0].mxu0
      %1611 = vmatprep.mubr.bf16.mxu0 0
      %1612 = vmatmul.mubr.bf16.gmra.mrb[0].mxu0 %v1465
      %v1613 = vpop.f32.mrb[0].mxu0
      %v1614 = vadd.f32 0.0, %v1613
      %v1615 = vpop.f32.mrb[0].mxu0
      %v1616 = vpop.f32.mrb[0].mxu0
      %v1617 = vadd.f32 0.0, %v1616
      %v1618 = vpop.f32.mrb[0].mxu0
      %1619 = vmatprep.mubr.bf16.mxu0 0
      %1620 = vmatmul.mubr.bf16.gmra.mrb[0].mxu0 %v1468
      %v1621 = vpop.f32.mrb[0].mxu0
      %v1622 = vadd.f32 0.0, %v1621
      %v1623 = vpop.f32.mrb[0].mxu0
      %v1624 = vpop.f32.mrb[0].mxu0
      %v1625 = vadd.f32 0.0, %v1624
      %v1626 = vpop.f32.mrb[0].mxu0
      %1627 = vmatprep.mubr.bf16.mxu0 0
      %1628 = vmatmul.mubr.bf16.gmra.mrb[0].mxu0 %v1471
      %v1629 = vpop.f32.mrb[0].mxu0
      %v1630 = vadd.f32 0.0, %v1629
      %v1631 = vpop.f32.mrb[0].mxu0
      %v1632 = vpop.f32.mrb[0].mxu0
      %v1633 = vadd.f32 0.0, %v1632
      %v1634 = vpop.f32.mrb[0].mxu0
      %1635 = vmatprep.mubr.bf16.mxu0 0
      %1636 = vmatmul.mubr.bf16.gmra.mrb[0].mxu0 %v1474
      %v1637 = vpop.f32.mrb[0].mxu0
      %v1638 = vadd.f32 0.0, %v1637
      %v1639 = vpop.f32.mrb[0].mxu0
      %v1640 = vpop.f32.mrb[0].mxu0
      %v1641 = vadd.f32 0.0, %v1640
      %v1642 = vpop.f32.mrb[0].mxu0
      %1643 = vdwg.mxu0
      %v1676 = vunpack.c.l.b16 %v941
      %v1677 = vunpack.c.l.b16 %v942
      %v1678 = vunpack.c.l.b16 %v943
      %v1679 = vunpack.c.l.b16 %v944
      %v1680 = vunpack.c.l.b16 %v945
      %v1681 = vunpack.c.l.b16 %v946
      %v1682 = vunpack.c.l.b16 %v947
      %v1683 = vunpack.c.l.b16 %v948
      %v1684 = vunpack.c.l.b16 %v949
      %v1685 = vunpack.c.l.b16 %v950
      %v1686 = vunpack.c.l.b16 %v951
      %v1687 = vunpack.c.l.b16 %v952
      %v1688 = vunpack.c.l.b16 %v953
      %v1689 = vunpack.c.l.b16 %v954
      %v1690 = vunpack.c.l.b16 %v955
      %v1691 = vunpack.c.l.b16 %v956
      %v1692 = vunpack.c.l.b16 %v957
      %v1693 = vunpack.c.l.b16 %v958
      %v1694 = vunpack.c.l.b16 %v959
      %v1695 = vunpack.c.l.b16 %v960
      %v1696 = vunpack.c.l.b16 %v961
      %v1697 = vunpack.c.l.b16 %v962
      %v1698 = vunpack.c.l.b16 %v963
      %v1699 = vunpack.c.l.b16 %v964
      %v1700 = vunpack.c.l.b16 %v965
      %v1701 = vunpack.c.l.b16 %v966
      %v1702 = vunpack.c.l.b16 %v967
      %v1703 = vunpack.c.l.b16 %v968
      %v1704 = vunpack.c.l.b16 %v969
      %v1705 = vunpack.c.l.b16 %v970
      %v1706 = vunpack.c.l.b16 %v971
      %v1707 = vunpack.c.l.b16 %v972
      %v1708 = vpack.c.b16 %v1677, %v1676
      %v1709 = vpack.c.b16 %v1679, %v1678
      %v1710 = vpack.c.b16 %v1681, %v1680
      %v1711 = vpack.c.b16 %v1683, %v1682
      %v1712 = vpack.c.b16 %v1685, %v1684
      %v1713 = vpack.c.b16 %v1687, %v1686
      %v1714 = vpack.c.b16 %v1689, %v1688
      %v1715 = vpack.c.b16 %v1691, %v1690
      %v1716 = vpack.c.b16 %v1693, %v1692
      %v1717 = vpack.c.b16 %v1695, %v1694
      %v1718 = vpack.c.b16 %v1697, %v1696
      %v1719 = vpack.c.b16 %v1699, %v1698
      %v1720 = vpack.c.b16 %v1701, %v1700
      %v1721 = vpack.c.b16 %v1703, %v1702
      %v1722 = vpack.c.b16 %v1705, %v1704
      %v1723 = vpack.c.b16 %v1707, %v1706
      %v1725 = vsel %vm1427, %v1708, 0
      %v1728 = vsel %vm1427, %v1709, 0
      %v1731 = vsel %vm1427, %v1710, 0
      %v1734 = vsel %vm1427, %v1711, 0
      %v1737 = vsel %vm1427, %v1712, 0
      %v1740 = vsel %vm1427, %v1713, 0
      %v1743 = vsel %vm1427, %v1714, 0
      %v1746 = vsel %vm1427, %v1715, 0
      %v1749 = vsel %vm1427, %v1716, 0
      %v1752 = vsel %vm1427, %v1717, 0
      %v1755 = vsel %vm1427, %v1718, 0
      %v1758 = vsel %vm1427, %v1719, 0
      %v1761 = vsel %vm1427, %v1720, 0
      %v1764 = vsel %vm1427, %v1721, 0
      %v1767 = vsel %vm1427, %v1722, 0
      %v1770 = vsel %vm1427, %v1723, 0
      %v1773 = vand.u32 %v973, %v1479
      %1775 = vmatprep.subr.bf16.mxu0 0
      %1776 = vmatpush1.bf16.msra.mxu0 %v1773
      %1777 = vmatprep.subr.bf16.mxu0 0
      %1778 = vmatpush1.bf16.msra.mxu0 0
      %1779 = vmatprep.subr.bf16.mxu0 0
      %1780 = vmatpush1.bf16.msra.mxu0 0
      %1781 = vmatprep.subr.bf16.mxu0 0
      %1782 = vmatpush1.bf16.msra.mxu0 0
      %1783 = vmatprep.subr.bf16.mxu0 0
      %1784 = vmatpush1.bf16.msra.mxu0 0
      %1785 = vmatprep.subr.bf16.mxu0 0
      %1786 = vmatpush1.bf16.msra.mxu0 0
      %1787 = vmatprep.subr.bf16.mxu0 0
      %1788 = vmatpush1.bf16.msra.mxu0 0
      %1789 = vmatprep.subr.bf16.mxu0 0
      %1790 = vmatpush1.bf16.msra.mxu0 0
      %1791 = vmatprep.subr.bf16.mxu0 0
      %1792 = vmatpush1.bf16.msra.mxu0 0
      %1793 = vmatprep.subr.bf16.mxu0 0
      %1794 = vmatpush1.bf16.msra.mxu0 0
      %1795 = vmatprep.subr.bf16.mxu0 0
      %1796 = vmatpush1.bf16.msra.mxu0 0
      %1797 = vmatprep.subr.bf16.mxu0 0
      %1798 = vmatpush1.bf16.msra.mxu0 0
      %1799 = vmatprep.subr.bf16.mxu0 0
      %1800 = vmatpush1.bf16.msra.mxu0 0
      %1801 = vmatprep.subr.bf16.mxu0 0
      %1802 = vmatpush1.bf16.msra.mxu0 0
      %1803 = vmatprep.subr.bf16.mxu0 0
      %1804 = vmatpush1.bf16.msra.mxu0 0
      %1805 = vmatprep.subr.bf16.mxu0 0
      %1806 = vmatpush1.bf16.msra.mxu0 0
      %1807 = vmatprep.mubr.bf16.mxu0 0
      %1808 = vmatmul.mubr.bf16.gmra.mrb[0].mxu0 %v1725
      %v1809 = vpop.f32.mrb[0].mxu0
      %v1810 = vadd.f32 %v1518, %v1809
      %v1811 = vpop.f32.mrb[0].mxu0
      %v1812 = vpop.f32.mrb[0].mxu0
      %v1813 = vadd.f32 %v1521, %v1812
      %v1814 = vpop.f32.mrb[0].mxu0
      %1815 = vmatprep.mubr.bf16.mxu0 0
      %1816 = vmatmul.mubr.bf16.gmra.mrb[0].mxu0 %v1728
      %v1817 = vpop.f32.mrb[0].mxu0
      %v1818 = vadd.f32 %v1526, %v1817
      %v1819 = vpop.f32.mrb[0].mxu0
      %v1820 = vpop.f32.mrb[0].mxu0
      %v1821 = vadd.f32 %v1529, %v1820
      %v1822 = vpop.f32.mrb[0].mxu0
      %1823 = vmatprep.mubr.bf16.mxu0 0
      %1824 = vmatmul.mubr.bf16.gmra.mrb[0].mxu0 %v1731
      %v1825 = vpop.f32.mrb[0].mxu0
      %v1826 = vadd.f32 %v1534, %v1825
      %v1827 = vpop.f32.mrb[0].mxu0
      %v1828 = vpop.f32.mrb[0].mxu0
      %v1829 = vadd.f32 %v1537, %v1828
      %v1830 = vpop.f32.mrb[0].mxu0
      %1831 = vmatprep.mubr.bf16.mxu0 0
      %1832 = vmatmul.mubr.bf16.gmra.mrb[0].mxu0 %v1734
      %v1833 = vpop.f32.mrb[0].mxu0
      %v1834 = vadd.f32 %v1542, %v1833
      %v1835 = vpop.f32.mrb[0].mxu0
      %v1836 = vpop.f32.mrb[0].mxu0
      %v1837 = vadd.f32 %v1545, %v1836
      %v1838 = vpop.f32.mrb[0].mxu0
      %1839 = vmatprep.mubr.bf16.mxu0 0
      %1840 = vmatmul.mubr.bf16.gmra.mrb[0].mxu0 %v1737
      %v1841 = vpop.f32.mrb[0].mxu0
      %v1842 = vadd.f32 %v1550, %v1841
      %v1843 = vpop.f32.mrb[0].mxu0
      %v1844 = vpop.f32.mrb[0].mxu0
      %v1845 = vadd.f32 %v1553, %v1844
      %v1846 = vpop.f32.mrb[0].mxu0
      %1847 = vmatprep.mubr.bf16.mxu0 0
      %1848 = vmatmul.mubr.bf16.gmra.mrb[0].mxu0 %v1740
      %v1849 = vpop.f32.mrb[0].mxu0
      %v1850 = vadd.f32 %v1558, %v1849
      %v1851 = vpop.f32.mrb[0].mxu0
      %v1852 = vpop.f32.mrb[0].mxu0
      %v1853 = vadd.f32 %v1561, %v1852
      %v1854 = vpop.f32.mrb[0].mxu0
      %1855 = vmatprep.mubr.bf16.mxu0 0
      %1856 = vmatmul.mubr.bf16.gmra.mrb[0].mxu0 %v1743
      %v1857 = vpop.f32.mrb[0].mxu0
      %v1858 = vadd.f32 %v1566, %v1857
      %v1859 = vpop.f32.mrb[0].mxu0
      %v1860 = vpop.f32.mrb[0].mxu0
      %v1861 = vadd.f32 %v1569, %v1860
      %v1862 = vpop.f32.mrb[0].mxu0
      %1863 = vmatprep.mubr.bf16.mxu0 0
      %1864 = vmatmul.mubr.bf16.gmra.mrb[0].mxu0 %v1746
      %v1865 = vpop.f32.mrb[0].mxu0
      %v1866 = vadd.f32 %v1574, %v1865
      %v1867 = vpop.f32.mrb[0].mxu0
      %v1868 = vpop.f32.mrb[0].mxu0
      %v1869 = vadd.f32 %v1577, %v1868
      %v1870 = vpop.f32.mrb[0].mxu0
      %1871 = vmatprep.mubr.bf16.mxu0 0
      %1872 = vmatmul.mubr.bf16.gmra.mrb[0].mxu0 %v1749
      %v1873 = vpop.f32.mrb[0].mxu0
      %v1874 = vadd.f32 %v1582, %v1873
      %v1875 = vpop.f32.mrb[0].mxu0
      %v1876 = vpop.f32.mrb[0].mxu0
      %v1877 = vadd.f32 %v1585, %v1876
      %v1878 = vpop.f32.mrb[0].mxu0
      %1879 = vmatprep.mubr.bf16.mxu0 0
      %1880 = vmatmul.mubr.bf16.gmra.mrb[0].mxu0 %v1752
      %v1881 = vpop.f32.mrb[0].mxu0
      %v1882 = vadd.f32 %v1590, %v1881
      %v1883 = vpop.f32.mrb[0].mxu0
      %v1884 = vpop.f32.mrb[0].mxu0
      %v1885 = vadd.f32 %v1593, %v1884
      %v1886 = vpop.f32.mrb[0].mxu0
      %1887 = vmatprep.mubr.bf16.mxu0 0
      %1888 = vmatmul.mubr.bf16.gmra.mrb[0].mxu0 %v1755
      %v1889 = vpop.f32.mrb[0].mxu0
      %v1890 = vadd.f32 %v1598, %v1889
      %v1891 = vpop.f32.mrb[0].mxu0
      %v1892 = vpop.f32.mrb[0].mxu0
      %v1893 = vadd.f32 %v1601, %v1892
      %v1894 = vpop.f32.mrb[0].mxu0
      %1895 = vmatprep.mubr.bf16.mxu0 0
      %1896 = vmatmul.mubr.bf16.gmra.mrb[0].mxu0 %v1758
      %v1897 = vpop.f32.mrb[0].mxu0
      %v1898 = vadd.f32 %v1606, %v1897
      %v1899 = vpop.f32.mrb[0].mxu0
      %v1900 = vpop.f32.mrb[0].mxu0
      %v1901 = vadd.f32 %v1609, %v1900
      %v1902 = vpop.f32.mrb[0].mxu0
      %1903 = vmatprep.mubr.bf16.mxu0 0
      %1904 = vmatmul.mubr.bf16.gmra.mrb[0].mxu0 %v1761
      %v1905 = vpop.f32.mrb[0].mxu0
      %v1906 = vadd.f32 %v1614, %v1905
      %v1907 = vpop.f32.mrb[0].mxu0
      %v1908 = vpop.f32.mrb[0].mxu0
      %v1909 = vadd.f32 %v1617, %v1908
      %v1910 = vpop.f32.mrb[0].mxu0
      %1911 = vmatprep.mubr.bf16.mxu0 0
      %1912 = vmatmul.mubr.bf16.gmra.mrb[0].mxu0 %v1764
      %v1913 = vpop.f32.mrb[0].mxu0
      %v1914 = vadd.f32 %v1622, %v1913
      %v1915 = vpop.f32.mrb[0].mxu0
      %v1916 = vpop.f32.mrb[0].mxu0
      %v1917 = vadd.f32 %v1625, %v1916
      %v1918 = vpop.f32.mrb[0].mxu0
      %1919 = vmatprep.mubr.bf16.mxu0 0
      %1920 = vmatmul.mubr.bf16.gmra.mrb[0].mxu0 %v1767
      %v1921 = vpop.f32.mrb[0].mxu0
      %v1922 = vadd.f32 %v1630, %v1921
      %v1923 = vpop.f32.mrb[0].mxu0
      %v1924 = vpop.f32.mrb[0].mxu0
      %v1925 = vadd.f32 %v1633, %v1924
      %v1926 = vpop.f32.mrb[0].mxu0
      %1927 = vmatprep.mubr.bf16.mxu0 0
      %1928 = vmatmul.mubr.bf16.gmra.mrb[0].mxu0 %v1770
      %v1929 = vpop.f32.mrb[0].mxu0
      %v1930 = vadd.f32 %v1638, %v1929
      %v1931 = vpop.f32.mrb[0].mxu0
      %v1932 = vpop.f32.mrb[0].mxu0
      %v1933 = vadd.f32 %v1641, %v1932
      %v1934 = vpop.f32.mrb[0].mxu0
      %1935 = vdwg.mxu0
      %v1936 = vld [vmem:[#allocation2] sm:$0xe]
      %v1937 = vld [vmem:[#allocation2 + $0xc] sm:$0xe]
      %v1938 = vld [vmem:[#allocation2 + $0x18] sm:$0xe]
      %v1939 = vld [vmem:[#allocation2 + $0x24] sm:$0xe]
      %v1940 = vld [vmem:[#allocation2 + $0x30] sm:$0xe]
      %v1941 = vld [vmem:[#allocation2 + $0x3c] sm:$0xe]
      %v1942 = vld [vmem:[#allocation2 + $0x48] sm:$0xe]
      %v1943 = vld [vmem:[#allocation2 + $0x54] sm:$0xe]
      %v1944 = vld [vmem:[#allocation2 + $0x60] sm:$0xe]
      %v1945 = vld [vmem:[#allocation2 + $0x6c] sm:$0xe]
      %v1946 = vld [vmem:[#allocation2 + $0x78] sm:$0xe]
      %v1947 = vld [vmem:[#allocation2 + $0x84] sm:$0xe]
      %v1948 = vld [vmem:[#allocation2 + $0x90] sm:$0xe]
      %v1949 = vld [vmem:[#allocation2 + $0x9c] sm:$0xe]
      %v1950 = vld [vmem:[#allocation2 + $0xa8] sm:$0xe]
      %v1951 = vld [vmem:[#allocation2 + $0xb4] sm:$0xe]
      %vm1984 = vcmask 1042432
      %vm1985 = vcmask 1046532
      %vm1986 = vmor %vm1984, %vm1985
      %v1987 = vrot.slane %v1936, 5
      %v1988 = vrot.slane %v1987, 4
      %v1989 = vrot.slane %v942, 5
      %v1990 = vsel %vm1986, %v1988, %v1989
      %v1991 = vrot.slane %v1989, 4
      %v1992 = vrot.slane %v974, 5
      %v1993 = vsel %vm1986, %v1991, %v1992
      %v1994 = vrot.slane %v1937, 5
      %v1995 = vrot.slane %v1994, 4
      %v1996 = vrot.slane %v944, 5
      %v1997 = vsel %vm1986, %v1995, %v1996
      %v1998 = vrot.slane %v1996, 4
      %v1999 = vrot.slane %v975, 5
      %v2000 = vsel %vm1986, %v1998, %v1999
      %v2001 = vrot.slane %v1938, 5
      %v2002 = vrot.slane %v2001, 4
      %v2003 = vrot.slane %v946, 5
      %v2004 = vsel %vm1986, %v2002, %v2003
      %v2005 = vrot.slane %v2003, 4
      %v2006 = vrot.slane %v976, 5
      %v2007 = vsel %vm1986, %v2005, %v2006
      %v2008 = vrot.slane %v1939, 5
      %v2009 = vrot.slane %v2008, 4
      %v2010 = vrot.slane %v948, 5
      %v2011 = vsel %vm1986, %v2009, %v2010
      %v2012 = vrot.slane %v2010, 4
      %v2013 = vrot.slane %v977, 5
      %v2014 = vsel %vm1986, %v2012, %v2013
      %v2015 = vrot.slane %v1940, 5
      %v2016 = vrot.slane %v2015, 4
      %v2017 = vrot.slane %v950, 5
      %v2018 = vsel %vm1986, %v2016, %v2017
      %v2019 = vrot.slane %v2017, 4
      %v2020 = vrot.slane %v978, 5
      %v2021 = vsel %vm1986, %v2019, %v2020
      %v2022 = vrot.slane %v1941, 5
      %v2023 = vrot.slane %v2022, 4
      %v2024 = vrot.slane %v952, 5
      %v2025 = vsel %vm1986, %v2023, %v2024
      %v2026 = vrot.slane %v2024, 4
      %v2027 = vrot.slane %v979, 5
      %v2028 = vsel %vm1986, %v2026, %v2027
      %v2029 = vrot.slane %v1942, 5
      %v2030 = vrot.slane %v2029, 4
      %v2031 = vrot.slane %v954, 5
      %v2032 = vsel %vm1986, %v2030, %v2031
      %v2033 = vrot.slane %v2031, 4
      %v2034 = vrot.slane %v980, 5
      %v2035 = vsel %vm1986, %v2033, %v2034
      %v2036 = vrot.slane %v1943, 5
      %v2037 = vrot.slane %v2036, 4
      %v2038 = vrot.slane %v956, 5
      %v2039 = vsel %vm1986, %v2037, %v2038
      %v2040 = vrot.slane %v2038, 4
      %v2041 = vrot.slane %v981, 5
      %v2042 = vsel %vm1986, %v2040, %v2041
      %v2043 = vrot.slane %v1944, 5
      %v2044 = vrot.slane %v2043, 4
      %v2045 = vrot.slane %v958, 5
      %v2046 = vsel %vm1986, %v2044, %v2045
      %v2047 = vrot.slane %v2045, 4
      %v2048 = vrot.slane %v982, 5
      %v2049 = vsel %vm1986, %v2047, %v2048
      %v2050 = vrot.slane %v1945, 5
      %v2051 = vrot.slane %v2050, 4
      %v2052 = vrot.slane %v960, 5
      %v2053 = vsel %vm1986, %v2051, %v2052
      %v2054 = vrot.slane %v2052, 4
      %v2055 = vrot.slane %v983, 5
      %v2056 = vsel %vm1986, %v2054, %v2055
      %v2057 = vrot.slane %v1946, 5
      %v2058 = vrot.slane %v2057, 4
      %v2059 = vrot.slane %v962, 5
      %v2060 = vsel %vm1986, %v2058, %v2059
      %v2061 = vrot.slane %v2059, 4
      %v2062 = vrot.slane %v984, 5
      %v2063 = vsel %vm1986, %v2061, %v2062
      %v2064 = vrot.slane %v1947, 5
      %v2065 = vrot.slane %v2064, 4
      %v2066 = vrot.slane %v964, 5
      %v2067 = vsel %vm1986, %v2065, %v2066
      %v2068 = vrot.slane %v2066, 4
      %v2069 = vrot.slane %v985, 5
      %v2070 = vsel %vm1986, %v2068, %v2069
      %v2071 = vrot.slane %v1948, 5
      %v2072 = vrot.slane %v2071, 4
      %v2073 = vrot.slane %v966, 5
      %v2074 = vsel %vm1986, %v2072, %v2073
      %v2075 = vrot.slane %v2073, 4
      %v2076 = vrot.slane %v986, 5
      %v2077 = vsel %vm1986, %v2075, %v2076
      %v2078 = vrot.slane %v1949, 5
      %v2079 = vrot.slane %v2078, 4
      %v2080 = vrot.slane %v968, 5
      %v2081 = vsel %vm1986, %v2079, %v2080
      %v2082 = vrot.slane %v2080, 4
      %v2083 = vrot.slane %v987, 5
      %v2084 = vsel %vm1986, %v2082, %v2083
      %v2085 = vrot.slane %v1950, 5
      %v2086 = vrot.slane %v2085, 4
      %v2087 = vrot.slane %v970, 5
      %v2088 = vsel %vm1986, %v2086, %v2087
      %v2089 = vrot.slane %v2087, 4
      %v2090 = vrot.slane %v988, 5
      %v2091 = vsel %vm1986, %v2089, %v2090
      %v2092 = vrot.slane %v1951, 5
      %v2093 = vrot.slane %v2092, 4
      %v2094 = vrot.slane %v972, 5
      %v2095 = vsel %vm1986, %v2093, %v2094
      %v2096 = vrot.slane %v2094, 4
      %v2097 = vrot.slane %v989, 5
      %v2098 = vsel %vm1986, %v2096, %v2097
      %s2099 = scalar_lea.vmem %s1, 4
      %v2100 = vld [vmem:[%s2099] sm:$0x3]
      %v2101 = vunpack.c.l.b16 %v1990
      %v2102 = vunpack.c.l.b16 %v1993
      %v2103 = vunpack.c.l.b16 %v1997
      %v2104 = vunpack.c.l.b16 %v2000
      %v2105 = vunpack.c.l.b16 %v2004
      %v2106 = vunpack.c.l.b16 %v2007
      %v2107 = vunpack.c.l.b16 %v2011
      %v2108 = vunpack.c.l.b16 %v2014
      %v2109 = vunpack.c.l.b16 %v2018
      %v2110 = vunpack.c.l.b16 %v2021
      %v2111 = vunpack.c.l.b16 %v2025
      %v2112 = vunpack.c.l.b16 %v2028
      %v2113 = vunpack.c.l.b16 %v2032
      %v2114 = vunpack.c.l.b16 %v2035
      %v2115 = vunpack.c.l.b16 %v2039
      %v2116 = vunpack.c.l.b16 %v2042
      %v2117 = vunpack.c.l.b16 %v2046
      %v2118 = vunpack.c.l.b16 %v2049
      %v2119 = vunpack.c.l.b16 %v2053
      %v2120 = vunpack.c.l.b16 %v2056
      %v2121 = vunpack.c.l.b16 %v2060
      %v2122 = vunpack.c.l.b16 %v2063
      %v2123 = vunpack.c.l.b16 %v2067
      %v2124 = vunpack.c.l.b16 %v2070
      %v2125 = vunpack.c.l.b16 %v2074
      %v2126 = vunpack.c.l.b16 %v2077
      %v2127 = vunpack.c.l.b16 %v2081
      %v2128 = vunpack.c.l.b16 %v2084
      %v2129 = vunpack.c.l.b16 %v2088
      %v2130 = vunpack.c.l.b16 %v2091
      %v2131 = vunpack.c.l.b16 %v2095
      %v2132 = vunpack.c.l.b16 %v2098
      %v2133 = vpack.c.b16 %v2102, %v2101
      %v2134 = vpack.c.b16 %v2104, %v2103
      %v2135 = vpack.c.b16 %v2106, %v2105
      %v2136 = vpack.c.b16 %v2108, %v2107
      %v2137 = vpack.c.b16 %v2110, %v2109
      %v2138 = vpack.c.b16 %v2112, %v2111
      %v2139 = vpack.c.b16 %v2114, %v2113
      %v2140 = vpack.c.b16 %v2116, %v2115
      %v2141 = vpack.c.b16 %v2118, %v2117
      %v2142 = vpack.c.b16 %v2120, %v2119
      %v2143 = vpack.c.b16 %v2122, %v2121
      %v2144 = vpack.c.b16 %v2124, %v2123
      %v2145 = vpack.c.b16 %v2126, %v2125
      %v2146 = vpack.c.b16 %v2128, %v2127
      %v2147 = vpack.c.b16 %v2130, %v2129
      %v2148 = vpack.c.b16 %v2132, %v2131
      %v2150 = vsel %vm1427, %v2133, 0
      %v2153 = vsel %vm1427, %v2134, 0
      %v2156 = vsel %vm1427, %v2135, 0
      %v2159 = vsel %vm1427, %v2136, 0
      %v2162 = vsel %vm1427, %v2137, 0
      %v2165 = vsel %vm1427, %v2138, 0
      %v2168 = vsel %vm1427, %v2139, 0
      %v2171 = vsel %vm1427, %v2140, 0
      %v2174 = vsel %vm1427, %v2141, 0
      %v2177 = vsel %vm1427, %v2142, 0
      %v2180 = vsel %vm1427, %v2143, 0
      %v2183 = vsel %vm1427, %v2144, 0
      %v2186 = vsel %vm1427, %v2145, 0
      %v2189 = vsel %vm1427, %v2146, 0
      %v2192 = vsel %vm1427, %v2147, 0
      %v2195 = vsel %vm1427, %v2148, 0
      %v2198 = vand.u32 %v2100, %v1479
      %2200 = vmatprep.subr.bf16.mxu0 0
      %2201 = vmatpush1.bf16.msra.mxu0 %v2198
      %2202 = vmatprep.subr.bf16.mxu0 0
      %2203 = vmatpush1.bf16.msra.mxu0 0
      %2204 = vmatprep.subr.bf16.mxu0 0
      %2205 = vmatpush1.bf16.msra.mxu0 0
      %2206 = vmatprep.subr.bf16.mxu0 0
      %2207 = vmatpush1.bf16.msra.mxu0 0
      %2208 = vmatprep.subr.bf16.mxu0 0
      %2209 = vmatpush1.bf16.msra.mxu0 0
      %2210 = vmatprep.subr.bf16.mxu0 0
      %2211 = vmatpush1.bf16.msra.mxu0 0
      %2212 = vmatprep.subr.bf16.mxu0 0
      %2213 = vmatpush1.bf16.msra.mxu0 0
      %2214 = vmatprep.subr.bf16.mxu0 0
      %2215 = vmatpush1.bf16.msra.mxu0 0
      %2216 = vmatprep.subr.bf16.mxu0 0
      %2217 = vmatpush1.bf16.msra.mxu0 0
      %2218 = vmatprep.subr.bf16.mxu0 0
      %2219 = vmatpush1.bf16.msra.mxu0 0
      %2220 = vmatprep.subr.bf16.mxu0 0
      %2221 = vmatpush1.bf16.msra.mxu0 0
      %2222 = vmatprep.subr.bf16.mxu0 0
      %2223 = vmatpush1.bf16.msra.mxu0 0
      %2224 = vmatprep.subr.bf16.mxu0 0
      %2225 = vmatpush1.bf16.msra.mxu0 0
      %2226 = vmatprep.subr.bf16.mxu0 0
      %2227 = vmatpush1.bf16.msra.mxu0 0
      %2228 = vmatprep.subr.bf16.mxu0 0
      %2229 = vmatpush1.bf16.msra.mxu0 0
      %2230 = vmatprep.subr.bf16.mxu0 0
      %2231 = vmatpush1.bf16.msra.mxu0 0
      %2232 = vmatprep.mubr.bf16.mxu0 0
      %2233 = vmatmul.mubr.bf16.gmra.mrb[0].mxu0 %v2150
      %v2234 = vpop.f32.mrb[0].mxu0
      %v2235 = vadd.f32 0.0, %v2234
      %v2236 = vpop.f32.mrb[0].mxu0
      %v2237 = vpop.f32.mrb[0].mxu0
      %v2238 = vadd.f32 0.0, %v2237
      %v2239 = vpop.f32.mrb[0].mxu0
      %2240 = vmatprep.mubr.bf16.mxu0 0
      %2241 = vmatmul.mubr.bf16.gmra.mrb[0].mxu0 %v2153
      %v2242 = vpop.f32.mrb[0].mxu0
      %v2243 = vadd.f32 0.0, %v2242
      %v2244 = vpop.f32.mrb[0].mxu0
      %v2245 = vpop.f32.mrb[0].mxu0
      %v2246 = vadd.f32 0.0, %v2245
      %v2247 = vpop.f32.mrb[0].mxu0
      %2248 = vmatprep.mubr.bf16.mxu0 0
      %2249 = vmatmul.mubr.bf16.gmra.mrb[0].mxu0 %v2156
      %v2250 = vpop.f32.mrb[0].mxu0
      %v2251 = vadd.f32 0.0, %v2250
      %v2252 = vpop.f32.mrb[0].mxu0
      %v2253 = vpop.f32.mrb[0].mxu0
      %v2254 = vadd.f32 0.0, %v2253
      %v2255 = vpop.f32.mrb[0].mxu0
      %2256 = vmatprep.mubr.bf16.mxu0 0
      %2257 = vmatmul.mubr.bf16.gmra.mrb[0].mxu0 %v2159
      %v2258 = vpop.f32.mrb[0].mxu0
      %v2259 = vadd.f32 0.0, %v2258
      %v2260 = vpop.f32.mrb[0].mxu0
      %v2261 = vpop.f32.mrb[0].mxu0
      %v2262 = vadd.f32 0.0, %v2261
      %v2263 = vpop.f32.mrb[0].mxu0
      %2264 = vmatprep.mubr.bf16.mxu0 0
      %2265 = vmatmul.mubr.bf16.gmra.mrb[0].mxu0 %v2162
      %v2266 = vpop.f32.mrb[0].mxu0
      %v2267 = vadd.f32 0.0, %v2266
      %v2268 = vpop.f32.mrb[0].mxu0
      %v2269 = vpop.f32.mrb[0].mxu0
      %v2270 = vadd.f32 0.0, %v2269
      %v2271 = vpop.f32.mrb[0].mxu0
      %2272 = vmatprep.mubr.bf16.mxu0 0
      %2273 = vmatmul.mubr.bf16.gmra.mrb[0].mxu0 %v2165
      %v2274 = vpop.f32.mrb[0].mxu0
      %v2275 = vadd.f32 0.0, %v2274
      %v2276 = vpop.f32.mrb[0].mxu0
      %v2277 = vpop.f32.mrb[0].mxu0
      %v2278 = vadd.f32 0.0, %v2277
      %v2279 = vpop.f32.mrb[0].mxu0
      %2280 = vmatprep.mubr.bf16.mxu0 0
      %2281 = vmatmul.mubr.bf16.gmra.mrb[0].mxu0 %v2168
      %v2282 = vpop.f32.mrb[0].mxu0
      %v2283 = vadd.f32 0.0, %v2282
      %v2284 = vpop.f32.mrb[0].mxu0
      %v2285 = vpop.f32.mrb[0].mxu0
      %v2286 = vadd.f32 0.0, %v2285
      %v2287 = vpop.f32.mrb[0].mxu0
      %2288 = vmatprep.mubr.bf16.mxu0 0
      %2289 = vmatmul.mubr.bf16.gmra.mrb[0].mxu0 %v2171
      %v2290 = vpop.f32.mrb[0].mxu0
      %v2291 = vadd.f32 0.0, %v2290
      %v2292 = vpop.f32.mrb[0].mxu0
      %v2293 = vpop.f32.mrb[0].mxu0
      %v2294 = vadd.f32 0.0, %v2293
      %v2295 = vpop.f32.mrb[0].mxu0
      %2296 = vmatprep.mubr.bf16.mxu0 0
      %2297 = vmatmul.mubr.bf16.gmra.mrb[0].mxu0 %v2174
      %v2298 = vpop.f32.mrb[0].mxu0
      %v2299 = vadd.f32 0.0, %v2298
      %v2300 = vpop.f32.mrb[0].mxu0
      %v2301 = vpop.f32.mrb[0].mxu0
      %v2302 = vadd.f32 0.0, %v2301
      %v2303 = vpop.f32.mrb[0].mxu0
      %2304 = vmatprep.mubr.bf16.mxu0 0
      %2305 = vmatmul.mubr.bf16.gmra.mrb[0].mxu0 %v2177
      %v2306 = vpop.f32.mrb[0].mxu0
      %v2307 = vadd.f32 0.0, %v2306
      %v2308 = vpop.f32.mrb[0].mxu0
      %v2309 = vpop.f32.mrb[0].mxu0
      %v2310 = vadd.f32 0.0, %v2309
      %v2311 = vpop.f32.mrb[0].mxu0
      %2312 = vmatprep.mubr.bf16.mxu0 0
      %2313 = vmatmul.mubr.bf16.gmra.mrb[0].mxu0 %v2180
      %v2314 = vpop.f32.mrb[0].mxu0
      %v2315 = vadd.f32 0.0, %v2314
      %v2316 = vpop.f32.mrb[0].mxu0
      %v2317 = vpop.f32.mrb[0].mxu0
      %v2318 = vadd.f32 0.0, %v2317
      %v2319 = vpop.f32.mrb[0].mxu0
      %2320 = vmatprep.mubr.bf16.mxu0 0
      %2321 = vmatmul.mubr.bf16.gmra.mrb[0].mxu0 %v2183
      %v2322 = vpop.f32.mrb[0].mxu0
      %v2323 = vadd.f32 0.0, %v2322
      %v2324 = vpop.f32.mrb[0].mxu0
      %v2325 = vpop.f32.mrb[0].mxu0
      %v2326 = vadd.f32 0.0, %v2325
      %v2327 = vpop.f32.mrb[0].mxu0
      %2328 = vmatprep.mubr.bf16.mxu0 0
      %2329 = vmatmul.mubr.bf16.gmra.mrb[0].mxu0 %v2186
      %v2330 = vpop.f32.mrb[0].mxu0
      %v2331 = vadd.f32 0.0, %v2330
      %v2332 = vpop.f32.mrb[0].mxu0
      %v2333 = vpop.f32.mrb[0].mxu0
      %v2334 = vadd.f32 0.0, %v2333
      %v2335 = vpop.f32.mrb[0].mxu0
      %2336 = vmatprep.mubr.bf16.mxu0 0
      %2337 = vmatmul.mubr.bf16.gmra.mrb[0].mxu0 %v2189
      %v2338 = vpop.f32.mrb[0].mxu0
      %v2339 = vadd.f32 0.0, %v2338
      %v2340 = vpop.f32.mrb[0].mxu0
      %v2341 = vpop.f32.mrb[0].mxu0
      %v2342 = vadd.f32 0.0, %v2341
      %v2343 = vpop.f32.mrb[0].mxu0
      %2344 = vmatprep.mubr.bf16.mxu0 0
      %2345 = vmatmul.mubr.bf16.gmra.mrb[0].mxu0 %v2192
      %v2346 = vpop.f32.mrb[0].mxu0
      %v2347 = vadd.f32 0.0, %v2346
      %v2348 = vpop.f32.mrb[0].mxu0
      %v2349 = vpop.f32.mrb[0].mxu0
      %v2350 = vadd.f32 0.0, %v2349
      %v2351 = vpop.f32.mrb[0].mxu0
      %2352 = vmatprep.mubr.bf16.mxu0 0
      %2353 = vmatmul.mubr.bf16.gmra.mrb[0].mxu0 %v2195
      %v2354 = vpop.f32.mrb[0].mxu0
      %v2355 = vadd.f32 0.0, %v2354
      %v2356 = vpop.f32.mrb[0].mxu0
      %v2357 = vpop.f32.mrb[0].mxu0
      %v2358 = vadd.f32 0.0, %v2357
      %v2359 = vpop.f32.mrb[0].mxu0
      %2360 = vdwg.mxu0
      %v2361 = vadd.f32 %v1810, %v2235
      %v2362 = vadd.f32 %v1813, %v2238
      %v2363 = vadd.f32 %v1818, %v2243
      %v2364 = vadd.f32 %v1821, %v2246
      %v2365 = vadd.f32 %v1826, %v2251
      %v2366 = vadd.f32 %v1829, %v2254
      %v2367 = vadd.f32 %v1834, %v2259
      %v2368 = vadd.f32 %v1837, %v2262
      %v2369 = vadd.f32 %v1842, %v2267
      %v2370 = vadd.f32 %v1845, %v2270
      %v2371 = vadd.f32 %v1850, %v2275
      %v2372 = vadd.f32 %v1853, %v2278
      %v2373 = vadd.f32 %v1858, %v2283
      %v2374 = vadd.f32 %v1861, %v2286
      %v2375 = vadd.f32 %v1866, %v2291
      %v2376 = vadd.f32 %v1869, %v2294
      %v2377 = vadd.f32 %v1874, %v2299
      %v2378 = vadd.f32 %v1877, %v2302
      %v2379 = vadd.f32 %v1882, %v2307
      %v2380 = vadd.f32 %v1885, %v2310
      %v2381 = vadd.f32 %v1890, %v2315
      %v2382 = vadd.f32 %v1893, %v2318
      %v2383 = vadd.f32 %v1898, %v2323
      %v2384 = vadd.f32 %v1901, %v2326
      %v2385 = vadd.f32 %v1906, %v2331
      %v2386 = vadd.f32 %v1909, %v2334
      %v2387 = vadd.f32 %v1914, %v2339
      %v2388 = vadd.f32 %v1917, %v2342
      %v2389 = vadd.f32 %v1922, %v2347
      %v2390 = vadd.f32 %v1925, %v2350
      %v2391 = vadd.f32 %v1930, %v2355
      %v2392 = vadd.f32 %v1933, %v2358
      %v2393 = vld [vmem:[%s823] sm:$0xf]
      %v2394 = vld [vmem:[%s823 + $0x4] sm:$0xf]
      %v2395 = vld [vmem:[%s823 + $0xc] sm:$0xf]
      %v2396 = vld [vmem:[%s823 + $0x10] sm:$0xf]
      %v2397 = vld [vmem:[%s823 + $0x18] sm:$0xf]
      %v2398 = vld [vmem:[%s823 + $0x1c] sm:$0xf]
      %v2399 = vld [vmem:[%s823 + $0x24] sm:$0xf]
      %v2400 = vld [vmem:[%s823 + $0x28] sm:$0xf]
      %v2401 = vld [vmem:[%s823 + $0x30] sm:$0xf]
      %v2402 = vld [vmem:[%s823 + $0x34] sm:$0xf]
      %v2403 = vld [vmem:[%s823 + $0x3c] sm:$0xf]
      %v2404 = vld [vmem:[%s823 + $0x40] sm:$0xf]
      %v2405 = vld [vmem:[%s823 + $0x48] sm:$0xf]
      %v2406 = vld [vmem:[%s823 + $0x4c] sm:$0xf]
      %v2407 = vld [vmem:[%s823 + $0x54] sm:$0xf]
      %v2408 = vld [vmem:[%s823 + $0x58] sm:$0xf]
      %v2409 = vld [vmem:[%s823 + $0x60] sm:$0xf]
      %v2410 = vld [vmem:[%s823 + $0x64] sm:$0xf]
      %v2411 = vld [vmem:[%s823 + $0x6c] sm:$0xf]
      %v2412 = vld [vmem:[%s823 + $0x70] sm:$0xf]
      %v2413 = vld [vmem:[%s823 + $0x78] sm:$0xf]
      %v2414 = vld [vmem:[%s823 + $0x7c] sm:$0xf]
      %v2415 = vld [vmem:[%s823 + $0x84] sm:$0xf]
      %v2416 = vld [vmem:[%s823 + $0x88] sm:$0xf]
      %v2417 = vld [vmem:[%s823 + $0x90] sm:$0xf]
      %v2418 = vld [vmem:[%s823 + $0x94] sm:$0xf]
      %v2419 = vld [vmem:[%s823 + $0x9c] sm:$0xf]
      %v2420 = vld [vmem:[%s823 + $0xa0] sm:$0xf]
      %v2421 = vld [vmem:[%s823 + $0xa8] sm:$0xf]
      %v2422 = vld [vmem:[%s823 + $0xac] sm:$0xf]
      %v2423 = vld [vmem:[%s823 + $0xb4] sm:$0xf]
      %v2424 = vld [vmem:[%s823 + $0xb8] sm:$0xf]
      %s2425 = scalar_lea.vmem %s1, 6
      %v2426 = vld [vmem:[%s2425] sm:$0x3]
      %v2459 = vunpack.c.l.b16 %v2393
      %v2460 = vunpack.c.l.b16 %v2394
      %v2461 = vunpack.c.l.b16 %v2395
      %v2462 = vunpack.c.l.b16 %v2396
      %v2463 = vunpack.c.l.b16 %v2397
      %v2464 = vunpack.c.l.b16 %v2398
      %v2465 = vunpack.c.l.b16 %v2399
      %v2466 = vunpack.c.l.b16 %v2400
      %v2467 = vunpack.c.l.b16 %v2401
      %v2468 = vunpack.c.l.b16 %v2402
      %v2469 = vunpack.c.l.b16 %v2403
      %v2470 = vunpack.c.l.b16 %v2404
      %v2471 = vunpack.c.l.b16 %v2405
      %v2472 = vunpack.c.l.b16 %v2406
      %v2473 = vunpack.c.l.b16 %v2407
      %v2474 = vunpack.c.l.b16 %v2408
      %v2475 = vunpack.c.l.b16 %v2409
      %v2476 = vunpack.c.l.b16 %v2410
      %v2477 = vunpack.c.l.b16 %v2411
      %v2478 = vunpack.c.l.b16 %v2412
      %v2479 = vunpack.c.l.b16 %v2413
      %v2480 = vunpack.c.l.b16 %v2414
      %v2481 = vunpack.c.l.b16 %v2415
      %v2482 = vunpack.c.l.b16 %v2416
      %v2483 = vunpack.c.l.b16 %v2417
      %v2484 = vunpack.c.l.b16 %v2418
      %v2485 = vunpack.c.l.b16 %v2419
      %v2486 = vunpack.c.l.b16 %v2420
      %v2487 = vunpack.c.l.b16 %v2421
      %v2488 = vunpack.c.l.b16 %v2422
      %v2489 = vunpack.c.l.b16 %v2423
      %v2490 = vunpack.c.l.b16 %v2424
      %v2491 = vpack.c.b16 %v2460, %v2459
      %v2492 = vpack.c.b16 %v2462, %v2461
      %v2493 = vpack.c.b16 %v2464, %v2463
      %v2494 = vpack.c.b16 %v2466, %v2465
      %v2495 = vpack.c.b16 %v2468, %v2467
      %v2496 = vpack.c.b16 %v2470, %v2469
      %v2497 = vpack.c.b16 %v2472, %v2471
      %v2498 = vpack.c.b16 %v2474, %v2473
      %v2499 = vpack.c.b16 %v2476, %v2475
      %v2500 = vpack.c.b16 %v2478, %v2477
      %v2501 = vpack.c.b16 %v2480, %v2479
      %v2502 = vpack.c.b16 %v2482, %v2481
      %v2503 = vpack.c.b16 %v2484, %v2483
      %v2504 = vpack.c.b16 %v2486, %v2485
      %v2505 = vpack.c.b16 %v2488, %v2487
      %v2506 = vpack.c.b16 %v2490, %v2489
      %v2508 = vsel %vm1427, %v2491, 0
      %v2511 = vsel %vm1427, %v2492, 0
      %v2514 = vsel %vm1427, %v2493, 0
      %v2517 = vsel %vm1427, %v2494, 0
      %v2520 = vsel %vm1427, %v2495, 0
      %v2523 = vsel %vm1427, %v2496, 0
      %v2526 = vsel %vm1427, %v2497, 0
      %v2529 = vsel %vm1427, %v2498, 0
      %v2532 = vsel %vm1427, %v2499, 0
      %v2535 = vsel %vm1427, %v2500, 0
      %v2538 = vsel %vm1427, %v2501, 0
      %v2541 = vsel %vm1427, %v2502, 0
      %v2544 = vsel %vm1427, %v2503, 0
      %v2547 = vsel %vm1427, %v2504, 0
      %v2550 = vsel %vm1427, %v2505, 0
      %v2553 = vsel %vm1427, %v2506, 0
      %v2556 = vand.u32 %v2426, %v1479
      %2558 = vmatprep.subr.bf16.mxu0 0
      %2559 = vmatpush1.bf16.msra.mxu0 %v2556
      %2560 = vmatprep.subr.bf16.mxu0 0
      %2561 = vmatpush1.bf16.msra.mxu0 0
      %2562 = vmatprep.subr.bf16.mxu0 0
      %2563 = vmatpush1.bf16.msra.mxu0 0
      %2564 = vmatprep.subr.bf16.mxu0 0
      %2565 = vmatpush1.bf16.msra.mxu0 0
      %2566 = vmatprep.subr.bf16.mxu0 0
      %2567 = vmatpush1.bf16.msra.mxu0 0
      %2568 = vmatprep.subr.bf16.mxu0 0
      %2569 = vmatpush1.bf16.msra.mxu0 0
      %2570 = vmatprep.subr.bf16.mxu0 0
      %2571 = vmatpush1.bf16.msra.mxu0 0
      %2572 = vmatprep.subr.bf16.mxu0 0
      %2573 = vmatpush1.bf16.msra.mxu0 0
      %2574 = vmatprep.subr.bf16.mxu0 0
      %2575 = vmatpush1.bf16.msra.mxu0 0
      %2576 = vmatprep.subr.bf16.mxu0 0
      %2577 = vmatpush1.bf16.msra.mxu0 0
      %2578 = vmatprep.subr.bf16.mxu0 0
      %2579 = vmatpush1.bf16.msra.mxu0 0
      %2580 = vmatprep.subr.bf16.mxu0 0
      %2581 = vmatpush1.bf16.msra.mxu0 0
      %2582 = vmatprep.subr.bf16.mxu0 0
      %2583 = vmatpush1.bf16.msra.mxu0 0
      %2584 = vmatprep.subr.bf16.mxu0 0
      %2585 = vmatpush1.bf16.msra.mxu0 0
      %2586 = vmatprep.subr.bf16.mxu0 0
      %2587 = vmatpush1.bf16.msra.mxu0 0
      %2588 = vmatprep.subr.bf16.mxu0 0
      %2589 = vmatpush1.bf16.msra.mxu0 0
      %2590 = vmatprep.mubr.bf16.mxu0 0
      %2591 = vmatmul.mubr.bf16.gmra.mrb[0].mxu0 %v2508
      %v2592 = vpop.f32.mrb[0].mxu0
      %v2593 = vadd.f32 0.0, %v2592
      %v2594 = vpop.f32.mrb[0].mxu0
      %v2595 = vpop.f32.mrb[0].mxu0
      %v2596 = vadd.f32 0.0, %v2595
      %v2597 = vpop.f32.mrb[0].mxu0
      %2598 = vmatprep.mubr.bf16.mxu0 0
      %2599 = vmatmul.mubr.bf16.gmra.mrb[0].mxu0 %v2511
      %v2600 = vpop.f32.mrb[0].mxu0
      %v2601 = vadd.f32 0.0, %v2600
      %v2602 = vpop.f32.mrb[0].mxu0
      %v2603 = vpop.f32.mrb[0].mxu0
      %v2604 = vadd.f32 0.0, %v2603
      %v2605 = vpop.f32.mrb[0].mxu0
      %2606 = vmatprep.mubr.bf16.mxu0 0
      %2607 = vmatmul.mubr.bf16.gmra.mrb[0].mxu0 %v2514
      %v2608 = vpop.f32.mrb[0].mxu0
      %v2609 = vadd.f32 0.0, %v2608
      %v2610 = vpop.f32.mrb[0].mxu0
      %v2611 = vpop.f32.mrb[0].mxu0
      %v2612 = vadd.f32 0.0, %v2611
      %v2613 = vpop.f32.mrb[0].mxu0
      %2614 = vmatprep.mubr.bf16.mxu0 0
      %2615 = vmatmul.mubr.bf16.gmra.mrb[0].mxu0 %v2517
      %v2616 = vpop.f32.mrb[0].mxu0
      %v2617 = vadd.f32 0.0, %v2616
      %v2618 = vpop.f32.mrb[0].mxu0
      %v2619 = vpop.f32.mrb[0].mxu0
      %v2620 = vadd.f32 0.0, %v2619
      %v2621 = vpop.f32.mrb[0].mxu0
      %2622 = vmatprep.mubr.bf16.mxu0 0
      %2623 = vmatmul.mubr.bf16.gmra.mrb[0].mxu0 %v2520
      %v2624 = vpop.f32.mrb[0].mxu0
      %v2625 = vadd.f32 0.0, %v2624
      %v2626 = vpop.f32.mrb[0].mxu0
      %v2627 = vpop.f32.mrb[0].mxu0
      %v2628 = vadd.f32 0.0, %v2627
      %v2629 = vpop.f32.mrb[0].mxu0
      %2630 = vmatprep.mubr.bf16.mxu0 0
      %2631 = vmatmul.mubr.bf16.gmra.mrb[0].mxu0 %v2523
      %v2632 = vpop.f32.mrb[0].mxu0
      %v2633 = vadd.f32 0.0, %v2632
      %v2634 = vpop.f32.mrb[0].mxu0
      %v2635 = vpop.f32.mrb[0].mxu0
      %v2636 = vadd.f32 0.0, %v2635
      %v2637 = vpop.f32.mrb[0].mxu0
      %2638 = vmatprep.mubr.bf16.mxu0 0
      %2639 = vmatmul.mubr.bf16.gmra.mrb[0].mxu0 %v2526
      %v2640 = vpop.f32.mrb[0].mxu0
      %v2641 = vadd.f32 0.0, %v2640
      %v2642 = vpop.f32.mrb[0].mxu0
      %v2643 = vpop.f32.mrb[0].mxu0
      %v2644 = vadd.f32 0.0, %v2643
      %v2645 = vpop.f32.mrb[0].mxu0
      %2646 = vmatprep.mubr.bf16.mxu0 0
      %2647 = vmatmul.mubr.bf16.gmra.mrb[0].mxu0 %v2529
      %v2648 = vpop.f32.mrb[0].mxu0
      %v2649 = vadd.f32 0.0, %v2648
      %v2650 = vpop.f32.mrb[0].mxu0
      %v2651 = vpop.f32.mrb[0].mxu0
      %v2652 = vadd.f32 0.0, %v2651
      %v2653 = vpop.f32.mrb[0].mxu0
      %2654 = vmatprep.mubr.bf16.mxu0 0
      %2655 = vmatmul.mubr.bf16.gmra.mrb[0].mxu0 %v2532
      %v2656 = vpop.f32.mrb[0].mxu0
      %v2657 = vadd.f32 0.0, %v2656
      %v2658 = vpop.f32.mrb[0].mxu0
      %v2659 = vpop.f32.mrb[0].mxu0
      %v2660 = vadd.f32 0.0, %v2659
      %v2661 = vpop.f32.mrb[0].mxu0
      %2662 = vmatprep.mubr.bf16.mxu0 0
      %2663 = vmatmul.mubr.bf16.gmra.mrb[0].mxu0 %v2535
      %v2664 = vpop.f32.mrb[0].mxu0
      %v2665 = vadd.f32 0.0, %v2664
      %v2666 = vpop.f32.mrb[0].mxu0
      %v2667 = vpop.f32.mrb[0].mxu0
      %v2668 = vadd.f32 0.0, %v2667
      %v2669 = vpop.f32.mrb[0].mxu0
      %2670 = vmatprep.mubr.bf16.mxu0 0
      %2671 = vmatmul.mubr.bf16.gmra.mrb[0].mxu0 %v2538
      %v2672 = vpop.f32.mrb[0].mxu0
      %v2673 = vadd.f32 0.0, %v2672
      %v2674 = vpop.f32.mrb[0].mxu0
      %v2675 = vpop.f32.mrb[0].mxu0
      %v2676 = vadd.f32 0.0, %v2675
      %v2677 = vpop.f32.mrb[0].mxu0
      %2678 = vmatprep.mubr.bf16.mxu0 0
      %2679 = vmatmul.mubr.bf16.gmra.mrb[0].mxu0 %v2541
      %v2680 = vpop.f32.mrb[0].mxu0
      %v2681 = vadd.f32 0.0, %v2680
      %v2682 = vpop.f32.mrb[0].mxu0
      %v2683 = vpop.f32.mrb[0].mxu0
      %v2684 = vadd.f32 0.0, %v2683
      %v2685 = vpop.f32.mrb[0].mxu0
      %2686 = vmatprep.mubr.bf16.mxu0 0
      %2687 = vmatmul.mubr.bf16.gmra.mrb[0].mxu0 %v2544
      %v2688 = vpop.f32.mrb[0].mxu0
      %v2689 = vadd.f32 0.0, %v2688
      %v2690 = vpop.f32.mrb[0].mxu0
      %v2691 = vpop.f32.mrb[0].mxu0
      %v2692 = vadd.f32 0.0, %v2691
      %v2693 = vpop.f32.mrb[0].mxu0
      %2694 = vmatprep.mubr.bf16.mxu0 0
      %2695 = vmatmul.mubr.bf16.gmra.mrb[0].mxu0 %v2547
      %v2696 = vpop.f32.mrb[0].mxu0
      %v2697 = vadd.f32 0.0, %v2696
      %v2698 = vpop.f32.mrb[0].mxu0
      %v2699 = vpop.f32.mrb[0].mxu0
      %v2700 = vadd.f32 0.0, %v2699
      %v2701 = vpop.f32.mrb[0].mxu0
      %2702 = vmatprep.mubr.bf16.mxu0 0
      %2703 = vmatmul.mubr.bf16.gmra.mrb[0].mxu0 %v2550
      %v2704 = vpop.f32.mrb[0].mxu0
      %v2705 = vadd.f32 0.0, %v2704
      %v2706 = vpop.f32.mrb[0].mxu0
      %v2707 = vpop.f32.mrb[0].mxu0
      %v2708 = vadd.f32 0.0, %v2707
      %v2709 = vpop.f32.mrb[0].mxu0
      %2710 = vmatprep.mubr.bf16.mxu0 0
      %2711 = vmatmul.mubr.bf16.gmra.mrb[0].mxu0 %v2553
      %v2712 = vpop.f32.mrb[0].mxu0
      %v2713 = vadd.f32 0.0, %v2712
      %v2714 = vpop.f32.mrb[0].mxu0
      %v2715 = vpop.f32.mrb[0].mxu0
      %v2716 = vadd.f32 0.0, %v2715
      %v2717 = vpop.f32.mrb[0].mxu0
      %2718 = vdwg.mxu0
      %v2719 = vadd.f32 %v2361, %v2593
      %v2720 = vadd.f32 %v2362, %v2596
      %v2721 = vadd.f32 %v2363, %v2601
      %v2722 = vadd.f32 %v2364, %v2604
      %v2723 = vadd.f32 %v2365, %v2609
      %v2724 = vadd.f32 %v2366, %v2612
      %v2725 = vadd.f32 %v2367, %v2617
      %v2726 = vadd.f32 %v2368, %v2620
      %v2727 = vadd.f32 %v2369, %v2625
      %v2728 = vadd.f32 %v2370, %v2628
      %v2729 = vadd.f32 %v2371, %v2633
      %v2730 = vadd.f32 %v2372, %v2636
      %v2731 = vadd.f32 %v2373, %v2641
      %v2732 = vadd.f32 %v2374, %v2644
      %v2733 = vadd.f32 %v2375, %v2649
      %v2734 = vadd.f32 %v2376, %v2652
      %v2735 = vadd.f32 %v2377, %v2657
      %v2736 = vadd.f32 %v2378, %v2660
      %v2737 = vadd.f32 %v2379, %v2665
      %v2738 = vadd.f32 %v2380, %v2668
      %v2739 = vadd.f32 %v2381, %v2673
      %v2740 = vadd.f32 %v2382, %v2676
      %v2741 = vadd.f32 %v2383, %v2681
      %v2742 = vadd.f32 %v2384, %v2684
      %v2743 = vadd.f32 %v2385, %v2689
      %v2744 = vadd.f32 %v2386, %v2692
      %v2745 = vadd.f32 %v2387, %v2697
      %v2746 = vadd.f32 %v2388, %v2700
      %v2747 = vadd.f32 %v2389, %v2705
      %v2748 = vadd.f32 %v2390, %v2708
      %v2749 = vadd.f32 %v2391, %v2713
      %v2750 = vadd.f32 %v2392, %v2716
      %v2751 = vld [vmem:[%s823] sm:$0xf]
      %v2752 = vld [vmem:[%s823 + $0x4] sm:$0xf]
      %v2753 = vld [vmem:[%s823 + $0x8] sm:$0x1]
      %v2754 = vld [vmem:[%s823 + $0xc] sm:$0xf]
      %v2755 = vld [vmem:[%s823 + $0x10] sm:$0xf]
      %v2756 = vld [vmem:[%s823 + $0x14] sm:$0x1]
      %v2757 = vld [vmem:[%s823 + $0x18] sm:$0xf]
      %v2758 = vld [vmem:[%s823 + $0x1c] sm:$0xf]
      %v2759 = vld [vmem:[%s823 + $0x20] sm:$0x1]
      %v2760 = vld [vmem:[%s823 + $0x24] sm:$0xf]
      %v2761 = vld [vmem:[%s823 + $0x28] sm:$0xf]
      %v2762 = vld [vmem:[%s823 + $0x2c] sm:$0x1]
      %v2763 = vld [vmem:[%s823 + $0x30] sm:$0xf]
      %v2764 = vld [vmem:[%s823 + $0x34] sm:$0xf]
      %v2765 = vld [vmem:[%s823 + $0x38] sm:$0x1]
      %v2766 = vld [vmem:[%s823 + $0x3c] sm:$0xf]
      %v2767 = vld [vmem:[%s823 + $0x40] sm:$0xf]
      %v2768 = vld [vmem:[%s823 + $0x44] sm:$0x1]
      %v2769 = vld [vmem:[%s823 + $0x48] sm:$0xf]
      %v2770 = vld [vmem:[%s823 + $0x4c] sm:$0xf]
      %v2771 = vld [vmem:[%s823 + $0x50] sm:$0x1]
      %v2772 = vld [vmem:[%s823 + $0x54] sm:$0xf]
      %v2773 = vld [vmem:[%s823 + $0x58] sm:$0xf]
      %v2774 = vld [vmem:[%s823 + $0x5c] sm:$0x1]
      %v2775 = vld [vmem:[%s823 + $0x60] sm:$0xf]
      %v2776 = vld [vmem:[%s823 + $0x64] sm:$0xf]
      %v2777 = vld [vmem:[%s823 + $0x68] sm:$0x1]
      %v2778 = vld [vmem:[%s823 + $0x6c] sm:$0xf]
      %v2779 = vld [vmem:[%s823 + $0x70] sm:$0xf]
      %v2780 = vld [vmem:[%s823 + $0x74] sm:$0x1]
      %v2781 = vld [vmem:[%s823 + $0x78] sm:$0xf]
      %v2782 = vld [vmem:[%s823 + $0x7c] sm:$0xf]
      %v2783 = vld [vmem:[%s823 + $0x80] sm:$0x1]
      %v2784 = vld [vmem:[%s823 + $0x84] sm:$0xf]
      %v2785 = vld [vmem:[%s823 + $0x88] sm:$0xf]
      %v2786 = vld [vmem:[%s823 + $0x8c] sm:$0x1]
      %v2787 = vld [vmem:[%s823 + $0x90] sm:$0xf]
      %v2788 = vld [vmem:[%s823 + $0x94] sm:$0xf]
      %v2789 = vld [vmem:[%s823 + $0x98] sm:$0x1]
      %v2790 = vld [vmem:[%s823 + $0x9c] sm:$0xf]
      %v2791 = vld [vmem:[%s823 + $0xa0] sm:$0xf]
      %v2792 = vld [vmem:[%s823 + $0xa4] sm:$0x1]
      %v2793 = vld [vmem:[%s823 + $0xa8] sm:$0xf]
      %v2794 = vld [vmem:[%s823 + $0xac] sm:$0xf]
      %v2795 = vld [vmem:[%s823 + $0xb0] sm:$0x1]
      %v2796 = vld [vmem:[%s823 + $0xb4] sm:$0xf]
      %v2797 = vld [vmem:[%s823 + $0xb8] sm:$0xf]
      %v2798 = vld [vmem:[%s823 + $0xbc] sm:$0x1]
      %v2800 = vshrl.u32 %v2751, 16
      %v2802 = vrot.slane %v2800, 4
      %v2803 = vshll.u32 %v2751, 16
      %v2805 = vrot.slane %v2803, 5
      %v2806 = vor.u32 %v2802, %v2805
      %v2807 = vrot.slane %v2806, 4
      %v2809 = vshll.u32 %v2752, 16
      %v2811 = vrot.slane %v2809, 5
      %v2812 = vsel %vm992, %v2807, %v2811
      %v2813 = vshrl.u32 %v2752, 16
      %v2815 = vrot.slane %v2813, 4
      %v2816 = vor.u32 %v2815, %v2811
      %v2817 = vrot.slane %v2816, 4
      %v2819 = vshll.u32 %v2753, 16
      %v2821 = vrot.slane %v2819, 5
      %v2822 = vsel %vm992, %v2817, %v2821
      %v2824 = vshrl.u32 %v2754, 16
      %v2826 = vrot.slane %v2824, 4
      %v2827 = vshll.u32 %v2754, 16
      %v2829 = vrot.slane %v2827, 5
      %v2830 = vor.u32 %v2826, %v2829
      %v2831 = vrot.slane %v2830, 4
      %v2833 = vshll.u32 %v2755, 16
      %v2835 = vrot.slane %v2833, 5
      %v2836 = vsel %vm992, %v2831, %v2835
      %v2837 = vshrl.u32 %v2755, 16
      %v2839 = vrot.slane %v2837, 4
      %v2840 = vor.u32 %v2839, %v2835
      %v2841 = vrot.slane %v2840, 4
      %v2843 = vshll.u32 %v2756, 16
      %v2845 = vrot.slane %v2843, 5
      %v2846 = vsel %vm992, %v2841, %v2845
      %v2848 = vshrl.u32 %v2757, 16
      %v2850 = vrot.slane %v2848, 4
      %v2851 = vshll.u32 %v2757, 16
      %v2853 = vrot.slane %v2851, 5
      %v2854 = vor.u32 %v2850, %v2853
      %v2855 = vrot.slane %v2854, 4
      %v2857 = vshll.u32 %v2758, 16
      %v2859 = vrot.slane %v2857, 5
      %v2860 = vsel %vm992, %v2855, %v2859
      %v2861 = vshrl.u32 %v2758, 16
      %v2863 = vrot.slane %v2861, 4
      %v2864 = vor.u32 %v2863, %v2859
      %v2865 = vrot.slane %v2864, 4
      %v2867 = vshll.u32 %v2759, 16
      %v2869 = vrot.slane %v2867, 5
      %v2870 = vsel %vm992, %v2865, %v2869
      %v2872 = vshrl.u32 %v2760, 16
      %v2874 = vrot.slane %v2872, 4
      %v2875 = vshll.u32 %v2760, 16
      %v2877 = vrot.slane %v2875, 5
      %v2878 = vor.u32 %v2874, %v2877
      %v2879 = vrot.slane %v2878, 4
      %v2881 = vshll.u32 %v2761, 16
      %v2883 = vrot.slane %v2881, 5
      %v2884 = vsel %vm992, %v2879, %v2883
      %v2885 = vshrl.u32 %v2761, 16
      %v2887 = vrot.slane %v2885, 4
      %v2888 = vor.u32 %v2887, %v2883
      %v2889 = vrot.slane %v2888, 4
      %v2891 = vshll.u32 %v2762, 16
      %v2893 = vrot.slane %v2891, 5
      %v2894 = vsel %vm992, %v2889, %v2893
      %v2896 = vshrl.u32 %v2763, 16
      %v2898 = vrot.slane %v2896, 4
      %v2899 = vshll.u32 %v2763, 16
      %v2901 = vrot.slane %v2899, 5
      %v2902 = vor.u32 %v2898, %v2901
      %v2903 = vrot.slane %v2902, 4
      %v2905 = vshll.u32 %v2764, 16
      %v2907 = vrot.slane %v2905, 5
      %v2908 = vsel %vm992, %v2903, %v2907
      %v2909 = vshrl.u32 %v2764, 16
      %v2911 = vrot.slane %v2909, 4
      %v2912 = vor.u32 %v2911, %v2907
      %v2913 = vrot.slane %v2912, 4
      %v2915 = vshll.u32 %v2765, 16
      %v2917 = vrot.slane %v2915, 5
      %v2918 = vsel %vm992, %v2913, %v2917
      %v2920 = vshrl.u32 %v2766, 16
      %v2922 = vrot.slane %v2920, 4
      %v2923 = vshll.u32 %v2766, 16
      %v2925 = vrot.slane %v2923, 5
      %v2926 = vor.u32 %v2922, %v2925
      %v2927 = vrot.slane %v2926, 4
      %v2929 = vshll.u32 %v2767, 16
      %v2931 = vrot.slane %v2929, 5
      %v2932 = vsel %vm992, %v2927, %v2931
      %v2933 = vshrl.u32 %v2767, 16
      %v2935 = vrot.slane %v2933, 4
      %v2936 = vor.u32 %v2935, %v2931
      %v2937 = vrot.slane %v2936, 4
      %v2939 = vshll.u32 %v2768, 16
      %v2941 = vrot.slane %v2939, 5
      %v2942 = vsel %vm992, %v2937, %v2941
      %v2944 = vshrl.u32 %v2769, 16
      %v2946 = vrot.slane %v2944, 4
      %v2947 = vshll.u32 %v2769, 16
      %v2949 = vrot.slane %v2947, 5
      %v2950 = vor.u32 %v2946, %v2949
      %v2951 = vrot.slane %v2950, 4
      %v2953 = vshll.u32 %v2770, 16
      %v2955 = vrot.slane %v2953, 5
      %v2956 = vsel %vm992, %v2951, %v2955
      %v2957 = vshrl.u32 %v2770, 16
      %v2959 = vrot.slane %v2957, 4
      %v2960 = vor.u32 %v2959, %v2955
      %v2961 = vrot.slane %v2960, 4
      %v2963 = vshll.u32 %v2771, 16
      %v2965 = vrot.slane %v2963, 5
      %v2966 = vsel %vm992, %v2961, %v2965
      %v2968 = vshrl.u32 %v2772, 16
      %v2970 = vrot.slane %v2968, 4
      %v2971 = vshll.u32 %v2772, 16
      %v2973 = vrot.slane %v2971, 5
      %v2974 = vor.u32 %v2970, %v2973
      %v2975 = vrot.slane %v2974, 4
      %v2977 = vshll.u32 %v2773, 16
      %v2979 = vrot.slane %v2977, 5
      %v2980 = vsel %vm992, %v2975, %v2979
      %v2981 = vshrl.u32 %v2773, 16
      %v2983 = vrot.slane %v2981, 4
      %v2984 = vor.u32 %v2983, %v2979
      %v2985 = vrot.slane %v2984, 4
      %v2987 = vshll.u32 %v2774, 16
      %v2989 = vrot.slane %v2987, 5
      %v2990 = vsel %vm992, %v2985, %v2989
      %v2992 = vshrl.u32 %v2775, 16
      %v2994 = vrot.slane %v2992, 4
      %v2995 = vshll.u32 %v2775, 16
      %v2997 = vrot.slane %v2995, 5
      %v2998 = vor.u32 %v2994, %v2997
      %v2999 = vrot.slane %v2998, 4
      %v3001 = vshll.u32 %v2776, 16
      %v3003 = vrot.slane %v3001, 5
      %v3004 = vsel %vm992, %v2999, %v3003
      %v3005 = vshrl.u32 %v2776, 16
      %v3007 = vrot.slane %v3005, 4
      %v3008 = vor.u32 %v3007, %v3003
      %v3009 = vrot.slane %v3008, 4
      %v3011 = vshll.u32 %v2777, 16
      %v3013 = vrot.slane %v3011, 5
      %v3014 = vsel %vm992, %v3009, %v3013
      %v3016 = vshrl.u32 %v2778, 16
      %v3018 = vrot.slane %v3016, 4
      %v3019 = vshll.u32 %v2778, 16
      %v3021 = vrot.slane %v3019, 5
      %v3022 = vor.u32 %v3018, %v3021
      %v3023 = vrot.slane %v3022, 4
      %v3025 = vshll.u32 %v2779, 16
      %v3027 = vrot.slane %v3025, 5
      %v3028 = vsel %vm992, %v3023, %v3027
      %v3029 = vshrl.u32 %v2779, 16
      %v3031 = vrot.slane %v3029, 4
      %v3032 = vor.u32 %v3031, %v3027
      %v3033 = vrot.slane %v3032, 4
      %v3035 = vshll.u32 %v2780, 16
      %v3037 = vrot.slane %v3035, 5
      %v3038 = vsel %vm992, %v3033, %v3037
      %v3040 = vshrl.u32 %v2781, 16
      %v3042 = vrot.slane %v3040, 4
      %v3043 = vshll.u32 %v2781, 16
      %v3045 = vrot.slane %v3043, 5
      %v3046 = vor.u32 %v3042, %v3045
      %v3047 = vrot.slane %v3046, 4
      %v3049 = vshll.u32 %v2782, 16
      %v3051 = vrot.slane %v3049, 5
      %v3052 = vsel %vm992, %v3047, %v3051
      %v3053 = vshrl.u32 %v2782, 16
      %v3055 = vrot.slane %v3053, 4
      %v3056 = vor.u32 %v3055, %v3051
      %v3057 = vrot.slane %v3056, 4
      %v3059 = vshll.u32 %v2783, 16
      %v3061 = vrot.slane %v3059, 5
      %v3062 = vsel %vm992, %v3057, %v3061
      %v3064 = vshrl.u32 %v2784, 16
      %v3066 = vrot.slane %v3064, 4
      %v3067 = vshll.u32 %v2784, 16
      %v3069 = vrot.slane %v3067, 5
      %v3070 = vor.u32 %v3066, %v3069
      %v3071 = vrot.slane %v3070, 4
      %v3073 = vshll.u32 %v2785, 16
      %v3075 = vrot.slane %v3073, 5
      %v3076 = vsel %vm992, %v3071, %v3075
      %v3077 = vshrl.u32 %v2785, 16
      %v3079 = vrot.slane %v3077, 4
      %v3080 = vor.u32 %v3079, %v3075
      %v3081 = vrot.slane %v3080, 4
      %v3083 = vshll.u32 %v2786, 16
      %v3085 = vrot.slane %v3083, 5
      %v3086 = vsel %vm992, %v3081, %v3085
      %v3088 = vshrl.u32 %v2787, 16
      %v3090 = vrot.slane %v3088, 4
      %v3091 = vshll.u32 %v2787, 16
      %v3093 = vrot.slane %v3091, 5
      %v3094 = vor.u32 %v3090, %v3093
      %v3095 = vrot.slane %v3094, 4
      %v3097 = vshll.u32 %v2788, 16
      %v3099 = vrot.slane %v3097, 5
      %v3100 = vsel %vm992, %v3095, %v3099
      %v3101 = vshrl.u32 %v2788, 16
      %v3103 = vrot.slane %v3101, 4
      %v3104 = vor.u32 %v3103, %v3099
      %v3105 = vrot.slane %v3104, 4
      %v3107 = vshll.u32 %v2789, 16
      %v3109 = vrot.slane %v3107, 5
      %v3110 = vsel %vm992, %v3105, %v3109
      %v3112 = vshrl.u32 %v2790, 16
      %v3114 = vrot.slane %v3112, 4
      %v3115 = vshll.u32 %v2790, 16
      %v3117 = vrot.slane %v3115, 5
      %v3118 = vor.u32 %v3114, %v3117
      %v3119 = vrot.slane %v3118, 4
      %v3121 = vshll.u32 %v2791, 16
      %v3123 = vrot.slane %v3121, 5
      %v3124 = vsel %vm992, %v3119, %v3123
      %v3125 = vshrl.u32 %v2791, 16
      %v3127 = vrot.slane %v3125, 4
      %v3128 = vor.u32 %v3127, %v3123
      %v3129 = vrot.slane %v3128, 4
      %v3131 = vshll.u32 %v2792, 16
      %v3133 = vrot.slane %v3131, 5
      %v3134 = vsel %vm992, %v3129, %v3133
      %v3136 = vshrl.u32 %v2793, 16
      %v3138 = vrot.slane %v3136, 4
      %v3139 = vshll.u32 %v2793, 16
      %v3141 = vrot.slane %v3139, 5
      %v3142 = vor.u32 %v3138, %v3141
      %v3143 = vrot.slane %v3142, 4
      %v3145 = vshll.u32 %v2794, 16
      %v3147 = vrot.slane %v3145, 5
      %v3148 = vsel %vm992, %v3143, %v3147
      %v3149 = vshrl.u32 %v2794, 16
      %v3151 = vrot.slane %v3149, 4
      %v3152 = vor.u32 %v3151, %v3147
      %v3153 = vrot.slane %v3152, 4
      %v3155 = vshll.u32 %v2795, 16
      %v3157 = vrot.slane %v3155, 5
      %v3158 = vsel %vm992, %v3153, %v3157
      %v3160 = vshrl.u32 %v2796, 16
      %v3162 = vrot.slane %v3160, 4
      %v3163 = vshll.u32 %v2796, 16
      %v3165 = vrot.slane %v3163, 5
      %v3166 = vor.u32 %v3162, %v3165
      %v3167 = vrot.slane %v3166, 4
      %v3169 = vshll.u32 %v2797, 16
      %v3171 = vrot.slane %v3169, 5
      %v3172 = vsel %vm992, %v3167, %v3171
      %v3173 = vshrl.u32 %v2797, 16
      %v3175 = vrot.slane %v3173, 4
      %v3176 = vor.u32 %v3175, %v3171
      %v3177 = vrot.slane %v3176, 4
      %v3179 = vshll.u32 %v2798, 16
      %v3181 = vrot.slane %v3179, 5
      %v3182 = vsel %vm992, %v3177, %v3181
      %s3183 = scalar_lea.vmem %s1, 8
      %v3184 = vld [vmem:[%s3183] sm:$0x3]
      %v3185 = vunpack.c.l.b16 %v2812
      %v3186 = vunpack.c.l.b16 %v2822
      %v3187 = vunpack.c.l.b16 %v2836
      %v3188 = vunpack.c.l.b16 %v2846
      %v3189 = vunpack.c.l.b16 %v2860
      %v3190 = vunpack.c.l.b16 %v2870
      %v3191 = vunpack.c.l.b16 %v2884
      %v3192 = vunpack.c.l.b16 %v2894
      %v3193 = vunpack.c.l.b16 %v2908
      %v3194 = vunpack.c.l.b16 %v2918
      %v3195 = vunpack.c.l.b16 %v2932
      %v3196 = vunpack.c.l.b16 %v2942
      %v3197 = vunpack.c.l.b16 %v2956
      %v3198 = vunpack.c.l.b16 %v2966
      %v3199 = vunpack.c.l.b16 %v2980
      %v3200 = vunpack.c.l.b16 %v2990
      %v3201 = vunpack.c.l.b16 %v3004
      %v3202 = vunpack.c.l.b16 %v3014
      %v3203 = vunpack.c.l.b16 %v3028
      %v3204 = vunpack.c.l.b16 %v3038
      %v3205 = vunpack.c.l.b16 %v3052
      %v3206 = vunpack.c.l.b16 %v3062
      %v3207 = vunpack.c.l.b16 %v3076
      %v3208 = vunpack.c.l.b16 %v3086
      %v3209 = vunpack.c.l.b16 %v3100
      %v3210 = vunpack.c.l.b16 %v3110
      %v3211 = vunpack.c.l.b16 %v3124
      %v3212 = vunpack.c.l.b16 %v3134
      %v3213 = vunpack.c.l.b16 %v3148
      %v3214 = vunpack.c.l.b16 %v3158
      %v3215 = vunpack.c.l.b16 %v3172
      %v3216 = vunpack.c.l.b16 %v3182
      %v3217 = vpack.c.b16 %v3186, %v3185
      %v3218 = vpack.c.b16 %v3188, %v3187
      %v3219 = vpack.c.b16 %v3190, %v3189
      %v3220 = vpack.c.b16 %v3192, %v3191
      %v3221 = vpack.c.b16 %v3194, %v3193
      %v3222 = vpack.c.b16 %v3196, %v3195
      %v3223 = vpack.c.b16 %v3198, %v3197
      %v3224 = vpack.c.b16 %v3200, %v3199
      %v3225 = vpack.c.b16 %v3202, %v3201
      %v3226 = vpack.c.b16 %v3204, %v3203
      %v3227 = vpack.c.b16 %v3206, %v3205
      %v3228 = vpack.c.b16 %v3208, %v3207
      %v3229 = vpack.c.b16 %v3210, %v3209
      %v3230 = vpack.c.b16 %v3212, %v3211
      %v3231 = vpack.c.b16 %v3214, %v3213
      %v3232 = vpack.c.b16 %v3216, %v3215
      %v3234 = vsel %vm1427, %v3217, 0
      %v3237 = vsel %vm1427, %v3218, 0
      %v3240 = vsel %vm1427, %v3219, 0
      %v3243 = vsel %vm1427, %v3220, 0
      %v3246 = vsel %vm1427, %v3221, 0
      %v3249 = vsel %vm1427, %v3222, 0
      %v3252 = vsel %vm1427, %v3223, 0
      %v3255 = vsel %vm1427, %v3224, 0
      %v3258 = vsel %vm1427, %v3225, 0
      %v3261 = vsel %vm1427, %v3226, 0
      %v3264 = vsel %vm1427, %v3227, 0
      %v3267 = vsel %vm1427, %v3228, 0
      %v3270 = vsel %vm1427, %v3229, 0
      %v3273 = vsel %vm1427, %v3230, 0
      %v3276 = vsel %vm1427, %v3231, 0
      %v3279 = vsel %vm1427, %v3232, 0
      %v3282 = vand.u32 %v3184, %v1479
      %3284 = vmatprep.subr.bf16.mxu0 0
      %3285 = vmatpush1.bf16.msra.mxu0 %v3282
      %3286 = vmatprep.subr.bf16.mxu0 0
      %3287 = vmatpush1.bf16.msra.mxu0 0
      %3288 = vmatprep.subr.bf16.mxu0 0
      %3289 = vmatpush1.bf16.msra.mxu0 0
      %3290 = vmatprep.subr.bf16.mxu0 0
      %3291 = vmatpush1.bf16.msra.mxu0 0
      %3292 = vmatprep.subr.bf16.mxu0 0
      %3293 = vmatpush1.bf16.msra.mxu0 0
      %3294 = vmatprep.subr.bf16.mxu0 0
      %3295 = vmatpush1.bf16.msra.mxu0 0
      %3296 = vmatprep.subr.bf16.mxu0 0
      %3297 = vmatpush1.bf16.msra.mxu0 0
      %3298 = vmatprep.subr.bf16.mxu0 0
      %3299 = vmatpush1.bf16.msra.mxu0 0
      %3300 = vmatprep.subr.bf16.mxu0 0
      %3301 = vmatpush1.bf16.msra.mxu0 0
      %3302 = vmatprep.subr.bf16.mxu0 0
      %3303 = vmatpush1.bf16.msra.mxu0 0
      %3304 = vmatprep.subr.bf16.mxu0 0
      %3305 = vmatpush1.bf16.msra.mxu0 0
      %3306 = vmatprep.subr.bf16.mxu0 0
      %3307 = vmatpush1.bf16.msra.mxu0 0
      %3308 = vmatprep.subr.bf16.mxu0 0
      %3309 = vmatpush1.bf16.msra.mxu0 0
      %3310 = vmatprep.subr.bf16.mxu0 0
      %3311 = vmatpush1.bf16.msra.mxu0 0
      %3312 = vmatprep.subr.bf16.mxu0 0
      %3313 = vmatpush1.bf16.msra.mxu0 0
      %3314 = vmatprep.subr.bf16.mxu0 0
      %3315 = vmatpush1.bf16.msra.mxu0 0
      %3316 = vmatprep.mubr.bf16.mxu0 0
      %3317 = vmatmul.mubr.bf16.gmra.mrb[0].mxu0 %v3234
      %v3318 = vpop.f32.mrb[0].mxu0
      %v3319 = vadd.f32 0.0, %v3318
      %v3320 = vpop.f32.mrb[0].mxu0
      %v3321 = vpop.f32.mrb[0].mxu0
      %v3322 = vadd.f32 0.0, %v3321
      %v3323 = vpop.f32.mrb[0].mxu0
      %3324 = vmatprep.mubr.bf16.mxu0 0
      %3325 = vmatmul.mubr.bf16.gmra.mrb[0].mxu0 %v3237
      %v3326 = vpop.f32.mrb[0].mxu0
      %v3327 = vadd.f32 0.0, %v3326
      %v3328 = vpop.f32.mrb[0].mxu0
      %v3329 = vpop.f32.mrb[0].mxu0
      %v3330 = vadd.f32 0.0, %v3329
      %v3331 = vpop.f32.mrb[0].mxu0
      %3332 = vmatprep.mubr.bf16.mxu0 0
      %3333 = vmatmul.mubr.bf16.gmra.mrb[0].mxu0 %v3240
      %v3334 = vpop.f32.mrb[0].mxu0
      %v3335 = vadd.f32 0.0, %v3334
      %v3336 = vpop.f32.mrb[0].mxu0
      %v3337 = vpop.f32.mrb[0].mxu0
      %v3338 = vadd.f32 0.0, %v3337
      %v3339 = vpop.f32.mrb[0].mxu0
      %3340 = vmatprep.mubr.bf16.mxu0 0
      %3341 = vmatmul.mubr.bf16.gmra.mrb[0].mxu0 %v3243
      %v3342 = vpop.f32.mrb[0].mxu0
      %v3343 = vadd.f32 0.0, %v3342
      %v3344 = vpop.f32.mrb[0].mxu0
      %v3345 = vpop.f32.mrb[0].mxu0
      %v3346 = vadd.f32 0.0, %v3345
      %v3347 = vpop.f32.mrb[0].mxu0
      %3348 = vmatprep.mubr.bf16.mxu0 0
      %3349 = vmatmul.mubr.bf16.gmra.mrb[0].mxu0 %v3246
      %v3350 = vpop.f32.mrb[0].mxu0
      %v3351 = vadd.f32 0.0, %v3350
      %v3352 = vpop.f32.mrb[0].mxu0
      %v3353 = vpop.f32.mrb[0].mxu0
      %v3354 = vadd.f32 0.0, %v3353
      %v3355 = vpop.f32.mrb[0].mxu0
      %3356 = vmatprep.mubr.bf16.mxu0 0
      %3357 = vmatmul.mubr.bf16.gmra.mrb[0].mxu0 %v3249
      %v3358 = vpop.f32.mrb[0].mxu0
      %v3359 = vadd.f32 0.0, %v3358
      %v3360 = vpop.f32.mrb[0].mxu0
      %v3361 = vpop.f32.mrb[0].mxu0
      %v3362 = vadd.f32 0.0, %v3361
      %v3363 = vpop.f32.mrb[0].mxu0
      %3364 = vmatprep.mubr.bf16.mxu0 0
      %3365 = vmatmul.mubr.bf16.gmra.mrb[0].mxu0 %v3252
      %v3366 = vpop.f32.mrb[0].mxu0
      %v3367 = vadd.f32 0.0, %v3366
      %v3368 = vpop.f32.mrb[0].mxu0
      %v3369 = vpop.f32.mrb[0].mxu0
      %v3370 = vadd.f32 0.0, %v3369
      %v3371 = vpop.f32.mrb[0].mxu0
      %3372 = vmatprep.mubr.bf16.mxu0 0
      %3373 = vmatmul.mubr.bf16.gmra.mrb[0].mxu0 %v3255
      %v3374 = vpop.f32.mrb[0].mxu0
      %v3375 = vadd.f32 0.0, %v3374
      %v3376 = vpop.f32.mrb[0].mxu0
      %v3377 = vpop.f32.mrb[0].mxu0
      %v3378 = vadd.f32 0.0, %v3377
      %v3379 = vpop.f32.mrb[0].mxu0
      %3380 = vmatprep.mubr.bf16.mxu0 0
      %3381 = vmatmul.mubr.bf16.gmra.mrb[0].mxu0 %v3258
      %v3382 = vpop.f32.mrb[0].mxu0
      %v3383 = vadd.f32 0.0, %v3382
      %v3384 = vpop.f32.mrb[0].mxu0
      %v3385 = vpop.f32.mrb[0].mxu0
      %v3386 = vadd.f32 0.0, %v3385
      %v3387 = vpop.f32.mrb[0].mxu0
      %3388 = vmatprep.mubr.bf16.mxu0 0
      %3389 = vmatmul.mubr.bf16.gmra.mrb[0].mxu0 %v3261
      %v3390 = vpop.f32.mrb[0].mxu0
      %v3391 = vadd.f32 0.0, %v3390
      %v3392 = vpop.f32.mrb[0].mxu0
      %v3393 = vpop.f32.mrb[0].mxu0
      %v3394 = vadd.f32 0.0, %v3393
      %v3395 = vpop.f32.mrb[0].mxu0
      %3396 = vmatprep.mubr.bf16.mxu0 0
      %3397 = vmatmul.mubr.bf16.gmra.mrb[0].mxu0 %v3264
      %v3398 = vpop.f32.mrb[0].mxu0
      %v3399 = vadd.f32 0.0, %v3398
      %v3400 = vpop.f32.mrb[0].mxu0
      %v3401 = vpop.f32.mrb[0].mxu0
      %v3402 = vadd.f32 0.0, %v3401
      %v3403 = vpop.f32.mrb[0].mxu0
      %3404 = vmatprep.mubr.bf16.mxu0 0
      %3405 = vmatmul.mubr.bf16.gmra.mrb[0].mxu0 %v3267
      %v3406 = vpop.f32.mrb[0].mxu0
      %v3407 = vadd.f32 0.0, %v3406
      %v3408 = vpop.f32.mrb[0].mxu0
      %v3409 = vpop.f32.mrb[0].mxu0
      %v3410 = vadd.f32 0.0, %v3409
      %v3411 = vpop.f32.mrb[0].mxu0
      %3412 = vmatprep.mubr.bf16.mxu0 0
      %3413 = vmatmul.mubr.bf16.gmra.mrb[0].mxu0 %v3270
      %v3414 = vpop.f32.mrb[0].mxu0
      %v3415 = vadd.f32 0.0, %v3414
      %v3416 = vpop.f32.mrb[0].mxu0
      %v3417 = vpop.f32.mrb[0].mxu0
      %v3418 = vadd.f32 0.0, %v3417
      %v3419 = vpop.f32.mrb[0].mxu0
      %3420 = vmatprep.mubr.bf16.mxu0 0
      %3421 = vmatmul.mubr.bf16.gmra.mrb[0].mxu0 %v3273
      %v3422 = vpop.f32.mrb[0].mxu0
      %v3423 = vadd.f32 0.0, %v3422
      %v3424 = vpop.f32.mrb[0].mxu0
      %v3425 = vpop.f32.mrb[0].mxu0
      %v3426 = vadd.f32 0.0, %v3425
      %v3427 = vpop.f32.mrb[0].mxu0
      %3428 = vmatprep.mubr.bf16.mxu0 0
      %3429 = vmatmul.mubr.bf16.gmra.mrb[0].mxu0 %v3276
      %v3430 = vpop.f32.mrb[0].mxu0
      %v3431 = vadd.f32 0.0, %v3430
      %v3432 = vpop.f32.mrb[0].mxu0
      %v3433 = vpop.f32.mrb[0].mxu0
      %v3434 = vadd.f32 0.0, %v3433
      %v3435 = vpop.f32.mrb[0].mxu0
      %3436 = vmatprep.mubr.bf16.mxu0 0
      %3437 = vmatmul.mubr.bf16.gmra.mrb[0].mxu0 %v3279
      %v3438 = vpop.f32.mrb[0].mxu0
      %v3439 = vadd.f32 0.0, %v3438
      %v3440 = vpop.f32.mrb[0].mxu0
      %v3441 = vpop.f32.mrb[0].mxu0
      %v3442 = vadd.f32 0.0, %v3441
      %v3443 = vpop.f32.mrb[0].mxu0
      %3444 = vdwg.mxu0
      %v3445 = vadd.f32 %v2719, %v3319
      %v3446 = vadd.f32 %v2720, %v3322
      %v3447 = vadd.f32 %v2721, %v3327
      %v3448 = vadd.f32 %v2722, %v3330
      %v3449 = vadd.f32 %v2723, %v3335
      %v3450 = vadd.f32 %v2724, %v3338
      %v3451 = vadd.f32 %v2725, %v3343
      %v3452 = vadd.f32 %v2726, %v3346
      %v3453 = vadd.f32 %v2727, %v3351
      %v3454 = vadd.f32 %v2728, %v3354
      %v3455 = vadd.f32 %v2729, %v3359
      %v3456 = vadd.f32 %v2730, %v3362
      %v3457 = vadd.f32 %v2731, %v3367
      %v3458 = vadd.f32 %v2732, %v3370
      %v3459 = vadd.f32 %v2733, %v3375
      %v3460 = vadd.f32 %v2734, %v3378
      %v3461 = vadd.f32 %v2735, %v3383
      %v3462 = vadd.f32 %v2736, %v3386
      %v3463 = vadd.f32 %v2737, %v3391
      %v3464 = vadd.f32 %v2738, %v3394
      %v3465 = vadd.f32 %v2739, %v3399
      %v3466 = vadd.f32 %v2740, %v3402
      %v3467 = vadd.f32 %v2741, %v3407
      %v3468 = vadd.f32 %v2742, %v3410
      %v3469 = vadd.f32 %v2743, %v3415
      %v3470 = vadd.f32 %v2744, %v3418
      %v3471 = vadd.f32 %v2745, %v3423
      %v3472 = vadd.f32 %v2746, %v3426
      %v3473 = vadd.f32 %v2747, %v3431
      %v3474 = vadd.f32 %v2748, %v3434
      %v3475 = vadd.f32 %v2749, %v3439
      %v3476 = vadd.f32 %v2750, %v3442
      %v3477 = vld [vmem:[%s823] sm:$0xe]
      %v3478 = vld [vmem:[%s823 + $0xc] sm:$0xe]
      %v3479 = vld [vmem:[%s823 + $0x18] sm:$0xe]
      %v3480 = vld [vmem:[%s823 + $0x24] sm:$0xe]
      %v3481 = vld [vmem:[%s823 + $0x30] sm:$0xe]
      %v3482 = vld [vmem:[%s823 + $0x3c] sm:$0xe]
      %v3483 = vld [vmem:[%s823 + $0x48] sm:$0xe]
      %v3484 = vld [vmem:[%s823 + $0x54] sm:$0xe]
      %v3485 = vld [vmem:[%s823 + $0x60] sm:$0xe]
      %v3486 = vld [vmem:[%s823 + $0x6c] sm:$0xe]
      %v3487 = vld [vmem:[%s823 + $0x78] sm:$0xe]
      %v3488 = vld [vmem:[%s823 + $0x84] sm:$0xe]
      %v3489 = vld [vmem:[%s823 + $0x90] sm:$0xe]
      %v3490 = vld [vmem:[%s823 + $0x9c] sm:$0xe]
      %v3491 = vld [vmem:[%s823 + $0xa8] sm:$0xe]
      %v3492 = vld [vmem:[%s823 + $0xb4] sm:$0xe]
      %v3541 = vrot.slane %v3477, 5
      %v3542 = vrot.slane %v3541, 4
      %v3543 = vrot.slane %v2752, 5
      %v3544 = vsel %vm1986, %v3542, %v3543
      %v3545 = vrot.slane %v3543, 4
      %v3546 = vrot.slane %v2753, 5
      %v3547 = vsel %vm1986, %v3545, %v3546
      %v3548 = vrot.slane %v3478, 5
      %v3549 = vrot.slane %v3548, 4
      %v3550 = vrot.slane %v2755, 5
      %v3551 = vsel %vm1986, %v3549, %v3550
      %v3552 = vrot.slane %v3550, 4
      %v3553 = vrot.slane %v2756, 5
      %v3554 = vsel %vm1986, %v3552, %v3553
      %v3555 = vrot.slane %v3479, 5
      %v3556 = vrot.slane %v3555, 4
      %v3557 = vrot.slane %v2758, 5
      %v3558 = vsel %vm1986, %v3556, %v3557
      %v3559 = vrot.slane %v3557, 4
      %v3560 = vrot.slane %v2759, 5
      %v3561 = vsel %vm1986, %v3559, %v3560
      %v3562 = vrot.slane %v3480, 5
      %v3563 = vrot.slane %v3562, 4
      %v3564 = vrot.slane %v2761, 5
      %v3565 = vsel %vm1986, %v3563, %v3564
      %v3566 = vrot.slane %v3564, 4
      %v3567 = vrot.slane %v2762, 5
      %v3568 = vsel %vm1986, %v3566, %v3567
      %v3569 = vrot.slane %v3481, 5
      %v3570 = vrot.slane %v3569, 4
      %v3571 = vrot.slane %v2764, 5
      %v3572 = vsel %vm1986, %v3570, %v3571
      %v3573 = vrot.slane %v3571, 4
      %v3574 = vrot.slane %v2765, 5
      %v3575 = vsel %vm1986, %v3573, %v3574
      %v3576 = vrot.slane %v3482, 5
      %v3577 = vrot.slane %v3576, 4
      %v3578 = vrot.slane %v2767, 5
      %v3579 = vsel %vm1986, %v3577, %v3578
      %v3580 = vrot.slane %v3578, 4
      %v3581 = vrot.slane %v2768, 5
      %v3582 = vsel %vm1986, %v3580, %v3581
      %v3583 = vrot.slane %v3483, 5
      %v3584 = vrot.slane %v3583, 4
      %v3585 = vrot.slane %v2770, 5
      %v3586 = vsel %vm1986, %v3584, %v3585
      %v3587 = vrot.slane %v3585, 4
      %v3588 = vrot.slane %v2771, 5
      %v3589 = vsel %vm1986, %v3587, %v3588
      %v3590 = vrot.slane %v3484, 5
      %v3591 = vrot.slane %v3590, 4
      %v3592 = vrot.slane %v2773, 5
      %v3593 = vsel %vm1986, %v3591, %v3592
      %v3594 = vrot.slane %v3592, 4
      %v3595 = vrot.slane %v2774, 5
      %v3596 = vsel %vm1986, %v3594, %v3595
      %v3597 = vrot.slane %v3485, 5
      %v3598 = vrot.slane %v3597, 4
      %v3599 = vrot.slane %v2776, 5
      %v3600 = vsel %vm1986, %v3598, %v3599
      %v3601 = vrot.slane %v3599, 4
      %v3602 = vrot.slane %v2777, 5
      %v3603 = vsel %vm1986, %v3601, %v3602
      %v3604 = vrot.slane %v3486, 5
      %v3605 = vrot.slane %v3604, 4
      %v3606 = vrot.slane %v2779, 5
      %v3607 = vsel %vm1986, %v3605, %v3606
      %v3608 = vrot.slane %v3606, 4
      %v3609 = vrot.slane %v2780, 5
      %v3610 = vsel %vm1986, %v3608, %v3609
      %v3611 = vrot.slane %v3487, 5
      %v3612 = vrot.slane %v3611, 4
      %v3613 = vrot.slane %v2782, 5
      %v3614 = vsel %vm1986, %v3612, %v3613
      %v3615 = vrot.slane %v3613, 4
      %v3616 = vrot.slane %v2783, 5
      %v3617 = vsel %vm1986, %v3615, %v3616
      %v3618 = vrot.slane %v3488, 5
      %v3619 = vrot.slane %v3618, 4
      %v3620 = vrot.slane %v2785, 5
      %v3621 = vsel %vm1986, %v3619, %v3620
      %v3622 = vrot.slane %v3620, 4
      %v3623 = vrot.slane %v2786, 5
      %v3624 = vsel %vm1986, %v3622, %v3623
      %v3625 = vrot.slane %v3489, 5
      %v3626 = vrot.slane %v3625, 4
      %v3627 = vrot.slane %v2788, 5
      %v3628 = vsel %vm1986, %v3626, %v3627
      %v3629 = vrot.slane %v3627, 4
      %v3630 = vrot.slane %v2789, 5
      %v3631 = vsel %vm1986, %v3629, %v3630
      %v3632 = vrot.slane %v3490, 5
      %v3633 = vrot.slane %v3632, 4
      %v3634 = vrot.slane %v2791, 5
      %v3635 = vsel %vm1986, %v3633, %v3634
      %v3636 = vrot.slane %v3634, 4
      %v3637 = vrot.slane %v2792, 5
      %v3638 = vsel %vm1986, %v3636, %v3637
      %v3639 = vrot.slane %v3491, 5
      %v3640 = vrot.slane %v3639, 4
      %v3641 = vrot.slane %v2794, 5
      %v3642 = vsel %vm1986, %v3640, %v3641
      %v3643 = vrot.slane %v3641, 4
      %v3644 = vrot.slane %v2795, 5
      %v3645 = vsel %vm1986, %v3643, %v3644
      %v3646 = vrot.slane %v3492, 5
      %v3647 = vrot.slane %v3646, 4
      %v3648 = vrot.slane %v2797, 5
      %v3649 = vsel %vm1986, %v3647, %v3648
      %v3650 = vrot.slane %v3648, 4
      %v3651 = vrot.slane %v2798, 5
      %v3652 = vsel %vm1986, %v3650, %v3651
      %s3653 = scalar_lea.vmem %s1, 10
      %v3654 = vld [vmem:[%s3653] sm:$0x3]
      %v3655 = vunpack.c.l.b16 %v3544
      %v3656 = vunpack.c.l.b16 %v3547
      %v3657 = vunpack.c.l.b16 %v3551
      %v3658 = vunpack.c.l.b16 %v3554
      %v3659 = vunpack.c.l.b16 %v3558
      %v3660 = vunpack.c.l.b16 %v3561
      %v3661 = vunpack.c.l.b16 %v3565
      %v3662 = vunpack.c.l.b16 %v3568
      %v3663 = vunpack.c.l.b16 %v3572
      %v3664 = vunpack.c.l.b16 %v3575
      %v3665 = vunpack.c.l.b16 %v3579
      %v3666 = vunpack.c.l.b16 %v3582
      %v3667 = vunpack.c.l.b16 %v3586
      %v3668 = vunpack.c.l.b16 %v3589
      %v3669 = vunpack.c.l.b16 %v3593
      %v3670 = vunpack.c.l.b16 %v3596
      %v3671 = vunpack.c.l.b16 %v3600
      %v3672 = vunpack.c.l.b16 %v3603
      %v3673 = vunpack.c.l.b16 %v3607
      %v3674 = vunpack.c.l.b16 %v3610
      %v3675 = vunpack.c.l.b16 %v3614
      %v3676 = vunpack.c.l.b16 %v3617
      %v3677 = vunpack.c.l.b16 %v3621
      %v3678 = vunpack.c.l.b16 %v3624
      %v3679 = vunpack.c.l.b16 %v3628
      %v3680 = vunpack.c.l.b16 %v3631
      %v3681 = vunpack.c.l.b16 %v3635
      %v3682 = vunpack.c.l.b16 %v3638
      %v3683 = vunpack.c.l.b16 %v3642
      %v3684 = vunpack.c.l.b16 %v3645
      %v3685 = vunpack.c.l.b16 %v3649
      %v3686 = vunpack.c.l.b16 %v3652
      %v3687 = vpack.c.b16 %v3656, %v3655
      %v3688 = vpack.c.b16 %v3658, %v3657
      %v3689 = vpack.c.b16 %v3660, %v3659
      %v3690 = vpack.c.b16 %v3662, %v3661
      %v3691 = vpack.c.b16 %v3664, %v3663
      %v3692 = vpack.c.b16 %v3666, %v3665
      %v3693 = vpack.c.b16 %v3668, %v3667
      %v3694 = vpack.c.b16 %v3670, %v3669
      %v3695 = vpack.c.b16 %v3672, %v3671
      %v3696 = vpack.c.b16 %v3674, %v3673
      %v3697 = vpack.c.b16 %v3676, %v3675
      %v3698 = vpack.c.b16 %v3678, %v3677
      %v3699 = vpack.c.b16 %v3680, %v3679
      %v3700 = vpack.c.b16 %v3682, %v3681
      %v3701 = vpack.c.b16 %v3684, %v3683
      %v3702 = vpack.c.b16 %v3686, %v3685
      %v3704 = vsel %vm1427, %v3687, 0
      %v3707 = vsel %vm1427, %v3688, 0
      %v3710 = vsel %vm1427, %v3689, 0
      %v3713 = vsel %vm1427, %v3690, 0
      %v3716 = vsel %vm1427, %v3691, 0
      %v3719 = vsel %vm1427, %v3692, 0
      %v3722 = vsel %vm1427, %v3693, 0
      %v3725 = vsel %vm1427, %v3694, 0
      %v3728 = vsel %vm1427, %v3695, 0
      %v3731 = vsel %vm1427, %v3696, 0
      %v3734 = vsel %vm1427, %v3697, 0
      %v3737 = vsel %vm1427, %v3698, 0
      %v3740 = vsel %vm1427, %v3699, 0
      %v3743 = vsel %vm1427, %v3700, 0
      %v3746 = vsel %vm1427, %v3701, 0
      %v3749 = vsel %vm1427, %v3702, 0
      %v3752 = vand.u32 %v3654, %v1479
      %3754 = vmatprep.subr.bf16.mxu0 0
      %3755 = vmatpush1.bf16.msra.mxu0 %v3752
      %3756 = vmatprep.subr.bf16.mxu0 0
      %3757 = vmatpush1.bf16.msra.mxu0 0
      %3758 = vmatprep.subr.bf16.mxu0 0
      %3759 = vmatpush1.bf16.msra.mxu0 0
      %3760 = vmatprep.subr.bf16.mxu0 0
      %3761 = vmatpush1.bf16.msra.mxu0 0
      %3762 = vmatprep.subr.bf16.mxu0 0
      %3763 = vmatpush1.bf16.msra.mxu0 0
      %3764 = vmatprep.subr.bf16.mxu0 0
      %3765 = vmatpush1.bf16.msra.mxu0 0
      %3766 = vmatprep.subr.bf16.mxu0 0
      %3767 = vmatpush1.bf16.msra.mxu0 0
      %3768 = vmatprep.subr.bf16.mxu0 0
      %3769 = vmatpush1.bf16.msra.mxu0 0
      %3770 = vmatprep.subr.bf16.mxu0 0
      %3771 = vmatpush1.bf16.msra.mxu0 0
      %3772 = vmatprep.subr.bf16.mxu0 0
      %3773 = vmatpush1.bf16.msra.mxu0 0
      %3774 = vmatprep.subr.bf16.mxu0 0
      %3775 = vmatpush1.bf16.msra.mxu0 0
      %3776 = vmatprep.subr.bf16.mxu0 0
      %3777 = vmatpush1.bf16.msra.mxu0 0
      %3778 = vmatprep.subr.bf16.mxu0 0
      %3779 = vmatpush1.bf16.msra.mxu0 0
      %3780 = vmatprep.subr.bf16.mxu0 0
      %3781 = vmatpush1.bf16.msra.mxu0 0
      %3782 = vmatprep.subr.bf16.mxu0 0
      %3783 = vmatpush1.bf16.msra.mxu0 0
      %3784 = vmatprep.subr.bf16.mxu0 0
      %3785 = vmatpush1.bf16.msra.mxu0 0
      %3786 = vmatprep.mubr.bf16.mxu0 0
      %3787 = vmatmul.mubr.bf16.gmra.mrb[0].mxu0 %v3704
      %v3788 = vpop.f32.mrb[0].mxu0
      %v3789 = vadd.f32 0.0, %v3788
      %v3790 = vpop.f32.mrb[0].mxu0
      %v3791 = vpop.f32.mrb[0].mxu0
      %v3792 = vadd.f32 0.0, %v3791
      %v3793 = vpop.f32.mrb[0].mxu0
      %3794 = vmatprep.mubr.bf16.mxu0 0
      %3795 = vmatmul.mubr.bf16.gmra.mrb[0].mxu0 %v3707
      %v3796 = vpop.f32.mrb[0].mxu0
      %v3797 = vadd.f32 0.0, %v3796
      %v3798 = vpop.f32.mrb[0].mxu0
      %v3799 = vpop.f32.mrb[0].mxu0
      %v3800 = vadd.f32 0.0, %v3799
      %v3801 = vpop.f32.mrb[0].mxu0
      %3802 = vmatprep.mubr.bf16.mxu0 0
      %3803 = vmatmul.mubr.bf16.gmra.mrb[0].mxu0 %v3710
      %v3804 = vpop.f32.mrb[0].mxu0
      %v3805 = vadd.f32 0.0, %v3804
      %v3806 = vpop.f32.mrb[0].mxu0
      %v3807 = vpop.f32.mrb[0].mxu0
      %v3808 = vadd.f32 0.0, %v3807
      %v3809 = vpop.f32.mrb[0].mxu0
      %3810 = vmatprep.mubr.bf16.mxu0 0
      %3811 = vmatmul.mubr.bf16.gmra.mrb[0].mxu0 %v3713
      %v3812 = vpop.f32.mrb[0].mxu0
      %v3813 = vadd.f32 0.0, %v3812
      %v3814 = vpop.f32.mrb[0].mxu0
      %v3815 = vpop.f32.mrb[0].mxu0
      %v3816 = vadd.f32 0.0, %v3815
      %v3817 = vpop.f32.mrb[0].mxu0
      %3818 = vmatprep.mubr.bf16.mxu0 0
      %3819 = vmatmul.mubr.bf16.gmra.mrb[0].mxu0 %v3716
      %v3820 = vpop.f32.mrb[0].mxu0
      %v3821 = vadd.f32 0.0, %v3820
      %v3822 = vpop.f32.mrb[0].mxu0
      %v3823 = vpop.f32.mrb[0].mxu0
      %v3824 = vadd.f32 0.0, %v3823
      %v3825 = vpop.f32.mrb[0].mxu0
      %3826 = vmatprep.mubr.bf16.mxu0 0
      %3827 = vmatmul.mubr.bf16.gmra.mrb[0].mxu0 %v3719
      %v3828 = vpop.f32.mrb[0].mxu0
      %v3829 = vadd.f32 0.0, %v3828
      %v3830 = vpop.f32.mrb[0].mxu0
      %v3831 = vpop.f32.mrb[0].mxu0
      %v3832 = vadd.f32 0.0, %v3831
      %v3833 = vpop.f32.mrb[0].mxu0
      %3834 = vmatprep.mubr.bf16.mxu0 0
      %3835 = vmatmul.mubr.bf16.gmra.mrb[0].mxu0 %v3722
      %v3836 = vpop.f32.mrb[0].mxu0
      %v3837 = vadd.f32 0.0, %v3836
      %v3838 = vpop.f32.mrb[0].mxu0
      %v3839 = vpop.f32.mrb[0].mxu0
      %v3840 = vadd.f32 0.0, %v3839
      %v3841 = vpop.f32.mrb[0].mxu0
      %3842 = vmatprep.mubr.bf16.mxu0 0
      %3843 = vmatmul.mubr.bf16.gmra.mrb[0].mxu0 %v3725
      %v3844 = vpop.f32.mrb[0].mxu0
      %v3845 = vadd.f32 0.0, %v3844
      %v3846 = vpop.f32.mrb[0].mxu0
      %v3847 = vpop.f32.mrb[0].mxu0
      %v3848 = vadd.f32 0.0, %v3847
      %v3849 = vpop.f32.mrb[0].mxu0
      %3850 = vmatprep.mubr.bf16.mxu0 0
      %3851 = vmatmul.mubr.bf16.gmra.mrb[0].mxu0 %v3728
      %v3852 = vpop.f32.mrb[0].mxu0
      %v3853 = vadd.f32 0.0, %v3852
      %v3854 = vpop.f32.mrb[0].mxu0
      %v3855 = vpop.f32.mrb[0].mxu0
      %v3856 = vadd.f32 0.0, %v3855
      %v3857 = vpop.f32.mrb[0].mxu0
      %3858 = vmatprep.mubr.bf16.mxu0 0
      %3859 = vmatmul.mubr.bf16.gmra.mrb[0].mxu0 %v3731
      %v3860 = vpop.f32.mrb[0].mxu0
      %v3861 = vadd.f32 0.0, %v3860
      %v3862 = vpop.f32.mrb[0].mxu0
      %v3863 = vpop.f32.mrb[0].mxu0
      %v3864 = vadd.f32 0.0, %v3863
      %v3865 = vpop.f32.mrb[0].mxu0
      %3866 = vmatprep.mubr.bf16.mxu0 0
      %3867 = vmatmul.mubr.bf16.gmra.mrb[0].mxu0 %v3734
      %v3868 = vpop.f32.mrb[0].mxu0
      %v3869 = vadd.f32 0.0, %v3868
      %v3870 = vpop.f32.mrb[0].mxu0
      %v3871 = vpop.f32.mrb[0].mxu0
      %v3872 = vadd.f32 0.0, %v3871
      %v3873 = vpop.f32.mrb[0].mxu0
      %3874 = vmatprep.mubr.bf16.mxu0 0
      %3875 = vmatmul.mubr.bf16.gmra.mrb[0].mxu0 %v3737
      %v3876 = vpop.f32.mrb[0].mxu0
      %v3877 = vadd.f32 0.0, %v3876
      %v3878 = vpop.f32.mrb[0].mxu0
      %v3879 = vpop.f32.mrb[0].mxu0
      %v3880 = vadd.f32 0.0, %v3879
      %v3881 = vpop.f32.mrb[0].mxu0
      %3882 = vmatprep.mubr.bf16.mxu0 0
      %3883 = vmatmul.mubr.bf16.gmra.mrb[0].mxu0 %v3740
      %v3884 = vpop.f32.mrb[0].mxu0
      %v3885 = vadd.f32 0.0, %v3884
      %v3886 = vpop.f32.mrb[0].mxu0
      %v3887 = vpop.f32.mrb[0].mxu0
      %v3888 = vadd.f32 0.0, %v3887
      %v3889 = vpop.f32.mrb[0].mxu0
      %3890 = vmatprep.mubr.bf16.mxu0 0
      %3891 = vmatmul.mubr.bf16.gmra.mrb[0].mxu0 %v3743
      %v3892 = vpop.f32.mrb[0].mxu0
      %v3893 = vadd.f32 0.0, %v3892
      %v3894 = vpop.f32.mrb[0].mxu0
      %v3895 = vpop.f32.mrb[0].mxu0
      %v3896 = vadd.f32 0.0, %v3895
      %v3897 = vpop.f32.mrb[0].mxu0
      %3898 = vmatprep.mubr.bf16.mxu0 0
      %3899 = vmatmul.mubr.bf16.gmra.mrb[0].mxu0 %v3746
      %v3900 = vpop.f32.mrb[0].mxu0
      %v3901 = vadd.f32 0.0, %v3900
      %v3902 = vpop.f32.mrb[0].mxu0
      %v3903 = vpop.f32.mrb[0].mxu0
      %v3904 = vadd.f32 0.0, %v3903
      %v3905 = vpop.f32.mrb[0].mxu0
      %3906 = vmatprep.mubr.bf16.mxu0 0
      %3907 = vmatmul.mubr.bf16.gmra.mrb[0].mxu0 %v3749
      %v3908 = vpop.f32.mrb[0].mxu0
      %v3909 = vadd.f32 0.0, %v3908
      %v3910 = vpop.f32.mrb[0].mxu0
      %v3911 = vpop.f32.mrb[0].mxu0
      %v3912 = vadd.f32 0.0, %v3911
      %v3913 = vpop.f32.mrb[0].mxu0
      %3914 = vdwg.mxu0
      %v3915 = vadd.f32 %v3445, %v3789
      %v3916 = vadd.f32 %v3446, %v3792
      %v3917 = vadd.f32 %v3447, %v3797
      %v3918 = vadd.f32 %v3448, %v3800
      %v3919 = vadd.f32 %v3449, %v3805
      %v3920 = vadd.f32 %v3450, %v3808
      %v3921 = vadd.f32 %v3451, %v3813
      %v3922 = vadd.f32 %v3452, %v3816
      %v3923 = vadd.f32 %v3453, %v3821
      %v3924 = vadd.f32 %v3454, %v3824
      %v3925 = vadd.f32 %v3455, %v3829
      %v3926 = vadd.f32 %v3456, %v3832
      %v3927 = vadd.f32 %v3457, %v3837
      %v3928 = vadd.f32 %v3458, %v3840
      %v3929 = vadd.f32 %v3459, %v3845
      %v3930 = vadd.f32 %v3460, %v3848
      %v3931 = vadd.f32 %v3461, %v3853
      %v3932 = vadd.f32 %v3462, %v3856
      %v3933 = vadd.f32 %v3463, %v3861
      %v3934 = vadd.f32 %v3464, %v3864
      %v3935 = vadd.f32 %v3465, %v3869
      %v3936 = vadd.f32 %v3466, %v3872
      %v3937 = vadd.f32 %v3467, %v3877
      %v3938 = vadd.f32 %v3468, %v3880
      %v3939 = vadd.f32 %v3469, %v3885
      %v3940 = vadd.f32 %v3470, %v3888
      %v3941 = vadd.f32 %v3471, %v3893
      %v3942 = vadd.f32 %v3472, %v3896
      %v3943 = vadd.f32 %v3473, %v3901
      %v3944 = vadd.f32 %v3474, %v3904
      %v3945 = vadd.f32 %v3475, %v3909
      %v3946 = vadd.f32 %v3476, %v3912
      %s3947 = scalar_lea.vmem [#allocation2], 24
      %v3948 = vld [vmem:[%s3947] sm:$0xf]
      %v3949 = vld [vmem:[%s3947 + $0x4] sm:$0xf]
      %v3950 = vld [vmem:[%s3947 + $0xc] sm:$0xf]
      %v3951 = vld [vmem:[%s3947 + $0x10] sm:$0xf]
      %v3952 = vld [vmem:[%s3947 + $0x18] sm:$0xf]
      %v3953 = vld [vmem:[%s3947 + $0x1c] sm:$0xf]
      %v3954 = vld [vmem:[%s3947 + $0x24] sm:$0xf]
      %v3955 = vld [vmem:[%s3947 + $0x28] sm:$0xf]
      %v3956 = vld [vmem:[%s3947 + $0x30] sm:$0xf]
      %v3957 = vld [vmem:[%s3947 + $0x34] sm:$0xf]
      %v3958 = vld [vmem:[%s3947 + $0x3c] sm:$0xf]
      %v3959 = vld [vmem:[%s3947 + $0x40] sm:$0xf]
      %v3960 = vld [vmem:[%s3947 + $0x48] sm:$0xf]
      %v3961 = vld [vmem:[%s3947 + $0x4c] sm:$0xf]
      %v3962 = vld [vmem:[%s3947 + $0x54] sm:$0xf]
      %v3963 = vld [vmem:[%s3947 + $0x58] sm:$0xf]
      %v3964 = vld [vmem:[%s3947 + $0x60] sm:$0xf]
      %v3965 = vld [vmem:[%s3947 + $0x64] sm:$0xf]
      %v3966 = vld [vmem:[%s3947 + $0x6c] sm:$0xf]
      %v3967 = vld [vmem:[%s3947 + $0x70] sm:$0xf]
      %v3968 = vld [vmem:[%s3947 + $0x78] sm:$0xf]
      %v3969 = vld [vmem:[%s3947 + $0x7c] sm:$0xf]
      %v3970 = vld [vmem:[%s3947 + $0x84] sm:$0xf]
      %v3971 = vld [vmem:[%s3947 + $0x88] sm:$0xf]
      %v3972 = vld [vmem:[%s3947 + $0x90] sm:$0xf]
      %v3973 = vld [vmem:[%s3947 + $0x94] sm:$0xf]
      %v3974 = vld [vmem:[%s3947 + $0x9c] sm:$0xf]
      %v3975 = vld [vmem:[%s3947 + $0xa0] sm:$0xf]
      %v3976 = vld [vmem:[%s3947 + $0xa8] sm:$0xf]
      %v3977 = vld [vmem:[%s3947 + $0xac] sm:$0xf]
      %v3978 = vld [vmem:[%s3947 + $0xb4] sm:$0xf]
      %v3979 = vld [vmem:[%s3947 + $0xb8] sm:$0xf]
      %s3980 = scalar_lea.vmem %s1, 12
      %v3981 = vld [vmem:[%s3980] sm:$0x3]
      %v4014 = vunpack.c.l.b16 %v3948
      %v4015 = vunpack.c.l.b16 %v3949
      %v4016 = vunpack.c.l.b16 %v3950
      %v4017 = vunpack.c.l.b16 %v3951
      %v4018 = vunpack.c.l.b16 %v3952
      %v4019 = vunpack.c.l.b16 %v3953
      %v4020 = vunpack.c.l.b16 %v3954
      %v4021 = vunpack.c.l.b16 %v3955
      %v4022 = vunpack.c.l.b16 %v3956
      %v4023 = vunpack.c.l.b16 %v3957
      %v4024 = vunpack.c.l.b16 %v3958
      %v4025 = vunpack.c.l.b16 %v3959
      %v4026 = vunpack.c.l.b16 %v3960
      %v4027 = vunpack.c.l.b16 %v3961
      %v4028 = vunpack.c.l.b16 %v3962
      %v4029 = vunpack.c.l.b16 %v3963
      %v4030 = vunpack.c.l.b16 %v3964
      %v4031 = vunpack.c.l.b16 %v3965
      %v4032 = vunpack.c.l.b16 %v3966
      %v4033 = vunpack.c.l.b16 %v3967
      %v4034 = vunpack.c.l.b16 %v3968
      %v4035 = vunpack.c.l.b16 %v3969
      %v4036 = vunpack.c.l.b16 %v3970
      %v4037 = vunpack.c.l.b16 %v3971
      %v4038 = vunpack.c.l.b16 %v3972
      %v4039 = vunpack.c.l.b16 %v3973
      %v4040 = vunpack.c.l.b16 %v3974
      %v4041 = vunpack.c.l.b16 %v3975
      %v4042 = vunpack.c.l.b16 %v3976
      %v4043 = vunpack.c.l.b16 %v3977
      %v4044 = vunpack.c.l.b16 %v3978
      %v4045 = vunpack.c.l.b16 %v3979
      %v4046 = vpack.c.b16 %v4015, %v4014
      %v4047 = vpack.c.b16 %v4017, %v4016
      %v4048 = vpack.c.b16 %v4019, %v4018
      %v4049 = vpack.c.b16 %v4021, %v4020
      %v4050 = vpack.c.b16 %v4023, %v4022
      %v4051 = vpack.c.b16 %v4025, %v4024
      %v4052 = vpack.c.b16 %v4027, %v4026
      %v4053 = vpack.c.b16 %v4029, %v4028
      %v4054 = vpack.c.b16 %v4031, %v4030
      %v4055 = vpack.c.b16 %v4033, %v4032
      %v4056 = vpack.c.b16 %v4035, %v4034
      %v4057 = vpack.c.b16 %v4037, %v4036
      %v4058 = vpack.c.b16 %v4039, %v4038
      %v4059 = vpack.c.b16 %v4041, %v4040
      %v4060 = vpack.c.b16 %v4043, %v4042
      %v4061 = vpack.c.b16 %v4045, %v4044
      %v4063 = vsel %vm1427, %v4046, 0
      %v4066 = vsel %vm1427, %v4047, 0
      %v4069 = vsel %vm1427, %v4048, 0
      %v4072 = vsel %vm1427, %v4049, 0
      %v4075 = vsel %vm1427, %v4050, 0
      %v4078 = vsel %vm1427, %v4051, 0
      %v4081 = vsel %vm1427, %v4052, 0
      %v4084 = vsel %vm1427, %v4053, 0
      %v4087 = vsel %vm1427, %v4054, 0
      %v4090 = vsel %vm1427, %v4055, 0
      %v4093 = vsel %vm1427, %v4056, 0
      %v4096 = vsel %vm1427, %v4057, 0
      %v4099 = vsel %vm1427, %v4058, 0
      %v4102 = vsel %vm1427, %v4059, 0
      %v4105 = vsel %vm1427, %v4060, 0
      %v4108 = vsel %vm1427, %v4061, 0
      %v4111 = vand.u32 %v3981, %v1479
      %4113 = vmatprep.subr.bf16.mxu0 0
      %4114 = vmatpush1.bf16.msra.mxu0 %v4111
      %4115 = vmatprep.subr.bf16.mxu0 0
      %4116 = vmatpush1.bf16.msra.mxu0 0
      %4117 = vmatprep.subr.bf16.mxu0 0
      %4118 = vmatpush1.bf16.msra.mxu0 0
      %4119 = vmatprep.subr.bf16.mxu0 0
      %4120 = vmatpush1.bf16.msra.mxu0 0
      %4121 = vmatprep.subr.bf16.mxu0 0
      %4122 = vmatpush1.bf16.msra.mxu0 0
      %4123 = vmatprep.subr.bf16.mxu0 0
      %4124 = vmatpush1.bf16.msra.mxu0 0
      %4125 = vmatprep.subr.bf16.mxu0 0
      %4126 = vmatpush1.bf16.msra.mxu0 0
      %4127 = vmatprep.subr.bf16.mxu0 0
      %4128 = vmatpush1.bf16.msra.mxu0 0
      %4129 = vmatprep.subr.bf16.mxu0 0
      %4130 = vmatpush1.bf16.msra.mxu0 0
      %4131 = vmatprep.subr.bf16.mxu0 0
      %4132 = vmatpush1.bf16.msra.mxu0 0
      %4133 = vmatprep.subr.bf16.mxu0 0
      %4134 = vmatpush1.bf16.msra.mxu0 0
      %4135 = vmatprep.subr.bf16.mxu0 0
      %4136 = vmatpush1.bf16.msra.mxu0 0
      %4137 = vmatprep.subr.bf16.mxu0 0
      %4138 = vmatpush1.bf16.msra.mxu0 0
      %4139 = vmatprep.subr.bf16.mxu0 0
      %4140 = vmatpush1.bf16.msra.mxu0 0
      %4141 = vmatprep.subr.bf16.mxu0 0
      %4142 = vmatpush1.bf16.msra.mxu0 0
      %4143 = vmatprep.subr.bf16.mxu0 0
      %4144 = vmatpush1.bf16.msra.mxu0 0
      %4145 = vmatprep.mubr.bf16.mxu0 0
      %4146 = vmatmul.mubr.bf16.gmra.mrb[0].mxu0 %v4063
      %v4147 = vpop.f32.mrb[0].mxu0
      %v4148 = vadd.f32 0.0, %v4147
      %v4149 = vpop.f32.mrb[0].mxu0
      %v4150 = vpop.f32.mrb[0].mxu0
      %v4151 = vadd.f32 0.0, %v4150
      %v4152 = vpop.f32.mrb[0].mxu0
      %4153 = vmatprep.mubr.bf16.mxu0 0
      %4154 = vmatmul.mubr.bf16.gmra.mrb[0].mxu0 %v4066
      %v4155 = vpop.f32.mrb[0].mxu0
      %v4156 = vadd.f32 0.0, %v4155
      %v4157 = vpop.f32.mrb[0].mxu0
      %v4158 = vpop.f32.mrb[0].mxu0
      %v4159 = vadd.f32 0.0, %v4158
      %v4160 = vpop.f32.mrb[0].mxu0
      %4161 = vmatprep.mubr.bf16.mxu0 0
      %4162 = vmatmul.mubr.bf16.gmra.mrb[0].mxu0 %v4069
      %v4163 = vpop.f32.mrb[0].mxu0
      %v4164 = vadd.f32 0.0, %v4163
      %v4165 = vpop.f32.mrb[0].mxu0
      %v4166 = vpop.f32.mrb[0].mxu0
      %v4167 = vadd.f32 0.0, %v4166
      %v4168 = vpop.f32.mrb[0].mxu0
      %4169 = vmatprep.mubr.bf16.mxu0 0
      %4170 = vmatmul.mubr.bf16.gmra.mrb[0].mxu0 %v4072
      %v4171 = vpop.f32.mrb[0].mxu0
      %v4172 = vadd.f32 0.0, %v4171
      %v4173 = vpop.f32.mrb[0].mxu0
      %v4174 = vpop.f32.mrb[0].mxu0
      %v4175 = vadd.f32 0.0, %v4174
      %v4176 = vpop.f32.mrb[0].mxu0
      %4177 = vmatprep.mubr.bf16.mxu0 0
      %4178 = vmatmul.mubr.bf16.gmra.mrb[0].mxu0 %v4075
      %v4179 = vpop.f32.mrb[0].mxu0
      %v4180 = vadd.f32 0.0, %v4179
      %v4181 = vpop.f32.mrb[0].mxu0
      %v4182 = vpop.f32.mrb[0].mxu0
      %v4183 = vadd.f32 0.0, %v4182
      %v4184 = vpop.f32.mrb[0].mxu0
      %4185 = vmatprep.mubr.bf16.mxu0 0
      %4186 = vmatmul.mubr.bf16.gmra.mrb[0].mxu0 %v4078
      %v4187 = vpop.f32.mrb[0].mxu0
      %v4188 = vadd.f32 0.0, %v4187
      %v4189 = vpop.f32.mrb[0].mxu0
      %v4190 = vpop.f32.mrb[0].mxu0
      %v4191 = vadd.f32 0.0, %v4190
      %v4192 = vpop.f32.mrb[0].mxu0
      %4193 = vmatprep.mubr.bf16.mxu0 0
      %4194 = vmatmul.mubr.bf16.gmra.mrb[0].mxu0 %v4081
      %v4195 = vpop.f32.mrb[0].mxu0
      %v4196 = vadd.f32 0.0, %v4195
      %v4197 = vpop.f32.mrb[0].mxu0
      %v4198 = vpop.f32.mrb[0].mxu0
      %v4199 = vadd.f32 0.0, %v4198
      %v4200 = vpop.f32.mrb[0].mxu0
      %4201 = vmatprep.mubr.bf16.mxu0 0
      %4202 = vmatmul.mubr.bf16.gmra.mrb[0].mxu0 %v4084
      %v4203 = vpop.f32.mrb[0].mxu0
      %v4204 = vadd.f32 0.0, %v4203
      %v4205 = vpop.f32.mrb[0].mxu0
      %v4206 = vpop.f32.mrb[0].mxu0
      %v4207 = vadd.f32 0.0, %v4206
      %v4208 = vpop.f32.mrb[0].mxu0
      %4209 = vmatprep.mubr.bf16.mxu0 0
      %4210 = vmatmul.mubr.bf16.gmra.mrb[0].mxu0 %v4087
      %v4211 = vpop.f32.mrb[0].mxu0
      %v4212 = vadd.f32 0.0, %v4211
      %v4213 = vpop.f32.mrb[0].mxu0
      %v4214 = vpop.f32.mrb[0].mxu0
      %v4215 = vadd.f32 0.0, %v4214
      %v4216 = vpop.f32.mrb[0].mxu0
      %4217 = vmatprep.mubr.bf16.mxu0 0
      %4218 = vmatmul.mubr.bf16.gmra.mrb[0].mxu0 %v4090
      %v4219 = vpop.f32.mrb[0].mxu0
      %v4220 = vadd.f32 0.0, %v4219
      %v4221 = vpop.f32.mrb[0].mxu0
      %v4222 = vpop.f32.mrb[0].mxu0
      %v4223 = vadd.f32 0.0, %v4222
      %v4224 = vpop.f32.mrb[0].mxu0
      %4225 = vmatprep.mubr.bf16.mxu0 0
      %4226 = vmatmul.mubr.bf16.gmra.mrb[0].mxu0 %v4093
      %v4227 = vpop.f32.mrb[0].mxu0
      %v4228 = vadd.f32 0.0, %v4227
      %v4229 = vpop.f32.mrb[0].mxu0
      %v4230 = vpop.f32.mrb[0].mxu0
      %v4231 = vadd.f32 0.0, %v4230
      %v4232 = vpop.f32.mrb[0].mxu0
      %4233 = vmatprep.mubr.bf16.mxu0 0
      %4234 = vmatmul.mubr.bf16.gmra.mrb[0].mxu0 %v4096
      %v4235 = vpop.f32.mrb[0].mxu0
      %v4236 = vadd.f32 0.0, %v4235
      %v4237 = vpop.f32.mrb[0].mxu0
      %v4238 = vpop.f32.mrb[0].mxu0
      %v4239 = vadd.f32 0.0, %v4238
      %v4240 = vpop.f32.mrb[0].mxu0
      %4241 = vmatprep.mubr.bf16.mxu0 0
      %4242 = vmatmul.mubr.bf16.gmra.mrb[0].mxu0 %v4099
      %v4243 = vpop.f32.mrb[0].mxu0
      %v4244 = vadd.f32 0.0, %v4243
      %v4245 = vpop.f32.mrb[0].mxu0
      %v4246 = vpop.f32.mrb[0].mxu0
      %v4247 = vadd.f32 0.0, %v4246
      %v4248 = vpop.f32.mrb[0].mxu0
      %4249 = vmatprep.mubr.bf16.mxu0 0
      %4250 = vmatmul.mubr.bf16.gmra.mrb[0].mxu0 %v4102
      %v4251 = vpop.f32.mrb[0].mxu0
      %v4252 = vadd.f32 0.0, %v4251
      %v4253 = vpop.f32.mrb[0].mxu0
      %v4254 = vpop.f32.mrb[0].mxu0
      %v4255 = vadd.f32 0.0, %v4254
      %v4256 = vpop.f32.mrb[0].mxu0
      %4257 = vmatprep.mubr.bf16.mxu0 0
      %4258 = vmatmul.mubr.bf16.gmra.mrb[0].mxu0 %v4105
      %v4259 = vpop.f32.mrb[0].mxu0
      %v4260 = vadd.f32 0.0, %v4259
      %v4261 = vpop.f32.mrb[0].mxu0
      %v4262 = vpop.f32.mrb[0].mxu0
      %v4263 = vadd.f32 0.0, %v4262
      %v4264 = vpop.f32.mrb[0].mxu0
      %4265 = vmatprep.mubr.bf16.mxu0 0
      %4266 = vmatmul.mubr.bf16.gmra.mrb[0].mxu0 %v4108
      %v4267 = vpop.f32.mrb[0].mxu0
      %v4268 = vadd.f32 0.0, %v4267
      %v4269 = vpop.f32.mrb[0].mxu0
      %v4270 = vpop.f32.mrb[0].mxu0
      %v4271 = vadd.f32 0.0, %v4270
      %v4272 = vpop.f32.mrb[0].mxu0
      %4273 = vdwg.mxu0
      %v4274 = vadd.f32 %v3915, %v4148
      %v4275 = vadd.f32 %v3916, %v4151
      %v4276 = vadd.f32 %v3917, %v4156
      %v4277 = vadd.f32 %v3918, %v4159
      %v4278 = vadd.f32 %v3919, %v4164
      %v4279 = vadd.f32 %v3920, %v4167
      %v4280 = vadd.f32 %v3921, %v4172
      %v4281 = vadd.f32 %v3922, %v4175
      %v4282 = vadd.f32 %v3923, %v4180
      %v4283 = vadd.f32 %v3924, %v4183
      %v4284 = vadd.f32 %v3925, %v4188
      %v4285 = vadd.f32 %v3926, %v4191
      %v4286 = vadd.f32 %v3927, %v4196
      %v4287 = vadd.f32 %v3928, %v4199
      %v4288 = vadd.f32 %v3929, %v4204
      %v4289 = vadd.f32 %v3930, %v4207
      %v4290 = vadd.f32 %v3931, %v4212
      %v4291 = vadd.f32 %v3932, %v4215
      %v4292 = vadd.f32 %v3933, %v4220
      %v4293 = vadd.f32 %v3934, %v4223
      %v4294 = vadd.f32 %v3935, %v4228
      %v4295 = vadd.f32 %v3936, %v4231
      %v4296 = vadd.f32 %v3937, %v4236
      %v4297 = vadd.f32 %v3938, %v4239
      %v4298 = vadd.f32 %v3939, %v4244
      %v4299 = vadd.f32 %v3940, %v4247
      %v4300 = vadd.f32 %v3941, %v4252
      %v4301 = vadd.f32 %v3942, %v4255
      %v4302 = vadd.f32 %v3943, %v4260
      %v4303 = vadd.f32 %v3944, %v4263
      %v4304 = vadd.f32 %v3945, %v4268
      %v4305 = vadd.f32 %v3946, %v4271
      %v4306 = vld [vmem:[%s3947] sm:$0xf]
      %v4307 = vld [vmem:[%s3947 + $0x4] sm:$0xf]
      %v4308 = vld [vmem:[%s3947 + $0x8] sm:$0x1]
      %v4309 = vld [vmem:[%s3947 + $0xc] sm:$0xf]
      %v4310 = vld [vmem:[%s3947 + $0x10] sm:$0xf]
      %v4311 = vld [vmem:[%s3947 + $0x14] sm:$0x1]
      %v4312 = vld [vmem:[%s3947 + $0x18] sm:$0xf]
      %v4313 = vld [vmem:[%s3947 + $0x1c] sm:$0xf]
      %v4314 = vld [vmem:[%s3947 + $0x20] sm:$0x1]
      %v4315 = vld [vmem:[%s3947 + $0x24] sm:$0xf]
      %v4316 = vld [vmem:[%s3947 + $0x28] sm:$0xf]
      %v4317 = vld [vmem:[%s3947 + $0x2c] sm:$0x1]
      %v4318 = vld [vmem:[%s3947 + $0x30] sm:$0xf]
      %v4319 = vld [vmem:[%s3947 + $0x34] sm:$0xf]
      %v4320 = vld [vmem:[%s3947 + $0x38] sm:$0x1]
      %v4321 = vld [vmem:[%s3947 + $0x3c] sm:$0xf]
      %v4322 = vld [vmem:[%s3947 + $0x40] sm:$0xf]
      %v4323 = vld [vmem:[%s3947 + $0x44] sm:$0x1]
      %v4324 = vld [vmem:[%s3947 + $0x48] sm:$0xf]
      %v4325 = vld [vmem:[%s3947 + $0x4c] sm:$0xf]
      %v4326 = vld [vmem:[%s3947 + $0x50] sm:$0x1]
      %v4327 = vld [vmem:[%s3947 + $0x54] sm:$0xf]
      %v4328 = vld [vmem:[%s3947 + $0x58] sm:$0xf]
      %v4329 = vld [vmem:[%s3947 + $0x5c] sm:$0x1]
      %v4330 = vld [vmem:[%s3947 + $0x60] sm:$0xf]
      %v4331 = vld [vmem:[%s3947 + $0x64] sm:$0xf]
      %v4332 = vld [vmem:[%s3947 + $0x68] sm:$0x1]
      %v4333 = vld [vmem:[%s3947 + $0x6c] sm:$0xf]
      %v4334 = vld [vmem:[%s3947 + $0x70] sm:$0xf]
      %v4335 = vld [vmem:[%s3947 + $0x74] sm:$0x1]
      %v4336 = vld [vmem:[%s3947 + $0x78] sm:$0xf]
      %v4337 = vld [vmem:[%s3947 + $0x7c] sm:$0xf]
      %v4338 = vld [vmem:[%s3947 + $0x80] sm:$0x1]
      %v4339 = vld [vmem:[%s3947 + $0x84] sm:$0xf]
      %v4340 = vld [vmem:[%s3947 + $0x88] sm:$0xf]
      %v4341 = vld [vmem:[%s3947 + $0x8c] sm:$0x1]
      %v4342 = vld [vmem:[%s3947 + $0x90] sm:$0xf]
      %v4343 = vld [vmem:[%s3947 + $0x94] sm:$0xf]
      %v4344 = vld [vmem:[%s3947 + $0x98] sm:$0x1]
      %v4345 = vld [vmem:[%s3947 + $0x9c] sm:$0xf]
      %v4346 = vld [vmem:[%s3947 + $0xa0] sm:$0xf]
      %v4347 = vld [vmem:[%s3947 + $0xa4] sm:$0x1]
      %v4348 = vld [vmem:[%s3947 + $0xa8] sm:$0xf]
      %v4349 = vld [vmem:[%s3947 + $0xac] sm:$0xf]
      %v4350 = vld [vmem:[%s3947 + $0xb0] sm:$0x1]
      %v4351 = vld [vmem:[%s3947 + $0xb4] sm:$0xf]
      %v4352 = vld [vmem:[%s3947 + $0xb8] sm:$0xf]
      %v4353 = vld [vmem:[%s3947 + $0xbc] sm:$0x1]
      %v4355 = vshrl.u32 %v4306, 16
      %v4357 = vrot.slane %v4355, 4
      %v4358 = vshll.u32 %v4306, 16
      %v4360 = vrot.slane %v4358, 5
      %v4361 = vor.u32 %v4357, %v4360
      %v4362 = vrot.slane %v4361, 4
      %v4364 = vshll.u32 %v4307, 16
      %v4366 = vrot.slane %v4364, 5
      %v4367 = vsel %vm992, %v4362, %v4366
      %v4368 = vshrl.u32 %v4307, 16
      %v4370 = vrot.slane %v4368, 4
      %v4371 = vor.u32 %v4370, %v4366
      %v4372 = vrot.slane %v4371, 4
      %v4374 = vshll.u32 %v4308, 16
      %v4376 = vrot.slane %v4374, 5
      %v4377 = vsel %vm992, %v4372, %v4376
      %v4379 = vshrl.u32 %v4309, 16
      %v4381 = vrot.slane %v4379, 4
      %v4382 = vshll.u32 %v4309, 16
      %v4384 = vrot.slane %v4382, 5
      %v4385 = vor.u32 %v4381, %v4384
      %v4386 = vrot.slane %v4385, 4
      %v4388 = vshll.u32 %v4310, 16
      %v4390 = vrot.slane %v4388, 5
      %v4391 = vsel %vm992, %v4386, %v4390
      %v4392 = vshrl.u32 %v4310, 16
      %v4394 = vrot.slane %v4392, 4
      %v4395 = vor.u32 %v4394, %v4390
      %v4396 = vrot.slane %v4395, 4
      %v4398 = vshll.u32 %v4311, 16
      %v4400 = vrot.slane %v4398, 5
      %v4401 = vsel %vm992, %v4396, %v4400
      %v4403 = vshrl.u32 %v4312, 16
      %v4405 = vrot.slane %v4403, 4
      %v4406 = vshll.u32 %v4312, 16
      %v4408 = vrot.slane %v4406, 5
      %v4409 = vor.u32 %v4405, %v4408
      %v4410 = vrot.slane %v4409, 4
      %v4412 = vshll.u32 %v4313, 16
      %v4414 = vrot.slane %v4412, 5
      %v4415 = vsel %vm992, %v4410, %v4414
      %v4416 = vshrl.u32 %v4313, 16
      %v4418 = vrot.slane %v4416, 4
      %v4419 = vor.u32 %v4418, %v4414
      %v4420 = vrot.slane %v4419, 4
      %v4422 = vshll.u32 %v4314, 16
      %v4424 = vrot.slane %v4422, 5
      %v4425 = vsel %vm992, %v4420, %v4424
      %v4427 = vshrl.u32 %v4315, 16
      %v4429 = vrot.slane %v4427, 4
      %v4430 = vshll.u32 %v4315, 16
      %v4432 = vrot.slane %v4430, 5
      %v4433 = vor.u32 %v4429, %v4432
      %v4434 = vrot.slane %v4433, 4
      %v4436 = vshll.u32 %v4316, 16
      %v4438 = vrot.slane %v4436, 5
      %v4439 = vsel %vm992, %v4434, %v4438
      %v4440 = vshrl.u32 %v4316, 16
      %v4442 = vrot.slane %v4440, 4
      %v4443 = vor.u32 %v4442, %v4438
      %v4444 = vrot.slane %v4443, 4
      %v4446 = vshll.u32 %v4317, 16
      %v4448 = vrot.slane %v4446, 5
      %v4449 = vsel %vm992, %v4444, %v4448
      %v4451 = vshrl.u32 %v4318, 16
      %v4453 = vrot.slane %v4451, 4
      %v4454 = vshll.u32 %v4318, 16
      %v4456 = vrot.slane %v4454, 5
      %v4457 = vor.u32 %v4453, %v4456
      %v4458 = vrot.slane %v4457, 4
      %v4460 = vshll.u32 %v4319, 16
      %v4462 = vrot.slane %v4460, 5
      %v4463 = vsel %vm992, %v4458, %v4462
      %v4464 = vshrl.u32 %v4319, 16
      %v4466 = vrot.slane %v4464, 4
      %v4467 = vor.u32 %v4466, %v4462
      %v4468 = vrot.slane %v4467, 4
      %v4470 = vshll.u32 %v4320, 16
      %v4472 = vrot.slane %v4470, 5
      %v4473 = vsel %vm992, %v4468, %v4472
      %v4475 = vshrl.u32 %v4321, 16
      %v4477 = vrot.slane %v4475, 4
      %v4478 = vshll.u32 %v4321, 16
      %v4480 = vrot.slane %v4478, 5
      %v4481 = vor.u32 %v4477, %v4480
      %v4482 = vrot.slane %v4481, 4
      %v4484 = vshll.u32 %v4322, 16
      %v4486 = vrot.slane %v4484, 5
      %v4487 = vsel %vm992, %v4482, %v4486
      %v4488 = vshrl.u32 %v4322, 16
      %v4490 = vrot.slane %v4488, 4
      %v4491 = vor.u32 %v4490, %v4486
      %v4492 = vrot.slane %v4491, 4
      %v4494 = vshll.u32 %v4323, 16
      %v4496 = vrot.slane %v4494, 5
      %v4497 = vsel %vm992, %v4492, %v4496
      %v4499 = vshrl.u32 %v4324, 16
      %v4501 = vrot.slane %v4499, 4
      %v4502 = vshll.u32 %v4324, 16
      %v4504 = vrot.slane %v4502, 5
      %v4505 = vor.u32 %v4501, %v4504
      %v4506 = vrot.slane %v4505, 4
      %v4508 = vshll.u32 %v4325, 16
      %v4510 = vrot.slane %v4508, 5
      %v4511 = vsel %vm992, %v4506, %v4510
      %v4512 = vshrl.u32 %v4325, 16
      %v4514 = vrot.slane %v4512, 4
      %v4515 = vor.u32 %v4514, %v4510
      %v4516 = vrot.slane %v4515, 4
      %v4518 = vshll.u32 %v4326, 16
      %v4520 = vrot.slane %v4518, 5
      %v4521 = vsel %vm992, %v4516, %v4520
      %v4523 = vshrl.u32 %v4327, 16
      %v4525 = vrot.slane %v4523, 4
      %v4526 = vshll.u32 %v4327, 16
      %v4528 = vrot.slane %v4526, 5
      %v4529 = vor.u32 %v4525, %v4528
      %v4530 = vrot.slane %v4529, 4
      %v4532 = vshll.u32 %v4328, 16
      %v4534 = vrot.slane %v4532, 5
      %v4535 = vsel %vm992, %v4530, %v4534
      %v4536 = vshrl.u32 %v4328, 16
      %v4538 = vrot.slane %v4536, 4
      %v4539 = vor.u32 %v4538, %v4534
      %v4540 = vrot.slane %v4539, 4
      %v4542 = vshll.u32 %v4329, 16
      %v4544 = vrot.slane %v4542, 5
      %v4545 = vsel %vm992, %v4540, %v4544
      %v4547 = vshrl.u32 %v4330, 16
      %v4549 = vrot.slane %v4547, 4
      %v4550 = vshll.u32 %v4330, 16
      %v4552 = vrot.slane %v4550, 5
      %v4553 = vor.u32 %v4549, %v4552
      %v4554 = vrot.slane %v4553, 4
      %v4556 = vshll.u32 %v4331, 16
      %v4558 = vrot.slane %v4556, 5
      %v4559 = vsel %vm992, %v4554, %v4558
      %v4560 = vshrl.u32 %v4331, 16
      %v4562 = vrot.slane %v4560, 4
      %v4563 = vor.u32 %v4562, %v4558
      %v4564 = vrot.slane %v4563, 4
      %v4566 = vshll.u32 %v4332, 16
      %v4568 = vrot.slane %v4566, 5
      %v4569 = vsel %vm992, %v4564, %v4568
      %v4571 = vshrl.u32 %v4333, 16
      %v4573 = vrot.slane %v4571, 4
      %v4574 = vshll.u32 %v4333, 16
      %v4576 = vrot.slane %v4574, 5
      %v4577 = vor.u32 %v4573, %v4576
      %v4578 = vrot.slane %v4577, 4
      %v4580 = vshll.u32 %v4334, 16
      %v4582 = vrot.slane %v4580, 5
      %v4583 = vsel %vm992, %v4578, %v4582
      %v4584 = vshrl.u32 %v4334, 16
      %v4586 = vrot.slane %v4584, 4
      %v4587 = vor.u32 %v4586, %v4582
      %v4588 = vrot.slane %v4587, 4
      %v4590 = vshll.u32 %v4335, 16
      %v4592 = vrot.slane %v4590, 5
      %v4593 = vsel %vm992, %v4588, %v4592
      %v4595 = vshrl.u32 %v4336, 16
      %v4597 = vrot.slane %v4595, 4
      %v4598 = vshll.u32 %v4336, 16
      %v4600 = vrot.slane %v4598, 5
      %v4601 = vor.u32 %v4597, %v4600
      %v4602 = vrot.slane %v4601, 4
      %v4604 = vshll.u32 %v4337, 16
      %v4606 = vrot.slane %v4604, 5
      %v4607 = vsel %vm992, %v4602, %v4606
      %v4608 = vshrl.u32 %v4337, 16
      %v4610 = vrot.slane %v4608, 4
      %v4611 = vor.u32 %v4610, %v4606
      %v4612 = vrot.slane %v4611, 4
      %v4614 = vshll.u32 %v4338, 16
      %v4616 = vrot.slane %v4614, 5
      %v4617 = vsel %vm992, %v4612, %v4616
      %v4619 = vshrl.u32 %v4339, 16
      %v4621 = vrot.slane %v4619, 4
      %v4622 = vshll.u32 %v4339, 16
      %v4624 = vrot.slane %v4622, 5
      %v4625 = vor.u32 %v4621, %v4624
      %v4626 = vrot.slane %v4625, 4
      %v4628 = vshll.u32 %v4340, 16
      %v4630 = vrot.slane %v4628, 5
      %v4631 = vsel %vm992, %v4626, %v4630
      %v4632 = vshrl.u32 %v4340, 16
      %v4634 = vrot.slane %v4632, 4
      %v4635 = vor.u32 %v4634, %v4630
      %v4636 = vrot.slane %v4635, 4
      %v4638 = vshll.u32 %v4341, 16
      %v4640 = vrot.slane %v4638, 5
      %v4641 = vsel %vm992, %v4636, %v4640
      %v4643 = vshrl.u32 %v4342, 16
      %v4645 = vrot.slane %v4643, 4
      %v4646 = vshll.u32 %v4342, 16
      %v4648 = vrot.slane %v4646, 5
      %v4649 = vor.u32 %v4645, %v4648
      %v4650 = vrot.slane %v4649, 4
      %v4652 = vshll.u32 %v4343, 16
      %v4654 = vrot.slane %v4652, 5
      %v4655 = vsel %vm992, %v4650, %v4654
      %v4656 = vshrl.u32 %v4343, 16
      %v4658 = vrot.slane %v4656, 4
      %v4659 = vor.u32 %v4658, %v4654
      %v4660 = vrot.slane %v4659, 4
      %v4662 = vshll.u32 %v4344, 16
      %v4664 = vrot.slane %v4662, 5
      %v4665 = vsel %vm992, %v4660, %v4664
      %v4667 = vshrl.u32 %v4345, 16
      %v4669 = vrot.slane %v4667, 4
      %v4670 = vshll.u32 %v4345, 16
      %v4672 = vrot.slane %v4670, 5
      %v4673 = vor.u32 %v4669, %v4672
      %v4674 = vrot.slane %v4673, 4
      %v4676 = vshll.u32 %v4346, 16
      %v4678 = vrot.slane %v4676, 5
      %v4679 = vsel %vm992, %v4674, %v4678
      %v4680 = vshrl.u32 %v4346, 16
      %v4682 = vrot.slane %v4680, 4
      %v4683 = vor.u32 %v4682, %v4678
      %v4684 = vrot.slane %v4683, 4
      %v4686 = vshll.u32 %v4347, 16
      %v4688 = vrot.slane %v4686, 5
      %v4689 = vsel %vm992, %v4684, %v4688
      %v4691 = vshrl.u32 %v4348, 16
      %v4693 = vrot.slane %v4691, 4
      %v4694 = vshll.u32 %v4348, 16
      %v4696 = vrot.slane %v4694, 5
      %v4697 = vor.u32 %v4693, %v4696
      %v4698 = vrot.slane %v4697, 4
      %v4700 = vshll.u32 %v4349, 16
      %v4702 = vrot.slane %v4700, 5
      %v4703 = vsel %vm992, %v4698, %v4702
      %v4704 = vshrl.u32 %v4349, 16
      %v4706 = vrot.slane %v4704, 4
      %v4707 = vor.u32 %v4706, %v4702
      %v4708 = vrot.slane %v4707, 4
      %v4710 = vshll.u32 %v4350, 16
      %v4712 = vrot.slane %v4710, 5
      %v4713 = vsel %vm992, %v4708, %v4712
      %v4715 = vshrl.u32 %v4351, 16
      %v4717 = vrot.slane %v4715, 4
      %v4718 = vshll.u32 %v4351, 16
      %v4720 = vrot.slane %v4718, 5
      %v4721 = vor.u32 %v4717, %v4720
      %v4722 = vrot.slane %v4721, 4
      %v4724 = vshll.u32 %v4352, 16
      %v4726 = vrot.slane %v4724, 5
      %v4727 = vsel %vm992, %v4722, %v4726
      %v4728 = vshrl.u32 %v4352, 16
      %v4730 = vrot.slane %v4728, 4
      %v4731 = vor.u32 %v4730, %v4726
      %v4732 = vrot.slane %v4731, 4
      %v4734 = vshll.u32 %v4353, 16
      %v4736 = vrot.slane %v4734, 5
      %v4737 = vsel %vm992, %v4732, %v4736
      %s4738 = scalar_lea.vmem %s1, 14
      %v4739 = vld [vmem:[%s4738] sm:$0x3]
      %v4740 = vunpack.c.l.b16 %v4367
      %v4741 = vunpack.c.l.b16 %v4377
      %v4742 = vunpack.c.l.b16 %v4391
      %v4743 = vunpack.c.l.b16 %v4401
      %v4744 = vunpack.c.l.b16 %v4415
      %v4745 = vunpack.c.l.b16 %v4425
      %v4746 = vunpack.c.l.b16 %v4439
      %v4747 = vunpack.c.l.b16 %v4449
      %v4748 = vunpack.c.l.b16 %v4463
      %v4749 = vunpack.c.l.b16 %v4473
      %v4750 = vunpack.c.l.b16 %v4487
      %v4751 = vunpack.c.l.b16 %v4497
      %v4752 = vunpack.c.l.b16 %v4511
      %v4753 = vunpack.c.l.b16 %v4521
      %v4754 = vunpack.c.l.b16 %v4535
      %v4755 = vunpack.c.l.b16 %v4545
      %v4756 = vunpack.c.l.b16 %v4559
      %v4757 = vunpack.c.l.b16 %v4569
      %v4758 = vunpack.c.l.b16 %v4583
      %v4759 = vunpack.c.l.b16 %v4593
      %v4760 = vunpack.c.l.b16 %v4607
      %v4761 = vunpack.c.l.b16 %v4617
      %v4762 = vunpack.c.l.b16 %v4631
      %v4763 = vunpack.c.l.b16 %v4641
      %v4764 = vunpack.c.l.b16 %v4655
      %v4765 = vunpack.c.l.b16 %v4665
      %v4766 = vunpack.c.l.b16 %v4679
      %v4767 = vunpack.c.l.b16 %v4689
      %v4768 = vunpack.c.l.b16 %v4703
      %v4769 = vunpack.c.l.b16 %v4713
      %v4770 = vunpack.c.l.b16 %v4727
      %v4771 = vunpack.c.l.b16 %v4737
      %v4772 = vpack.c.b16 %v4741, %v4740
      %v4773 = vpack.c.b16 %v4743, %v4742
      %v4774 = vpack.c.b16 %v4745, %v4744
      %v4775 = vpack.c.b16 %v4747, %v4746
      %v4776 = vpack.c.b16 %v4749, %v4748
      %v4777 = vpack.c.b16 %v4751, %v4750
      %v4778 = vpack.c.b16 %v4753, %v4752
      %v4779 = vpack.c.b16 %v4755, %v4754
      %v4780 = vpack.c.b16 %v4757, %v4756
      %v4781 = vpack.c.b16 %v4759, %v4758
      %v4782 = vpack.c.b16 %v4761, %v4760
      %v4783 = vpack.c.b16 %v4763, %v4762
      %v4784 = vpack.c.b16 %v4765, %v4764
      %v4785 = vpack.c.b16 %v4767, %v4766
      %v4786 = vpack.c.b16 %v4769, %v4768
      %v4787 = vpack.c.b16 %v4771, %v4770
      %v4789 = vsel %vm1427, %v4772, 0
      %v4792 = vsel %vm1427, %v4773, 0
      %v4795 = vsel %vm1427, %v4774, 0
      %v4798 = vsel %vm1427, %v4775, 0
      %v4801 = vsel %vm1427, %v4776, 0
      %v4804 = vsel %vm1427, %v4777, 0
      %v4807 = vsel %vm1427, %v4778, 0
      %v4810 = vsel %vm1427, %v4779, 0
      %v4813 = vsel %vm1427, %v4780, 0
      %v4816 = vsel %vm1427, %v4781, 0
      %v4819 = vsel %vm1427, %v4782, 0
      %v4822 = vsel %vm1427, %v4783, 0
      %v4825 = vsel %vm1427, %v4784, 0
      %v4828 = vsel %vm1427, %v4785, 0
      %v4831 = vsel %vm1427, %v4786, 0
      %v4834 = vsel %vm1427, %v4787, 0
      %v4837 = vand.u32 %v4739, %v1479
      %4839 = vmatprep.subr.bf16.mxu0 0
      %4840 = vmatpush1.bf16.msra.mxu0 %v4837
      %4841 = vmatprep.subr.bf16.mxu0 0
      %4842 = vmatpush1.bf16.msra.mxu0 0
      %4843 = vmatprep.subr.bf16.mxu0 0
      %4844 = vmatpush1.bf16.msra.mxu0 0
      %4845 = vmatprep.subr.bf16.mxu0 0
      %4846 = vmatpush1.bf16.msra.mxu0 0
      %4847 = vmatprep.subr.bf16.mxu0 0
      %4848 = vmatpush1.bf16.msra.mxu0 0
      %4849 = vmatprep.subr.bf16.mxu0 0
      %4850 = vmatpush1.bf16.msra.mxu0 0
      %4851 = vmatprep.subr.bf16.mxu0 0
      %4852 = vmatpush1.bf16.msra.mxu0 0
      %4853 = vmatprep.subr.bf16.mxu0 0
      %4854 = vmatpush1.bf16.msra.mxu0 0
      %4855 = vmatprep.subr.bf16.mxu0 0
      %4856 = vmatpush1.bf16.msra.mxu0 0
      %4857 = vmatprep.subr.bf16.mxu0 0
      %4858 = vmatpush1.bf16.msra.mxu0 0
      %4859 = vmatprep.subr.bf16.mxu0 0
      %4860 = vmatpush1.bf16.msra.mxu0 0
      %4861 = vmatprep.subr.bf16.mxu0 0
      %4862 = vmatpush1.bf16.msra.mxu0 0
      %4863 = vmatprep.subr.bf16.mxu0 0
      %4864 = vmatpush1.bf16.msra.mxu0 0
      %4865 = vmatprep.subr.bf16.mxu0 0
      %4866 = vmatpush1.bf16.msra.mxu0 0
      %4867 = vmatprep.subr.bf16.mxu0 0
      %4868 = vmatpush1.bf16.msra.mxu0 0
      %4869 = vmatprep.subr.bf16.mxu0 0
      %4870 = vmatpush1.bf16.msra.mxu0 0
      %4871 = vmatprep.mubr.bf16.mxu0 0
      %4872 = vmatmul.mubr.bf16.gmra.mrb[0].mxu0 %v4789
      %v4873 = vpop.f32.mrb[0].mxu0
      %v4874 = vadd.f32 0.0, %v4873
      %v4875 = vpop.f32.mrb[0].mxu0
      %v4876 = vpop.f32.mrb[0].mxu0
      %v4877 = vadd.f32 0.0, %v4876
      %v4878 = vpop.f32.mrb[0].mxu0
      %4879 = vmatprep.mubr.bf16.mxu0 0
      %4880 = vmatmul.mubr.bf16.gmra.mrb[0].mxu0 %v4792
      %v4881 = vpop.f32.mrb[0].mxu0
      %v4882 = vadd.f32 0.0, %v4881
      %v4883 = vpop.f32.mrb[0].mxu0
      %v4884 = vpop.f32.mrb[0].mxu0
      %v4885 = vadd.f32 0.0, %v4884
      %v4886 = vpop.f32.mrb[0].mxu0
      %4887 = vmatprep.mubr.bf16.mxu0 0
      %4888 = vmatmul.mubr.bf16.gmra.mrb[0].mxu0 %v4795
      %v4889 = vpop.f32.mrb[0].mxu0
      %v4890 = vadd.f32 0.0, %v4889
      %v4891 = vpop.f32.mrb[0].mxu0
      %v4892 = vpop.f32.mrb[0].mxu0
      %v4893 = vadd.f32 0.0, %v4892
      %v4894 = vpop.f32.mrb[0].mxu0
      %4895 = vmatprep.mubr.bf16.mxu0 0
      %4896 = vmatmul.mubr.bf16.gmra.mrb[0].mxu0 %v4798
      %v4897 = vpop.f32.mrb[0].mxu0
      %v4898 = vadd.f32 0.0, %v4897
      %v4899 = vpop.f32.mrb[0].mxu0
      %v4900 = vpop.f32.mrb[0].mxu0
      %v4901 = vadd.f32 0.0, %v4900
      %v4902 = vpop.f32.mrb[0].mxu0
      %4903 = vmatprep.mubr.bf16.mxu0 0
      %4904 = vmatmul.mubr.bf16.gmra.mrb[0].mxu0 %v4801
      %v4905 = vpop.f32.mrb[0].mxu0
      %v4906 = vadd.f32 0.0, %v4905
      %v4907 = vpop.f32.mrb[0].mxu0
      %v4908 = vpop.f32.mrb[0].mxu0
      %v4909 = vadd.f32 0.0, %v4908
      %v4910 = vpop.f32.mrb[0].mxu0
      %4911 = vmatprep.mubr.bf16.mxu0 0
      %4912 = vmatmul.mubr.bf16.gmra.mrb[0].mxu0 %v4804
      %v4913 = vpop.f32.mrb[0].mxu0
      %v4914 = vadd.f32 0.0, %v4913
      %v4915 = vpop.f32.mrb[0].mxu0
      %v4916 = vpop.f32.mrb[0].mxu0
      %v4917 = vadd.f32 0.0, %v4916
      %v4918 = vpop.f32.mrb[0].mxu0
      %4919 = vmatprep.mubr.bf16.mxu0 0
      %4920 = vmatmul.mubr.bf16.gmra.mrb[0].mxu0 %v4807
      %v4921 = vpop.f32.mrb[0].mxu0
      %v4922 = vadd.f32 0.0, %v4921
      %v4923 = vpop.f32.mrb[0].mxu0
      %v4924 = vpop.f32.mrb[0].mxu0
      %v4925 = vadd.f32 0.0, %v4924
      %v4926 = vpop.f32.mrb[0].mxu0
      %4927 = vmatprep.mubr.bf16.mxu0 0
      %4928 = vmatmul.mubr.bf16.gmra.mrb[0].mxu0 %v4810
      %v4929 = vpop.f32.mrb[0].mxu0
      %v4930 = vadd.f32 0.0, %v4929
      %v4931 = vpop.f32.mrb[0].mxu0
      %v4932 = vpop.f32.mrb[0].mxu0
      %v4933 = vadd.f32 0.0, %v4932
      %v4934 = vpop.f32.mrb[0].mxu0
      %4935 = vmatprep.mubr.bf16.mxu0 0
      %4936 = vmatmul.mubr.bf16.gmra.mrb[0].mxu0 %v4813
      %v4937 = vpop.f32.mrb[0].mxu0
      %v4938 = vadd.f32 0.0, %v4937
      %v4939 = vpop.f32.mrb[0].mxu0
      %v4940 = vpop.f32.mrb[0].mxu0
      %v4941 = vadd.f32 0.0, %v4940
      %v4942 = vpop.f32.mrb[0].mxu0
      %4943 = vmatprep.mubr.bf16.mxu0 0
      %4944 = vmatmul.mubr.bf16.gmra.mrb[0].mxu0 %v4816
      %v4945 = vpop.f32.mrb[0].mxu0
      %v4946 = vadd.f32 0.0, %v4945
      %v4947 = vpop.f32.mrb[0].mxu0
      %v4948 = vpop.f32.mrb[0].mxu0
      %v4949 = vadd.f32 0.0, %v4948
      %v4950 = vpop.f32.mrb[0].mxu0
      %4951 = vmatprep.mubr.bf16.mxu0 0
      %4952 = vmatmul.mubr.bf16.gmra.mrb[0].mxu0 %v4819
      %v4953 = vpop.f32.mrb[0].mxu0
      %v4954 = vadd.f32 0.0, %v4953
      %v4955 = vpop.f32.mrb[0].mxu0
      %v4956 = vpop.f32.mrb[0].mxu0
      %v4957 = vadd.f32 0.0, %v4956
      %v4958 = vpop.f32.mrb[0].mxu0
      %4959 = vmatprep.mubr.bf16.mxu0 0
      %4960 = vmatmul.mubr.bf16.gmra.mrb[0].mxu0 %v4822
      %v4961 = vpop.f32.mrb[0].mxu0
      %v4962 = vadd.f32 0.0, %v4961
      %v4963 = vpop.f32.mrb[0].mxu0
      %v4964 = vpop.f32.mrb[0].mxu0
      %v4965 = vadd.f32 0.0, %v4964
      %v4966 = vpop.f32.mrb[0].mxu0
      %4967 = vmatprep.mubr.bf16.mxu0 0
      %4968 = vmatmul.mubr.bf16.gmra.mrb[0].mxu0 %v4825
      %v4969 = vpop.f32.mrb[0].mxu0
      %v4970 = vadd.f32 0.0, %v4969
      %v4971 = vpop.f32.mrb[0].mxu0
      %v4972 = vpop.f32.mrb[0].mxu0
      %v4973 = vadd.f32 0.0, %v4972
      %v4974 = vpop.f32.mrb[0].mxu0
      %4975 = vmatprep.mubr.bf16.mxu0 0
      %4976 = vmatmul.mubr.bf16.gmra.mrb[0].mxu0 %v4828
      %v4977 = vpop.f32.mrb[0].mxu0
      %v4978 = vadd.f32 0.0, %v4977
      %v4979 = vpop.f32.mrb[0].mxu0
      %v4980 = vpop.f32.mrb[0].mxu0
      %v4981 = vadd.f32 0.0, %v4980
      %v4982 = vpop.f32.mrb[0].mxu0
      %4983 = vmatprep.mubr.bf16.mxu0 0
      %4984 = vmatmul.mubr.bf16.gmra.mrb[0].mxu0 %v4831
      %v4985 = vpop.f32.mrb[0].mxu0
      %v4986 = vadd.f32 0.0, %v4985
      %v4987 = vpop.f32.mrb[0].mxu0
      %v4988 = vpop.f32.mrb[0].mxu0
      %v4989 = vadd.f32 0.0, %v4988
      %v4990 = vpop.f32.mrb[0].mxu0
      %4991 = vmatprep.mubr.bf16.mxu0 0
      %4992 = vmatmul.mubr.bf16.gmra.mrb[0].mxu0 %v4834
      %v4993 = vpop.f32.mrb[0].mxu0
      %v4994 = vadd.f32 0.0, %v4993
      %v4995 = vpop.f32.mrb[0].mxu0
      %v4996 = vpop.f32.mrb[0].mxu0
      %v4997 = vadd.f32 0.0, %v4996
      %v4998 = vpop.f32.mrb[0].mxu0
      %4999 = vdwg.mxu0
      %v5000 = vadd.f32 %v4274, %v4874
      %v5001 = vadd.f32 %v4275, %v4877
      %v5002 = vadd.f32 %v4276, %v4882
      %v5003 = vadd.f32 %v4277, %v4885
      %v5004 = vadd.f32 %v4278, %v4890
      %v5005 = vadd.f32 %v4279, %v4893
      %v5006 = vadd.f32 %v4280, %v4898
      %v5007 = vadd.f32 %v4281, %v4901
      %v5008 = vadd.f32 %v4282, %v4906
      %v5009 = vadd.f32 %v4283, %v4909
      %v5010 = vadd.f32 %v4284, %v4914
      %v5011 = vadd.f32 %v4285, %v4917
      %v5012 = vadd.f32 %v4286, %v4922
      %v5013 = vadd.f32 %v4287, %v4925
      %v5014 = vadd.f32 %v4288, %v4930
      %v5015 = vadd.f32 %v4289, %v4933
      %v5016 = vadd.f32 %v4290, %v4938
      %v5017 = vadd.f32 %v4291, %v4941
      %v5018 = vadd.f32 %v4292, %v4946
      %v5019 = vadd.f32 %v4293, %v4949
      %v5020 = vadd.f32 %v4294, %v4954
      %v5021 = vadd.f32 %v4295, %v4957
      %v5022 = vadd.f32 %v4296, %v4962
      %v5023 = vadd.f32 %v4297, %v4965
      %v5024 = vadd.f32 %v4298, %v4970
      %v5025 = vadd.f32 %v4299, %v4973
      %v5026 = vadd.f32 %v4300, %v4978
      %v5027 = vadd.f32 %v4301, %v4981
      %v5028 = vadd.f32 %v4302, %v4986
      %v5029 = vadd.f32 %v4303, %v4989
      %v5030 = vadd.f32 %v4304, %v4994
      %v5031 = vadd.f32 %v4305, %v4997
      %v5032 = vld [vmem:[%s3947] sm:$0xe]
      %v5033 = vld [vmem:[%s3947 + $0xc] sm:$0xe]
      %v5034 = vld [vmem:[%s3947 + $0x18] sm:$0xe]
      %v5035 = vld [vmem:[%s3947 + $0x24] sm:$0xe]
      %v5036 = vld [vmem:[%s3947 + $0x30] sm:$0xe]
      %v5037 = vld [vmem:[%s3947 + $0x3c] sm:$0xe]
      %v5038 = vld [vmem:[%s3947 + $0x48] sm:$0xe]
      %v5039 = vld [vmem:[%s3947 + $0x54] sm:$0xe]
      %v5040 = vld [vmem:[%s3947 + $0x60] sm:$0xe]
      %v5041 = vld [vmem:[%s3947 + $0x6c] sm:$0xe]
      %v5042 = vld [vmem:[%s3947 + $0x78] sm:$0xe]
      %v5043 = vld [vmem:[%s3947 + $0x84] sm:$0xe]
      %v5044 = vld [vmem:[%s3947 + $0x90] sm:$0xe]
      %v5045 = vld [vmem:[%s3947 + $0x9c] sm:$0xe]
      %v5046 = vld [vmem:[%s3947 + $0xa8] sm:$0xe]
      %v5047 = vld [vmem:[%s3947 + $0xb4] sm:$0xe]
      %v5096 = vrot.slane %v5032, 5
      %v5097 = vrot.slane %v5096, 4
      %v5098 = vrot.slane %v4307, 5
      %v5099 = vsel %vm1986, %v5097, %v5098
      %v5100 = vrot.slane %v5098, 4
      %v5101 = vrot.slane %v4308, 5
      %v5102 = vsel %vm1986, %v5100, %v5101
      %v5103 = vrot.slane %v5033, 5
      %v5104 = vrot.slane %v5103, 4
      %v5105 = vrot.slane %v4310, 5
      %v5106 = vsel %vm1986, %v5104, %v5105
      %v5107 = vrot.slane %v5105, 4
      %v5108 = vrot.slane %v4311, 5
      %v5109 = vsel %vm1986, %v5107, %v5108
      %v5110 = vrot.slane %v5034, 5
      %v5111 = vrot.slane %v5110, 4
      %v5112 = vrot.slane %v4313, 5
      %v5113 = vsel %vm1986, %v5111, %v5112
      %v5114 = vrot.slane %v5112, 4
      %v5115 = vrot.slane %v4314, 5
      %v5116 = vsel %vm1986, %v5114, %v5115
      %v5117 = vrot.slane %v5035, 5
      %v5118 = vrot.slane %v5117, 4
      %v5119 = vrot.slane %v4316, 5
      %v5120 = vsel %vm1986, %v5118, %v5119
      %v5121 = vrot.slane %v5119, 4
      %v5122 = vrot.slane %v4317, 5
      %v5123 = vsel %vm1986, %v5121, %v5122
      %v5124 = vrot.slane %v5036, 5
      %v5125 = vrot.slane %v5124, 4
      %v5126 = vrot.slane %v4319, 5
      %v5127 = vsel %vm1986, %v5125, %v5126
      %v5128 = vrot.slane %v5126, 4
      %v5129 = vrot.slane %v4320, 5
      %v5130 = vsel %vm1986, %v5128, %v5129
      %v5131 = vrot.slane %v5037, 5
      %v5132 = vrot.slane %v5131, 4
      %v5133 = vrot.slane %v4322, 5
      %v5134 = vsel %vm1986, %v5132, %v5133
      %v5135 = vrot.slane %v5133, 4
      %v5136 = vrot.slane %v4323, 5
      %v5137 = vsel %vm1986, %v5135, %v5136
      %v5138 = vrot.slane %v5038, 5
      %v5139 = vrot.slane %v5138, 4
      %v5140 = vrot.slane %v4325, 5
      %v5141 = vsel %vm1986, %v5139, %v5140
      %v5142 = vrot.slane %v5140, 4
      %v5143 = vrot.slane %v4326, 5
      %v5144 = vsel %vm1986, %v5142, %v5143
      %v5145 = vrot.slane %v5039, 5
      %v5146 = vrot.slane %v5145, 4
      %v5147 = vrot.slane %v4328, 5
      %v5148 = vsel %vm1986, %v5146, %v5147
      %v5149 = vrot.slane %v5147, 4
      %v5150 = vrot.slane %v4329, 5
      %v5151 = vsel %vm1986, %v5149, %v5150
      %v5152 = vrot.slane %v5040, 5
      %v5153 = vrot.slane %v5152, 4
      %v5154 = vrot.slane %v4331, 5
      %v5155 = vsel %vm1986, %v5153, %v5154
      %v5156 = vrot.slane %v5154, 4
      %v5157 = vrot.slane %v4332, 5
      %v5158 = vsel %vm1986, %v5156, %v5157
      %v5159 = vrot.slane %v5041, 5
      %v5160 = vrot.slane %v5159, 4
      %v5161 = vrot.slane %v4334, 5
      %v5162 = vsel %vm1986, %v5160, %v5161
      %v5163 = vrot.slane %v5161, 4
      %v5164 = vrot.slane %v4335, 5
      %v5165 = vsel %vm1986, %v5163, %v5164
      %v5166 = vrot.slane %v5042, 5
      %v5167 = vrot.slane %v5166, 4
      %v5168 = vrot.slane %v4337, 5
      %v5169 = vsel %vm1986, %v5167, %v5168
      %v5170 = vrot.slane %v5168, 4
      %v5171 = vrot.slane %v4338, 5
      %v5172 = vsel %vm1986, %v5170, %v5171
      %v5173 = vrot.slane %v5043, 5
      %v5174 = vrot.slane %v5173, 4
      %v5175 = vrot.slane %v4340, 5
      %v5176 = vsel %vm1986, %v5174, %v5175
      %v5177 = vrot.slane %v5175, 4
      %v5178 = vrot.slane %v4341, 5
      %v5179 = vsel %vm1986, %v5177, %v5178
      %v5180 = vrot.slane %v5044, 5
      %v5181 = vrot.slane %v5180, 4
      %v5182 = vrot.slane %v4343, 5
      %v5183 = vsel %vm1986, %v5181, %v5182
      %v5184 = vrot.slane %v5182, 4
      %v5185 = vrot.slane %v4344, 5
      %v5186 = vsel %vm1986, %v5184, %v5185
      %v5187 = vrot.slane %v5045, 5
      %v5188 = vrot.slane %v5187, 4
      %v5189 = vrot.slane %v4346, 5
      %v5190 = vsel %vm1986, %v5188, %v5189
      %v5191 = vrot.slane %v5189, 4
      %v5192 = vrot.slane %v4347, 5
      %v5193 = vsel %vm1986, %v5191, %v5192
      %v5194 = vrot.slane %v5046, 5
      %v5195 = vrot.slane %v5194, 4
      %v5196 = vrot.slane %v4349, 5
      %v5197 = vsel %vm1986, %v5195, %v5196
      %v5198 = vrot.slane %v5196, 4
      %v5199 = vrot.slane %v4350, 5
      %v5200 = vsel %vm1986, %v5198, %v5199
      %v5201 = vrot.slane %v5047, 5
      %v5202 = vrot.slane %v5201, 4
      %v5203 = vrot.slane %v4352, 5
      %v5204 = vsel %vm1986, %v5202, %v5203
      %v5205 = vrot.slane %v5203, 4
      %v5206 = vrot.slane %v4353, 5
      %v5207 = vsel %vm1986, %v5205, %v5206
      %s5208 = scalar_lea.vmem %s1, 16
      %v5209 = vld [vmem:[%s5208] sm:$0x3]
      %v5210 = vunpack.c.l.b16 %v5099
      %v5211 = vunpack.c.l.b16 %v5102
      %v5212 = vunpack.c.l.b16 %v5106
      %v5213 = vunpack.c.l.b16 %v5109
      %v5214 = vunpack.c.l.b16 %v5113
      %v5215 = vunpack.c.l.b16 %v5116
      %v5216 = vunpack.c.l.b16 %v5120
      %v5217 = vunpack.c.l.b16 %v5123
      %v5218 = vunpack.c.l.b16 %v5127
      %v5219 = vunpack.c.l.b16 %v5130
      %v5220 = vunpack.c.l.b16 %v5134
      %v5221 = vunpack.c.l.b16 %v5137
      %v5222 = vunpack.c.l.b16 %v5141
      %v5223 = vunpack.c.l.b16 %v5144
      %v5224 = vunpack.c.l.b16 %v5148
      %v5225 = vunpack.c.l.b16 %v5151
      %v5226 = vunpack.c.l.b16 %v5155
      %v5227 = vunpack.c.l.b16 %v5158
      %v5228 = vunpack.c.l.b16 %v5162
      %v5229 = vunpack.c.l.b16 %v5165
      %v5230 = vunpack.c.l.b16 %v5169
      %v5231 = vunpack.c.l.b16 %v5172
      %v5232 = vunpack.c.l.b16 %v5176
      %v5233 = vunpack.c.l.b16 %v5179
      %v5234 = vunpack.c.l.b16 %v5183
      %v5235 = vunpack.c.l.b16 %v5186
      %v5236 = vunpack.c.l.b16 %v5190
      %v5237 = vunpack.c.l.b16 %v5193
      %v5238 = vunpack.c.l.b16 %v5197
      %v5239 = vunpack.c.l.b16 %v5200
      %v5240 = vunpack.c.l.b16 %v5204
      %v5241 = vunpack.c.l.b16 %v5207
      %v5242 = vpack.c.b16 %v5211, %v5210
      %v5243 = vpack.c.b16 %v5213, %v5212
      %v5244 = vpack.c.b16 %v5215, %v5214
      %v5245 = vpack.c.b16 %v5217, %v5216
      %v5246 = vpack.c.b16 %v5219, %v5218
      %v5247 = vpack.c.b16 %v5221, %v5220
      %v5248 = vpack.c.b16 %v5223, %v5222
      %v5249 = vpack.c.b16 %v5225, %v5224
      %v5250 = vpack.c.b16 %v5227, %v5226
      %v5251 = vpack.c.b16 %v5229, %v5228
      %v5252 = vpack.c.b16 %v5231, %v5230
      %v5253 = vpack.c.b16 %v5233, %v5232
      %v5254 = vpack.c.b16 %v5235, %v5234
      %v5255 = vpack.c.b16 %v5237, %v5236
      %v5256 = vpack.c.b16 %v5239, %v5238
      %v5257 = vpack.c.b16 %v5241, %v5240
      %v5259 = vsel %vm1427, %v5242, 0
      %v5262 = vsel %vm1427, %v5243, 0
      %v5265 = vsel %vm1427, %v5244, 0
      %v5268 = vsel %vm1427, %v5245, 0
      %v5271 = vsel %vm1427, %v5246, 0
      %v5274 = vsel %vm1427, %v5247, 0
      %v5277 = vsel %vm1427, %v5248, 0
      %v5280 = vsel %vm1427, %v5249, 0
      %v5283 = vsel %vm1427, %v5250, 0
      %v5286 = vsel %vm1427, %v5251, 0
      %v5289 = vsel %vm1427, %v5252, 0
      %v5292 = vsel %vm1427, %v5253, 0
      %v5295 = vsel %vm1427, %v5254, 0
      %v5298 = vsel %vm1427, %v5255, 0
      %v5301 = vsel %vm1427, %v5256, 0
      %v5304 = vsel %vm1427, %v5257, 0
      %v5307 = vand.u32 %v5209, %v1479
      %5309 = vmatprep.subr.bf16.mxu0 0
      %5310 = vmatpush1.bf16.msra.mxu0 %v5307
      %5311 = vmatprep.subr.bf16.mxu0 0
      %5312 = vmatpush1.bf16.msra.mxu0 0
      %5313 = vmatprep.subr.bf16.mxu0 0
      %5314 = vmatpush1.bf16.msra.mxu0 0
      %5315 = vmatprep.subr.bf16.mxu0 0
      %5316 = vmatpush1.bf16.msra.mxu0 0
      %5317 = vmatprep.subr.bf16.mxu0 0
      %5318 = vmatpush1.bf16.msra.mxu0 0
      %5319 = vmatprep.subr.bf16.mxu0 0
      %5320 = vmatpush1.bf16.msra.mxu0 0
      %5321 = vmatprep.subr.bf16.mxu0 0
      %5322 = vmatpush1.bf16.msra.mxu0 0
      %5323 = vmatprep.subr.bf16.mxu0 0
      %5324 = vmatpush1.bf16.msra.mxu0 0
      %5325 = vmatprep.subr.bf16.mxu0 0
      %5326 = vmatpush1.bf16.msra.mxu0 0
      %5327 = vmatprep.subr.bf16.mxu0 0
      %5328 = vmatpush1.bf16.msra.mxu0 0
      %5329 = vmatprep.subr.bf16.mxu0 0
      %5330 = vmatpush1.bf16.msra.mxu0 0
      %5331 = vmatprep.subr.bf16.mxu0 0
      %5332 = vmatpush1.bf16.msra.mxu0 0
      %5333 = vmatprep.subr.bf16.mxu0 0
      %5334 = vmatpush1.bf16.msra.mxu0 0
      %5335 = vmatprep.subr.bf16.mxu0 0
      %5336 = vmatpush1.bf16.msra.mxu0 0
      %5337 = vmatprep.subr.bf16.mxu0 0
      %5338 = vmatpush1.bf16.msra.mxu0 0
      %5339 = vmatprep.subr.bf16.mxu0 0
      %5340 = vmatpush1.bf16.msra.mxu0 0
      %5341 = vmatprep.mubr.bf16.mxu0 0
      %5342 = vmatmul.mubr.bf16.gmra.mrb[0].mxu0 %v5259
      %v5343 = vpop.f32.mrb[0].mxu0
      %v5344 = vadd.f32 0.0, %v5343
      %v5345 = vpop.f32.mrb[0].mxu0
      %v5346 = vpop.f32.mrb[0].mxu0
      %v5347 = vadd.f32 0.0, %v5346
      %v5348 = vpop.f32.mrb[0].mxu0
      %5349 = vmatprep.mubr.bf16.mxu0 0
      %5350 = vmatmul.mubr.bf16.gmra.mrb[0].mxu0 %v5262
      %v5351 = vpop.f32.mrb[0].mxu0
      %v5352 = vadd.f32 0.0, %v5351
      %v5353 = vpop.f32.mrb[0].mxu0
      %v5354 = vpop.f32.mrb[0].mxu0
      %v5355 = vadd.f32 0.0, %v5354
      %v5356 = vpop.f32.mrb[0].mxu0
      %5357 = vmatprep.mubr.bf16.mxu0 0
      %5358 = vmatmul.mubr.bf16.gmra.mrb[0].mxu0 %v5265
      %v5359 = vpop.f32.mrb[0].mxu0
      %v5360 = vadd.f32 0.0, %v5359
      %v5361 = vpop.f32.mrb[0].mxu0
      %v5362 = vpop.f32.mrb[0].mxu0
      %v5363 = vadd.f32 0.0, %v5362
      %v5364 = vpop.f32.mrb[0].mxu0
      %5365 = vmatprep.mubr.bf16.mxu0 0
      %5366 = vmatmul.mubr.bf16.gmra.mrb[0].mxu0 %v5268
      %v5367 = vpop.f32.mrb[0].mxu0
      %v5368 = vadd.f32 0.0, %v5367
      %v5369 = vpop.f32.mrb[0].mxu0
      %v5370 = vpop.f32.mrb[0].mxu0
      %v5371 = vadd.f32 0.0, %v5370
      %v5372 = vpop.f32.mrb[0].mxu0
      %5373 = vmatprep.mubr.bf16.mxu0 0
      %5374 = vmatmul.mubr.bf16.gmra.mrb[0].mxu0 %v5271
      %v5375 = vpop.f32.mrb[0].mxu0
      %v5376 = vadd.f32 0.0, %v5375
      %v5377 = vpop.f32.mrb[0].mxu0
      %v5378 = vpop.f32.mrb[0].mxu0
      %v5379 = vadd.f32 0.0, %v5378
      %v5380 = vpop.f32.mrb[0].mxu0
      %5381 = vmatprep.mubr.bf16.mxu0 0
      %5382 = vmatmul.mubr.bf16.gmra.mrb[0].mxu0 %v5274
      %v5383 = vpop.f32.mrb[0].mxu0
      %v5384 = vadd.f32 0.0, %v5383
      %v5385 = vpop.f32.mrb[0].mxu0
      %v5386 = vpop.f32.mrb[0].mxu0
      %v5387 = vadd.f32 0.0, %v5386
      %v5388 = vpop.f32.mrb[0].mxu0
      %5389 = vmatprep.mubr.bf16.mxu0 0
      %5390 = vmatmul.mubr.bf16.gmra.mrb[0].mxu0 %v5277
      %v5391 = vpop.f32.mrb[0].mxu0
      %v5392 = vadd.f32 0.0, %v5391
      %v5393 = vpop.f32.mrb[0].mxu0
      %v5394 = vpop.f32.mrb[0].mxu0
      %v5395 = vadd.f32 0.0, %v5394
      %v5396 = vpop.f32.mrb[0].mxu0
      %5397 = vmatprep.mubr.bf16.mxu0 0
      %5398 = vmatmul.mubr.bf16.gmra.mrb[0].mxu0 %v5280
      %v5399 = vpop.f32.mrb[0].mxu0
      %v5400 = vadd.f32 0.0, %v5399
      %v5401 = vpop.f32.mrb[0].mxu0
      %v5402 = vpop.f32.mrb[0].mxu0
      %v5403 = vadd.f32 0.0, %v5402
      %v5404 = vpop.f32.mrb[0].mxu0
      %5405 = vmatprep.mubr.bf16.mxu0 0
      %5406 = vmatmul.mubr.bf16.gmra.mrb[0].mxu0 %v5283
      %v5407 = vpop.f32.mrb[0].mxu0
      %v5408 = vadd.f32 0.0, %v5407
      %v5409 = vpop.f32.mrb[0].mxu0
      %v5410 = vpop.f32.mrb[0].mxu0
      %v5411 = vadd.f32 0.0, %v5410
      %v5412 = vpop.f32.mrb[0].mxu0
      %5413 = vmatprep.mubr.bf16.mxu0 0
      %5414 = vmatmul.mubr.bf16.gmra.mrb[0].mxu0 %v5286
      %v5415 = vpop.f32.mrb[0].mxu0
      %v5416 = vadd.f32 0.0, %v5415
      %v5417 = vpop.f32.mrb[0].mxu0
      %v5418 = vpop.f32.mrb[0].mxu0
      %v5419 = vadd.f32 0.0, %v5418
      %v5420 = vpop.f32.mrb[0].mxu0
      %5421 = vmatprep.mubr.bf16.mxu0 0
      %5422 = vmatmul.mubr.bf16.gmra.mrb[0].mxu0 %v5289
      %v5423 = vpop.f32.mrb[0].mxu0
      %v5424 = vadd.f32 0.0, %v5423
      %v5425 = vpop.f32.mrb[0].mxu0
      %v5426 = vpop.f32.mrb[0].mxu0
      %v5427 = vadd.f32 0.0, %v5426
      %v5428 = vpop.f32.mrb[0].mxu0
      %5429 = vmatprep.mubr.bf16.mxu0 0
      %5430 = vmatmul.mubr.bf16.gmra.mrb[0].mxu0 %v5292
      %v5431 = vpop.f32.mrb[0].mxu0
      %v5432 = vadd.f32 0.0, %v5431
      %v5433 = vpop.f32.mrb[0].mxu0
      %v5434 = vpop.f32.mrb[0].mxu0
      %v5435 = vadd.f32 0.0, %v5434
      %v5436 = vpop.f32.mrb[0].mxu0
      %5437 = vmatprep.mubr.bf16.mxu0 0
      %5438 = vmatmul.mubr.bf16.gmra.mrb[0].mxu0 %v5295
      %v5439 = vpop.f32.mrb[0].mxu0
      %v5440 = vadd.f32 0.0, %v5439
      %v5441 = vpop.f32.mrb[0].mxu0
      %v5442 = vpop.f32.mrb[0].mxu0
      %v5443 = vadd.f32 0.0, %v5442
      %v5444 = vpop.f32.mrb[0].mxu0
      %5445 = vmatprep.mubr.bf16.mxu0 0
      %5446 = vmatmul.mubr.bf16.gmra.mrb[0].mxu0 %v5298
      %v5447 = vpop.f32.mrb[0].mxu0
      %v5448 = vadd.f32 0.0, %v5447
      %v5449 = vpop.f32.mrb[0].mxu0
      %v5450 = vpop.f32.mrb[0].mxu0
      %v5451 = vadd.f32 0.0, %v5450
      %v5452 = vpop.f32.mrb[0].mxu0
      %5453 = vmatprep.mubr.bf16.mxu0 0
      %5454 = vmatmul.mubr.bf16.gmra.mrb[0].mxu0 %v5301
      %v5455 = vpop.f32.mrb[0].mxu0
      %v5456 = vadd.f32 0.0, %v5455
      %v5457 = vpop.f32.mrb[0].mxu0
      %v5458 = vpop.f32.mrb[0].mxu0
      %v5459 = vadd.f32 0.0, %v5458
      %v5460 = vpop.f32.mrb[0].mxu0
      %5461 = vmatprep.mubr.bf16.mxu0 0
      %5462 = vmatmul.mubr.bf16.gmra.mrb[0].mxu0 %v5304
      %v5463 = vpop.f32.mrb[0].mxu0
      %v5464 = vadd.f32 0.0, %v5463
      %v5465 = vpop.f32.mrb[0].mxu0
      %v5466 = vpop.f32.mrb[0].mxu0
      %v5467 = vadd.f32 0.0, %v5466
      %v5468 = vpop.f32.mrb[0].mxu0
      %5469 = vdwg.mxu0
      %v5470 = vadd.f32 %v5000, %v5344
      %v5471 = vadd.f32 %v5001, %v5347
      %v5472 = vadd.f32 %v5002, %v5352
      %v5473 = vadd.f32 %v5003, %v5355
      %v5474 = vadd.f32 %v5004, %v5360
      %v5475 = vadd.f32 %v5005, %v5363
      %v5476 = vadd.f32 %v5006, %v5368
      %v5477 = vadd.f32 %v5007, %v5371
      %v5478 = vadd.f32 %v5008, %v5376
      %v5479 = vadd.f32 %v5009, %v5379
      %v5480 = vadd.f32 %v5010, %v5384
      %v5481 = vadd.f32 %v5011, %v5387
      %v5482 = vadd.f32 %v5012, %v5392
      %v5483 = vadd.f32 %v5013, %v5395
      %v5484 = vadd.f32 %v5014, %v5400
      %v5485 = vadd.f32 %v5015, %v5403
      %v5486 = vadd.f32 %v5016, %v5408
      %v5487 = vadd.f32 %v5017, %v5411
      %v5488 = vadd.f32 %v5018, %v5416
      %v5489 = vadd.f32 %v5019, %v5419
      %v5490 = vadd.f32 %v5020, %v5424
      %v5491 = vadd.f32 %v5021, %v5427
      %v5492 = vadd.f32 %v5022, %v5432
      %v5493 = vadd.f32 %v5023, %v5435
      %v5494 = vadd.f32 %v5024, %v5440
      %v5495 = vadd.f32 %v5025, %v5443
      %v5496 = vadd.f32 %v5026, %v5448
      %v5497 = vadd.f32 %v5027, %v5451
      %v5498 = vadd.f32 %v5028, %v5456
      %v5499 = vadd.f32 %v5029, %v5459
      %v5500 = vadd.f32 %v5030, %v5464
      %v5501 = vadd.f32 %v5031, %v5467
      %v5502 = vld [vmem:[%s2] sm:$0x1]
      %v5504 = vlaneseq
      %v5505 = vshrl.u32 %v5504, 7
      %v5506 = vsub.s32 0, %v5505
      %v5507 = vrot.slane %v5502, %v5506
      %v5509 = vadd.f32 %v5470, %v5507
      %v5510 = vadd.f32 %v5471, %v5507
      %v5511 = vadd.f32 %v5472, %v5507
      %v5512 = vadd.f32 %v5473, %v5507
      %v5513 = vadd.f32 %v5474, %v5507
      %v5514 = vadd.f32 %v5475, %v5507
      %v5515 = vadd.f32 %v5476, %v5507
      %v5516 = vadd.f32 %v5477, %v5507
      %v5517 = vadd.f32 %v5478, %v5507
      %v5518 = vadd.f32 %v5479, %v5507
      %v5519 = vadd.f32 %v5480, %v5507
      %v5520 = vadd.f32 %v5481, %v5507
      %v5521 = vadd.f32 %v5482, %v5507
      %v5522 = vadd.f32 %v5483, %v5507
      %v5523 = vadd.f32 %v5484, %v5507
      %v5524 = vadd.f32 %v5485, %v5507
      %v5525 = vadd.f32 %v5486, %v5507
      %v5526 = vadd.f32 %v5487, %v5507
      %v5527 = vadd.f32 %v5488, %v5507
      %v5528 = vadd.f32 %v5489, %v5507
      %v5529 = vadd.f32 %v5490, %v5507
      %v5530 = vadd.f32 %v5491, %v5507
      %v5531 = vadd.f32 %v5492, %v5507
      %v5532 = vadd.f32 %v5493, %v5507
      %v5533 = vadd.f32 %v5494, %v5507
      %v5534 = vadd.f32 %v5495, %v5507
      %v5535 = vadd.f32 %v5496, %v5507
      %v5536 = vadd.f32 %v5497, %v5507
      %v5537 = vadd.f32 %v5498, %v5507
      %v5538 = vadd.f32 %v5499, %v5507
      %v5539 = vadd.f32 %v5500, %v5507
      %v5540 = vadd.f32 %v5501, %v5507
      %v5541 = vmax.f32 %v5509, 0.0
      %v5542 = vmax.f32 %v5510, 0.0
      %v5543 = vmax.f32 %v5511, 0.0
      %v5544 = vmax.f32 %v5512, 0.0
      %v5545 = vmax.f32 %v5513, 0.0
      %v5546 = vmax.f32 %v5514, 0.0
      %v5547 = vmax.f32 %v5515, 0.0
      %v5548 = vmax.f32 %v5516, 0.0
      %v5549 = vmax.f32 %v5517, 0.0
      %v5550 = vmax.f32 %v5518, 0.0
      %v5551 = vmax.f32 %v5519, 0.0
      %v5552 = vmax.f32 %v5520, 0.0
      %v5553 = vmax.f32 %v5521, 0.0
      %v5554 = vmax.f32 %v5522, 0.0
      %v5555 = vmax.f32 %v5523, 0.0
      %v5556 = vmax.f32 %v5524, 0.0
      %v5557 = vmax.f32 %v5525, 0.0
      %v5558 = vmax.f32 %v5526, 0.0
      %v5559 = vmax.f32 %v5527, 0.0
      %v5560 = vmax.f32 %v5528, 0.0
      %v5561 = vmax.f32 %v5529, 0.0
      %v5562 = vmax.f32 %v5530, 0.0
      %v5563 = vmax.f32 %v5531, 0.0
      %v5564 = vmax.f32 %v5532, 0.0
      %v5565 = vmax.f32 %v5533, 0.0
      %v5566 = vmax.f32 %v5534, 0.0
      %v5567 = vmax.f32 %v5535, 0.0
      %v5568 = vmax.f32 %v5536, 0.0
      %v5569 = vmax.f32 %v5537, 0.0
      %v5570 = vmax.f32 %v5538, 0.0
      %v5571 = vmax.f32 %v5539, 0.0
      %v5572 = vmax.f32 %v5540, 0.0
      %v5573 = vpack.c.bf16 %v5542, %v5541
      %v5574 = vpack.c.bf16 %v5544, %v5543
      %v5575 = vpack.c.bf16 %v5546, %v5545
      %v5576 = vpack.c.bf16 %v5548, %v5547
      %v5577 = vpack.c.bf16 %v5550, %v5549
      %v5578 = vpack.c.bf16 %v5552, %v5551
      %v5579 = vpack.c.bf16 %v5554, %v5553
      %v5580 = vpack.c.bf16 %v5556, %v5555
      %v5581 = vpack.c.bf16 %v5558, %v5557
      %v5582 = vpack.c.bf16 %v5560, %v5559
      %v5583 = vpack.c.bf16 %v5562, %v5561
      %v5584 = vpack.c.bf16 %v5564, %v5563
      %v5585 = vpack.c.bf16 %v5566, %v5565
      %v5586 = vpack.c.bf16 %v5568, %v5567
      %v5587 = vpack.c.bf16 %v5570, %v5569
      %v5588 = vpack.c.bf16 %v5572, %v5571
      %v5590 = vshrl.u32 %v5573, 16
      %v5592 = vrot.slane %v5590, 7
      %v5593 = vshll.u32 %v5573, 16
      %v5595 = vor.u32 %v5592, %v5593
      %v5597 = vshrl.u32 %v5574, 16
      %v5599 = vrot.slane %v5597, 7
      %v5600 = vshll.u32 %v5574, 16
      %v5602 = vor.u32 %v5599, %v5600
      %v5604 = vshrl.u32 %v5575, 16
      %v5606 = vrot.slane %v5604, 7
      %v5607 = vshll.u32 %v5575, 16
      %v5609 = vor.u32 %v5606, %v5607
      %v5611 = vshrl.u32 %v5576, 16
      %v5613 = vrot.slane %v5611, 7
      %v5614 = vshll.u32 %v5576, 16
      %v5616 = vor.u32 %v5613, %v5614
      %v5618 = vshrl.u32 %v5577, 16
      %v5620 = vrot.slane %v5618, 7
      %v5621 = vshll.u32 %v5577, 16
      %v5623 = vor.u32 %v5620, %v5621
      %v5625 = vshrl.u32 %v5578, 16
      %v5627 = vrot.slane %v5625, 7
      %v5628 = vshll.u32 %v5578, 16
      %v5630 = vor.u32 %v5627, %v5628
      %v5632 = vshrl.u32 %v5579, 16
      %v5634 = vrot.slane %v5632, 7
      %v5635 = vshll.u32 %v5579, 16
      %v5637 = vor.u32 %v5634, %v5635
      %v5639 = vshrl.u32 %v5580, 16
      %v5641 = vrot.slane %v5639, 7
      %v5642 = vshll.u32 %v5580, 16
      %v5644 = vor.u32 %v5641, %v5642
      %v5646 = vshrl.u32 %v5581, 16
      %v5648 = vrot.slane %v5646, 7
      %v5649 = vshll.u32 %v5581, 16
      %v5651 = vor.u32 %v5648, %v5649
      %v5653 = vshrl.u32 %v5582, 16
      %v5655 = vrot.slane %v5653, 7
      %v5656 = vshll.u32 %v5582, 16
      %v5658 = vor.u32 %v5655, %v5656
      %v5660 = vshrl.u32 %v5583, 16
      %v5662 = vrot.slane %v5660, 7
      %v5663 = vshll.u32 %v5583, 16
      %v5665 = vor.u32 %v5662, %v5663
      %v5667 = vshrl.u32 %v5584, 16
      %v5669 = vrot.slane %v5667, 7
      %v5670 = vshll.u32 %v5584, 16
      %v5672 = vor.u32 %v5669, %v5670
      %v5674 = vshrl.u32 %v5585, 16
      %v5676 = vrot.slane %v5674, 7
      %v5677 = vshll.u32 %v5585, 16
      %v5679 = vor.u32 %v5676, %v5677
      %v5681 = vshrl.u32 %v5586, 16
      %v5683 = vrot.slane %v5681, 7
      %v5684 = vshll.u32 %v5586, 16
      %v5686 = vor.u32 %v5683, %v5684
      %v5688 = vshrl.u32 %v5587, 16
      %v5690 = vrot.slane %v5688, 7
      %v5691 = vshll.u32 %v5587, 16
      %v5693 = vor.u32 %v5690, %v5691
      %v5695 = vshrl.u32 %v5588, 16
      %v5697 = vrot.slane %v5695, 7
      %v5698 = vshll.u32 %v5588, 16
      %v5700 = vor.u32 %v5697, %v5698
      %vm5733 = vcmask 1040384
      %vm5734 = vmand %vm5733, %vm500
      %v5735 = vsel %vm5734, 0, %v5595
      %v5736 = vsel %vm5734, 0, %v5602
      %v5737 = vsel %vm5734, 0, %v5609
      %v5738 = vsel %vm5734, 0, %v5616
      %v5739 = vsel %vm5734, 0, %v5623
      %v5740 = vsel %vm5734, 0, %v5630
      %v5741 = vsel %vm5734, 0, %v5637
      %v5742 = vsel %vm5734, 0, %v5644
      %v5743 = vsel %vm5734, 0, %v5651
      %v5744 = vsel %vm5734, 0, %v5658
      %v5745 = vsel %vm5734, 0, %v5665
      %v5746 = vsel %vm5734, 0, %v5672
      %v5747 = vsel %vm5734, 0, %v5679
      %v5748 = vsel %vm5734, 0, %v5686
      %v5749 = vsel %vm5734, 0, %v5693
      %v5750 = vsel %vm5734, 0, %v5700
      %v5751 = vsel %vm5734, %v5592, 0
      %v5752 = vsel %vm5734, %v5599, 0
      %v5753 = vsel %vm5734, %v5606, 0
      %v5754 = vsel %vm5734, %v5613, 0
      %v5755 = vsel %vm5734, %v5620, 0
      %v5756 = vsel %vm5734, %v5627, 0
      %v5757 = vsel %vm5734, %v5634, 0
      %v5758 = vsel %vm5734, %v5641, 0
      %v5759 = vsel %vm5734, %v5648, 0
      %v5760 = vsel %vm5734, %v5655, 0
      %v5761 = vsel %vm5734, %v5662, 0
      %v5762 = vsel %vm5734, %v5669, 0
      %v5763 = vsel %vm5734, %v5676, 0
      %v5764 = vsel %vm5734, %v5683, 0
      %v5765 = vsel %vm5734, %v5690, 0
      %v5766 = vsel %vm5734, %v5697, 0
      %v5798 = vunpack.c.l.b16 0
      %v5799 = vunpack.c.h.b16 0
      %v5800 = vunpack.c.l.b16 %v5735
      %v5801 = vunpack.c.h.b16 %v5735
      %v5802 = vunpack.c.l.b16 %v5751
      %v5803 = vunpack.c.l.b16 %v5736
      %v5804 = vunpack.c.h.b16 %v5736
      %v5805 = vunpack.c.l.b16 %v5752
      %v5806 = vunpack.c.l.b16 %v5737
      %v5807 = vunpack.c.h.b16 %v5737
      %v5808 = vunpack.c.l.b16 %v5753
      %v5809 = vunpack.c.l.b16 %v5738
      %v5810 = vunpack.c.h.b16 %v5738
      %v5811 = vunpack.c.l.b16 %v5754
      %v5812 = vunpack.c.l.b16 %v5739
      %v5813 = vunpack.c.h.b16 %v5739
      %v5814 = vunpack.c.l.b16 %v5755
      %v5815 = vunpack.c.l.b16 %v5740
      %v5816 = vunpack.c.h.b16 %v5740
      %v5817 = vunpack.c.l.b16 %v5756
      %v5818 = vunpack.c.l.b16 %v5741
      %v5819 = vunpack.c.h.b16 %v5741
      %v5820 = vunpack.c.l.b16 %v5757
      %v5821 = vunpack.c.l.b16 %v5742
      %v5822 = vunpack.c.h.b16 %v5742
      %v5823 = vunpack.c.l.b16 %v5758
      %v5824 = vunpack.c.l.b16 %v5743
      %v5825 = vunpack.c.h.b16 %v5743
      %v5826 = vunpack.c.l.b16 %v5759
      %v5827 = vunpack.c.l.b16 %v5744
      %v5828 = vunpack.c.h.b16 %v5744
      %v5829 = vunpack.c.l.b16 %v5760
      %v5830 = vunpack.c.l.b16 %v5745
      %v5831 = vunpack.c.h.b16 %v5745
      %v5832 = vunpack.c.l.b16 %v5761
      %v5833 = vunpack.c.l.b16 %v5746
      %v5834 = vunpack.c.h.b16 %v5746
      %v5835 = vunpack.c.l.b16 %v5762
      %v5836 = vunpack.c.l.b16 %v5747
      %v5837 = vunpack.c.h.b16 %v5747
      %v5838 = vunpack.c.l.b16 %v5763
      %v5839 = vunpack.c.l.b16 %v5748
      %v5840 = vunpack.c.h.b16 %v5748
      %v5841 = vunpack.c.l.b16 %v5764
      %v5842 = vunpack.c.l.b16 %v5749
      %v5843 = vunpack.c.h.b16 %v5749
      %v5844 = vunpack.c.l.b16 %v5765
      %v5845 = vpack.c.b16 %v5798, %v5798
      %v5846 = vpack.c.b16 %v5799, %v5799
      %v5847 = vpack.c.b16 %v5800, %v5800
      %v5848 = vpack.c.b16 %v5801, %v5801
      %v5849 = vpack.c.b16 %v5802, %v5802
      %v5850 = vpack.c.b16 %v5803, %v5803
      %v5851 = vpack.c.b16 %v5804, %v5804
      %v5852 = vpack.c.b16 %v5805, %v5805
      %v5853 = vpack.c.b16 %v5806, %v5806
      %v5854 = vpack.c.b16 %v5807, %v5807
      %v5855 = vpack.c.b16 %v5808, %v5808
      %v5856 = vpack.c.b16 %v5809, %v5809
      %v5857 = vpack.c.b16 %v5810, %v5810
      %v5858 = vpack.c.b16 %v5811, %v5811
      %v5859 = vpack.c.b16 %v5812, %v5812
      %v5860 = vpack.c.b16 %v5813, %v5813
      %v5861 = vpack.c.b16 %v5814, %v5814
      %v5862 = vpack.c.b16 %v5815, %v5815
      %v5863 = vpack.c.b16 %v5816, %v5816
      %v5864 = vpack.c.b16 %v5817, %v5817
      %v5865 = vpack.c.b16 %v5818, %v5818
      %v5866 = vpack.c.b16 %v5819, %v5819
      %v5867 = vpack.c.b16 %v5820, %v5820
      %v5868 = vpack.c.b16 %v5821, %v5821
      %v5869 = vpack.c.b16 %v5822, %v5822
      %v5870 = vpack.c.b16 %v5823, %v5823
      %v5871 = vpack.c.b16 %v5824, %v5824
      %v5872 = vpack.c.b16 %v5825, %v5825
      %v5873 = vpack.c.b16 %v5826, %v5826
      %v5874 = vpack.c.b16 %v5827, %v5827
      %v5875 = vpack.c.b16 %v5828, %v5828
      %v5876 = vpack.c.b16 %v5829, %v5829
      %v5877 = vpack.c.b16 %v5830, %v5830
      %v5878 = vpack.c.b16 %v5831, %v5831
      %v5879 = vpack.c.b16 %v5832, %v5832
      %v5880 = vpack.c.b16 %v5833, %v5833
      %v5881 = vpack.c.b16 %v5834, %v5834
      %v5882 = vpack.c.b16 %v5835, %v5835
      %v5883 = vpack.c.b16 %v5836, %v5836
      %v5884 = vpack.c.b16 %v5837, %v5837
      %v5885 = vpack.c.b16 %v5838, %v5838
      %v5886 = vpack.c.b16 %v5839, %v5839
      %v5887 = vpack.c.b16 %v5840, %v5840
      %v5888 = vpack.c.b16 %v5841, %v5841
      %v5889 = vpack.c.b16 %v5842, %v5842
      %v5890 = vpack.c.b16 %v5843, %v5843
      %v5891 = vpack.c.b16 %v5844, %v5844
      %vm5939 = vcmask 519168
      %5940 = vst.msk [vmem:[#allocation3] sm:$0xf] %vm5939, %v5845
      %5941 = vst.msk [vmem:[#allocation3 + $0x8] sm:$0xf] %vm5939, %v5846
      %5942 = vst.msk [vmem:[#allocation3 + $0x10] sm:$0xf] %vm5939, %v5845
      %5943 = vst.msk [vmem:[#allocation3 + $0x18] sm:$0xf] %vm5939, %v5847
      %5944 = vst.msk [vmem:[#allocation3 + $0x20] sm:$0xf] %vm5939, %v5848
      %5945 = vst.msk [vmem:[#allocation3 + $0x28] sm:$0xf] %vm5939, %v5849
      %5946 = vst.msk [vmem:[#allocation3 + $0x30] sm:$0xf] %vm5939, %v5850
      %5947 = vst.msk [vmem:[#allocation3 + $0x38] sm:$0xf] %vm5939, %v5851
      %5948 = vst.msk [vmem:[#allocation3 + $0x40] sm:$0xf] %vm5939, %v5852
      %5949 = vst.msk [vmem:[#allocation3 + $0x48] sm:$0xf] %vm5939, %v5853
      %5950 = vst.msk [vmem:[#allocation3 + $0x50] sm:$0xf] %vm5939, %v5854
      %5951 = vst.msk [vmem:[#allocation3 + $0x58] sm:$0xf] %vm5939, %v5855
      %5952 = vst.msk [vmem:[#allocation3 + $0x60] sm:$0xf] %vm5939, %v5856
      %5953 = vst.msk [vmem:[#allocation3 + $0x68] sm:$0xf] %vm5939, %v5857
      %5954 = vst.msk [vmem:[#allocation3 + $0x70] sm:$0xf] %vm5939, %v5858
      %5955 = vst.msk [vmem:[#allocation3 + $0x78] sm:$0xf] %vm5939, %v5859
      %5956 = vst.msk [vmem:[#allocation3 + $0x80] sm:$0xf] %vm5939, %v5860
      %5957 = vst.msk [vmem:[#allocation3 + $0x88] sm:$0xf] %vm5939, %v5861
      %5958 = vst.msk [vmem:[#allocation3 + $0x90] sm:$0xf] %vm5939, %v5862
      %5959 = vst.msk [vmem:[#allocation3 + $0x98] sm:$0xf] %vm5939, %v5863
      %5960 = vst.msk [vmem:[#allocation3 + $0xa0] sm:$0xf] %vm5939, %v5864
      %5961 = vst.msk [vmem:[#allocation3 + $0xa8] sm:$0xf] %vm5939, %v5865
      %5962 = vst.msk [vmem:[#allocation3 + $0xb0] sm:$0xf] %vm5939, %v5866
      %5963 = vst.msk [vmem:[#allocation3 + $0xb8] sm:$0xf] %vm5939, %v5867
      %5964 = vst.msk [vmem:[#allocation3 + $0xc0] sm:$0xf] %vm5939, %v5868
      %5965 = vst.msk [vmem:[#allocation3 + $0xc8] sm:$0xf] %vm5939, %v5869
      %5966 = vst.msk [vmem:[#allocation3 + $0xd0] sm:$0xf] %vm5939, %v5870
      %5967 = vst.msk [vmem:[#allocation3 + $0xd8] sm:$0xf] %vm5939, %v5871
      %5968 = vst.msk [vmem:[#allocation3 + $0xe0] sm:$0xf] %vm5939, %v5872
      %5969 = vst.msk [vmem:[#allocation3 + $0xe8] sm:$0xf] %vm5939, %v5873
      %5970 = vst.msk [vmem:[#allocation3 + $0xf0] sm:$0xf] %vm5939, %v5874
      %5971 = vst.msk [vmem:[#allocation3 + $0xf8] sm:$0xf] %vm5939, %v5875
      %5972 = vst.msk [vmem:[#allocation3 + $0x100] sm:$0xf] %vm5939, %v5876
      %5973 = vst.msk [vmem:[#allocation3 + $0x108] sm:$0xf] %vm5939, %v5877
      %5974 = vst.msk [vmem:[#allocation3 + $0x110] sm:$0xf] %vm5939, %v5878
      %5975 = vst.msk [vmem:[#allocation3 + $0x118] sm:$0xf] %vm5939, %v5879
      %5976 = vst.msk [vmem:[#allocation3 + $0x120] sm:$0xf] %vm5939, %v5880
      %5977 = vst.msk [vmem:[#allocation3 + $0x128] sm:$0xf] %vm5939, %v5881
      %5978 = vst.msk [vmem:[#allocation3 + $0x130] sm:$0xf] %vm5939, %v5882
      %5979 = vst.msk [vmem:[#allocation3 + $0x138] sm:$0xf] %vm5939, %v5883
      %5980 = vst.msk [vmem:[#allocation3 + $0x140] sm:$0xf] %vm5939, %v5884
      %5981 = vst.msk [vmem:[#allocation3 + $0x148] sm:$0xf] %vm5939, %v5885
      %5982 = vst.msk [vmem:[#allocation3 + $0x150] sm:$0xf] %vm5939, %v5886
      %5983 = vst.msk [vmem:[#allocation3 + $0x158] sm:$0xf] %vm5939, %v5887
      %5984 = vst.msk [vmem:[#allocation3 + $0x160] sm:$0xf] %vm5939, %v5888
      %5985 = vst.msk [vmem:[#allocation3 + $0x168] sm:$0xf] %vm5939, %v5889
      %5986 = vst.msk [vmem:[#allocation3 + $0x170] sm:$0xf] %vm5939, %v5890
      %5987 = vst.msk [vmem:[#allocation3 + $0x178] sm:$0xf] %vm5939, %v5891
      %v5990 = vunpack.c.l.b16 %v5750
      %v5991 = vunpack.c.h.b16 %v5750
      %v5992 = vunpack.c.l.b16 %v5766
      %v5993 = vpack.c.b16 %v5990, %v5990
      %v5994 = vpack.c.b16 %v5991, %v5991
      %v5995 = vpack.c.b16 %v5992, %v5992
      %5996 = vrot.lane.b32.xlu0 %v5847, 64
      %v5997 = vpop.permute.xlu0 %5996
      %5998 = vrot.lane.b32.xlu0 %v5848, 64
      %v5999 = vpop.permute.xlu0 %5998
      %6000 = vrot.lane.b32.xlu0 %v5849, 64
      %v6001 = vpop.permute.xlu0 %6000
      %6002 = vrot.lane.b32.xlu0 %v5850, 64
      %v6003 = vpop.permute.xlu0 %6002
      %6004 = vrot.lane.b32.xlu0 %v5851, 64
      %v6005 = vpop.permute.xlu0 %6004
      %6006 = vrot.lane.b32.xlu0 %v5852, 64
      %v6007 = vpop.permute.xlu0 %6006
      %6008 = vrot.lane.b32.xlu0 %v5853, 64
      %v6009 = vpop.permute.xlu0 %6008
      %6010 = vrot.lane.b32.xlu0 %v5854, 64
      %v6011 = vpop.permute.xlu0 %6010
      %6012 = vrot.lane.b32.xlu0 %v5855, 64
      %v6013 = vpop.permute.xlu0 %6012
      %6014 = vrot.lane.b32.xlu0 %v5856, 64
      %v6015 = vpop.permute.xlu0 %6014
      %6016 = vrot.lane.b32.xlu0 %v5857, 64
      %v6017 = vpop.permute.xlu0 %6016
      %6018 = vrot.lane.b32.xlu0 %v5858, 64
      %v6019 = vpop.permute.xlu0 %6018
      %6020 = vrot.lane.b32.xlu0 %v5859, 64
      %v6021 = vpop.permute.xlu0 %6020
      %6022 = vrot.lane.b32.xlu0 %v5860, 64
      %v6023 = vpop.permute.xlu0 %6022
      %6024 = vrot.lane.b32.xlu0 %v5861, 64
      %v6025 = vpop.permute.xlu0 %6024
      %6026 = vrot.lane.b32.xlu0 %v5862, 64
      %v6027 = vpop.permute.xlu0 %6026
      %6028 = vrot.lane.b32.xlu0 %v5863, 64
      %v6029 = vpop.permute.xlu0 %6028
      %6030 = vrot.lane.b32.xlu0 %v5864, 64
      %v6031 = vpop.permute.xlu0 %6030
      %6032 = vrot.lane.b32.xlu0 %v5865, 64
      %v6033 = vpop.permute.xlu0 %6032
      %6034 = vrot.lane.b32.xlu0 %v5866, 64
      %v6035 = vpop.permute.xlu0 %6034
      %6036 = vrot.lane.b32.xlu0 %v5867, 64
      %v6037 = vpop.permute.xlu0 %6036
      %6038 = vrot.lane.b32.xlu0 %v5868, 64
      %v6039 = vpop.permute.xlu0 %6038
      %6040 = vrot.lane.b32.xlu0 %v5869, 64
      %v6041 = vpop.permute.xlu0 %6040
      %6042 = vrot.lane.b32.xlu0 %v5870, 64
      %v6043 = vpop.permute.xlu0 %6042
      %6044 = vrot.lane.b32.xlu0 %v5871, 64
      %v6045 = vpop.permute.xlu0 %6044
      %6046 = vrot.lane.b32.xlu0 %v5872, 64
      %v6047 = vpop.permute.xlu0 %6046
      %6048 = vrot.lane.b32.xlu0 %v5873, 64
      %v6049 = vpop.permute.xlu0 %6048
      %6050 = vrot.lane.b32.xlu0 %v5874, 64
      %v6051 = vpop.permute.xlu0 %6050
      %6052 = vrot.lane.b32.xlu0 %v5875, 64
      %v6053 = vpop.permute.xlu0 %6052
      %6054 = vrot.lane.b32.xlu0 %v5876, 64
      %v6055 = vpop.permute.xlu0 %6054
      %6056 = vrot.lane.b32.xlu0 %v5877, 64
      %v6057 = vpop.permute.xlu0 %6056
      %6058 = vrot.lane.b32.xlu0 %v5878, 64
      %v6059 = vpop.permute.xlu0 %6058
      %6060 = vrot.lane.b32.xlu0 %v5879, 64
      %v6061 = vpop.permute.xlu0 %6060
      %6062 = vrot.lane.b32.xlu0 %v5880, 64
      %v6063 = vpop.permute.xlu0 %6062
      %6064 = vrot.lane.b32.xlu0 %v5881, 64
      %v6065 = vpop.permute.xlu0 %6064
      %6066 = vrot.lane.b32.xlu0 %v5882, 64
      %v6067 = vpop.permute.xlu0 %6066
      %6068 = vrot.lane.b32.xlu0 %v5883, 64
      %v6069 = vpop.permute.xlu0 %6068
      %6070 = vrot.lane.b32.xlu0 %v5884, 64
      %v6071 = vpop.permute.xlu0 %6070
      %6072 = vrot.lane.b32.xlu0 %v5885, 64
      %v6073 = vpop.permute.xlu0 %6072
      %6074 = vrot.lane.b32.xlu0 %v5886, 64
      %v6075 = vpop.permute.xlu0 %6074
      %6076 = vrot.lane.b32.xlu0 %v5887, 64
      %v6077 = vpop.permute.xlu0 %6076
      %6078 = vrot.lane.b32.xlu0 %v5888, 64
      %v6079 = vpop.permute.xlu0 %6078
      %6080 = vrot.lane.b32.xlu0 %v5889, 64
      %v6081 = vpop.permute.xlu0 %6080
      %6082 = vrot.lane.b32.xlu0 %v5890, 64
      %v6083 = vpop.permute.xlu0 %6082
      %6084 = vrot.lane.b32.xlu0 %v5891, 64
      %v6085 = vpop.permute.xlu0 %6084
      %6086 = vrot.lane.b32.xlu0 %v5993, 64
      %v6087 = vpop.permute.xlu0 %6086
      %6088 = vrot.lane.b32.xlu0 %v5994, 64
      %v6089 = vpop.permute.xlu0 %6088
      %6090 = vrot.lane.b32.xlu0 %v5995, 64
      %v6091 = vpop.permute.xlu0 %6090
      %vm6140 = vcmask 1043968
      %6141 = vst.msk [vmem:[#allocation3] sm:$0xf] %vm6140, %v5997
      %6142 = vst.msk [vmem:[#allocation3 + $0x8] sm:$0xf] %vm6140, %v5999
      %6143 = vst.msk [vmem:[#allocation3 + $0x10] sm:$0xf] %vm6140, %v6001
      %6144 = vst.msk [vmem:[#allocation3 + $0x18] sm:$0xf] %vm6140, %v6003
      %6145 = vst.msk [vmem:[#allocation3 + $0x20] sm:$0xf] %vm6140, %v6005
      %6146 = vst.msk [vmem:[#allocation3 + $0x28] sm:$0xf] %vm6140, %v6007
      %6147 = vst.msk [vmem:[#allocation3 + $0x30] sm:$0xf] %vm6140, %v6009
      %6148 = vst.msk [vmem:[#allocation3 + $0x38] sm:$0xf] %vm6140, %v6011
      %6149 = vst.msk [vmem:[#allocation3 + $0x40] sm:$0xf] %vm6140, %v6013
      %6150 = vst.msk [vmem:[#allocation3 + $0x48] sm:$0xf] %vm6140, %v6015
      %6151 = vst.msk [vmem:[#allocation3 + $0x50] sm:$0xf] %vm6140, %v6017
      %6152 = vst.msk [vmem:[#allocation3 + $0x58] sm:$0xf] %vm6140, %v6019
      %6153 = vst.msk [vmem:[#allocation3 + $0x60] sm:$0xf] %vm6140, %v6021
      %6154 = vst.msk [vmem:[#allocation3 + $0x68] sm:$0xf] %vm6140, %v6023
      %6155 = vst.msk [vmem:[#allocation3 + $0x70] sm:$0xf] %vm6140, %v6025
      %6156 = vst.msk [vmem:[#allocation3 + $0x78] sm:$0xf] %vm6140, %v6027
      %6157 = vst.msk [vmem:[#allocation3 + $0x80] sm:$0xf] %vm6140, %v6029
      %6158 = vst.msk [vmem:[#allocation3 + $0x88] sm:$0xf] %vm6140, %v6031
      %6159 = vst.msk [vmem:[#allocation3 + $0x90] sm:$0xf] %vm6140, %v6033
      %6160 = vst.msk [vmem:[#allocation3 + $0x98] sm:$0xf] %vm6140, %v6035
      %6161 = vst.msk [vmem:[#allocation3 + $0xa0] sm:$0xf] %vm6140, %v6037
      %6162 = vst.msk [vmem:[#allocation3 + $0xa8] sm:$0xf] %vm6140, %v6039
      %6163 = vst.msk [vmem:[#allocation3 + $0xb0] sm:$0xf] %vm6140, %v6041
      %6164 = vst.msk [vmem:[#allocation3 + $0xb8] sm:$0xf] %vm6140, %v6043
      %6165 = vst.msk [vmem:[#allocation3 + $0xc0] sm:$0xf] %vm6140, %v6045
      %6166 = vst.msk [vmem:[#allocation3 + $0xc8] sm:$0xf] %vm6140, %v6047
      %6167 = vst.msk [vmem:[#allocation3 + $0xd0] sm:$0xf] %vm6140, %v6049
      %6168 = vst.msk [vmem:[#allocation3 + $0xd8] sm:$0xf] %vm6140, %v6051
      %6169 = vst.msk [vmem:[#allocation3 + $0xe0] sm:$0xf] %vm6140, %v6053
      %6170 = vst.msk [vmem:[#allocation3 + $0xe8] sm:$0xf] %vm6140, %v6055
      %6171 = vst.msk [vmem:[#allocation3 + $0xf0] sm:$0xf] %vm6140, %v6057
      %6172 = vst.msk [vmem:[#allocation3 + $0xf8] sm:$0xf] %vm6140, %v6059
      %6173 = vst.msk [vmem:[#allocation3 + $0x100] sm:$0xf] %vm6140, %v6061
      %6174 = vst.msk [vmem:[#allocation3 + $0x108] sm:$0xf] %vm6140, %v6063
      %6175 = vst.msk [vmem:[#allocation3 + $0x110] sm:$0xf] %vm6140, %v6065
      %6176 = vst.msk [vmem:[#allocation3 + $0x118] sm:$0xf] %vm6140, %v6067
      %6177 = vst.msk [vmem:[#allocation3 + $0x120] sm:$0xf] %vm6140, %v6069
      %6178 = vst.msk [vmem:[#allocation3 + $0x128] sm:$0xf] %vm6140, %v6071
      %6179 = vst.msk [vmem:[#allocation3 + $0x130] sm:$0xf] %vm6140, %v6073
      %6180 = vst.msk [vmem:[#allocation3 + $0x138] sm:$0xf] %vm6140, %v6075
      %6181 = vst.msk [vmem:[#allocation3 + $0x140] sm:$0xf] %vm6140, %v6077
      %6182 = vst.msk [vmem:[#allocation3 + $0x148] sm:$0xf] %vm6140, %v6079
      %6183 = vst.msk [vmem:[#allocation3 + $0x150] sm:$0xf] %vm6140, %v6081
      %6184 = vst.msk [vmem:[#allocation3 + $0x158] sm:$0xf] %vm6140, %v6083
      %6185 = vst.msk [vmem:[#allocation3 + $0x160] sm:$0xf] %vm6140, %v6085
      %6186 = vst.msk [vmem:[#allocation3 + $0x168] sm:$0xf] %vm6140, %v6087
      %6187 = vst.msk [vmem:[#allocation3 + $0x170] sm:$0xf] %vm6140, %v6089
      %6188 = vst.msk [vmem:[#allocation3 + $0x178] sm:$0xf] %vm6140, %v6091
      %6192 = vst.msk [vmem:[#allocation3 + $0x4] sm:$0xf] %vm5939, %v5850
      %6193 = vst.msk [vmem:[#allocation3 + $0xc] sm:$0xf] %vm5939, %v5851
      %6194 = vst.msk [vmem:[#allocation3 + $0x14] sm:$0xf] %vm5939, %v5852
      %6195 = vst.msk [vmem:[#allocation3 + $0x1c] sm:$0xf] %vm5939, %v5853
      %6196 = vst.msk [vmem:[#allocation3 + $0x24] sm:$0xf] %vm5939, %v5854
      %6197 = vst.msk [vmem:[#allocation3 + $0x2c] sm:$0xf] %vm5939, %v5855
      %6198 = vst.msk [vmem:[#allocation3 + $0x34] sm:$0xf] %vm5939, %v5856
      %6199 = vst.msk [vmem:[#allocation3 + $0x3c] sm:$0xf] %vm5939, %v5857
      %6200 = vst.msk [vmem:[#allocation3 + $0x44] sm:$0xf] %vm5939, %v5858
      %6201 = vst.msk [vmem:[#allocation3 + $0x4c] sm:$0xf] %vm5939, %v5859
      %6202 = vst.msk [vmem:[#allocation3 + $0x54] sm:$0xf] %vm5939, %v5860
      %6203 = vst.msk [vmem:[#allocation3 + $0x5c] sm:$0xf] %vm5939, %v5861
      %6204 = vst.msk [vmem:[#allocation3 + $0x64] sm:$0xf] %vm5939, %v5862
      %6205 = vst.msk [vmem:[#allocation3 + $0x6c] sm:$0xf] %vm5939, %v5863
      %6206 = vst.msk [vmem:[#allocation3 + $0x74] sm:$0xf] %vm5939, %v5864
      %6207 = vst.msk [vmem:[#allocation3 + $0x7c] sm:$0xf] %vm5939, %v5865
      %6208 = vst.msk [vmem:[#allocation3 + $0x84] sm:$0xf] %vm5939, %v5866
      %6209 = vst.msk [vmem:[#allocation3 + $0x8c] sm:$0xf] %vm5939, %v5867
      %6210 = vst.msk [vmem:[#allocation3 + $0x94] sm:$0xf] %vm5939, %v5868
      %6211 = vst.msk [vmem:[#allocation3 + $0x9c] sm:$0xf] %vm5939, %v5869
      %6212 = vst.msk [vmem:[#allocation3 + $0xa4] sm:$0xf] %vm5939, %v5870
      %6213 = vst.msk [vmem:[#allocation3 + $0xac] sm:$0xf] %vm5939, %v5871
      %6214 = vst.msk [vmem:[#allocation3 + $0xb4] sm:$0xf] %vm5939, %v5872
      %6215 = vst.msk [vmem:[#allocation3 + $0xbc] sm:$0xf] %vm5939, %v5873
      %6216 = vst.msk [vmem:[#allocation3 + $0xc4] sm:$0xf] %vm5939, %v5874
      %6217 = vst.msk [vmem:[#allocation3 + $0xcc] sm:$0xf] %vm5939, %v5875
      %6218 = vst.msk [vmem:[#allocation3 + $0xd4] sm:$0xf] %vm5939, %v5876
      %6219 = vst.msk [vmem:[#allocation3 + $0xdc] sm:$0xf] %vm5939, %v5877
      %6220 = vst.msk [vmem:[#allocation3 + $0xe4] sm:$0xf] %vm5939, %v5878
      %6221 = vst.msk [vmem:[#allocation3 + $0xec] sm:$0xf] %vm5939, %v5879
      %6222 = vst.msk [vmem:[#allocation3 + $0xf4] sm:$0xf] %vm5939, %v5880
      %6223 = vst.msk [vmem:[#allocation3 + $0xfc] sm:$0xf] %vm5939, %v5881
      %6224 = vst.msk [vmem:[#allocation3 + $0x104] sm:$0xf] %vm5939, %v5882
      %6225 = vst.msk [vmem:[#allocation3 + $0x10c] sm:$0xf] %vm5939, %v5883
      %6226 = vst.msk [vmem:[#allocation3 + $0x114] sm:$0xf] %vm5939, %v5884
      %6227 = vst.msk [vmem:[#allocation3 + $0x11c] sm:$0xf] %vm5939, %v5885
      %6228 = vst.msk [vmem:[#allocation3 + $0x124] sm:$0xf] %vm5939, %v5886
      %6229 = vst.msk [vmem:[#allocation3 + $0x12c] sm:$0xf] %vm5939, %v5887
      %6230 = vst.msk [vmem:[#allocation3 + $0x134] sm:$0xf] %vm5939, %v5888
      %6231 = vst.msk [vmem:[#allocation3 + $0x13c] sm:$0xf] %vm5939, %v5889
      %6232 = vst.msk [vmem:[#allocation3 + $0x144] sm:$0xf] %vm5939, %v5890
      %6233 = vst.msk [vmem:[#allocation3 + $0x14c] sm:$0xf] %vm5939, %v5891
      %6234 = vst.msk [vmem:[#allocation3 + $0x154] sm:$0xf] %vm5939, %v5993
      %6235 = vst.msk [vmem:[#allocation3 + $0x15c] sm:$0xf] %vm5939, %v5994
      %6236 = vst.msk [vmem:[#allocation3 + $0x164] sm:$0xf] %vm5939, %v5995
      %6237 = vst.msk [vmem:[#allocation3 + $0x16c] sm:$0xf] %vm5939, %v5845
      %6238 = vst.msk [vmem:[#allocation3 + $0x174] sm:$0xf] %vm5939, %v5846
      %6239 = vst.msk [vmem:[#allocation3 + $0x17c] sm:$0xf] %vm5939, %v5845
      %v6240 = vld [vmem:[#allocation3] sm:$0xff]
      %v6241 = vld [vmem:[#allocation3 + $0x8] sm:$0xff]
      %v6242 = vld [vmem:[#allocation3 + $0x10] sm:$0xff]
      %v6243 = vld [vmem:[#allocation3 + $0x18] sm:$0xff]
      %v6244 = vld [vmem:[#allocation3 + $0x20] sm:$0xff]
      %v6245 = vld [vmem:[#allocation3 + $0x28] sm:$0xff]
      %v6246 = vld [vmem:[#allocation3 + $0x30] sm:$0xff]
      %v6247 = vld [vmem:[#allocation3 + $0x38] sm:$0xff]
      %v6248 = vld [vmem:[#allocation3 + $0x40] sm:$0xff]
      %v6249 = vld [vmem:[#allocation3 + $0x48] sm:$0xff]
      %v6250 = vld [vmem:[#allocation3 + $0x50] sm:$0xff]
      %v6251 = vld [vmem:[#allocation3 + $0x58] sm:$0xff]
      %v6252 = vld [vmem:[#allocation3 + $0x60] sm:$0xff]
      %v6253 = vld [vmem:[#allocation3 + $0x68] sm:$0xff]
      %v6254 = vld [vmem:[#allocation3 + $0x70] sm:$0xff]
      %v6255 = vld [vmem:[#allocation3 + $0x78] sm:$0xff]
      %v6256 = vld [vmem:[#allocation3 + $0x80] sm:$0xff]
      %v6257 = vld [vmem:[#allocation3 + $0x88] sm:$0xff]
      %v6258 = vld [vmem:[#allocation3 + $0x90] sm:$0xff]
      %v6259 = vld [vmem:[#allocation3 + $0x98] sm:$0xff]
      %v6260 = vld [vmem:[#allocation3 + $0xa0] sm:$0xff]
      %v6261 = vld [vmem:[#allocation3 + $0xa8] sm:$0xff]
      %v6262 = vld [vmem:[#allocation3 + $0xb0] sm:$0xff]
      %v6263 = vld [vmem:[#allocation3 + $0xb8] sm:$0xff]
      %v6264 = vld [vmem:[#allocation3 + $0xc0] sm:$0xff]
      %v6265 = vld [vmem:[#allocation3 + $0xc8] sm:$0xff]
      %v6266 = vld [vmem:[#allocation3 + $0xd0] sm:$0xff]
      %v6267 = vld [vmem:[#allocation3 + $0xd8] sm:$0xff]
      %v6268 = vld [vmem:[#allocation3 + $0xe0] sm:$0xff]
      %v6269 = vld [vmem:[#allocation3 + $0xe8] sm:$0xff]
      %v6270 = vld [vmem:[#allocation3 + $0xf0] sm:$0xff]
      %v6271 = vld [vmem:[#allocation3 + $0xf8] sm:$0xff]
      %v6272 = vld [vmem:[#allocation3 + $0x100] sm:$0xff]
      %v6273 = vld [vmem:[#allocation3 + $0x108] sm:$0xff]
      %v6274 = vld [vmem:[#allocation3 + $0x110] sm:$0xff]
      %v6275 = vld [vmem:[#allocation3 + $0x118] sm:$0xff]
      %v6276 = vld [vmem:[#allocation3 + $0x120] sm:$0xff]
      %v6277 = vld [vmem:[#allocation3 + $0x128] sm:$0xff]
      %v6278 = vld [vmem:[#allocation3 + $0x130] sm:$0xff]
      %v6279 = vld [vmem:[#allocation3 + $0x138] sm:$0xff]
      %v6280 = vld [vmem:[#allocation3 + $0x140] sm:$0xff]
      %v6281 = vld [vmem:[#allocation3 + $0x148] sm:$0xff]
      %v6282 = vld [vmem:[#allocation3 + $0x150] sm:$0xff]
      %v6283 = vld [vmem:[#allocation3 + $0x158] sm:$0xff]
      %v6284 = vld [vmem:[#allocation3 + $0x160] sm:$0xff]
      %v6285 = vld [vmem:[#allocation3 + $0x168] sm:$0xff]
      %v6286 = vld [vmem:[#allocation3 + $0x170] sm:$0xff]
      %v6287 = vld [vmem:[#allocation3 + $0x178] sm:$0xff]
      %v6288 = vld [vmem:[%s3] sm:$0xff]
      %v6289 = vld [vmem:[%s3 + $0x8] sm:$0xff]
      %v6290 = vld [vmem:[%s3 + $0x10] sm:$0xff]
      %v6291 = vld [vmem:[%s3 + $0x18] sm:$0xff]
      %v6292 = vld [vmem:[%s3 + $0x20] sm:$0xff]
      %v6293 = vld [vmem:[%s3 + $0x28] sm:$0xff]
      %v6294 = vld [vmem:[%s3 + $0x30] sm:$0xff]
      %v6295 = vld [vmem:[%s3 + $0x38] sm:$0xff]
      %v6296 = vld [vmem:[%s3 + $0x40] sm:$0xff]
      %v6297 = vld [vmem:[%s3 + $0x48] sm:$0xff]
      %v6298 = vld [vmem:[%s3 + $0x50] sm:$0xff]
      %v6299 = vld [vmem:[%s3 + $0x58] sm:$0xff]
      %v6300 = vld [vmem:[%s3 + $0x60] sm:$0xff]
      %v6301 = vld [vmem:[%s3 + $0x68] sm:$0xff]
      %v6302 = vld [vmem:[%s3 + $0x70] sm:$0xff]
      %v6303 = vld [vmem:[%s3 + $0x78] sm:$0xff]
      %v6304 = vld [vmem:[%s3 + $0x80] sm:$0xff]
      %v6305 = vld [vmem:[%s3 + $0x88] sm:$0xff]
      %v6306 = vld [vmem:[%s3 + $0x90] sm:$0xff]
      %v6307 = vld [vmem:[%s3 + $0x98] sm:$0xff]
      %v6308 = vld [vmem:[%s3 + $0xa0] sm:$0xff]
      %v6309 = vld [vmem:[%s3 + $0xa8] sm:$0xff]
      %v6310 = vld [vmem:[%s3 + $0xb0] sm:$0xff]
      %v6311 = vld [vmem:[%s3 + $0xb8] sm:$0xff]
      %v6360 = vunpack.c.l.b16 %v6240
      %v6361 = vunpack.c.h.b16 %v6240
      %v6362 = vunpack.c.l.b16 %v6241
      %v6363 = vunpack.c.h.b16 %v6241
      %v6364 = vunpack.c.l.b16 %v6242
      %v6365 = vunpack.c.h.b16 %v6242
      %v6366 = vunpack.c.l.b16 %v6243
      %v6367 = vunpack.c.h.b16 %v6243
      %v6368 = vunpack.c.l.b16 %v6244
      %v6369 = vunpack.c.h.b16 %v6244
      %v6370 = vunpack.c.l.b16 %v6245
      %v6371 = vunpack.c.h.b16 %v6245
      %v6372 = vunpack.c.l.b16 %v6246
      %v6373 = vunpack.c.h.b16 %v6246
      %v6374 = vunpack.c.l.b16 %v6247
      %v6375 = vunpack.c.h.b16 %v6247
      %v6376 = vunpack.c.l.b16 %v6248
      %v6377 = vunpack.c.h.b16 %v6248
      %v6378 = vunpack.c.l.b16 %v6249
      %v6379 = vunpack.c.h.b16 %v6249
      %v6380 = vunpack.c.l.b16 %v6250
      %v6381 = vunpack.c.h.b16 %v6250
      %v6382 = vunpack.c.l.b16 %v6251
      %v6383 = vunpack.c.h.b16 %v6251
      %v6384 = vunpack.c.l.b16 %v6252
      %v6385 = vunpack.c.h.b16 %v6252
      %v6386 = vunpack.c.l.b16 %v6253
      %v6387 = vunpack.c.h.b16 %v6253
      %v6388 = vunpack.c.l.b16 %v6254
      %v6389 = vunpack.c.h.b16 %v6254
      %v6390 = vunpack.c.l.b16 %v6255
      %v6391 = vunpack.c.h.b16 %v6255
      %v6392 = vunpack.c.l.b16 %v6256
      %v6393 = vunpack.c.h.b16 %v6256
      %v6394 = vunpack.c.l.b16 %v6257
      %v6395 = vunpack.c.h.b16 %v6257
      %v6396 = vunpack.c.l.b16 %v6258
      %v6397 = vunpack.c.h.b16 %v6258
      %v6398 = vunpack.c.l.b16 %v6259
      %v6399 = vunpack.c.h.b16 %v6259
      %v6400 = vunpack.c.l.b16 %v6260
      %v6401 = vunpack.c.h.b16 %v6260
      %v6402 = vunpack.c.l.b16 %v6261
      %v6403 = vunpack.c.h.b16 %v6261
      %v6404 = vunpack.c.l.b16 %v6262
      %v6405 = vunpack.c.h.b16 %v6262
      %v6406 = vunpack.c.l.b16 %v6263
      %v6407 = vunpack.c.h.b16 %v6263
      %v6408 = vunpack.c.l.b16 %v6264
      %v6409 = vunpack.c.h.b16 %v6264
      %v6410 = vunpack.c.l.b16 %v6265
      %v6411 = vunpack.c.h.b16 %v6265
      %v6412 = vunpack.c.l.b16 %v6266
      %v6413 = vunpack.c.h.b16 %v6266
      %v6414 = vunpack.c.l.b16 %v6267
      %v6415 = vunpack.c.h.b16 %v6267
      %v6416 = vunpack.c.l.b16 %v6268
      %v6417 = vunpack.c.h.b16 %v6268
      %v6418 = vunpack.c.l.b16 %v6269
      %v6419 = vunpack.c.h.b16 %v6269
      %v6420 = vunpack.c.l.b16 %v6270
      %v6421 = vunpack.c.h.b16 %v6270
      %v6422 = vunpack.c.l.b16 %v6271
      %v6423 = vunpack.c.h.b16 %v6271
      %v6424 = vunpack.c.l.b16 %v6272
      %v6425 = vunpack.c.h.b16 %v6272
      %v6426 = vunpack.c.l.b16 %v6273
      %v6427 = vunpack.c.h.b16 %v6273
      %v6428 = vunpack.c.l.b16 %v6274
      %v6429 = vunpack.c.h.b16 %v6274
      %v6430 = vunpack.c.l.b16 %v6275
      %v6431 = vunpack.c.h.b16 %v6275
      %v6432 = vunpack.c.l.b16 %v6276
      %v6433 = vunpack.c.h.b16 %v6276
      %v6434 = vunpack.c.l.b16 %v6277
      %v6435 = vunpack.c.h.b16 %v6277
      %v6436 = vunpack.c.l.b16 %v6278
      %v6437 = vunpack.c.h.b16 %v6278
      %v6438 = vunpack.c.l.b16 %v6279
      %v6439 = vunpack.c.h.b16 %v6279
      %v6440 = vunpack.c.l.b16 %v6280
      %v6441 = vunpack.c.h.b16 %v6280
      %v6442 = vunpack.c.l.b16 %v6281
      %v6443 = vunpack.c.h.b16 %v6281
      %v6444 = vunpack.c.l.b16 %v6282
      %v6445 = vunpack.c.h.b16 %v6282
      %v6446 = vunpack.c.l.b16 %v6283
      %v6447 = vunpack.c.h.b16 %v6283
      %v6448 = vunpack.c.l.b16 %v6284
      %v6449 = vunpack.c.h.b16 %v6284
      %v6450 = vunpack.c.l.b16 %v6285
      %v6451 = vunpack.c.h.b16 %v6285
      %v6452 = vunpack.c.l.b16 %v6286
      %v6453 = vunpack.c.h.b16 %v6286
      %v6454 = vunpack.c.l.b16 %v6287
      %v6455 = vunpack.c.h.b16 %v6287
      %v6456 = vpack.c.b16 %v6362, %v6360
      %v6457 = vpack.c.b16 %v6363, %v6361
      %v6458 = vpack.c.b16 %v6366, %v6364
      %v6459 = vpack.c.b16 %v6367, %v6365
      %v6460 = vpack.c.b16 %v6370, %v6368
      %v6461 = vpack.c.b16 %v6371, %v6369
      %v6462 = vpack.c.b16 %v6374, %v6372
      %v6463 = vpack.c.b16 %v6375, %v6373
      %v6464 = vpack.c.b16 %v6378, %v6376
      %v6465 = vpack.c.b16 %v6379, %v6377
      %v6466 = vpack.c.b16 %v6382, %v6380
      %v6467 = vpack.c.b16 %v6383, %v6381
      %v6468 = vpack.c.b16 %v6386, %v6384
      %v6469 = vpack.c.b16 %v6387, %v6385
      %v6470 = vpack.c.b16 %v6390, %v6388
      %v6471 = vpack.c.b16 %v6391, %v6389
      %v6472 = vpack.c.b16 %v6394, %v6392
      %v6473 = vpack.c.b16 %v6395, %v6393
      %v6474 = vpack.c.b16 %v6398, %v6396
      %v6475 = vpack.c.b16 %v6399, %v6397
      %v6476 = vpack.c.b16 %v6402, %v6400
      %v6477 = vpack.c.b16 %v6403, %v6401
      %v6478 = vpack.c.b16 %v6406, %v6404
      %v6479 = vpack.c.b16 %v6407, %v6405
      %v6480 = vpack.c.b16 %v6410, %v6408
      %v6481 = vpack.c.b16 %v6411, %v6409
      %v6482 = vpack.c.b16 %v6414, %v6412
      %v6483 = vpack.c.b16 %v6415, %v6413
      %v6484 = vpack.c.b16 %v6418, %v6416
      %v6485 = vpack.c.b16 %v6419, %v6417
      %v6486 = vpack.c.b16 %v6422, %v6420
      %v6487 = vpack.c.b16 %v6423, %v6421
      %v6488 = vpack.c.b16 %v6426, %v6424
      %v6489 = vpack.c.b16 %v6427, %v6425
      %v6490 = vpack.c.b16 %v6430, %v6428
      %v6491 = vpack.c.b16 %v6431, %v6429
      %v6492 = vpack.c.b16 %v6434, %v6432
      %v6493 = vpack.c.b16 %v6435, %v6433
      %v6494 = vpack.c.b16 %v6438, %v6436
      %v6495 = vpack.c.b16 %v6439, %v6437
      %v6496 = vpack.c.b16 %v6442, %v6440
      %v6497 = vpack.c.b16 %v6443, %v6441
      %v6498 = vpack.c.b16 %v6446, %v6444
      %v6499 = vpack.c.b16 %v6447, %v6445
      %v6500 = vpack.c.b16 %v6450, %v6448
      %v6501 = vpack.c.b16 %v6451, %v6449
      %v6502 = vpack.c.b16 %v6454, %v6452
      %v6503 = vpack.c.b16 %v6455, %v6453
      %v6552 = vunpack.c.l.b16 %v6288
      %v6553 = vunpack.c.h.b16 %v6288
      %v6554 = vunpack.c.l.b16 %v6289
      %v6555 = vunpack.c.h.b16 %v6289
      %v6556 = vunpack.c.l.b16 %v6290
      %v6557 = vunpack.c.h.b16 %v6290
      %v6558 = vunpack.c.l.b16 %v6291
      %v6559 = vunpack.c.h.b16 %v6291
      %v6560 = vunpack.c.l.b16 %v6292
      %v6561 = vunpack.c.h.b16 %v6292
      %v6562 = vunpack.c.l.b16 %v6293
      %v6563 = vunpack.c.h.b16 %v6293
      %v6564 = vunpack.c.l.b16 %v6294
      %v6565 = vunpack.c.h.b16 %v6294
      %v6566 = vunpack.c.l.b16 %v6295
      %v6567 = vunpack.c.h.b16 %v6295
      %v6568 = vunpack.c.l.b16 %v6296
      %v6569 = vunpack.c.h.b16 %v6296
      %v6570 = vunpack.c.l.b16 %v6297
      %v6571 = vunpack.c.h.b16 %v6297
      %v6572 = vunpack.c.l.b16 %v6298
      %v6573 = vunpack.c.h.b16 %v6298
      %v6574 = vunpack.c.l.b16 %v6299
      %v6575 = vunpack.c.h.b16 %v6299
      %v6576 = vunpack.c.l.b16 %v6300
      %v6577 = vunpack.c.h.b16 %v6300
      %v6578 = vunpack.c.l.b16 %v6301
      %v6579 = vunpack.c.h.b16 %v6301
      %v6580 = vunpack.c.l.b16 %v6302
      %v6581 = vunpack.c.h.b16 %v6302
      %v6582 = vunpack.c.l.b16 %v6303
      %v6583 = vunpack.c.h.b16 %v6303
      %v6584 = vunpack.c.l.b16 %v6304
      %v6585 = vunpack.c.h.b16 %v6304
      %v6586 = vunpack.c.l.b16 %v6305
      %v6587 = vunpack.c.h.b16 %v6305
      %v6588 = vunpack.c.l.b16 %v6306
      %v6589 = vunpack.c.h.b16 %v6306
      %v6590 = vunpack.c.l.b16 %v6307
      %v6591 = vunpack.c.h.b16 %v6307
      %v6592 = vunpack.c.l.b16 %v6308
      %v6593 = vunpack.c.h.b16 %v6308
      %v6594 = vunpack.c.l.b16 %v6309
      %v6595 = vunpack.c.h.b16 %v6309
      %v6596 = vunpack.c.l.b16 %v6310
      %v6597 = vunpack.c.h.b16 %v6310
      %v6598 = vunpack.c.l.b16 %v6311
      %v6599 = vunpack.c.h.b16 %v6311
      %v6600 = vpack.c.b16 %v6554, %v6552
      %v6601 = vpack.c.b16 %v6555, %v6553
      %v6602 = vpack.c.b16 %v6558, %v6556
      %v6603 = vpack.c.b16 %v6559, %v6557
      %v6604 = vpack.c.b16 %v6562, %v6560
      %v6605 = vpack.c.b16 %v6563, %v6561
      %v6606 = vpack.c.b16 %v6566, %v6564
      %v6607 = vpack.c.b16 %v6567, %v6565
      %v6608 = vpack.c.b16 %v6570, %v6568
      %v6609 = vpack.c.b16 %v6571, %v6569
      %v6610 = vpack.c.b16 %v6574, %v6572
      %v6611 = vpack.c.b16 %v6575, %v6573
      %v6612 = vpack.c.b16 %v6578, %v6576
      %v6613 = vpack.c.b16 %v6579, %v6577
      %v6614 = vpack.c.b16 %v6582, %v6580
      %v6615 = vpack.c.b16 %v6583, %v6581
      %v6616 = vpack.c.b16 %v6586, %v6584
      %v6617 = vpack.c.b16 %v6587, %v6585
      %v6618 = vpack.c.b16 %v6590, %v6588
      %v6619 = vpack.c.b16 %v6591, %v6589
      %v6620 = vpack.c.b16 %v6594, %v6592
      %v6621 = vpack.c.b16 %v6595, %v6593
      %v6622 = vpack.c.b16 %v6598, %v6596
      %v6623 = vpack.c.b16 %v6599, %v6597
      %vm6648 = vcmask 523264
      %v6650 = vsel %vm6648, %v6457, 0
      %v6653 = vsel %vm6648, %v6459, 0
      %v6656 = vsel %vm6648, %v6461, 0
      %v6659 = vsel %vm6648, %v6463, 0
      %v6662 = vsel %vm6648, %v6465, 0
      %v6665 = vsel %vm6648, %v6467, 0
      %v6668 = vsel %vm6648, %v6469, 0
      %v6671 = vsel %vm6648, %v6471, 0
      %v6674 = vsel %vm6648, %v6473, 0
      %v6677 = vsel %vm6648, %v6475, 0
      %v6680 = vsel %vm6648, %v6477, 0
      %v6683 = vsel %vm6648, %v6479, 0
      %v6686 = vsel %vm6648, %v6481, 0
      %v6689 = vsel %vm6648, %v6483, 0
      %v6692 = vsel %vm6648, %v6485, 0
      %v6695 = vsel %vm6648, %v6487, 0
      %v6698 = vsel %vm6648, %v6489, 0
      %v6701 = vsel %vm6648, %v6491, 0
      %v6704 = vsel %vm6648, %v6493, 0
      %v6707 = vsel %vm6648, %v6495, 0
      %v6710 = vsel %vm6648, %v6497, 0
      %v6713 = vsel %vm6648, %v6499, 0
      %v6716 = vsel %vm6648, %v6501, 0
      %v6719 = vsel %vm6648, %v6503, 0
      %6721 = vmatprep.subr.bf16.mxu0 %v6601
      %6722 = vmatpush1.bf16.msra.mxu0 %v6600
      %6723 = vmatprep.subr.bf16.mxu0 %v6603
      %6724 = vmatpush1.bf16.msra.mxu0 %v6602
      %6725 = vmatprep.subr.bf16.mxu0 %v6605
      %6726 = vmatpush1.bf16.msra.mxu0 %v6604
      %6727 = vmatprep.subr.bf16.mxu0 %v6607
      %6728 = vmatpush1.bf16.msra.mxu0 %v6606
      %6729 = vmatprep.subr.bf16.mxu0 %v6609
      %6730 = vmatpush1.bf16.msra.mxu0 %v6608
      %6731 = vmatprep.subr.bf16.mxu0 %v6611
      %6732 = vmatpush1.bf16.msra.mxu0 %v6610
      %6733 = vmatprep.subr.bf16.mxu0 %v6613
      %6734 = vmatpush1.bf16.msra.mxu0 %v6612
      %6735 = vmatprep.subr.bf16.mxu0 %v6615
      %6736 = vmatpush1.bf16.msra.mxu0 %v6614
      %6737 = vmatprep.subr.bf16.mxu0 %v6617
      %6738 = vmatpush1.bf16.msra.mxu0 %v6616
      %6739 = vmatprep.subr.bf16.mxu0 %v6619
      %6740 = vmatpush1.bf16.msra.mxu0 %v6618
      %6741 = vmatprep.subr.bf16.mxu0 %v6621
      %6742 = vmatpush1.bf16.msra.mxu0 %v6620
      %6743 = vmatprep.subr.bf16.mxu0 %v6623
      %6744 = vmatpush1.bf16.msra.mxu0 %v6622
      %6745 = vmatprep.subr.bf16.mxu0 0
      %6746 = vmatpush1.bf16.msra.mxu0 0
      %6747 = vmatprep.subr.bf16.mxu0 0
      %6748 = vmatpush1.bf16.msra.mxu0 0
      %6749 = vmatprep.subr.bf16.mxu0 0
      %6750 = vmatpush1.bf16.msra.mxu0 0
      %6751 = vmatprep.subr.bf16.mxu0 0
      %6752 = vmatpush1.bf16.msra.mxu0 0
      %6753 = vmatprep.mubr.bf16.mxu0 %v6650
      %6754 = vmatmul.mubr.bf16.gmra.mrb[0].mxu0 %v6456
      %v6755 = vpop.f32.mrb[0].mxu0
      %v6756 = vadd.f32 0.0, %v6755
      %v6757 = vpop.f32.mrb[0].mxu0
      %v6758 = vadd.f32 0.0, %v6757
      %v6759 = vpop.f32.mrb[0].mxu0
      %v6760 = vadd.f32 0.0, %v6759
      %v6761 = vpop.f32.mrb[0].mxu0
      %v6762 = vadd.f32 0.0, %v6761
      %6763 = vmatprep.mubr.bf16.mxu0 %v6653
      %6764 = vmatmul.mubr.bf16.gmra.mrb[0].mxu0 %v6458
      %v6765 = vpop.f32.mrb[0].mxu0
      %v6766 = vadd.f32 0.0, %v6765
      %v6767 = vpop.f32.mrb[0].mxu0
      %v6768 = vadd.f32 0.0, %v6767
      %v6769 = vpop.f32.mrb[0].mxu0
      %v6770 = vadd.f32 0.0, %v6769
      %v6771 = vpop.f32.mrb[0].mxu0
      %v6772 = vadd.f32 0.0, %v6771
      %6773 = vmatprep.mubr.bf16.mxu0 %v6656
      %6774 = vmatmul.mubr.bf16.gmra.mrb[0].mxu0 %v6460
      %v6775 = vpop.f32.mrb[0].mxu0
      %v6776 = vadd.f32 0.0, %v6775
      %v6777 = vpop.f32.mrb[0].mxu0
      %v6778 = vadd.f32 0.0, %v6777
      %v6779 = vpop.f32.mrb[0].mxu0
      %v6780 = vadd.f32 0.0, %v6779
      %v6781 = vpop.f32.mrb[0].mxu0
      %v6782 = vadd.f32 0.0, %v6781
      %6783 = vmatprep.mubr.bf16.mxu0 %v6659
      %6784 = vmatmul.mubr.bf16.gmra.mrb[0].mxu0 %v6462
      %v6785 = vpop.f32.mrb[0].mxu0
      %v6786 = vadd.f32 0.0, %v6785
      %v6787 = vpop.f32.mrb[0].mxu0
      %v6788 = vadd.f32 0.0, %v6787
      %v6789 = vpop.f32.mrb[0].mxu0
      %v6790 = vadd.f32 0.0, %v6789
      %v6791 = vpop.f32.mrb[0].mxu0
      %v6792 = vadd.f32 0.0, %v6791
      %6793 = vmatprep.mubr.bf16.mxu0 %v6662
      %6794 = vmatmul.mubr.bf16.gmra.mrb[0].mxu0 %v6464
      %v6795 = vpop.f32.mrb[0].mxu0
      %v6796 = vadd.f32 0.0, %v6795
      %v6797 = vpop.f32.mrb[0].mxu0
      %v6798 = vadd.f32 0.0, %v6797
      %v6799 = vpop.f32.mrb[0].mxu0
      %v6800 = vadd.f32 0.0, %v6799
      %v6801 = vpop.f32.mrb[0].mxu0
      %v6802 = vadd.f32 0.0, %v6801
      %6803 = vmatprep.mubr.bf16.mxu0 %v6665
      %6804 = vmatmul.mubr.bf16.gmra.mrb[0].mxu0 %v6466
      %v6805 = vpop.f32.mrb[0].mxu0
      %v6806 = vadd.f32 0.0, %v6805
      %v6807 = vpop.f32.mrb[0].mxu0
      %v6808 = vadd.f32 0.0, %v6807
      %v6809 = vpop.f32.mrb[0].mxu0
      %v6810 = vadd.f32 0.0, %v6809
      %v6811 = vpop.f32.mrb[0].mxu0
      %v6812 = vadd.f32 0.0, %v6811
      %6813 = vmatprep.mubr.bf16.mxu0 %v6668
      %6814 = vmatmul.mubr.bf16.gmra.mrb[0].mxu0 %v6468
      %v6815 = vpop.f32.mrb[0].mxu0
      %v6816 = vadd.f32 0.0, %v6815
      %v6817 = vpop.f32.mrb[0].mxu0
      %v6818 = vadd.f32 0.0, %v6817
      %v6819 = vpop.f32.mrb[0].mxu0
      %v6820 = vadd.f32 0.0, %v6819
      %v6821 = vpop.f32.mrb[0].mxu0
      %v6822 = vadd.f32 0.0, %v6821
      %6823 = vmatprep.mubr.bf16.mxu0 %v6671
      %6824 = vmatmul.mubr.bf16.gmra.mrb[0].mxu0 %v6470
      %v6825 = vpop.f32.mrb[0].mxu0
      %v6826 = vadd.f32 0.0, %v6825
      %v6827 = vpop.f32.mrb[0].mxu0
      %v6828 = vadd.f32 0.0, %v6827
      %v6829 = vpop.f32.mrb[0].mxu0
      %v6830 = vadd.f32 0.0, %v6829
      %v6831 = vpop.f32.mrb[0].mxu0
      %v6832 = vadd.f32 0.0, %v6831
      %6833 = vmatprep.mubr.bf16.mxu0 %v6674
      %6834 = vmatmul.mubr.bf16.gmra.mrb[0].mxu0 %v6472
      %v6835 = vpop.f32.mrb[0].mxu0
      %v6836 = vadd.f32 0.0, %v6835
      %v6837 = vpop.f32.mrb[0].mxu0
      %v6838 = vadd.f32 0.0, %v6837
      %v6839 = vpop.f32.mrb[0].mxu0
      %v6840 = vadd.f32 0.0, %v6839
      %v6841 = vpop.f32.mrb[0].mxu0
      %v6842 = vadd.f32 0.0, %v6841
      %6843 = vmatprep.mubr.bf16.mxu0 %v6677
      %6844 = vmatmul.mubr.bf16.gmra.mrb[0].mxu0 %v6474
      %v6845 = vpop.f32.mrb[0].mxu0
      %v6846 = vadd.f32 0.0, %v6845
      %v6847 = vpop.f32.mrb[0].mxu0
      %v6848 = vadd.f32 0.0, %v6847
      %v6849 = vpop.f32.mrb[0].mxu0
      %v6850 = vadd.f32 0.0, %v6849
      %v6851 = vpop.f32.mrb[0].mxu0
      %v6852 = vadd.f32 0.0, %v6851
      %6853 = vmatprep.mubr.bf16.mxu0 %v6680
      %6854 = vmatmul.mubr.bf16.gmra.mrb[0].mxu0 %v6476
      %v6855 = vpop.f32.mrb[0].mxu0
      %v6856 = vadd.f32 0.0, %v6855
      %v6857 = vpop.f32.mrb[0].mxu0
      %v6858 = vadd.f32 0.0, %v6857
      %v6859 = vpop.f32.mrb[0].mxu0
      %v6860 = vadd.f32 0.0, %v6859
      %v6861 = vpop.f32.mrb[0].mxu0
      %v6862 = vadd.f32 0.0, %v6861
      %6863 = vmatprep.mubr.bf16.mxu0 %v6683
      %6864 = vmatmul.mubr.bf16.gmra.mrb[0].mxu0 %v6478
      %v6865 = vpop.f32.mrb[0].mxu0
      %v6866 = vadd.f32 0.0, %v6865
      %v6867 = vpop.f32.mrb[0].mxu0
      %v6868 = vadd.f32 0.0, %v6867
      %v6869 = vpop.f32.mrb[0].mxu0
      %v6870 = vadd.f32 0.0, %v6869
      %v6871 = vpop.f32.mrb[0].mxu0
      %v6872 = vadd.f32 0.0, %v6871
      %6873 = vmatprep.mubr.bf16.mxu0 %v6686
      %6874 = vmatmul.mubr.bf16.gmra.mrb[0].mxu0 %v6480
      %v6875 = vpop.f32.mrb[0].mxu0
      %v6876 = vadd.f32 0.0, %v6875
      %v6877 = vpop.f32.mrb[0].mxu0
      %v6878 = vadd.f32 0.0, %v6877
      %v6879 = vpop.f32.mrb[0].mxu0
      %v6880 = vadd.f32 0.0, %v6879
      %v6881 = vpop.f32.mrb[0].mxu0
      %v6882 = vadd.f32 0.0, %v6881
      %6883 = vmatprep.mubr.bf16.mxu0 %v6689
      %6884 = vmatmul.mubr.bf16.gmra.mrb[0].mxu0 %v6482
      %v6885 = vpop.f32.mrb[0].mxu0
      %v6886 = vadd.f32 0.0, %v6885
      %v6887 = vpop.f32.mrb[0].mxu0
      %v6888 = vadd.f32 0.0, %v6887
      %v6889 = vpop.f32.mrb[0].mxu0
      %v6890 = vadd.f32 0.0, %v6889
      %v6891 = vpop.f32.mrb[0].mxu0
      %v6892 = vadd.f32 0.0, %v6891
      %6893 = vmatprep.mubr.bf16.mxu0 %v6692
      %6894 = vmatmul.mubr.bf16.gmra.mrb[0].mxu0 %v6484
      %v6895 = vpop.f32.mrb[0].mxu0
      %v6896 = vadd.f32 0.0, %v6895
      %v6897 = vpop.f32.mrb[0].mxu0
      %v6898 = vadd.f32 0.0, %v6897
      %v6899 = vpop.f32.mrb[0].mxu0
      %v6900 = vadd.f32 0.0, %v6899
      %v6901 = vpop.f32.mrb[0].mxu0
      %v6902 = vadd.f32 0.0, %v6901
      %6903 = vmatprep.mubr.bf16.mxu0 %v6695
      %6904 = vmatmul.mubr.bf16.gmra.mrb[0].mxu0 %v6486
      %v6905 = vpop.f32.mrb[0].mxu0
      %v6906 = vadd.f32 0.0, %v6905
      %v6907 = vpop.f32.mrb[0].mxu0
      %v6908 = vadd.f32 0.0, %v6907
      %v6909 = vpop.f32.mrb[0].mxu0
      %v6910 = vadd.f32 0.0, %v6909
      %v6911 = vpop.f32.mrb[0].mxu0
      %v6912 = vadd.f32 0.0, %v6911
      %6913 = vmatprep.mubr.bf16.mxu0 %v6698
      %6914 = vmatmul.mubr.bf16.gmra.mrb[0].mxu0 %v6488
      %v6915 = vpop.f32.mrb[0].mxu0
      %v6916 = vadd.f32 0.0, %v6915
      %v6917 = vpop.f32.mrb[0].mxu0
      %v6918 = vadd.f32 0.0, %v6917
      %v6919 = vpop.f32.mrb[0].mxu0
      %v6920 = vadd.f32 0.0, %v6919
      %v6921 = vpop.f32.mrb[0].mxu0
      %v6922 = vadd.f32 0.0, %v6921
      %6923 = vmatprep.mubr.bf16.mxu0 %v6701
      %6924 = vmatmul.mubr.bf16.gmra.mrb[0].mxu0 %v6490
      %v6925 = vpop.f32.mrb[0].mxu0
      %v6926 = vadd.f32 0.0, %v6925
      %v6927 = vpop.f32.mrb[0].mxu0
      %v6928 = vadd.f32 0.0, %v6927
      %v6929 = vpop.f32.mrb[0].mxu0
      %v6930 = vadd.f32 0.0, %v6929
      %v6931 = vpop.f32.mrb[0].mxu0
      %v6932 = vadd.f32 0.0, %v6931
      %6933 = vmatprep.mubr.bf16.mxu0 %v6704
      %6934 = vmatmul.mubr.bf16.gmra.mrb[0].mxu0 %v6492
      %v6935 = vpop.f32.mrb[0].mxu0
      %v6936 = vadd.f32 0.0, %v6935
      %v6937 = vpop.f32.mrb[0].mxu0
      %v6938 = vadd.f32 0.0, %v6937
      %v6939 = vpop.f32.mrb[0].mxu0
      %v6940 = vadd.f32 0.0, %v6939
      %v6941 = vpop.f32.mrb[0].mxu0
      %v6942 = vadd.f32 0.0, %v6941
      %6943 = vmatprep.mubr.bf16.mxu0 %v6707
      %6944 = vmatmul.mubr.bf16.gmra.mrb[0].mxu0 %v6494
      %v6945 = vpop.f32.mrb[0].mxu0
      %v6946 = vadd.f32 0.0, %v6945
      %v6947 = vpop.f32.mrb[0].mxu0
      %v6948 = vadd.f32 0.0, %v6947
      %v6949 = vpop.f32.mrb[0].mxu0
      %v6950 = vadd.f32 0.0, %v6949
      %v6951 = vpop.f32.mrb[0].mxu0
      %v6952 = vadd.f32 0.0, %v6951
      %6953 = vmatprep.mubr.bf16.mxu0 %v6710
      %6954 = vmatmul.mubr.bf16.gmra.mrb[0].mxu0 %v6496
      %v6955 = vpop.f32.mrb[0].mxu0
      %v6956 = vadd.f32 0.0, %v6955
      %v6957 = vpop.f32.mrb[0].mxu0
      %v6958 = vadd.f32 0.0, %v6957
      %v6959 = vpop.f32.mrb[0].mxu0
      %v6960 = vadd.f32 0.0, %v6959
      %v6961 = vpop.f32.mrb[0].mxu0
      %v6962 = vadd.f32 0.0, %v6961
      %6963 = vmatprep.mubr.bf16.mxu0 %v6713
      %6964 = vmatmul.mubr.bf16.gmra.mrb[0].mxu0 %v6498
      %v6965 = vpop.f32.mrb[0].mxu0
      %v6966 = vadd.f32 0.0, %v6965
      %v6967 = vpop.f32.mrb[0].mxu0
      %v6968 = vadd.f32 0.0, %v6967
      %v6969 = vpop.f32.mrb[0].mxu0
      %v6970 = vadd.f32 0.0, %v6969
      %v6971 = vpop.f32.mrb[0].mxu0
      %v6972 = vadd.f32 0.0, %v6971
      %6973 = vmatprep.mubr.bf16.mxu0 %v6716
      %6974 = vmatmul.mubr.bf16.gmra.mrb[0].mxu0 %v6500
      %v6975 = vpop.f32.mrb[0].mxu0
      %v6976 = vadd.f32 0.0, %v6975
      %v6977 = vpop.f32.mrb[0].mxu0
      %v6978 = vadd.f32 0.0, %v6977
      %v6979 = vpop.f32.mrb[0].mxu0
      %v6980 = vadd.f32 0.0, %v6979
      %v6981 = vpop.f32.mrb[0].mxu0
      %v6982 = vadd.f32 0.0, %v6981
      %6983 = vmatprep.mubr.bf16.mxu0 %v6719
      %6984 = vmatmul.mubr.bf16.gmra.mrb[0].mxu0 %v6502
      %v6985 = vpop.f32.mrb[0].mxu0
      %v6986 = vadd.f32 0.0, %v6985
      %v6987 = vpop.f32.mrb[0].mxu0
      %v6988 = vadd.f32 0.0, %v6987
      %v6989 = vpop.f32.mrb[0].mxu0
      %v6990 = vadd.f32 0.0, %v6989
      %v6991 = vpop.f32.mrb[0].mxu0
      %v6992 = vadd.f32 0.0, %v6991
      %6993 = vdwg.mxu0
      %vm7042 = vcmask 1046528
      %v7043 = vrot.slane %v6756, 1
      %v7044 = vrot.slane %v6760, 1
      %v7045 = vsel %vm7042, %v7043, %v7044
      %v7046 = vrot.slane %v6766, 1
      %v7047 = vsel %vm7042, %v7044, %v7046
      %v7048 = vrot.slane %v6770, 1
      %v7049 = vrot.slane %v6776, 1
      %v7050 = vsel %vm7042, %v7048, %v7049
      %v7051 = vrot.slane %v6780, 1
      %v7052 = vsel %vm7042, %v7049, %v7051
      %v7053 = vrot.slane %v6786, 1
      %v7054 = vrot.slane %v6790, 1
      %v7055 = vsel %vm7042, %v7053, %v7054
      %v7056 = vrot.slane %v6796, 1
      %v7057 = vsel %vm7042, %v7054, %v7056
      %v7058 = vrot.slane %v6800, 1
      %v7059 = vrot.slane %v6806, 1
      %v7060 = vsel %vm7042, %v7058, %v7059
      %v7061 = vrot.slane %v6810, 1
      %v7062 = vsel %vm7042, %v7059, %v7061
      %v7063 = vrot.slane %v6816, 1
      %v7064 = vrot.slane %v6820, 1
      %v7065 = vsel %vm7042, %v7063, %v7064
      %v7066 = vrot.slane %v6826, 1
      %v7067 = vsel %vm7042, %v7064, %v7066
      %v7068 = vrot.slane %v6830, 1
      %v7069 = vrot.slane %v6836, 1
      %v7070 = vsel %vm7042, %v7068, %v7069
      %v7071 = vrot.slane %v6840, 1
      %v7072 = vsel %vm7042, %v7069, %v7071
      %v7073 = vrot.slane %v6846, 1
      %v7074 = vrot.slane %v6850, 1
      %v7075 = vsel %vm7042, %v7073, %v7074
      %v7076 = vrot.slane %v6856, 1
      %v7077 = vsel %vm7042, %v7074, %v7076
      %v7078 = vrot.slane %v6860, 1
      %v7079 = vrot.slane %v6866, 1
      %v7080 = vsel %vm7042, %v7078, %v7079
      %v7081 = vrot.slane %v6870, 1
      %v7082 = vsel %vm7042, %v7079, %v7081
      %v7083 = vrot.slane %v6876, 1
      %v7084 = vrot.slane %v6880, 1
      %v7085 = vsel %vm7042, %v7083, %v7084
      %v7086 = vrot.slane %v6886, 1
      %v7087 = vsel %vm7042, %v7084, %v7086
      %v7088 = vrot.slane %v6890, 1
      %v7089 = vrot.slane %v6896, 1
      %v7090 = vsel %vm7042, %v7088, %v7089
      %v7091 = vrot.slane %v6900, 1
      %v7092 = vsel %vm7042, %v7089, %v7091
      %v7093 = vrot.slane %v6906, 1
      %v7094 = vrot.slane %v6910, 1
      %v7095 = vsel %vm7042, %v7093, %v7094
      %v7096 = vrot.slane %v6916, 1
      %v7097 = vsel %vm7042, %v7094, %v7096
      %v7098 = vrot.slane %v6920, 1
      %v7099 = vrot.slane %v6926, 1
      %v7100 = vsel %vm7042, %v7098, %v7099
      %v7101 = vrot.slane %v6930, 1
      %v7102 = vsel %vm7042, %v7099, %v7101
      %v7103 = vrot.slane %v6936, 1
      %v7104 = vrot.slane %v6940, 1
      %v7105 = vsel %vm7042, %v7103, %v7104
      %v7106 = vrot.slane %v6946, 1
      %v7107 = vsel %vm7042, %v7104, %v7106
      %v7108 = vrot.slane %v6950, 1
      %v7109 = vrot.slane %v6956, 1
      %v7110 = vsel %vm7042, %v7108, %v7109
      %v7111 = vrot.slane %v6960, 1
      %v7112 = vsel %vm7042, %v7109, %v7111
      %v7113 = vrot.slane %v6966, 1
      %v7114 = vrot.slane %v6970, 1
      %v7115 = vsel %vm7042, %v7113, %v7114
      %v7116 = vrot.slane %v6976, 1
      %v7117 = vsel %vm7042, %v7114, %v7116
      %v7118 = vrot.slane %v6980, 1
      %v7119 = vrot.slane %v6986, 1
      %v7120 = vsel %vm7042, %v7118, %v7119
      %v7121 = vrot.slane %v6990, 1
      %v7122 = vsel %vm7042, %v7119, %v7121
      %7123 = vrot.lane.b32.xlu0 %v7045, 64
      %v7124 = vpop.permute.xlu0 %7123
      %7125 = vrot.lane.b32.xlu0 %v7047, 64
      %v7126 = vpop.permute.xlu0 %7125
      %7127 = vrot.lane.b32.xlu0 %v7050, 64
      %v7128 = vpop.permute.xlu0 %7127
      %7129 = vrot.lane.b32.xlu0 %v7052, 64
      %v7130 = vpop.permute.xlu0 %7129
      %7131 = vrot.lane.b32.xlu0 %v7055, 64
      %v7132 = vpop.permute.xlu0 %7131
      %7133 = vrot.lane.b32.xlu0 %v7057, 64
      %v7134 = vpop.permute.xlu0 %7133
      %7135 = vrot.lane.b32.xlu0 %v7060, 64
      %v7136 = vpop.permute.xlu0 %7135
      %7137 = vrot.lane.b32.xlu0 %v7062, 64
      %v7138 = vpop.permute.xlu0 %7137
      %7139 = vrot.lane.b32.xlu0 %v7065, 64
      %v7140 = vpop.permute.xlu0 %7139
      %7141 = vrot.lane.b32.xlu0 %v7067, 64
      %v7142 = vpop.permute.xlu0 %7141
      %7143 = vrot.lane.b32.xlu0 %v7070, 64
      %v7144 = vpop.permute.xlu0 %7143
      %7145 = vrot.lane.b32.xlu0 %v7072, 64
      %v7146 = vpop.permute.xlu0 %7145
      %7147 = vrot.lane.b32.xlu0 %v7075, 64
      %v7148 = vpop.permute.xlu0 %7147
      %7149 = vrot.lane.b32.xlu0 %v7077, 64
      %v7150 = vpop.permute.xlu0 %7149
      %7151 = vrot.lane.b32.xlu0 %v7080, 64
      %v7152 = vpop.permute.xlu0 %7151
      %7153 = vrot.lane.b32.xlu0 %v7082, 64
      %v7154 = vpop.permute.xlu0 %7153
      %7155 = vrot.lane.b32.xlu0 %v7085, 64
      %v7156 = vpop.permute.xlu0 %7155
      %7157 = vrot.lane.b32.xlu0 %v7087, 64
      %v7158 = vpop.permute.xlu0 %7157
      %7159 = vrot.lane.b32.xlu0 %v7090, 64
      %v7160 = vpop.permute.xlu0 %7159
      %7161 = vrot.lane.b32.xlu0 %v7092, 64
      %v7162 = vpop.permute.xlu0 %7161
      %7163 = vrot.lane.b32.xlu0 %v7095, 64
      %v7164 = vpop.permute.xlu0 %7163
      %7165 = vrot.lane.b32.xlu0 %v7097, 64
      %v7166 = vpop.permute.xlu0 %7165
      %7167 = vrot.lane.b32.xlu0 %v7100, 64
      %v7168 = vpop.permute.xlu0 %7167
      %7169 = vrot.lane.b32.xlu0 %v7102, 64
      %v7170 = vpop.permute.xlu0 %7169
      %7171 = vrot.lane.b32.xlu0 %v7105, 64
      %v7172 = vpop.permute.xlu0 %7171
      %7173 = vrot.lane.b32.xlu0 %v7107, 64
      %v7174 = vpop.permute.xlu0 %7173
      %7175 = vrot.lane.b32.xlu0 %v7110, 64
      %v7176 = vpop.permute.xlu0 %7175
      %7177 = vrot.lane.b32.xlu0 %v7112, 64
      %v7178 = vpop.permute.xlu0 %7177
      %7179 = vrot.lane.b32.xlu0 %v7115, 64
      %v7180 = vpop.permute.xlu0 %7179
      %7181 = vrot.lane.b32.xlu0 %v7117, 64
      %v7182 = vpop.permute.xlu0 %7181
      %7183 = vrot.lane.b32.xlu0 %v7120, 64
      %v7184 = vpop.permute.xlu0 %7183
      %7185 = vrot.lane.b32.xlu0 %v7122, 64
      %v7186 = vpop.permute.xlu0 %7185
      %v7219 = vadd.f32 %v6756, %v7124
      %v7220 = vadd.f32 %v6760, %v7126
      %v7221 = vadd.f32 %v6770, %v7128
      %v7222 = vadd.f32 %v6776, %v7130
      %v7223 = vadd.f32 %v6786, %v7132
      %v7224 = vadd.f32 %v6790, %v7134
      %v7225 = vadd.f32 %v6800, %v7136
      %v7226 = vadd.f32 %v6806, %v7138
      %v7227 = vadd.f32 %v6816, %v7140
      %v7228 = vadd.f32 %v6820, %v7142
      %v7229 = vadd.f32 %v6830, %v7144
      %v7230 = vadd.f32 %v6836, %v7146
      %v7231 = vadd.f32 %v6846, %v7148
      %v7232 = vadd.f32 %v6850, %v7150
      %v7233 = vadd.f32 %v6860, %v7152
      %v7234 = vadd.f32 %v6866, %v7154
      %v7235 = vadd.f32 %v6876, %v7156
      %v7236 = vadd.f32 %v6880, %v7158
      %v7237 = vadd.f32 %v6890, %v7160
      %v7238 = vadd.f32 %v6896, %v7162
      %v7239 = vadd.f32 %v6906, %v7164
      %v7240 = vadd.f32 %v6910, %v7166
      %v7241 = vadd.f32 %v6920, %v7168
      %v7242 = vadd.f32 %v6926, %v7170
      %v7243 = vadd.f32 %v6936, %v7172
      %v7244 = vadd.f32 %v6940, %v7174
      %v7245 = vadd.f32 %v6950, %v7176
      %v7246 = vadd.f32 %v6956, %v7178
      %v7247 = vadd.f32 %v6966, %v7180
      %v7248 = vadd.f32 %v6970, %v7182
      %v7249 = vadd.f32 %v6980, %v7184
      %v7250 = vadd.f32 %v6986, %v7186
      %vm7299 = vcmask 1045504
      %v7300 = vrot.slane %v6758, 2
      %v7301 = vrot.slane %v6762, 2
      %v7302 = vsel %vm7299, %v7300, %v7301
      %v7303 = vrot.slane %v6768, 2
      %v7304 = vsel %vm7299, %v7301, %v7303
      %v7305 = vrot.slane %v6772, 2
      %v7306 = vrot.slane %v6778, 2
      %v7307 = vsel %vm7299, %v7305, %v7306
      %v7308 = vrot.slane %v6782, 2
      %v7309 = vsel %vm7299, %v7306, %v7308
      %v7310 = vrot.slane %v6788, 2
      %v7311 = vrot.slane %v6792, 2
      %v7312 = vsel %vm7299, %v7310, %v7311
      %v7313 = vrot.slane %v6798, 2
      %v7314 = vsel %vm7299, %v7311, %v7313
      %v7315 = vrot.slane %v6802, 2
      %v7316 = vrot.slane %v6808, 2
      %v7317 = vsel %vm7299, %v7315, %v7316
      %v7318 = vrot.slane %v6812, 2
      %v7319 = vsel %vm7299, %v7316, %v7318
      %v7320 = vrot.slane %v6818, 2
      %v7321 = vrot.slane %v6822, 2
      %v7322 = vsel %vm7299, %v7320, %v7321
      %v7323 = vrot.slane %v6828, 2
      %v7324 = vsel %vm7299, %v7321, %v7323
      %v7325 = vrot.slane %v6832, 2
      %v7326 = vrot.slane %v6838, 2
      %v7327 = vsel %vm7299, %v7325, %v7326
      %v7328 = vrot.slane %v6842, 2
      %v7329 = vsel %vm7299, %v7326, %v7328
      %v7330 = vrot.slane %v6848, 2
      %v7331 = vrot.slane %v6852, 2
      %v7332 = vsel %vm7299, %v7330, %v7331
      %v7333 = vrot.slane %v6858, 2
      %v7334 = vsel %vm7299, %v7331, %v7333
      %v7335 = vrot.slane %v6862, 2
      %v7336 = vrot.slane %v6868, 2
      %v7337 = vsel %vm7299, %v7335, %v7336
      %v7338 = vrot.slane %v6872, 2
      %v7339 = vsel %vm7299, %v7336, %v7338
      %v7340 = vrot.slane %v6878, 2
      %v7341 = vrot.slane %v6882, 2
      %v7342 = vsel %vm7299, %v7340, %v7341
      %v7343 = vrot.slane %v6888, 2
      %v7344 = vsel %vm7299, %v7341, %v7343
      %v7345 = vrot.slane %v6892, 2
      %v7346 = vrot.slane %v6898, 2
      %v7347 = vsel %vm7299, %v7345, %v7346
      %v7348 = vrot.slane %v6902, 2
      %v7349 = vsel %vm7299, %v7346, %v7348
      %v7350 = vrot.slane %v6908, 2
      %v7351 = vrot.slane %v6912, 2
      %v7352 = vsel %vm7299, %v7350, %v7351
      %v7353 = vrot.slane %v6918, 2
      %v7354 = vsel %vm7299, %v7351, %v7353
      %v7355 = vrot.slane %v6922, 2
      %v7356 = vrot.slane %v6928, 2
      %v7357 = vsel %vm7299, %v7355, %v7356
      %v7358 = vrot.slane %v6932, 2
      %v7359 = vsel %vm7299, %v7356, %v7358
      %v7360 = vrot.slane %v6938, 2
      %v7361 = vrot.slane %v6942, 2
      %v7362 = vsel %vm7299, %v7360, %v7361
      %v7363 = vrot.slane %v6948, 2
      %v7364 = vsel %vm7299, %v7361, %v7363
      %v7365 = vrot.slane %v6952, 2
      %v7366 = vrot.slane %v6958, 2
      %v7367 = vsel %vm7299, %v7365, %v7366
      %v7368 = vrot.slane %v6962, 2
      %v7369 = vsel %vm7299, %v7366, %v7368
      %v7370 = vrot.slane %v6968, 2
      %v7371 = vrot.slane %v6972, 2
      %v7372 = vsel %vm7299, %v7370, %v7371
      %v7373 = vrot.slane %v6978, 2
      %v7374 = vsel %vm7299, %v7371, %v7373
      %v7375 = vrot.slane %v6982, 2
      %v7376 = vrot.slane %v6988, 2
      %v7377 = vsel %vm7299, %v7375, %v7376
      %v7378 = vrot.slane %v6992, 2
      %v7379 = vsel %vm7299, %v7376, %v7378
      %v7412 = vadd.f32 %v7219, %v7302
      %v7413 = vadd.f32 %v7220, %v7304
      %v7414 = vadd.f32 %v7221, %v7307
      %v7415 = vadd.f32 %v7222, %v7309
      %v7416 = vadd.f32 %v7223, %v7312
      %v7417 = vadd.f32 %v7224, %v7314
      %v7418 = vadd.f32 %v7225, %v7317
      %v7419 = vadd.f32 %v7226, %v7319
      %v7420 = vadd.f32 %v7227, %v7322
      %v7421 = vadd.f32 %v7228, %v7324
      %v7422 = vadd.f32 %v7229, %v7327
      %v7423 = vadd.f32 %v7230, %v7329
      %v7424 = vadd.f32 %v7231, %v7332
      %v7425 = vadd.f32 %v7232, %v7334
      %v7426 = vadd.f32 %v7233, %v7337
      %v7427 = vadd.f32 %v7234, %v7339
      %v7428 = vadd.f32 %v7235, %v7342
      %v7429 = vadd.f32 %v7236, %v7344
      %v7430 = vadd.f32 %v7237, %v7347
      %v7431 = vadd.f32 %v7238, %v7349
      %v7432 = vadd.f32 %v7239, %v7352
      %v7433 = vadd.f32 %v7240, %v7354
      %v7434 = vadd.f32 %v7241, %v7357
      %v7435 = vadd.f32 %v7242, %v7359
      %v7436 = vadd.f32 %v7243, %v7362
      %v7437 = vadd.f32 %v7244, %v7364
      %v7438 = vadd.f32 %v7245, %v7367
      %v7439 = vadd.f32 %v7246, %v7369
      %v7440 = vadd.f32 %v7247, %v7372
      %v7441 = vadd.f32 %v7248, %v7374
      %v7442 = vadd.f32 %v7249, %v7377
      %v7443 = vadd.f32 %v7250, %v7379
      %v7444 = vld [vmem:[%s4] sm:$0x1]
      %v7446 = vlaneseq
      %v7447 = vshrl.u32 %v7446, 7
      %v7448 = vsub.s32 0, %v7447
      %v7449 = vrot.slane %v7444, %v7448
      %v7451 = vadd.f32 %v7412, %v7449
      %v7452 = vadd.f32 %v7413, %v7449
      %v7453 = vadd.f32 %v7414, %v7449
      %v7454 = vadd.f32 %v7415, %v7449
      %v7455 = vadd.f32 %v7416, %v7449
      %v7456 = vadd.f32 %v7417, %v7449
      %v7457 = vadd.f32 %v7418, %v7449
      %v7458 = vadd.f32 %v7419, %v7449
      %v7459 = vadd.f32 %v7420, %v7449
      %v7460 = vadd.f32 %v7421, %v7449
      %v7461 = vadd.f32 %v7422, %v7449
      %v7462 = vadd.f32 %v7423, %v7449
      %v7463 = vadd.f32 %v7424, %v7449
      %v7464 = vadd.f32 %v7425, %v7449
      %v7465 = vadd.f32 %v7426, %v7449
      %v7466 = vadd.f32 %v7427, %v7449
      %v7467 = vadd.f32 %v7428, %v7449
      %v7468 = vadd.f32 %v7429, %v7449
      %v7469 = vadd.f32 %v7430, %v7449
      %v7470 = vadd.f32 %v7431, %v7449
      %v7471 = vadd.f32 %v7432, %v7449
      %v7472 = vadd.f32 %v7433, %v7449
      %v7473 = vadd.f32 %v7434, %v7449
      %v7474 = vadd.f32 %v7435, %v7449
      %v7475 = vadd.f32 %v7436, %v7449
      %v7476 = vadd.f32 %v7437, %v7449
      %v7477 = vadd.f32 %v7438, %v7449
      %v7478 = vadd.f32 %v7439, %v7449
      %v7479 = vadd.f32 %v7440, %v7449
      %v7480 = vadd.f32 %v7441, %v7449
      %v7481 = vadd.f32 %v7442, %v7449
      %v7482 = vadd.f32 %v7443, %v7449
      %v7483 = vmax.f32 %v7451, 0.0
      %v7484 = vmax.f32 %v7452, 0.0
      %v7485 = vmax.f32 %v7453, 0.0
      %v7486 = vmax.f32 %v7454, 0.0
      %v7487 = vmax.f32 %v7455, 0.0
      %v7488 = vmax.f32 %v7456, 0.0
      %v7489 = vmax.f32 %v7457, 0.0
      %v7490 = vmax.f32 %v7458, 0.0
      %v7491 = vmax.f32 %v7459, 0.0
      %v7492 = vmax.f32 %v7460, 0.0
      %v7493 = vmax.f32 %v7461, 0.0
      %v7494 = vmax.f32 %v7462, 0.0
      %v7495 = vmax.f32 %v7463, 0.0
      %v7496 = vmax.f32 %v7464, 0.0
      %v7497 = vmax.f32 %v7465, 0.0
      %v7498 = vmax.f32 %v7466, 0.0
      %v7499 = vmax.f32 %v7467, 0.0
      %v7500 = vmax.f32 %v7468, 0.0
      %v7501 = vmax.f32 %v7469, 0.0
      %v7502 = vmax.f32 %v7470, 0.0
      %v7503 = vmax.f32 %v7471, 0.0
      %v7504 = vmax.f32 %v7472, 0.0
      %v7505 = vmax.f32 %v7473, 0.0
      %v7506 = vmax.f32 %v7474, 0.0
      %v7507 = vmax.f32 %v7475, 0.0
      %v7508 = vmax.f32 %v7476, 0.0
      %v7509 = vmax.f32 %v7477, 0.0
      %v7510 = vmax.f32 %v7478, 0.0
      %v7511 = vmax.f32 %v7479, 0.0
      %v7512 = vmax.f32 %v7480, 0.0
      %v7513 = vmax.f32 %v7481, 0.0
      %v7514 = vmax.f32 %v7482, 0.0
      %v7515 = vpack.c.bf16 %v7484, %v7483
      %v7516 = vpack.c.bf16 %v7486, %v7485
      %v7517 = vpack.c.bf16 %v7488, %v7487
      %v7518 = vpack.c.bf16 %v7490, %v7489
      %v7519 = vpack.c.bf16 %v7492, %v7491
      %v7520 = vpack.c.bf16 %v7494, %v7493
      %v7521 = vpack.c.bf16 %v7496, %v7495
      %v7522 = vpack.c.bf16 %v7498, %v7497
      %v7523 = vpack.c.bf16 %v7500, %v7499
      %v7524 = vpack.c.bf16 %v7502, %v7501
      %v7525 = vpack.c.bf16 %v7504, %v7503
      %v7526 = vpack.c.bf16 %v7506, %v7505
      %v7527 = vpack.c.bf16 %v7508, %v7507
      %v7528 = vpack.c.bf16 %v7510, %v7509
      %v7529 = vpack.c.bf16 %v7512, %v7511
      %v7530 = vpack.c.bf16 %v7514, %v7513
      %v7532 = vshrl.u32 %v7515, 16
      %v7534 = vrot.slane %v7532, 7
      %v7535 = vshll.u32 %v7515, 16
      %v7537 = vor.u32 %v7534, %v7535
      %v7539 = vshrl.u32 %v7516, 16
      %v7541 = vrot.slane %v7539, 7
      %v7542 = vshll.u32 %v7516, 16
      %v7544 = vor.u32 %v7541, %v7542
      %v7546 = vshrl.u32 %v7517, 16
      %v7548 = vrot.slane %v7546, 7
      %v7549 = vshll.u32 %v7517, 16
      %v7551 = vor.u32 %v7548, %v7549
      %v7553 = vshrl.u32 %v7518, 16
      %v7555 = vrot.slane %v7553, 7
      %v7556 = vshll.u32 %v7518, 16
      %v7558 = vor.u32 %v7555, %v7556
      %v7560 = vshrl.u32 %v7519, 16
      %v7562 = vrot.slane %v7560, 7
      %v7563 = vshll.u32 %v7519, 16
      %v7565 = vor.u32 %v7562, %v7563
      %v7567 = vshrl.u32 %v7520, 16
      %v7569 = vrot.slane %v7567, 7
      %v7570 = vshll.u32 %v7520, 16
      %v7572 = vor.u32 %v7569, %v7570
      %v7574 = vshrl.u32 %v7521, 16
      %v7576 = vrot.slane %v7574, 7
      %v7577 = vshll.u32 %v7521, 16
      %v7579 = vor.u32 %v7576, %v7577
      %v7581 = vshrl.u32 %v7522, 16
      %v7583 = vrot.slane %v7581, 7
      %v7584 = vshll.u32 %v7522, 16
      %v7586 = vor.u32 %v7583, %v7584
      %v7588 = vshrl.u32 %v7523, 16
      %v7590 = vrot.slane %v7588, 7
      %v7591 = vshll.u32 %v7523, 16
      %v7593 = vor.u32 %v7590, %v7591
      %v7595 = vshrl.u32 %v7524, 16
      %v7597 = vrot.slane %v7595, 7
      %v7598 = vshll.u32 %v7524, 16
      %v7600 = vor.u32 %v7597, %v7598
      %v7602 = vshrl.u32 %v7525, 16
      %v7604 = vrot.slane %v7602, 7
      %v7605 = vshll.u32 %v7525, 16
      %v7607 = vor.u32 %v7604, %v7605
      %v7609 = vshrl.u32 %v7526, 16
      %v7611 = vrot.slane %v7609, 7
      %v7612 = vshll.u32 %v7526, 16
      %v7614 = vor.u32 %v7611, %v7612
      %v7616 = vshrl.u32 %v7527, 16
      %v7618 = vrot.slane %v7616, 7
      %v7619 = vshll.u32 %v7527, 16
      %v7621 = vor.u32 %v7618, %v7619
      %v7623 = vshrl.u32 %v7528, 16
      %v7625 = vrot.slane %v7623, 7
      %v7626 = vshll.u32 %v7528, 16
      %v7628 = vor.u32 %v7625, %v7626
      %v7630 = vshrl.u32 %v7529, 16
      %v7632 = vrot.slane %v7630, 7
      %v7633 = vshll.u32 %v7529, 16
      %v7635 = vor.u32 %v7632, %v7633
      %v7637 = vshrl.u32 %v7530, 16
      %v7639 = vrot.slane %v7637, 7
      %v7640 = vshll.u32 %v7530, 16
      %v7642 = vor.u32 %v7639, %v7640
      %v7675 = vsel %vm5734, 0, %v7537
      %v7676 = vsel %vm5734, 0, %v7544
      %v7677 = vsel %vm5734, 0, %v7551
      %v7678 = vsel %vm5734, 0, %v7558
      %v7679 = vsel %vm5734, 0, %v7565
      %v7680 = vsel %vm5734, 0, %v7572
      %v7681 = vsel %vm5734, 0, %v7579
      %v7682 = vsel %vm5734, 0, %v7586
      %v7683 = vsel %vm5734, 0, %v7593
      %v7684 = vsel %vm5734, 0, %v7600
      %v7685 = vsel %vm5734, 0, %v7607
      %v7686 = vsel %vm5734, 0, %v7614
      %v7687 = vsel %vm5734, 0, %v7621
      %v7688 = vsel %vm5734, 0, %v7628
      %v7689 = vsel %vm5734, 0, %v7635
      %v7690 = vsel %vm5734, 0, %v7642
      %v7691 = vsel %vm5734, %v7534, 0
      %v7692 = vsel %vm5734, %v7541, 0
      %v7693 = vsel %vm5734, %v7548, 0
      %v7694 = vsel %vm5734, %v7555, 0
      %v7695 = vsel %vm5734, %v7562, 0
      %v7696 = vsel %vm5734, %v7569, 0
      %v7697 = vsel %vm5734, %v7576, 0
      %v7698 = vsel %vm5734, %v7583, 0
      %v7699 = vsel %vm5734, %v7590, 0
      %v7700 = vsel %vm5734, %v7597, 0
      %v7701 = vsel %vm5734, %v7604, 0
      %v7702 = vsel %vm5734, %v7611, 0
      %v7703 = vsel %vm5734, %v7618, 0
      %v7704 = vsel %vm5734, %v7625, 0
      %v7705 = vsel %vm5734, %v7632, 0
      %v7706 = vsel %vm5734, %v7639, 0
      %v7737 = vunpack.c.l.b16 %v7675
      %v7738 = vunpack.c.h.b16 %v7675
      %v7739 = vunpack.c.l.b16 %v7691
      %v7740 = vunpack.c.l.b16 %v7676
      %v7741 = vunpack.c.h.b16 %v7676
      %v7742 = vunpack.c.l.b16 %v7692
      %v7743 = vunpack.c.l.b16 %v7677
      %v7744 = vunpack.c.h.b16 %v7677
      %v7745 = vunpack.c.l.b16 %v7693
      %v7746 = vunpack.c.l.b16 %v7678
      %v7747 = vunpack.c.h.b16 %v7678
      %v7748 = vunpack.c.l.b16 %v7694
      %v7749 = vunpack.c.l.b16 %v7679
      %v7750 = vunpack.c.h.b16 %v7679
      %v7751 = vunpack.c.l.b16 %v7695
      %v7752 = vunpack.c.l.b16 %v7680
      %v7753 = vunpack.c.h.b16 %v7680
      %v7754 = vunpack.c.l.b16 %v7696
      %v7755 = vunpack.c.l.b16 %v7681
      %v7756 = vunpack.c.h.b16 %v7681
      %v7757 = vunpack.c.l.b16 %v7697
      %v7758 = vunpack.c.l.b16 %v7682
      %v7759 = vunpack.c.h.b16 %v7682
      %v7760 = vunpack.c.l.b16 %v7698
      %v7761 = vunpack.c.l.b16 %v7683
      %v7762 = vunpack.c.h.b16 %v7683
      %v7763 = vunpack.c.l.b16 %v7699
      %v7764 = vunpack.c.l.b16 %v7684
      %v7765 = vunpack.c.h.b16 %v7684
      %v7766 = vunpack.c.l.b16 %v7700
      %v7767 = vunpack.c.l.b16 %v7685
      %v7768 = vunpack.c.h.b16 %v7685
      %v7769 = vunpack.c.l.b16 %v7701
      %v7770 = vunpack.c.l.b16 %v7686
      %v7771 = vunpack.c.h.b16 %v7686
      %v7772 = vunpack.c.l.b16 %v7702
      %v7773 = vunpack.c.l.b16 %v7687
      %v7774 = vunpack.c.h.b16 %v7687
      %v7775 = vunpack.c.l.b16 %v7703
      %v7776 = vunpack.c.l.b16 %v7688
      %v7777 = vunpack.c.h.b16 %v7688
      %v7778 = vunpack.c.l.b16 %v7704
      %v7779 = vunpack.c.l.b16 %v7689
      %v7780 = vunpack.c.h.b16 %v7689
      %v7781 = vunpack.c.l.b16 %v7705
      %v7782 = vpack.c.b16 %v7737, %v7737
      %v7783 = vpack.c.b16 %v7738, %v7738
      %v7784 = vpack.c.b16 %v7739, %v7739
      %v7785 = vpack.c.b16 %v7740, %v7740
      %v7786 = vpack.c.b16 %v7741, %v7741
      %v7787 = vpack.c.b16 %v7742, %v7742
      %v7788 = vpack.c.b16 %v7743, %v7743
      %v7789 = vpack.c.b16 %v7744, %v7744
      %v7790 = vpack.c.b16 %v7745, %v7745
      %v7791 = vpack.c.b16 %v7746, %v7746
      %v7792 = vpack.c.b16 %v7747, %v7747
      %v7793 = vpack.c.b16 %v7748, %v7748
      %v7794 = vpack.c.b16 %v7749, %v7749
      %v7795 = vpack.c.b16 %v7750, %v7750
      %v7796 = vpack.c.b16 %v7751, %v7751
      %v7797 = vpack.c.b16 %v7752, %v7752
      %v7798 = vpack.c.b16 %v7753, %v7753
      %v7799 = vpack.c.b16 %v7754, %v7754
      %v7800 = vpack.c.b16 %v7755, %v7755
      %v7801 = vpack.c.b16 %v7756, %v7756
      %v7802 = vpack.c.b16 %v7757, %v7757
      %v7803 = vpack.c.b16 %v7758, %v7758
      %v7804 = vpack.c.b16 %v7759, %v7759
      %v7805 = vpack.c.b16 %v7760, %v7760
      %v7806 = vpack.c.b16 %v7761, %v7761
      %v7807 = vpack.c.b16 %v7762, %v7762
      %v7808 = vpack.c.b16 %v7763, %v7763
      %v7809 = vpack.c.b16 %v7764, %v7764
      %v7810 = vpack.c.b16 %v7765, %v7765
      %v7811 = vpack.c.b16 %v7766, %v7766
      %v7812 = vpack.c.b16 %v7767, %v7767
      %v7813 = vpack.c.b16 %v7768, %v7768
      %v7814 = vpack.c.b16 %v7769, %v7769
      %v7815 = vpack.c.b16 %v7770, %v7770
      %v7816 = vpack.c.b16 %v7771, %v7771
      %v7817 = vpack.c.b16 %v7772, %v7772
      %v7818 = vpack.c.b16 %v7773, %v7773
      %v7819 = vpack.c.b16 %v7774, %v7774
      %v7820 = vpack.c.b16 %v7775, %v7775
      %v7821 = vpack.c.b16 %v7776, %v7776
      %v7822 = vpack.c.b16 %v7777, %v7777
      %v7823 = vpack.c.b16 %v7778, %v7778
      %v7824 = vpack.c.b16 %v7779, %v7779
      %v7825 = vpack.c.b16 %v7780, %v7780
      %v7826 = vpack.c.b16 %v7781, %v7781
      %7872 = vst.msk [vmem:[#allocation3] sm:$0xf] %vm5939, %v5845
      %7873 = vst.msk [vmem:[#allocation3 + $0x8] sm:$0xf] %vm5939, %v5846
      %7874 = vst.msk [vmem:[#allocation3 + $0x10] sm:$0xf] %vm5939, %v5845
      %7875 = vst.msk [vmem:[#allocation3 + $0x18] sm:$0xf] %vm5939, %v7782
      %7876 = vst.msk [vmem:[#allocation3 + $0x20] sm:$0xf] %vm5939, %v7783
      %7877 = vst.msk [vmem:[#allocation3 + $0x28] sm:$0xf] %vm5939, %v7784
      %7878 = vst.msk [vmem:[#allocation3 + $0x30] sm:$0xf] %vm5939, %v7785
      %7879 = vst.msk [vmem:[#allocation3 + $0x38] sm:$0xf] %vm5939, %v7786
      %7880 = vst.msk [vmem:[#allocation3 + $0x40] sm:$0xf] %vm5939, %v7787
      %7881 = vst.msk [vmem:[#allocation3 + $0x48] sm:$0xf] %vm5939, %v7788
      %7882 = vst.msk [vmem:[#allocation3 + $0x50] sm:$0xf] %vm5939, %v7789
      %7883 = vst.msk [vmem:[#allocation3 + $0x58] sm:$0xf] %vm5939, %v7790
      %7884 = vst.msk [vmem:[#allocation3 + $0x60] sm:$0xf] %vm5939, %v7791
      %7885 = vst.msk [vmem:[#allocation3 + $0x68] sm:$0xf] %vm5939, %v7792
      %7886 = vst.msk [vmem:[#allocation3 + $0x70] sm:$0xf] %vm5939, %v7793
      %7887 = vst.msk [vmem:[#allocation3 + $0x78] sm:$0xf] %vm5939, %v7794
      %7888 = vst.msk [vmem:[#allocation3 + $0x80] sm:$0xf] %vm5939, %v7795
      %7889 = vst.msk [vmem:[#allocation3 + $0x88] sm:$0xf] %vm5939, %v7796
      %7890 = vst.msk [vmem:[#allocation3 + $0x90] sm:$0xf] %vm5939, %v7797
      %7891 = vst.msk [vmem:[#allocation3 + $0x98] sm:$0xf] %vm5939, %v7798
      %7892 = vst.msk [vmem:[#allocation3 + $0xa0] sm:$0xf] %vm5939, %v7799
      %7893 = vst.msk [vmem:[#allocation3 + $0xa8] sm:$0xf] %vm5939, %v7800
      %7894 = vst.msk [vmem:[#allocation3 + $0xb0] sm:$0xf] %vm5939, %v7801
      %7895 = vst.msk [vmem:[#allocation3 + $0xb8] sm:$0xf] %vm5939, %v7802
      %7896 = vst.msk [vmem:[#allocation3 + $0xc0] sm:$0xf] %vm5939, %v7803
      %7897 = vst.msk [vmem:[#allocation3 + $0xc8] sm:$0xf] %vm5939, %v7804
      %7898 = vst.msk [vmem:[#allocation3 + $0xd0] sm:$0xf] %vm5939, %v7805
      %7899 = vst.msk [vmem:[#allocation3 + $0xd8] sm:$0xf] %vm5939, %v7806
      %7900 = vst.msk [vmem:[#allocation3 + $0xe0] sm:$0xf] %vm5939, %v7807
      %7901 = vst.msk [vmem:[#allocation3 + $0xe8] sm:$0xf] %vm5939, %v7808
      %7902 = vst.msk [vmem:[#allocation3 + $0xf0] sm:$0xf] %vm5939, %v7809
      %7903 = vst.msk [vmem:[#allocation3 + $0xf8] sm:$0xf] %vm5939, %v7810
      %7904 = vst.msk [vmem:[#allocation3 + $0x100] sm:$0xf] %vm5939, %v7811
      %7905 = vst.msk [vmem:[#allocation3 + $0x108] sm:$0xf] %vm5939, %v7812
      %7906 = vst.msk [vmem:[#allocation3 + $0x110] sm:$0xf] %vm5939, %v7813
      %7907 = vst.msk [vmem:[#allocation3 + $0x118] sm:$0xf] %vm5939, %v7814
      %7908 = vst.msk [vmem:[#allocation3 + $0x120] sm:$0xf] %vm5939, %v7815
      %7909 = vst.msk [vmem:[#allocation3 + $0x128] sm:$0xf] %vm5939, %v7816
      %7910 = vst.msk [vmem:[#allocation3 + $0x130] sm:$0xf] %vm5939, %v7817
      %7911 = vst.msk [vmem:[#allocation3 + $0x138] sm:$0xf] %vm5939, %v7818
      %7912 = vst.msk [vmem:[#allocation3 + $0x140] sm:$0xf] %vm5939, %v7819
      %7913 = vst.msk [vmem:[#allocation3 + $0x148] sm:$0xf] %vm5939, %v7820
      %7914 = vst.msk [vmem:[#allocation3 + $0x150] sm:$0xf] %vm5939, %v7821
      %7915 = vst.msk [vmem:[#allocation3 + $0x158] sm:$0xf] %vm5939, %v7822
      %7916 = vst.msk [vmem:[#allocation3 + $0x160] sm:$0xf] %vm5939, %v7823
      %7917 = vst.msk [vmem:[#allocation3 + $0x168] sm:$0xf] %vm5939, %v7824
      %7918 = vst.msk [vmem:[#allocation3 + $0x170] sm:$0xf] %vm5939, %v7825
      %7919 = vst.msk [vmem:[#allocation3 + $0x178] sm:$0xf] %vm5939, %v7826
      %v7922 = vunpack.c.l.b16 %v7690
      %v7923 = vunpack.c.h.b16 %v7690
      %v7924 = vunpack.c.l.b16 %v7706
      %v7925 = vpack.c.b16 %v7922, %v7922
      %v7926 = vpack.c.b16 %v7923, %v7923
      %v7927 = vpack.c.b16 %v7924, %v7924
      %7928 = vrot.lane.b32.xlu0 %v7782, 64
      %v7929 = vpop.permute.xlu0 %7928
      %7930 = vrot.lane.b32.xlu0 %v7783, 64
      %v7931 = vpop.permute.xlu0 %7930
      %7932 = vrot.lane.b32.xlu0 %v7784, 64
      %v7933 = vpop.permute.xlu0 %7932
      %7934 = vrot.lane.b32.xlu0 %v7785, 64
      %v7935 = vpop.permute.xlu0 %7934
      %7936 = vrot.lane.b32.xlu0 %v7786, 64
      %v7937 = vpop.permute.xlu0 %7936
      %7938 = vrot.lane.b32.xlu0 %v7787, 64
      %v7939 = vpop.permute.xlu0 %7938
      %7940 = vrot.lane.b32.xlu0 %v7788, 64
      %v7941 = vpop.permute.xlu0 %7940
      %7942 = vrot.lane.b32.xlu0 %v7789, 64
      %v7943 = vpop.permute.xlu0 %7942
      %7944 = vrot.lane.b32.xlu0 %v7790, 64
      %v7945 = vpop.permute.xlu0 %7944
      %7946 = vrot.lane.b32.xlu0 %v7791, 64
      %v7947 = vpop.permute.xlu0 %7946
      %7948 = vrot.lane.b32.xlu0 %v7792, 64
      %v7949 = vpop.permute.xlu0 %7948
      %7950 = vrot.lane.b32.xlu0 %v7793, 64
      %v7951 = vpop.permute.xlu0 %7950
      %7952 = vrot.lane.b32.xlu0 %v7794, 64
      %v7953 = vpop.permute.xlu0 %7952
      %7954 = vrot.lane.b32.xlu0 %v7795, 64
      %v7955 = vpop.permute.xlu0 %7954
      %7956 = vrot.lane.b32.xlu0 %v7796, 64
      %v7957 = vpop.permute.xlu0 %7956
      %7958 = vrot.lane.b32.xlu0 %v7797, 64
      %v7959 = vpop.permute.xlu0 %7958
      %7960 = vrot.lane.b32.xlu0 %v7798, 64
      %v7961 = vpop.permute.xlu0 %7960
      %7962 = vrot.lane.b32.xlu0 %v7799, 64
      %v7963 = vpop.permute.xlu0 %7962
      %7964 = vrot.lane.b32.xlu0 %v7800, 64
      %v7965 = vpop.permute.xlu0 %7964
      %7966 = vrot.lane.b32.xlu0 %v7801, 64
      %v7967 = vpop.permute.xlu0 %7966
      %7968 = vrot.lane.b32.xlu0 %v7802, 64
      %v7969 = vpop.permute.xlu0 %7968
      %7970 = vrot.lane.b32.xlu0 %v7803, 64
      %v7971 = vpop.permute.xlu0 %7970
      %7972 = vrot.lane.b32.xlu0 %v7804, 64
      %v7973 = vpop.permute.xlu0 %7972
      %7974 = vrot.lane.b32.xlu0 %v7805, 64
      %v7975 = vpop.permute.xlu0 %7974
      %7976 = vrot.lane.b32.xlu0 %v7806, 64
      %v7977 = vpop.permute.xlu0 %7976
      %7978 = vrot.lane.b32.xlu0 %v7807, 64
      %v7979 = vpop.permute.xlu0 %7978
      %7980 = vrot.lane.b32.xlu0 %v7808, 64
      %v7981 = vpop.permute.xlu0 %7980
      %7982 = vrot.lane.b32.xlu0 %v7809, 64
      %v7983 = vpop.permute.xlu0 %7982
      %7984 = vrot.lane.b32.xlu0 %v7810, 64
      %v7985 = vpop.permute.xlu0 %7984
      %7986 = vrot.lane.b32.xlu0 %v7811, 64
      %v7987 = vpop.permute.xlu0 %7986
      %7988 = vrot.lane.b32.xlu0 %v7812, 64
      %v7989 = vpop.permute.xlu0 %7988
      %7990 = vrot.lane.b32.xlu0 %v7813, 64
      %v7991 = vpop.permute.xlu0 %7990
      %7992 = vrot.lane.b32.xlu0 %v7814, 64
      %v7993 = vpop.permute.xlu0 %7992
      %7994 = vrot.lane.b32.xlu0 %v7815, 64
      %v7995 = vpop.permute.xlu0 %7994
      %7996 = vrot.lane.b32.xlu0 %v7816, 64
      %v7997 = vpop.permute.xlu0 %7996
      %7998 = vrot.lane.b32.xlu0 %v7817, 64
      %v7999 = vpop.permute.xlu0 %7998
      %8000 = vrot.lane.b32.xlu0 %v7818, 64
      %v8001 = vpop.permute.xlu0 %8000
      %8002 = vrot.lane.b32.xlu0 %v7819, 64
      %v8003 = vpop.permute.xlu0 %8002
      %8004 = vrot.lane.b32.xlu0 %v7820, 64
      %v8005 = vpop.permute.xlu0 %8004
      %8006 = vrot.lane.b32.xlu0 %v7821, 64
      %v8007 = vpop.permute.xlu0 %8006
      %8008 = vrot.lane.b32.xlu0 %v7822, 64
      %v8009 = vpop.permute.xlu0 %8008
      %8010 = vrot.lane.b32.xlu0 %v7823, 64
      %v8011 = vpop.permute.xlu0 %8010
      %8012 = vrot.lane.b32.xlu0 %v7824, 64
      %v8013 = vpop.permute.xlu0 %8012
      %8014 = vrot.lane.b32.xlu0 %v7825, 64
      %v8015 = vpop.permute.xlu0 %8014
      %8016 = vrot.lane.b32.xlu0 %v7826, 64
      %v8017 = vpop.permute.xlu0 %8016
      %8018 = vrot.lane.b32.xlu0 %v7925, 64
      %v8019 = vpop.permute.xlu0 %8018
      %8020 = vrot.lane.b32.xlu0 %v7926, 64
      %v8021 = vpop.permute.xlu0 %8020
      %8022 = vrot.lane.b32.xlu0 %v7927, 64
      %v8023 = vpop.permute.xlu0 %8022
      %8072 = vst.msk [vmem:[#allocation3] sm:$0xf] %vm6140, %v7929
      %8073 = vst.msk [vmem:[#allocation3 + $0x8] sm:$0xf] %vm6140, %v7931
      %8074 = vst.msk [vmem:[#allocation3 + $0x10] sm:$0xf] %vm6140, %v7933
      %8075 = vst.msk [vmem:[#allocation3 + $0x18] sm:$0xf] %vm6140, %v7935
      %8076 = vst.msk [vmem:[#allocation3 + $0x20] sm:$0xf] %vm6140, %v7937
      %8077 = vst.msk [vmem:[#allocation3 + $0x28] sm:$0xf] %vm6140, %v7939
      %8078 = vst.msk [vmem:[#allocation3 + $0x30] sm:$0xf] %vm6140, %v7941
      %8079 = vst.msk [vmem:[#allocation3 + $0x38] sm:$0xf] %vm6140, %v7943
      %8080 = vst.msk [vmem:[#allocation3 + $0x40] sm:$0xf] %vm6140, %v7945
      %8081 = vst.msk [vmem:[#allocation3 + $0x48] sm:$0xf] %vm6140, %v7947
      %8082 = vst.msk [vmem:[#allocation3 + $0x50] sm:$0xf] %vm6140, %v7949
      %8083 = vst.msk [vmem:[#allocation3 + $0x58] sm:$0xf] %vm6140, %v7951
      %8084 = vst.msk [vmem:[#allocation3 + $0x60] sm:$0xf] %vm6140, %v7953
      %8085 = vst.msk [vmem:[#allocation3 + $0x68] sm:$0xf] %vm6140, %v7955
      %8086 = vst.msk [vmem:[#allocation3 + $0x70] sm:$0xf] %vm6140, %v7957
      %8087 = vst.msk [vmem:[#allocation3 + $0x78] sm:$0xf] %vm6140, %v7959
      %8088 = vst.msk [vmem:[#allocation3 + $0x80] sm:$0xf] %vm6140, %v7961
      %8089 = vst.msk [vmem:[#allocation3 + $0x88] sm:$0xf] %vm6140, %v7963
      %8090 = vst.msk [vmem:[#allocation3 + $0x90] sm:$0xf] %vm6140, %v7965
      %8091 = vst.msk [vmem:[#allocation3 + $0x98] sm:$0xf] %vm6140, %v7967
      %8092 = vst.msk [vmem:[#allocation3 + $0xa0] sm:$0xf] %vm6140, %v7969
      %8093 = vst.msk [vmem:[#allocation3 + $0xa8] sm:$0xf] %vm6140, %v7971
      %8094 = vst.msk [vmem:[#allocation3 + $0xb0] sm:$0xf] %vm6140, %v7973
      %8095 = vst.msk [vmem:[#allocation3 + $0xb8] sm:$0xf] %vm6140, %v7975
      %8096 = vst.msk [vmem:[#allocation3 + $0xc0] sm:$0xf] %vm6140, %v7977
      %8097 = vst.msk [vmem:[#allocation3 + $0xc8] sm:$0xf] %vm6140, %v7979
      %8098 = vst.msk [vmem:[#allocation3 + $0xd0] sm:$0xf] %vm6140, %v7981
      %8099 = vst.msk [vmem:[#allocation3 + $0xd8] sm:$0xf] %vm6140, %v7983
      %8100 = vst.msk [vmem:[#allocation3 + $0xe0] sm:$0xf] %vm6140, %v7985
      %8101 = vst.msk [vmem:[#allocation3 + $0xe8] sm:$0xf] %vm6140, %v7987
      %8102 = vst.msk [vmem:[#allocation3 + $0xf0] sm:$0xf] %vm6140, %v7989
      %8103 = vst.msk [vmem:[#allocation3 + $0xf8] sm:$0xf] %vm6140, %v7991
      %8104 = vst.msk [vmem:[#allocation3 + $0x100] sm:$0xf] %vm6140, %v7993
      %8105 = vst.msk [vmem:[#allocation3 + $0x108] sm:$0xf] %vm6140, %v7995
      %8106 = vst.msk [vmem:[#allocation3 + $0x110] sm:$0xf] %vm6140, %v7997
      %8107 = vst.msk [vmem:[#allocation3 + $0x118] sm:$0xf] %vm6140, %v7999
      %8108 = vst.msk [vmem:[#allocation3 + $0x120] sm:$0xf] %vm6140, %v8001
      %8109 = vst.msk [vmem:[#allocation3 + $0x128] sm:$0xf] %vm6140, %v8003
      %8110 = vst.msk [vmem:[#allocation3 + $0x130] sm:$0xf] %vm6140, %v8005
      %8111 = vst.msk [vmem:[#allocation3 + $0x138] sm:$0xf] %vm6140, %v8007
      %8112 = vst.msk [vmem:[#allocation3 + $0x140] sm:$0xf] %vm6140, %v8009
      %8113 = vst.msk [vmem:[#allocation3 + $0x148] sm:$0xf] %vm6140, %v8011
      %8114 = vst.msk [vmem:[#allocation3 + $0x150] sm:$0xf] %vm6140, %v8013
      %8115 = vst.msk [vmem:[#allocation3 + $0x158] sm:$0xf] %vm6140, %v8015
      %8116 = vst.msk [vmem:[#allocation3 + $0x160] sm:$0xf] %vm6140, %v8017
      %8117 = vst.msk [vmem:[#allocation3 + $0x168] sm:$0xf] %vm6140, %v8019
      %8118 = vst.msk [vmem:[#allocation3 + $0x170] sm:$0xf] %vm6140, %v8021
      %8119 = vst.msk [vmem:[#allocation3 + $0x178] sm:$0xf] %vm6140, %v8023
      %8123 = vst.msk [vmem:[#allocation3 + $0x4] sm:$0xf] %vm5939, %v7785
      %8124 = vst.msk [vmem:[#allocation3 + $0xc] sm:$0xf] %vm5939, %v7786
      %8125 = vst.msk [vmem:[#allocation3 + $0x14] sm:$0xf] %vm5939, %v7787
      %8126 = vst.msk [vmem:[#allocation3 + $0x1c] sm:$0xf] %vm5939, %v7788
      %8127 = vst.msk [vmem:[#allocation3 + $0x24] sm:$0xf] %vm5939, %v7789
      %8128 = vst.msk [vmem:[#allocation3 + $0x2c] sm:$0xf] %vm5939, %v7790
      %8129 = vst.msk [vmem:[#allocation3 + $0x34] sm:$0xf] %vm5939, %v7791
      %8130 = vst.msk [vmem:[#allocation3 + $0x3c] sm:$0xf] %vm5939, %v7792
      %8131 = vst.msk [vmem:[#allocation3 + $0x44] sm:$0xf] %vm5939, %v7793
      %8132 = vst.msk [vmem:[#allocation3 + $0x4c] sm:$0xf] %vm5939, %v7794
      %8133 = vst.msk [vmem:[#allocation3 + $0x54] sm:$0xf] %vm5939, %v7795
      %8134 = vst.msk [vmem:[#allocation3 + $0x5c] sm:$0xf] %vm5939, %v7796
      %8135 = vst.msk [vmem:[#allocation3 + $0x64] sm:$0xf] %vm5939, %v7797
      %8136 = vst.msk [vmem:[#allocation3 + $0x6c] sm:$0xf] %vm5939, %v7798
      %8137 = vst.msk [vmem:[#allocation3 + $0x74] sm:$0xf] %vm5939, %v7799
      %8138 = vst.msk [vmem:[#allocation3 + $0x7c] sm:$0xf] %vm5939, %v7800
      %8139 = vst.msk [vmem:[#allocation3 + $0x84] sm:$0xf] %vm5939, %v7801
      %8140 = vst.msk [vmem:[#allocation3 + $0x8c] sm:$0xf] %vm5939, %v7802
      %8141 = vst.msk [vmem:[#allocation3 + $0x94] sm:$0xf] %vm5939, %v7803
      %8142 = vst.msk [vmem:[#allocation3 + $0x9c] sm:$0xf] %vm5939, %v7804
      %8143 = vst.msk [vmem:[#allocation3 + $0xa4] sm:$0xf] %vm5939, %v7805
      %8144 = vst.msk [vmem:[#allocation3 + $0xac] sm:$0xf] %vm5939, %v7806
      %8145 = vst.msk [vmem:[#allocation3 + $0xb4] sm:$0xf] %vm5939, %v7807
      %8146 = vst.msk [vmem:[#allocation3 + $0xbc] sm:$0xf] %vm5939, %v7808
      %8147 = vst.msk [vmem:[#allocation3 + $0xc4] sm:$0xf] %vm5939, %v7809
      %8148 = vst.msk [vmem:[#allocation3 + $0xcc] sm:$0xf] %vm5939, %v7810
      %8149 = vst.msk [vmem:[#allocation3 + $0xd4] sm:$0xf] %vm5939, %v7811
      %8150 = vst.msk [vmem:[#allocation3 + $0xdc] sm:$0xf] %vm5939, %v7812
      %8151 = vst.msk [vmem:[#allocation3 + $0xe4] sm:$0xf] %vm5939, %v7813
      %8152 = vst.msk [vmem:[#allocation3 + $0xec] sm:$0xf] %vm5939, %v7814
      %8153 = vst.msk [vmem:[#allocation3 + $0xf4] sm:$0xf] %vm5939, %v7815
      %8154 = vst.msk [vmem:[#allocation3 + $0xfc] sm:$0xf] %vm5939, %v7816
      %8155 = vst.msk [vmem:[#allocation3 + $0x104] sm:$0xf] %vm5939, %v7817
      %8156 = vst.msk [vmem:[#allocation3 + $0x10c] sm:$0xf] %vm5939, %v7818
      %8157 = vst.msk [vmem:[#allocation3 + $0x114] sm:$0xf] %vm5939, %v7819
      %8158 = vst.msk [vmem:[#allocation3 + $0x11c] sm:$0xf] %vm5939, %v7820
      %8159 = vst.msk [vmem:[#allocation3 + $0x124] sm:$0xf] %vm5939, %v7821
      %8160 = vst.msk [vmem:[#allocation3 + $0x12c] sm:$0xf] %vm5939, %v7822
      %8161 = vst.msk [vmem:[#allocation3 + $0x134] sm:$0xf] %vm5939, %v7823
      %8162 = vst.msk [vmem:[#allocation3 + $0x13c] sm:$0xf] %vm5939, %v7824
      %8163 = vst.msk [vmem:[#allocation3 + $0x144] sm:$0xf] %vm5939, %v7825
      %8164 = vst.msk [vmem:[#allocation3 + $0x14c] sm:$0xf] %vm5939, %v7826
      %8165 = vst.msk [vmem:[#allocation3 + $0x154] sm:$0xf] %vm5939, %v7925
      %8166 = vst.msk [vmem:[#allocation3 + $0x15c] sm:$0xf] %vm5939, %v7926
      %8167 = vst.msk [vmem:[#allocation3 + $0x164] sm:$0xf] %vm5939, %v7927
      %8168 = vst.msk [vmem:[#allocation3 + $0x16c] sm:$0xf] %vm5939, %v5845
      %8169 = vst.msk [vmem:[#allocation3 + $0x174] sm:$0xf] %vm5939, %v5846
      %8170 = vst.msk [vmem:[#allocation3 + $0x17c] sm:$0xf] %vm5939, %v5845
      %v8171 = vld [vmem:[#allocation3] sm:$0xff]
      %v8172 = vld [vmem:[#allocation3 + $0x8] sm:$0xff]
      %v8173 = vld [vmem:[#allocation3 + $0x18] sm:$0xff]
      %v8174 = vld [vmem:[#allocation3 + $0x20] sm:$0xff]
      %v8175 = vld [vmem:[#allocation3 + $0x30] sm:$0xff]
      %v8176 = vld [vmem:[#allocation3 + $0x38] sm:$0xff]
      %v8177 = vld [vmem:[#allocation3 + $0x48] sm:$0xff]
      %v8178 = vld [vmem:[#allocation3 + $0x50] sm:$0xff]
      %v8179 = vld [vmem:[#allocation3 + $0x60] sm:$0xff]
      %v8180 = vld [vmem:[#allocation3 + $0x68] sm:$0xff]
      %v8181 = vld [vmem:[#allocation3 + $0x78] sm:$0xff]
      %v8182 = vld [vmem:[#allocation3 + $0x80] sm:$0xff]
      %v8183 = vld [vmem:[#allocation3 + $0x90] sm:$0xff]
      %v8184 = vld [vmem:[#allocation3 + $0x98] sm:$0xff]
      %v8185 = vld [vmem:[#allocation3 + $0xa8] sm:$0xff]
      %v8186 = vld [vmem:[#allocation3 + $0xb0] sm:$0xff]
      %v8187 = vld [vmem:[#allocation3 + $0xc0] sm:$0xff]
      %v8188 = vld [vmem:[#allocation3 + $0xc8] sm:$0xff]
      %v8189 = vld [vmem:[#allocation3 + $0xd8] sm:$0xff]
      %v8190 = vld [vmem:[#allocation3 + $0xe0] sm:$0xff]
      %v8191 = vld [vmem:[#allocation3 + $0xf0] sm:$0xff]
      %v8192 = vld [vmem:[#allocation3 + $0xf8] sm:$0xff]
      %v8193 = vld [vmem:[#allocation3 + $0x108] sm:$0xff]
      %v8194 = vld [vmem:[#allocation3 + $0x110] sm:$0xff]
      %v8195 = vld [vmem:[#allocation3 + $0x120] sm:$0xff]
      %v8196 = vld [vmem:[#allocation3 + $0x128] sm:$0xff]
      %v8197 = vld [vmem:[#allocation3 + $0x138] sm:$0xff]
      %v8198 = vld [vmem:[#allocation3 + $0x140] sm:$0xff]
      %v8199 = vld [vmem:[#allocation3 + $0x150] sm:$0xff]
      %v8200 = vld [vmem:[#allocation3 + $0x158] sm:$0xff]
      %v8201 = vld [vmem:[#allocation3 + $0x168] sm:$0xff]
      %v8202 = vld [vmem:[#allocation3 + $0x170] sm:$0xff]
      %v8203 = vld [vmem:[%s5] sm:$0xf]
      %v8204 = vld [vmem:[%s5 + $0x4] sm:$0xf]
      %v8205 = vld [vmem:[%s5 + $0x8] sm:$0xf]
      %v8206 = vld [vmem:[%s5 + $0xc] sm:$0xf]
      %v8207 = vld [vmem:[%s5 + $0x10] sm:$0xf]
      %v8208 = vld [vmem:[%s5 + $0x14] sm:$0xf]
      %v8209 = vld [vmem:[%s5 + $0x18] sm:$0xf]
      %v8210 = vld [vmem:[%s5 + $0x1c] sm:$0xf]
      %v8211 = vld [vmem:[%s5 + $0x20] sm:$0xf]
      %v8212 = vld [vmem:[%s5 + $0x24] sm:$0xf]
      %v8213 = vld [vmem:[%s5 + $0x28] sm:$0xf]
      %v8214 = vld [vmem:[%s5 + $0x2c] sm:$0xf]
      %v8215 = vld [vmem:[%s5 + $0x30] sm:$0xf]
      %v8216 = vld [vmem:[%s5 + $0x34] sm:$0xf]
      %v8217 = vld [vmem:[%s5 + $0x38] sm:$0xf]
      %v8218 = vld [vmem:[%s5 + $0x3c] sm:$0xf]
      %v8219 = vld [vmem:[%s5 + $0x40] sm:$0xf]
      %v8220 = vld [vmem:[%s5 + $0x44] sm:$0xf]
      %v8221 = vld [vmem:[%s5 + $0x48] sm:$0xf]
      %v8222 = vld [vmem:[%s5 + $0x4c] sm:$0xf]
      %v8223 = vld [vmem:[%s5 + $0x50] sm:$0xf]
      %v8224 = vld [vmem:[%s5 + $0x54] sm:$0xf]
      %v8225 = vld [vmem:[%s5 + $0x58] sm:$0xf]
      %v8226 = vld [vmem:[%s5 + $0x5c] sm:$0xf]
      %v8227 = vld [vmem:[#allocation3 + $0x10] sm:$0x11]
      %v8228 = vld [vmem:[#allocation3 + $0x28] sm:$0x11]
      %v8229 = vld [vmem:[#allocation3 + $0x40] sm:$0x11]
      %v8230 = vld [vmem:[#allocation3 + $0x58] sm:$0x11]
      %v8231 = vld [vmem:[#allocation3 + $0x70] sm:$0x11]
      %v8232 = vld [vmem:[#allocation3 + $0x88] sm:$0x11]
      %v8233 = vld [vmem:[#allocation3 + $0xa0] sm:$0x11]
      %v8234 = vld [vmem:[#allocation3 + $0xb8] sm:$0x11]
      %v8235 = vld [vmem:[#allocation3 + $0xd0] sm:$0x11]
      %v8236 = vld [vmem:[#allocation3 + $0xe8] sm:$0x11]
      %v8237 = vld [vmem:[#allocation3 + $0x100] sm:$0x11]
      %v8238 = vld [vmem:[#allocation3 + $0x118] sm:$0x11]
      %v8239 = vld [vmem:[#allocation3 + $0x130] sm:$0x11]
      %v8240 = vld [vmem:[#allocation3 + $0x148] sm:$0x11]
      %v8241 = vld [vmem:[#allocation3 + $0x160] sm:$0x11]
      %v8242 = vld [vmem:[#allocation3 + $0x178] sm:$0x11]
      %v8244 = vshrl.u32 %v8171, 16
      %v8246 = vrot.slane %v8244, 4
      %v8247 = vshll.u32 %v8171, 16
      %v8249 = vrot.slane %v8247, 5
      %v8250 = vor.u32 %v8246, %v8249
      %v8251 = vrot.slane %v8250, 4
      %v8253 = vshll.u32 %v8172, 16
      %v8255 = vrot.slane %v8253, 5
      %v8256 = vsel %vm992, %v8251, %v8255
      %v8257 = vshrl.u32 %v8172, 16
      %v8259 = vrot.slane %v8257, 4
      %v8260 = vor.u32 %v8259, %v8255
      %v8261 = vrot.slane %v8260, 4
      %v8263 = vshll.u32 %v8227, 16
      %v8265 = vrot.slane %v8263, 5
      %v8266 = vsel %vm992, %v8261, %v8265
      %v8268 = vshrl.u32 %v8173, 16
      %v8270 = vrot.slane %v8268, 4
      %v8271 = vshll.u32 %v8173, 16
      %v8273 = vrot.slane %v8271, 5
      %v8274 = vor.u32 %v8270, %v8273
      %v8275 = vrot.slane %v8274, 4
      %v8277 = vshll.u32 %v8174, 16
      %v8279 = vrot.slane %v8277, 5
      %v8280 = vsel %vm992, %v8275, %v8279
      %v8281 = vshrl.u32 %v8174, 16
      %v8283 = vrot.slane %v8281, 4
      %v8284 = vor.u32 %v8283, %v8279
      %v8285 = vrot.slane %v8284, 4
      %v8287 = vshll.u32 %v8228, 16
      %v8289 = vrot.slane %v8287, 5
      %v8290 = vsel %vm992, %v8285, %v8289
      %v8292 = vshrl.u32 %v8175, 16
      %v8294 = vrot.slane %v8292, 4
      %v8295 = vshll.u32 %v8175, 16
      %v8297 = vrot.slane %v8295, 5
      %v8298 = vor.u32 %v8294, %v8297
      %v8299 = vrot.slane %v8298, 4
      %v8301 = vshll.u32 %v8176, 16
      %v8303 = vrot.slane %v8301, 5
      %v8304 = vsel %vm992, %v8299, %v8303
      %v8305 = vshrl.u32 %v8176, 16
      %v8307 = vrot.slane %v8305, 4
      %v8308 = vor.u32 %v8307, %v8303
      %v8309 = vrot.slane %v8308, 4
      %v8311 = vshll.u32 %v8229, 16
      %v8313 = vrot.slane %v8311, 5
      %v8314 = vsel %vm992, %v8309, %v8313
      %v8316 = vshrl.u32 %v8177, 16
      %v8318 = vrot.slane %v8316, 4
      %v8319 = vshll.u32 %v8177, 16
      %v8321 = vrot.slane %v8319, 5
      %v8322 = vor.u32 %v8318, %v8321
      %v8323 = vrot.slane %v8322, 4
      %v8325 = vshll.u32 %v8178, 16
      %v8327 = vrot.slane %v8325, 5
      %v8328 = vsel %vm992, %v8323, %v8327
      %v8329 = vshrl.u32 %v8178, 16
      %v8331 = vrot.slane %v8329, 4
      %v8332 = vor.u32 %v8331, %v8327
      %v8333 = vrot.slane %v8332, 4
      %v8335 = vshll.u32 %v8230, 16
      %v8337 = vrot.slane %v8335, 5
      %v8338 = vsel %vm992, %v8333, %v8337
      %v8340 = vshrl.u32 %v8179, 16
      %v8342 = vrot.slane %v8340, 4
      %v8343 = vshll.u32 %v8179, 16
      %v8345 = vrot.slane %v8343, 5
      %v8346 = vor.u32 %v8342, %v8345
      %v8347 = vrot.slane %v8346, 4
      %v8349 = vshll.u32 %v8180, 16
      %v8351 = vrot.slane %v8349, 5
      %v8352 = vsel %vm992, %v8347, %v8351
      %v8353 = vshrl.u32 %v8180, 16
      %v8355 = vrot.slane %v8353, 4
      %v8356 = vor.u32 %v8355, %v8351
      %v8357 = vrot.slane %v8356, 4
      %v8359 = vshll.u32 %v8231, 16
      %v8361 = vrot.slane %v8359, 5
      %v8362 = vsel %vm992, %v8357, %v8361
      %v8364 = vshrl.u32 %v8181, 16
      %v8366 = vrot.slane %v8364, 4
      %v8367 = vshll.u32 %v8181, 16
      %v8369 = vrot.slane %v8367, 5
      %v8370 = vor.u32 %v8366, %v8369
      %v8371 = vrot.slane %v8370, 4
      %v8373 = vshll.u32 %v8182, 16
      %v8375 = vrot.slane %v8373, 5
      %v8376 = vsel %vm992, %v8371, %v8375
      %v8377 = vshrl.u32 %v8182, 16
      %v8379 = vrot.slane %v8377, 4
      %v8380 = vor.u32 %v8379, %v8375
      %v8381 = vrot.slane %v8380, 4
      %v8383 = vshll.u32 %v8232, 16
      %v8385 = vrot.slane %v8383, 5
      %v8386 = vsel %vm992, %v8381, %v8385
      %v8388 = vshrl.u32 %v8183, 16
      %v8390 = vrot.slane %v8388, 4
      %v8391 = vshll.u32 %v8183, 16
      %v8393 = vrot.slane %v8391, 5
      %v8394 = vor.u32 %v8390, %v8393
      %v8395 = vrot.slane %v8394, 4
      %v8397 = vshll.u32 %v8184, 16
      %v8399 = vrot.slane %v8397, 5
      %v8400 = vsel %vm992, %v8395, %v8399
      %v8401 = vshrl.u32 %v8184, 16
      %v8403 = vrot.slane %v8401, 4
      %v8404 = vor.u32 %v8403, %v8399
      %v8405 = vrot.slane %v8404, 4
      %v8407 = vshll.u32 %v8233, 16
      %v8409 = vrot.slane %v8407, 5
      %v8410 = vsel %vm992, %v8405, %v8409
      %v8412 = vshrl.u32 %v8185, 16
      %v8414 = vrot.slane %v8412, 4
      %v8415 = vshll.u32 %v8185, 16
      %v8417 = vrot.slane %v8415, 5
      %v8418 = vor.u32 %v8414, %v8417
      %v8419 = vrot.slane %v8418, 4
      %v8421 = vshll.u32 %v8186, 16
      %v8423 = vrot.slane %v8421, 5
      %v8424 = vsel %vm992, %v8419, %v8423
      %v8425 = vshrl.u32 %v8186, 16
      %v8427 = vrot.slane %v8425, 4
      %v8428 = vor.u32 %v8427, %v8423
      %v8429 = vrot.slane %v8428, 4
      %v8431 = vshll.u32 %v8234, 16
      %v8433 = vrot.slane %v8431, 5
      %v8434 = vsel %vm992, %v8429, %v8433
      %v8436 = vshrl.u32 %v8187, 16
      %v8438 = vrot.slane %v8436, 4
      %v8439 = vshll.u32 %v8187, 16
      %v8441 = vrot.slane %v8439, 5
      %v8442 = vor.u32 %v8438, %v8441
      %v8443 = vrot.slane %v8442, 4
      %v8445 = vshll.u32 %v8188, 16
      %v8447 = vrot.slane %v8445, 5
      %v8448 = vsel %vm992, %v8443, %v8447
      %v8449 = vshrl.u32 %v8188, 16
      %v8451 = vrot.slane %v8449, 4
      %v8452 = vor.u32 %v8451, %v8447
      %v8453 = vrot.slane %v8452, 4
      %v8455 = vshll.u32 %v8235, 16
      %v8457 = vrot.slane %v8455, 5
      %v8458 = vsel %vm992, %v8453, %v8457
      %v8460 = vshrl.u32 %v8189, 16
      %v8462 = vrot.slane %v8460, 4
      %v8463 = vshll.u32 %v8189, 16
      %v8465 = vrot.slane %v8463, 5
      %v8466 = vor.u32 %v8462, %v8465
      %v8467 = vrot.slane %v8466, 4
      %v8469 = vshll.u32 %v8190, 16
      %v8471 = vrot.slane %v8469, 5
      %v8472 = vsel %vm992, %v8467, %v8471
      %v8473 = vshrl.u32 %v8190, 16
      %v8475 = vrot.slane %v8473, 4
      %v8476 = vor.u32 %v8475, %v8471
      %v8477 = vrot.slane %v8476, 4
      %v8479 = vshll.u32 %v8236, 16
      %v8481 = vrot.slane %v8479, 5
      %v8482 = vsel %vm992, %v8477, %v8481
      %v8484 = vshrl.u32 %v8191, 16
      %v8486 = vrot.slane %v8484, 4
      %v8487 = vshll.u32 %v8191, 16
      %v8489 = vrot.slane %v8487, 5
      %v8490 = vor.u32 %v8486, %v8489
      %v8491 = vrot.slane %v8490, 4
      %v8493 = vshll.u32 %v8192, 16
      %v8495 = vrot.slane %v8493, 5
      %v8496 = vsel %vm992, %v8491, %v8495
      %v8497 = vshrl.u32 %v8192, 16
      %v8499 = vrot.slane %v8497, 4
      %v8500 = vor.u32 %v8499, %v8495
      %v8501 = vrot.slane %v8500, 4
      %v8503 = vshll.u32 %v8237, 16
      %v8505 = vrot.slane %v8503, 5
      %v8506 = vsel %vm992, %v8501, %v8505
      %v8508 = vshrl.u32 %v8193, 16
      %v8510 = vrot.slane %v8508, 4
      %v8511 = vshll.u32 %v8193, 16
      %v8513 = vrot.slane %v8511, 5
      %v8514 = vor.u32 %v8510, %v8513
      %v8515 = vrot.slane %v8514, 4
      %v8517 = vshll.u32 %v8194, 16
      %v8519 = vrot.slane %v8517, 5
      %v8520 = vsel %vm992, %v8515, %v8519
      %v8521 = vshrl.u32 %v8194, 16
      %v8523 = vrot.slane %v8521, 4
      %v8524 = vor.u32 %v8523, %v8519
      %v8525 = vrot.slane %v8524, 4
      %v8527 = vshll.u32 %v8238, 16
      %v8529 = vrot.slane %v8527, 5
      %v8530 = vsel %vm992, %v8525, %v8529
      %v8532 = vshrl.u32 %v8195, 16
      %v8534 = vrot.slane %v8532, 4
      %v8535 = vshll.u32 %v8195, 16
      %v8537 = vrot.slane %v8535, 5
      %v8538 = vor.u32 %v8534, %v8537
      %v8539 = vrot.slane %v8538, 4
      %v8541 = vshll.u32 %v8196, 16
      %v8543 = vrot.slane %v8541, 5
      %v8544 = vsel %vm992, %v8539, %v8543
      %v8545 = vshrl.u32 %v8196, 16
      %v8547 = vrot.slane %v8545, 4
      %v8548 = vor.u32 %v8547, %v8543
      %v8549 = vrot.slane %v8548, 4
      %v8551 = vshll.u32 %v8239, 16
      %v8553 = vrot.slane %v8551, 5
      %v8554 = vsel %vm992, %v8549, %v8553
      %v8556 = vshrl.u32 %v8197, 16
      %v8558 = vrot.slane %v8556, 4
      %v8559 = vshll.u32 %v8197, 16
      %v8561 = vrot.slane %v8559, 5
      %v8562 = vor.u32 %v8558, %v8561
      %v8563 = vrot.slane %v8562, 4
      %v8565 = vshll.u32 %v8198, 16
      %v8567 = vrot.slane %v8565, 5
      %v8568 = vsel %vm992, %v8563, %v8567
      %v8569 = vshrl.u32 %v8198, 16
      %v8571 = vrot.slane %v8569, 4
      %v8572 = vor.u32 %v8571, %v8567
      %v8573 = vrot.slane %v8572, 4
      %v8575 = vshll.u32 %v8240, 16
      %v8577 = vrot.slane %v8575, 5
      %v8578 = vsel %vm992, %v8573, %v8577
      %v8580 = vshrl.u32 %v8199, 16
      %v8582 = vrot.slane %v8580, 4
      %v8583 = vshll.u32 %v8199, 16
      %v8585 = vrot.slane %v8583, 5
      %v8586 = vor.u32 %v8582, %v8585
      %v8587 = vrot.slane %v8586, 4
      %v8589 = vshll.u32 %v8200, 16
      %v8591 = vrot.slane %v8589, 5
      %v8592 = vsel %vm992, %v8587, %v8591
      %v8593 = vshrl.u32 %v8200, 16
      %v8595 = vrot.slane %v8593, 4
      %v8596 = vor.u32 %v8595, %v8591
      %v8597 = vrot.slane %v8596, 4
      %v8599 = vshll.u32 %v8241, 16
      %v8601 = vrot.slane %v8599, 5
      %v8602 = vsel %vm992, %v8597, %v8601
      %v8604 = vshrl.u32 %v8201, 16
      %v8606 = vrot.slane %v8604, 4
      %v8607 = vshll.u32 %v8201, 16
      %v8609 = vrot.slane %v8607, 5
      %v8610 = vor.u32 %v8606, %v8609
      %v8611 = vrot.slane %v8610, 4
      %v8613 = vshll.u32 %v8202, 16
      %v8615 = vrot.slane %v8613, 5
      %v8616 = vsel %vm992, %v8611, %v8615
      %v8617 = vshrl.u32 %v8202, 16
      %v8619 = vrot.slane %v8617, 4
      %v8620 = vor.u32 %v8619, %v8615
      %v8621 = vrot.slane %v8620, 4
      %v8623 = vshll.u32 %v8242, 16
      %v8625 = vrot.slane %v8623, 5
      %v8626 = vsel %vm992, %v8621, %v8625
      %s8627 = scalar_lea.vmem %s5, 96
      %v8628 = vld [vmem:[%s8627] sm:$0xf]
      %v8629 = vld [vmem:[%s8627 + $0x4] sm:$0xf]
      %v8630 = vld [vmem:[%s8627 + $0x8] sm:$0xf]
      %v8631 = vld [vmem:[%s8627 + $0xc] sm:$0xf]
      %v8632 = vld [vmem:[%s8627 + $0x10] sm:$0xf]
      %v8633 = vld [vmem:[%s8627 + $0x14] sm:$0xf]
      %v8634 = vld [vmem:[%s8627 + $0x18] sm:$0xf]
      %v8635 = vld [vmem:[%s8627 + $0x1c] sm:$0xf]
      %v8636 = vld [vmem:[%s8627 + $0x20] sm:$0xf]
      %v8637 = vld [vmem:[%s8627 + $0x24] sm:$0xf]
      %v8638 = vld [vmem:[%s8627 + $0x28] sm:$0xf]
      %v8639 = vld [vmem:[%s8627 + $0x2c] sm:$0xf]
      %v8640 = vld [vmem:[%s8627 + $0x30] sm:$0xf]
      %v8641 = vld [vmem:[%s8627 + $0x34] sm:$0xf]
      %v8642 = vld [vmem:[%s8627 + $0x38] sm:$0xf]
      %v8643 = vld [vmem:[%s8627 + $0x3c] sm:$0xf]
      %v8644 = vld [vmem:[%s8627 + $0x40] sm:$0xf]
      %v8645 = vld [vmem:[%s8627 + $0x44] sm:$0xf]
      %v8646 = vld [vmem:[%s8627 + $0x48] sm:$0xf]
      %v8647 = vld [vmem:[%s8627 + $0x4c] sm:$0xf]
      %v8648 = vld [vmem:[%s8627 + $0x50] sm:$0xf]
      %v8649 = vld [vmem:[%s8627 + $0x54] sm:$0xf]
      %v8650 = vld [vmem:[%s8627 + $0x58] sm:$0xf]
      %v8651 = vld [vmem:[%s8627 + $0x5c] sm:$0xf]
      %v8652 = vunpack.c.l.b16 %v8256
      %v8653 = vunpack.c.h.b16 %v8256
      %v8654 = vunpack.c.l.b16 %v8266
      %v8655 = vunpack.c.h.b16 %v8266
      %v8656 = vunpack.c.l.b16 %v8280
      %v8657 = vunpack.c.h.b16 %v8280
      %v8658 = vunpack.c.l.b16 %v8290
      %v8659 = vunpack.c.h.b16 %v8290
      %v8660 = vunpack.c.l.b16 %v8304
      %v8661 = vunpack.c.h.b16 %v8304
      %v8662 = vunpack.c.l.b16 %v8314
      %v8663 = vunpack.c.h.b16 %v8314
      %v8664 = vunpack.c.l.b16 %v8328
      %v8665 = vunpack.c.h.b16 %v8328
      %v8666 = vunpack.c.l.b16 %v8338
      %v8667 = vunpack.c.h.b16 %v8338
      %v8668 = vunpack.c.l.b16 %v8352
      %v8669 = vunpack.c.h.b16 %v8352
      %v8670 = vunpack.c.l.b16 %v8362
      %v8671 = vunpack.c.h.b16 %v8362
      %v8672 = vunpack.c.l.b16 %v8376
      %v8673 = vunpack.c.h.b16 %v8376
      %v8674 = vunpack.c.l.b16 %v8386
      %v8675 = vunpack.c.h.b16 %v8386
      %v8676 = vunpack.c.l.b16 %v8400
      %v8677 = vunpack.c.h.b16 %v8400
      %v8678 = vunpack.c.l.b16 %v8410
      %v8679 = vunpack.c.h.b16 %v8410
      %v8680 = vunpack.c.l.b16 %v8424
      %v8681 = vunpack.c.h.b16 %v8424
      %v8682 = vunpack.c.l.b16 %v8434
      %v8683 = vunpack.c.h.b16 %v8434
      %v8684 = vunpack.c.l.b16 %v8448
      %v8685 = vunpack.c.h.b16 %v8448
      %v8686 = vunpack.c.l.b16 %v8458
      %v8687 = vunpack.c.h.b16 %v8458
      %v8688 = vunpack.c.l.b16 %v8472
      %v8689 = vunpack.c.h.b16 %v8472
      %v8690 = vunpack.c.l.b16 %v8482
      %v8691 = vunpack.c.h.b16 %v8482
      %v8692 = vunpack.c.l.b16 %v8496
      %v8693 = vunpack.c.h.b16 %v8496
      %v8694 = vunpack.c.l.b16 %v8506
      %v8695 = vunpack.c.h.b16 %v8506
      %v8696 = vunpack.c.l.b16 %v8520
      %v8697 = vunpack.c.h.b16 %v8520
      %v8698 = vunpack.c.l.b16 %v8530
      %v8699 = vunpack.c.h.b16 %v8530
      %v8700 = vunpack.c.l.b16 %v8544
      %v8701 = vunpack.c.h.b16 %v8544
      %v8702 = vunpack.c.l.b16 %v8554
      %v8703 = vunpack.c.h.b16 %v8554
      %v8704 = vunpack.c.l.b16 %v8568
      %v8705 = vunpack.c.h.b16 %v8568
      %v8706 = vunpack.c.l.b16 %v8578
      %v8707 = vunpack.c.h.b16 %v8578
      %v8708 = vunpack.c.l.b16 %v8592
      %v8709 = vunpack.c.h.b16 %v8592
      %v8710 = vunpack.c.l.b16 %v8602
      %v8711 = vunpack.c.h.b16 %v8602
      %v8712 = vunpack.c.l.b16 %v8616
      %v8713 = vunpack.c.h.b16 %v8616
      %v8714 = vunpack.c.l.b16 %v8626
      %v8715 = vunpack.c.h.b16 %v8626
      %v8716 = vpack.c.b16 %v8654, %v8652
      %v8717 = vpack.c.b16 %v8655, %v8653
      %v8718 = vpack.c.b16 %v8658, %v8656
      %v8719 = vpack.c.b16 %v8659, %v8657
      %v8720 = vpack.c.b16 %v8662, %v8660
      %v8721 = vpack.c.b16 %v8663, %v8661
      %v8722 = vpack.c.b16 %v8666, %v8664
      %v8723 = vpack.c.b16 %v8667, %v8665
      %v8724 = vpack.c.b16 %v8670, %v8668
      %v8725 = vpack.c.b16 %v8671, %v8669
      %v8726 = vpack.c.b16 %v8674, %v8672
      %v8727 = vpack.c.b16 %v8675, %v8673
      %v8728 = vpack.c.b16 %v8678, %v8676
      %v8729 = vpack.c.b16 %v8679, %v8677
      %v8730 = vpack.c.b16 %v8682, %v8680
      %v8731 = vpack.c.b16 %v8683, %v8681
      %v8732 = vpack.c.b16 %v8686, %v8684
      %v8733 = vpack.c.b16 %v8687, %v8685
      %v8734 = vpack.c.b16 %v8690, %v8688
      %v8735 = vpack.c.b16 %v8691, %v8689
      %v8736 = vpack.c.b16 %v8694, %v8692
      %v8737 = vpack.c.b16 %v8695, %v8693
      %v8738 = vpack.c.b16 %v8698, %v8696
      %v8739 = vpack.c.b16 %v8699, %v8697
      %v8740 = vpack.c.b16 %v8702, %v8700
      %v8741 = vpack.c.b16 %v8703, %v8701
      %v8742 = vpack.c.b16 %v8706, %v8704
      %v8743 = vpack.c.b16 %v8707, %v8705
      %v8744 = vpack.c.b16 %v8710, %v8708
      %v8745 = vpack.c.b16 %v8711, %v8709
      %v8746 = vpack.c.b16 %v8714, %v8712
      %v8747 = vpack.c.b16 %v8715, %v8713
      %v8788 = vunpack.c.l.b16 %v8628
      %v8789 = vunpack.c.l.b16 %v8629
      %v8790 = vunpack.c.l.b16 %v8630
      %v8791 = vunpack.c.l.b16 %v8631
      %v8792 = vunpack.c.l.b16 %v8632
      %v8793 = vunpack.c.l.b16 %v8633
      %v8794 = vunpack.c.l.b16 %v8634
      %v8795 = vunpack.c.l.b16 %v8635
      %v8796 = vunpack.c.l.b16 %v8636
      %v8797 = vunpack.c.l.b16 %v8637
      %v8798 = vunpack.c.l.b16 %v8638
      %v8799 = vunpack.c.l.b16 %v8639
      %v8800 = vunpack.c.l.b16 %v8640
      %v8801 = vunpack.c.l.b16 %v8641
      %v8802 = vunpack.c.l.b16 %v8642
      %v8803 = vunpack.c.l.b16 %v8643
      %v8804 = vunpack.c.l.b16 %v8644
      %v8805 = vunpack.c.l.b16 %v8645
      %v8806 = vunpack.c.l.b16 %v8646
      %v8807 = vunpack.c.l.b16 %v8647
      %v8808 = vunpack.c.l.b16 %v8648
      %v8809 = vunpack.c.l.b16 %v8649
      %v8810 = vunpack.c.l.b16 %v8650
      %v8811 = vunpack.c.l.b16 %v8651
      %v8812 = vpack.c.b16 %v8789, %v8788
      %v8813 = vpack.c.b16 %v8791, %v8790
      %v8814 = vpack.c.b16 %v8793, %v8792
      %v8815 = vpack.c.b16 %v8795, %v8794
      %v8816 = vpack.c.b16 %v8797, %v8796
      %v8817 = vpack.c.b16 %v8799, %v8798
      %v8818 = vpack.c.b16 %v8801, %v8800
      %v8819 = vpack.c.b16 %v8803, %v8802
      %v8820 = vpack.c.b16 %v8805, %v8804
      %v8821 = vpack.c.b16 %v8807, %v8806
      %v8822 = vpack.c.b16 %v8809, %v8808
      %v8823 = vpack.c.b16 %v8811, %v8810
      %v8837 = vsel %vm6648, %v8717, 0
      %v8840 = vsel %vm6648, %v8719, 0
      %v8843 = vsel %vm6648, %v8721, 0
      %v8846 = vsel %vm6648, %v8723, 0
      %v8849 = vsel %vm6648, %v8725, 0
      %v8852 = vsel %vm6648, %v8727, 0
      %v8855 = vsel %vm6648, %v8729, 0
      %v8858 = vsel %vm6648, %v8731, 0
      %v8861 = vsel %vm6648, %v8733, 0
      %v8864 = vsel %vm6648, %v8735, 0
      %v8867 = vsel %vm6648, %v8737, 0
      %v8870 = vsel %vm6648, %v8739, 0
      %v8873 = vsel %vm6648, %v8741, 0
      %v8876 = vsel %vm6648, %v8743, 0
      %v8879 = vsel %vm6648, %v8745, 0
      %v8882 = vsel %vm6648, %v8747, 0
      %8884 = vmatprep.subr.bf16.mxu0 0
      %8885 = vmatpush1.bf16.msra.mxu0 %v8812
      %8886 = vmatprep.subr.bf16.mxu0 0
      %8887 = vmatpush1.bf16.msra.mxu0 %v8813
      %8888 = vmatprep.subr.bf16.mxu0 0
      %8889 = vmatpush1.bf16.msra.mxu0 %v8814
      %8890 = vmatprep.subr.bf16.mxu0 0
      %8891 = vmatpush1.bf16.msra.mxu0 %v8815
      %8892 = vmatprep.subr.bf16.mxu0 0
      %8893 = vmatpush1.bf16.msra.mxu0 %v8816
      %8894 = vmatprep.subr.bf16.mxu0 0
      %8895 = vmatpush1.bf16.msra.mxu0 %v8817
      %8896 = vmatprep.subr.bf16.mxu0 0
      %8897 = vmatpush1.bf16.msra.mxu0 %v8818
      %8898 = vmatprep.subr.bf16.mxu0 0
      %8899 = vmatpush1.bf16.msra.mxu0 %v8819
      %8900 = vmatprep.subr.bf16.mxu0 0
      %8901 = vmatpush1.bf16.msra.mxu0 %v8820
      %8902 = vmatprep.subr.bf16.mxu0 0
      %8903 = vmatpush1.bf16.msra.mxu0 %v8821
      %8904 = vmatprep.subr.bf16.mxu0 0
      %8905 = vmatpush1.bf16.msra.mxu0 %v8822
      %8906 = vmatprep.subr.bf16.mxu0 0
      %8907 = vmatpush1.bf16.msra.mxu0 %v8823
      %8908 = vmatprep.subr.bf16.mxu0 0
      %8909 = vmatpush1.bf16.msra.mxu0 0
      %8910 = vmatprep.subr.bf16.mxu0 0
      %8911 = vmatpush1.bf16.msra.mxu0 0
      %8912 = vmatprep.subr.bf16.mxu0 0
      %8913 = vmatpush1.bf16.msra.mxu0 0
      %8914 = vmatprep.subr.bf16.mxu0 0
      %8915 = vmatpush1.bf16.msra.mxu0 0
      %8916 = vmatprep.mubr.bf16.mxu0 %v8837
      %8917 = vmatmul.mubr.bf16.gmra.mrb[0].mxu0 %v8716
      %v8918 = vpop.f32.mrb[0].mxu0
      %v8919 = vadd.f32 0.0, %v8918
      %v8920 = vpop.f32.mrb[0].mxu0
      %v8921 = vpop.f32.mrb[0].mxu0
      %v8922 = vadd.f32 0.0, %v8921
      %v8923 = vpop.f32.mrb[0].mxu0
      %8924 = vmatprep.mubr.bf16.mxu0 %v8840
      %8925 = vmatmul.mubr.bf16.gmra.mrb[0].mxu0 %v8718
      %v8926 = vpop.f32.mrb[0].mxu0
      %v8927 = vadd.f32 0.0, %v8926
      %v8928 = vpop.f32.mrb[0].mxu0
      %v8929 = vpop.f32.mrb[0].mxu0
      %v8930 = vadd.f32 0.0, %v8929
      %v8931 = vpop.f32.mrb[0].mxu0
      %8932 = vmatprep.mubr.bf16.mxu0 %v8843
      %8933 = vmatmul.mubr.bf16.gmra.mrb[0].mxu0 %v8720
      %v8934 = vpop.f32.mrb[0].mxu0
      %v8935 = vadd.f32 0.0, %v8934
      %v8936 = vpop.f32.mrb[0].mxu0
      %v8937 = vpop.f32.mrb[0].mxu0
      %v8938 = vadd.f32 0.0, %v8937
      %v8939 = vpop.f32.mrb[0].mxu0
      %8940 = vmatprep.mubr.bf16.mxu0 %v8846
      %8941 = vmatmul.mubr.bf16.gmra.mrb[0].mxu0 %v8722
      %v8942 = vpop.f32.mrb[0].mxu0
      %v8943 = vadd.f32 0.0, %v8942
      %v8944 = vpop.f32.mrb[0].mxu0
      %v8945 = vpop.f32.mrb[0].mxu0
      %v8946 = vadd.f32 0.0, %v8945
      %v8947 = vpop.f32.mrb[0].mxu0
      %8948 = vmatprep.mubr.bf16.mxu0 %v8849
      %8949 = vmatmul.mubr.bf16.gmra.mrb[0].mxu0 %v8724
      %v8950 = vpop.f32.mrb[0].mxu0
      %v8951 = vadd.f32 0.0, %v8950
      %v8952 = vpop.f32.mrb[0].mxu0
      %v8953 = vpop.f32.mrb[0].mxu0
      %v8954 = vadd.f32 0.0, %v8953
      %v8955 = vpop.f32.mrb[0].mxu0
      %8956 = vmatprep.mubr.bf16.mxu0 %v8852
      %8957 = vmatmul.mubr.bf16.gmra.mrb[0].mxu0 %v8726
      %v8958 = vpop.f32.mrb[0].mxu0
      %v8959 = vadd.f32 0.0, %v8958
      %v8960 = vpop.f32.mrb[0].mxu0
      %v8961 = vpop.f32.mrb[0].mxu0
      %v8962 = vadd.f32 0.0, %v8961
      %v8963 = vpop.f32.mrb[0].mxu0
      %8964 = vmatprep.mubr.bf16.mxu0 %v8855
      %8965 = vmatmul.mubr.bf16.gmra.mrb[0].mxu0 %v8728
      %v8966 = vpop.f32.mrb[0].mxu0
      %v8967 = vadd.f32 0.0, %v8966
      %v8968 = vpop.f32.mrb[0].mxu0
      %v8969 = vpop.f32.mrb[0].mxu0
      %v8970 = vadd.f32 0.0, %v8969
      %v8971 = vpop.f32.mrb[0].mxu0
      %8972 = vmatprep.mubr.bf16.mxu0 %v8858
      %8973 = vmatmul.mubr.bf16.gmra.mrb[0].mxu0 %v8730
      %v8974 = vpop.f32.mrb[0].mxu0
      %v8975 = vadd.f32 0.0, %v8974
      %v8976 = vpop.f32.mrb[0].mxu0
      %v8977 = vpop.f32.mrb[0].mxu0
      %v8978 = vadd.f32 0.0, %v8977
      %v8979 = vpop.f32.mrb[0].mxu0
      %8980 = vmatprep.mubr.bf16.mxu0 %v8861
      %8981 = vmatmul.mubr.bf16.gmra.mrb[0].mxu0 %v8732
      %v8982 = vpop.f32.mrb[0].mxu0
      %v8983 = vadd.f32 0.0, %v8982
      %v8984 = vpop.f32.mrb[0].mxu0
      %v8985 = vpop.f32.mrb[0].mxu0
      %v8986 = vadd.f32 0.0, %v8985
      %v8987 = vpop.f32.mrb[0].mxu0
      %8988 = vmatprep.mubr.bf16.mxu0 %v8864
      %8989 = vmatmul.mubr.bf16.gmra.mrb[0].mxu0 %v8734
      %v8990 = vpop.f32.mrb[0].mxu0
      %v8991 = vadd.f32 0.0, %v8990
      %v8992 = vpop.f32.mrb[0].mxu0
      %v8993 = vpop.f32.mrb[0].mxu0
      %v8994 = vadd.f32 0.0, %v8993
      %v8995 = vpop.f32.mrb[0].mxu0
      %8996 = vmatprep.mubr.bf16.mxu0 %v8867
      %8997 = vmatmul.mubr.bf16.gmra.mrb[0].mxu0 %v8736
      %v8998 = vpop.f32.mrb[0].mxu0
      %v8999 = vadd.f32 0.0, %v8998
      %v9000 = vpop.f32.mrb[0].mxu0
      %v9001 = vpop.f32.mrb[0].mxu0
      %v9002 = vadd.f32 0.0, %v9001
      %v9003 = vpop.f32.mrb[0].mxu0
      %9004 = vmatprep.mubr.bf16.mxu0 %v8870
      %9005 = vmatmul.mubr.bf16.gmra.mrb[0].mxu0 %v8738
      %v9006 = vpop.f32.mrb[0].mxu0
      %v9007 = vadd.f32 0.0, %v9006
      %v9008 = vpop.f32.mrb[0].mxu0
      %v9009 = vpop.f32.mrb[0].mxu0
      %v9010 = vadd.f32 0.0, %v9009
      %v9011 = vpop.f32.mrb[0].mxu0
      %9012 = vmatprep.mubr.bf16.mxu0 %v8873
      %9013 = vmatmul.mubr.bf16.gmra.mrb[0].mxu0 %v8740
      %v9014 = vpop.f32.mrb[0].mxu0
      %v9015 = vadd.f32 0.0, %v9014
      %v9016 = vpop.f32.mrb[0].mxu0
      %v9017 = vpop.f32.mrb[0].mxu0
      %v9018 = vadd.f32 0.0, %v9017
      %v9019 = vpop.f32.mrb[0].mxu0
      %9020 = vmatprep.mubr.bf16.mxu0 %v8876
      %9021 = vmatmul.mubr.bf16.gmra.mrb[0].mxu0 %v8742
      %v9022 = vpop.f32.mrb[0].mxu0
      %v9023 = vadd.f32 0.0, %v9022
      %v9024 = vpop.f32.mrb[0].mxu0
      %v9025 = vpop.f32.mrb[0].mxu0
      %v9026 = vadd.f32 0.0, %v9025
      %v9027 = vpop.f32.mrb[0].mxu0
      %9028 = vmatprep.mubr.bf16.mxu0 %v8879
      %9029 = vmatmul.mubr.bf16.gmra.mrb[0].mxu0 %v8744
      %v9030 = vpop.f32.mrb[0].mxu0
      %v9031 = vadd.f32 0.0, %v9030
      %v9032 = vpop.f32.mrb[0].mxu0
      %v9033 = vpop.f32.mrb[0].mxu0
      %v9034 = vadd.f32 0.0, %v9033
      %v9035 = vpop.f32.mrb[0].mxu0
      %9036 = vmatprep.mubr.bf16.mxu0 %v8882
      %9037 = vmatmul.mubr.bf16.gmra.mrb[0].mxu0 %v8746
      %v9038 = vpop.f32.mrb[0].mxu0
      %v9039 = vadd.f32 0.0, %v9038
      %v9040 = vpop.f32.mrb[0].mxu0
      %v9041 = vpop.f32.mrb[0].mxu0
      %v9042 = vadd.f32 0.0, %v9041
      %v9043 = vpop.f32.mrb[0].mxu0
      %9044 = vdwg.mxu0
      %v9077 = vunpack.c.l.b16 %v8171
      %v9078 = vunpack.c.h.b16 %v8171
      %v9079 = vunpack.c.l.b16 %v8172
      %v9080 = vunpack.c.h.b16 %v8172
      %v9081 = vunpack.c.l.b16 %v8173
      %v9082 = vunpack.c.h.b16 %v8173
      %v9083 = vunpack.c.l.b16 %v8174
      %v9084 = vunpack.c.h.b16 %v8174
      %v9085 = vunpack.c.l.b16 %v8175
      %v9086 = vunpack.c.h.b16 %v8175
      %v9087 = vunpack.c.l.b16 %v8176
      %v9088 = vunpack.c.h.b16 %v8176
      %v9089 = vunpack.c.l.b16 %v8177
      %v9090 = vunpack.c.h.b16 %v8177
      %v9091 = vunpack.c.l.b16 %v8178
      %v9092 = vunpack.c.h.b16 %v8178
      %v9093 = vunpack.c.l.b16 %v8179
      %v9094 = vunpack.c.h.b16 %v8179
      %v9095 = vunpack.c.l.b16 %v8180
      %v9096 = vunpack.c.h.b16 %v8180
      %v9097 = vunpack.c.l.b16 %v8181
      %v9098 = vunpack.c.h.b16 %v8181
      %v9099 = vunpack.c.l.b16 %v8182
      %v9100 = vunpack.c.h.b16 %v8182
      %v9101 = vunpack.c.l.b16 %v8183
      %v9102 = vunpack.c.h.b16 %v8183
      %v9103 = vunpack.c.l.b16 %v8184
      %v9104 = vunpack.c.h.b16 %v8184
      %v9105 = vunpack.c.l.b16 %v8185
      %v9106 = vunpack.c.h.b16 %v8185
      %v9107 = vunpack.c.l.b16 %v8186
      %v9108 = vunpack.c.h.b16 %v8186
      %v9109 = vunpack.c.l.b16 %v8187
      %v9110 = vunpack.c.h.b16 %v8187
      %v9111 = vunpack.c.l.b16 %v8188
      %v9112 = vunpack.c.h.b16 %v8188
      %v9113 = vunpack.c.l.b16 %v8189
      %v9114 = vunpack.c.h.b16 %v8189
      %v9115 = vunpack.c.l.b16 %v8190
      %v9116 = vunpack.c.h.b16 %v8190
      %v9117 = vunpack.c.l.b16 %v8191
      %v9118 = vunpack.c.h.b16 %v8191
      %v9119 = vunpack.c.l.b16 %v8192
      %v9120 = vunpack.c.h.b16 %v8192
      %v9121 = vunpack.c.l.b16 %v8193
      %v9122 = vunpack.c.h.b16 %v8193
      %v9123 = vunpack.c.l.b16 %v8194
      %v9124 = vunpack.c.h.b16 %v8194
      %v9125 = vunpack.c.l.b16 %v8195
      %v9126 = vunpack.c.h.b16 %v8195
      %v9127 = vunpack.c.l.b16 %v8196
      %v9128 = vunpack.c.h.b16 %v8196
      %v9129 = vunpack.c.l.b16 %v8197
      %v9130 = vunpack.c.h.b16 %v8197
      %v9131 = vunpack.c.l.b16 %v8198
      %v9132 = vunpack.c.h.b16 %v8198
      %v9133 = vunpack.c.l.b16 %v8199
      %v9134 = vunpack.c.h.b16 %v8199
      %v9135 = vunpack.c.l.b16 %v8200
      %v9136 = vunpack.c.h.b16 %v8200
      %v9137 = vunpack.c.l.b16 %v8201
      %v9138 = vunpack.c.h.b16 %v8201
      %v9139 = vunpack.c.l.b16 %v8202
      %v9140 = vunpack.c.h.b16 %v8202
      %v9141 = vpack.c.b16 %v9079, %v9077
      %v9142 = vpack.c.b16 %v9080, %v9078
      %v9143 = vpack.c.b16 %v9083, %v9081
      %v9144 = vpack.c.b16 %v9084, %v9082
      %v9145 = vpack.c.b16 %v9087, %v9085
      %v9146 = vpack.c.b16 %v9088, %v9086
      %v9147 = vpack.c.b16 %v9091, %v9089
      %v9148 = vpack.c.b16 %v9092, %v9090
      %v9149 = vpack.c.b16 %v9095, %v9093
      %v9150 = vpack.c.b16 %v9096, %v9094
      %v9151 = vpack.c.b16 %v9099, %v9097
      %v9152 = vpack.c.b16 %v9100, %v9098
      %v9153 = vpack.c.b16 %v9103, %v9101
      %v9154 = vpack.c.b16 %v9104, %v9102
      %v9155 = vpack.c.b16 %v9107, %v9105
      %v9156 = vpack.c.b16 %v9108, %v9106
      %v9157 = vpack.c.b16 %v9111, %v9109
      %v9158 = vpack.c.b16 %v9112, %v9110
      %v9159 = vpack.c.b16 %v9115, %v9113
      %v9160 = vpack.c.b16 %v9116, %v9114
      %v9161 = vpack.c.b16 %v9119, %v9117
      %v9162 = vpack.c.b16 %v9120, %v9118
      %v9163 = vpack.c.b16 %v9123, %v9121
      %v9164 = vpack.c.b16 %v9124, %v9122
      %v9165 = vpack.c.b16 %v9127, %v9125
      %v9166 = vpack.c.b16 %v9128, %v9126
      %v9167 = vpack.c.b16 %v9131, %v9129
      %v9168 = vpack.c.b16 %v9132, %v9130
      %v9169 = vpack.c.b16 %v9135, %v9133
      %v9170 = vpack.c.b16 %v9136, %v9134
      %v9171 = vpack.c.b16 %v9139, %v9137
      %v9172 = vpack.c.b16 %v9140, %v9138
      %v9213 = vunpack.c.l.b16 %v8203
      %v9214 = vunpack.c.l.b16 %v8204
      %v9215 = vunpack.c.l.b16 %v8205
      %v9216 = vunpack.c.l.b16 %v8206
      %v9217 = vunpack.c.l.b16 %v8207
      %v9218 = vunpack.c.l.b16 %v8208
      %v9219 = vunpack.c.l.b16 %v8209
      %v9220 = vunpack.c.l.b16 %v8210
      %v9221 = vunpack.c.l.b16 %v8211
      %v9222 = vunpack.c.l.b16 %v8212
      %v9223 = vunpack.c.l.b16 %v8213
      %v9224 = vunpack.c.l.b16 %v8214
      %v9225 = vunpack.c.l.b16 %v8215
      %v9226 = vunpack.c.l.b16 %v8216
      %v9227 = vunpack.c.l.b16 %v8217
      %v9228 = vunpack.c.l.b16 %v8218
      %v9229 = vunpack.c.l.b16 %v8219
      %v9230 = vunpack.c.l.b16 %v8220
      %v9231 = vunpack.c.l.b16 %v8221
      %v9232 = vunpack.c.l.b16 %v8222
      %v9233 = vunpack.c.l.b16 %v8223
      %v9234 = vunpack.c.l.b16 %v8224
      %v9235 = vunpack.c.l.b16 %v8225
      %v9236 = vunpack.c.l.b16 %v8226
      %v9237 = vpack.c.b16 %v9214, %v9213
      %v9238 = vpack.c.b16 %v9216, %v9215
      %v9239 = vpack.c.b16 %v9218, %v9217
      %v9240 = vpack.c.b16 %v9220, %v9219
      %v9241 = vpack.c.b16 %v9222, %v9221
      %v9242 = vpack.c.b16 %v9224, %v9223
      %v9243 = vpack.c.b16 %v9226, %v9225
      %v9244 = vpack.c.b16 %v9228, %v9227
      %v9245 = vpack.c.b16 %v9230, %v9229
      %v9246 = vpack.c.b16 %v9232, %v9231
      %v9247 = vpack.c.b16 %v9234, %v9233
      %v9248 = vpack.c.b16 %v9236, %v9235
      %v9262 = vsel %vm6648, %v9142, 0
      %v9265 = vsel %vm6648, %v9144, 0
      %v9268 = vsel %vm6648, %v9146, 0
      %v9271 = vsel %vm6648, %v9148, 0
      %v9274 = vsel %vm6648, %v9150, 0
      %v9277 = vsel %vm6648, %v9152, 0
      %v9280 = vsel %vm6648, %v9154, 0
      %v9283 = vsel %vm6648, %v9156, 0
      %v9286 = vsel %vm6648, %v9158, 0
      %v9289 = vsel %vm6648, %v9160, 0
      %v9292 = vsel %vm6648, %v9162, 0
      %v9295 = vsel %vm6648, %v9164, 0
      %v9298 = vsel %vm6648, %v9166, 0
      %v9301 = vsel %vm6648, %v9168, 0
      %v9304 = vsel %vm6648, %v9170, 0
      %v9307 = vsel %vm6648, %v9172, 0
      %9309 = vmatprep.subr.bf16.mxu0 0
      %9310 = vmatpush1.bf16.msra.mxu0 %v9237
      %9311 = vmatprep.subr.bf16.mxu0 0
      %9312 = vmatpush1.bf16.msra.mxu0 %v9238
      %9313 = vmatprep.subr.bf16.mxu0 0
      %9314 = vmatpush1.bf16.msra.mxu0 %v9239
      %9315 = vmatprep.subr.bf16.mxu0 0
      %9316 = vmatpush1.bf16.msra.mxu0 %v9240
      %9317 = vmatprep.subr.bf16.mxu0 0
      %9318 = vmatpush1.bf16.msra.mxu0 %v9241
      %9319 = vmatprep.subr.bf16.mxu0 0
      %9320 = vmatpush1.bf16.msra.mxu0 %v9242
      %9321 = vmatprep.subr.bf16.mxu0 0
      %9322 = vmatpush1.bf16.msra.mxu0 %v9243
      %9323 = vmatprep.subr.bf16.mxu0 0
      %9324 = vmatpush1.bf16.msra.mxu0 %v9244
      %9325 = vmatprep.subr.bf16.mxu0 0
      %9326 = vmatpush1.bf16.msra.mxu0 %v9245
      %9327 = vmatprep.subr.bf16.mxu0 0
      %9328 = vmatpush1.bf16.msra.mxu0 %v9246
      %9329 = vmatprep.subr.bf16.mxu0 0
      %9330 = vmatpush1.bf16.msra.mxu0 %v9247
      %9331 = vmatprep.subr.bf16.mxu0 0
      %9332 = vmatpush1.bf16.msra.mxu0 %v9248
      %9333 = vmatprep.subr.bf16.mxu0 0
      %9334 = vmatpush1.bf16.msra.mxu0 0
      %9335 = vmatprep.subr.bf16.mxu0 0
      %9336 = vmatpush1.bf16.msra.mxu0 0
      %9337 = vmatprep.subr.bf16.mxu0 0
      %9338 = vmatpush1.bf16.msra.mxu0 0
      %9339 = vmatprep.subr.bf16.mxu0 0
      %9340 = vmatpush1.bf16.msra.mxu0 0
      %9341 = vmatprep.mubr.bf16.mxu0 %v9262
      %9342 = vmatmul.mubr.bf16.gmra.mrb[0].mxu0 %v9141
      %v9343 = vpop.f32.mrb[0].mxu0
      %v9344 = vadd.f32 %v8919, %v9343
      %v9345 = vpop.f32.mrb[0].mxu0
      %v9346 = vpop.f32.mrb[0].mxu0
      %v9347 = vadd.f32 %v8922, %v9346
      %v9348 = vpop.f32.mrb[0].mxu0
      %9349 = vmatprep.mubr.bf16.mxu0 %v9265
      %9350 = vmatmul.mubr.bf16.gmra.mrb[0].mxu0 %v9143
      %v9351 = vpop.f32.mrb[0].mxu0
      %v9352 = vadd.f32 %v8927, %v9351
      %v9353 = vpop.f32.mrb[0].mxu0
      %v9354 = vpop.f32.mrb[0].mxu0
      %v9355 = vadd.f32 %v8930, %v9354
      %v9356 = vpop.f32.mrb[0].mxu0
      %9357 = vmatprep.mubr.bf16.mxu0 %v9268
      %9358 = vmatmul.mubr.bf16.gmra.mrb[0].mxu0 %v9145
      %v9359 = vpop.f32.mrb[0].mxu0
      %v9360 = vadd.f32 %v8935, %v9359
      %v9361 = vpop.f32.mrb[0].mxu0
      %v9362 = vpop.f32.mrb[0].mxu0
      %v9363 = vadd.f32 %v8938, %v9362
      %v9364 = vpop.f32.mrb[0].mxu0
      %9365 = vmatprep.mubr.bf16.mxu0 %v9271
      %9366 = vmatmul.mubr.bf16.gmra.mrb[0].mxu0 %v9147
      %v9367 = vpop.f32.mrb[0].mxu0
      %v9368 = vadd.f32 %v8943, %v9367
      %v9369 = vpop.f32.mrb[0].mxu0
      %v9370 = vpop.f32.mrb[0].mxu0
      %v9371 = vadd.f32 %v8946, %v9370
      %v9372 = vpop.f32.mrb[0].mxu0
      %9373 = vmatprep.mubr.bf16.mxu0 %v9274
      %9374 = vmatmul.mubr.bf16.gmra.mrb[0].mxu0 %v9149
      %v9375 = vpop.f32.mrb[0].mxu0
      %v9376 = vadd.f32 %v8951, %v9375
      %v9377 = vpop.f32.mrb[0].mxu0
      %v9378 = vpop.f32.mrb[0].mxu0
      %v9379 = vadd.f32 %v8954, %v9378
      %v9380 = vpop.f32.mrb[0].mxu0
      %9381 = vmatprep.mubr.bf16.mxu0 %v9277
      %9382 = vmatmul.mubr.bf16.gmra.mrb[0].mxu0 %v9151
      %v9383 = vpop.f32.mrb[0].mxu0
      %v9384 = vadd.f32 %v8959, %v9383
      %v9385 = vpop.f32.mrb[0].mxu0
      %v9386 = vpop.f32.mrb[0].mxu0
      %v9387 = vadd.f32 %v8962, %v9386
      %v9388 = vpop.f32.mrb[0].mxu0
      %9389 = vmatprep.mubr.bf16.mxu0 %v9280
      %9390 = vmatmul.mubr.bf16.gmra.mrb[0].mxu0 %v9153
      %v9391 = vpop.f32.mrb[0].mxu0
      %v9392 = vadd.f32 %v8967, %v9391
      %v9393 = vpop.f32.mrb[0].mxu0
      %v9394 = vpop.f32.mrb[0].mxu0
      %v9395 = vadd.f32 %v8970, %v9394
      %v9396 = vpop.f32.mrb[0].mxu0
      %9397 = vmatprep.mubr.bf16.mxu0 %v9283
      %9398 = vmatmul.mubr.bf16.gmra.mrb[0].mxu0 %v9155
      %v9399 = vpop.f32.mrb[0].mxu0
      %v9400 = vadd.f32 %v8975, %v9399
      %v9401 = vpop.f32.mrb[0].mxu0
      %v9402 = vpop.f32.mrb[0].mxu0
      %v9403 = vadd.f32 %v8978, %v9402
      %v9404 = vpop.f32.mrb[0].mxu0
      %9405 = vmatprep.mubr.bf16.mxu0 %v9286
      %9406 = vmatmul.mubr.bf16.gmra.mrb[0].mxu0 %v9157
      %v9407 = vpop.f32.mrb[0].mxu0
      %v9408 = vadd.f32 %v8983, %v9407
      %v9409 = vpop.f32.mrb[0].mxu0
      %v9410 = vpop.f32.mrb[0].mxu0
      %v9411 = vadd.f32 %v8986, %v9410
      %v9412 = vpop.f32.mrb[0].mxu0
      %9413 = vmatprep.mubr.bf16.mxu0 %v9289
      %9414 = vmatmul.mubr.bf16.gmra.mrb[0].mxu0 %v9159
      %v9415 = vpop.f32.mrb[0].mxu0
      %v9416 = vadd.f32 %v8991, %v9415
      %v9417 = vpop.f32.mrb[0].mxu0
      %v9418 = vpop.f32.mrb[0].mxu0
      %v9419 = vadd.f32 %v8994, %v9418
      %v9420 = vpop.f32.mrb[0].mxu0
      %9421 = vmatprep.mubr.bf16.mxu0 %v9292
      %9422 = vmatmul.mubr.bf16.gmra.mrb[0].mxu0 %v9161
      %v9423 = vpop.f32.mrb[0].mxu0
      %v9424 = vadd.f32 %v8999, %v9423
      %v9425 = vpop.f32.mrb[0].mxu0
      %v9426 = vpop.f32.mrb[0].mxu0
      %v9427 = vadd.f32 %v9002, %v9426
      %v9428 = vpop.f32.mrb[0].mxu0
      %9429 = vmatprep.mubr.bf16.mxu0 %v9295
      %9430 = vmatmul.mubr.bf16.gmra.mrb[0].mxu0 %v9163
      %v9431 = vpop.f32.mrb[0].mxu0
      %v9432 = vadd.f32 %v9007, %v9431
      %v9433 = vpop.f32.mrb[0].mxu0
      %v9434 = vpop.f32.mrb[0].mxu0
      %v9435 = vadd.f32 %v9010, %v9434
      %v9436 = vpop.f32.mrb[0].mxu0
      %9437 = vmatprep.mubr.bf16.mxu0 %v9298
      %9438 = vmatmul.mubr.bf16.gmra.mrb[0].mxu0 %v9165
      %v9439 = vpop.f32.mrb[0].mxu0
      %v9440 = vadd.f32 %v9015, %v9439
      %v9441 = vpop.f32.mrb[0].mxu0
      %v9442 = vpop.f32.mrb[0].mxu0
      %v9443 = vadd.f32 %v9018, %v9442
      %v9444 = vpop.f32.mrb[0].mxu0
      %9445 = vmatprep.mubr.bf16.mxu0 %v9301
      %9446 = vmatmul.mubr.bf16.gmra.mrb[0].mxu0 %v9167
      %v9447 = vpop.f32.mrb[0].mxu0
      %v9448 = vadd.f32 %v9023, %v9447
      %v9449 = vpop.f32.mrb[0].mxu0
      %v9450 = vpop.f32.mrb[0].mxu0
      %v9451 = vadd.f32 %v9026, %v9450
      %v9452 = vpop.f32.mrb[0].mxu0
      %9453 = vmatprep.mubr.bf16.mxu0 %v9304
      %9454 = vmatmul.mubr.bf16.gmra.mrb[0].mxu0 %v9169
      %v9455 = vpop.f32.mrb[0].mxu0
      %v9456 = vadd.f32 %v9031, %v9455
      %v9457 = vpop.f32.mrb[0].mxu0
      %v9458 = vpop.f32.mrb[0].mxu0
      %v9459 = vadd.f32 %v9034, %v9458
      %v9460 = vpop.f32.mrb[0].mxu0
      %9461 = vmatprep.mubr.bf16.mxu0 %v9307
      %9462 = vmatmul.mubr.bf16.gmra.mrb[0].mxu0 %v9171
      %v9463 = vpop.f32.mrb[0].mxu0
      %v9464 = vadd.f32 %v9039, %v9463
      %v9465 = vpop.f32.mrb[0].mxu0
      %v9466 = vpop.f32.mrb[0].mxu0
      %v9467 = vadd.f32 %v9042, %v9466
      %v9468 = vpop.f32.mrb[0].mxu0
      %9469 = vdwg.mxu0
      %v9470 = vld [vmem:[#allocation3] sm:$0xee]
      %v9471 = vld [vmem:[#allocation3 + $0x18] sm:$0xee]
      %v9472 = vld [vmem:[#allocation3 + $0x30] sm:$0xee]
      %v9473 = vld [vmem:[#allocation3 + $0x48] sm:$0xee]
      %v9474 = vld [vmem:[#allocation3 + $0x60] sm:$0xee]
      %v9475 = vld [vmem:[#allocation3 + $0x78] sm:$0xee]
      %v9476 = vld [vmem:[#allocation3 + $0x90] sm:$0xee]
      %v9477 = vld [vmem:[#allocation3 + $0xa8] sm:$0xee]
      %v9478 = vld [vmem:[#allocation3 + $0xc0] sm:$0xee]
      %v9479 = vld [vmem:[#allocation3 + $0xd8] sm:$0xee]
      %v9480 = vld [vmem:[#allocation3 + $0xf0] sm:$0xee]
      %v9481 = vld [vmem:[#allocation3 + $0x108] sm:$0xee]
      %v9482 = vld [vmem:[#allocation3 + $0x120] sm:$0xee]
      %v9483 = vld [vmem:[#allocation3 + $0x138] sm:$0xee]
      %v9484 = vld [vmem:[#allocation3 + $0x150] sm:$0xee]
      %v9485 = vld [vmem:[#allocation3 + $0x168] sm:$0xee]
      %v9518 = vrot.slane %v9470, 5
      %v9519 = vrot.slane %v9518, 4
      %v9520 = vrot.slane %v8172, 5
      %v9521 = vsel %vm1986, %v9519, %v9520
      %v9522 = vrot.slane %v9520, 4
      %v9523 = vrot.slane %v8227, 5
      %v9524 = vsel %vm1986, %v9522, %v9523
      %v9525 = vrot.slane %v9471, 5
      %v9526 = vrot.slane %v9525, 4
      %v9527 = vrot.slane %v8174, 5
      %v9528 = vsel %vm1986, %v9526, %v9527
      %v9529 = vrot.slane %v9527, 4
      %v9530 = vrot.slane %v8228, 5
      %v9531 = vsel %vm1986, %v9529, %v9530
      %v9532 = vrot.slane %v9472, 5
      %v9533 = vrot.slane %v9532, 4
      %v9534 = vrot.slane %v8176, 5
      %v9535 = vsel %vm1986, %v9533, %v9534
      %v9536 = vrot.slane %v9534, 4
      %v9537 = vrot.slane %v8229, 5
      %v9538 = vsel %vm1986, %v9536, %v9537
      %v9539 = vrot.slane %v9473, 5
      %v9540 = vrot.slane %v9539, 4
      %v9541 = vrot.slane %v8178, 5
      %v9542 = vsel %vm1986, %v9540, %v9541
      %v9543 = vrot.slane %v9541, 4
      %v9544 = vrot.slane %v8230, 5
      %v9545 = vsel %vm1986, %v9543, %v9544
      %v9546 = vrot.slane %v9474, 5
      %v9547 = vrot.slane %v9546, 4
      %v9548 = vrot.slane %v8180, 5
      %v9549 = vsel %vm1986, %v9547, %v9548
      %v9550 = vrot.slane %v9548, 4
      %v9551 = vrot.slane %v8231, 5
      %v9552 = vsel %vm1986, %v9550, %v9551
      %v9553 = vrot.slane %v9475, 5
      %v9554 = vrot.slane %v9553, 4
      %v9555 = vrot.slane %v8182, 5
      %v9556 = vsel %vm1986, %v9554, %v9555
      %v9557 = vrot.slane %v9555, 4
      %v9558 = vrot.slane %v8232, 5
      %v9559 = vsel %vm1986, %v9557, %v9558
      %v9560 = vrot.slane %v9476, 5
      %v9561 = vrot.slane %v9560, 4
      %v9562 = vrot.slane %v8184, 5
      %v9563 = vsel %vm1986, %v9561, %v9562
      %v9564 = vrot.slane %v9562, 4
      %v9565 = vrot.slane %v8233, 5
      %v9566 = vsel %vm1986, %v9564, %v9565
      %v9567 = vrot.slane %v9477, 5
      %v9568 = vrot.slane %v9567, 4
      %v9569 = vrot.slane %v8186, 5
      %v9570 = vsel %vm1986, %v9568, %v9569
      %v9571 = vrot.slane %v9569, 4
      %v9572 = vrot.slane %v8234, 5
      %v9573 = vsel %vm1986, %v9571, %v9572
      %v9574 = vrot.slane %v9478, 5
      %v9575 = vrot.slane %v9574, 4
      %v9576 = vrot.slane %v8188, 5
      %v9577 = vsel %vm1986, %v9575, %v9576
      %v9578 = vrot.slane %v9576, 4
      %v9579 = vrot.slane %v8235, 5
      %v9580 = vsel %vm1986, %v9578, %v9579
      %v9581 = vrot.slane %v9479, 5
      %v9582 = vrot.slane %v9581, 4
      %v9583 = vrot.slane %v8190, 5
      %v9584 = vsel %vm1986, %v9582, %v9583
      %v9585 = vrot.slane %v9583, 4
      %v9586 = vrot.slane %v8236, 5
      %v9587 = vsel %vm1986, %v9585, %v9586
      %v9588 = vrot.slane %v9480, 5
      %v9589 = vrot.slane %v9588, 4
      %v9590 = vrot.slane %v8192, 5
      %v9591 = vsel %vm1986, %v9589, %v9590
      %v9592 = vrot.slane %v9590, 4
      %v9593 = vrot.slane %v8237, 5
      %v9594 = vsel %vm1986, %v9592, %v9593
      %v9595 = vrot.slane %v9481, 5
      %v9596 = vrot.slane %v9595, 4
      %v9597 = vrot.slane %v8194, 5
      %v9598 = vsel %vm1986, %v9596, %v9597
      %v9599 = vrot.slane %v9597, 4
      %v9600 = vrot.slane %v8238, 5
      %v9601 = vsel %vm1986, %v9599, %v9600
      %v9602 = vrot.slane %v9482, 5
      %v9603 = vrot.slane %v9602, 4
      %v9604 = vrot.slane %v8196, 5
      %v9605 = vsel %vm1986, %v9603, %v9604
      %v9606 = vrot.slane %v9604, 4
      %v9607 = vrot.slane %v8239, 5
      %v9608 = vsel %vm1986, %v9606, %v9607
      %v9609 = vrot.slane %v9483, 5
      %v9610 = vrot.slane %v9609, 4
      %v9611 = vrot.slane %v8198, 5
      %v9612 = vsel %vm1986, %v9610, %v9611
      %v9613 = vrot.slane %v9611, 4
      %v9614 = vrot.slane %v8240, 5
      %v9615 = vsel %vm1986, %v9613, %v9614
      %v9616 = vrot.slane %v9484, 5
      %v9617 = vrot.slane %v9616, 4
      %v9618 = vrot.slane %v8200, 5
      %v9619 = vsel %vm1986, %v9617, %v9618
      %v9620 = vrot.slane %v9618, 4
      %v9621 = vrot.slane %v8241, 5
      %v9622 = vsel %vm1986, %v9620, %v9621
      %v9623 = vrot.slane %v9485, 5
      %v9624 = vrot.slane %v9623, 4
      %v9625 = vrot.slane %v8202, 5
      %v9626 = vsel %vm1986, %v9624, %v9625
      %v9627 = vrot.slane %v9625, 4
      %v9628 = vrot.slane %v8242, 5
      %v9629 = vsel %vm1986, %v9627, %v9628
      %s9630 = scalar_lea.vmem %s5, 192
      %v9631 = vld [vmem:[%s9630] sm:$0xf]
      %v9632 = vld [vmem:[%s9630 + $0x4] sm:$0xf]
      %v9633 = vld [vmem:[%s9630 + $0x8] sm:$0xf]
      %v9634 = vld [vmem:[%s9630 + $0xc] sm:$0xf]
      %v9635 = vld [vmem:[%s9630 + $0x10] sm:$0xf]
      %v9636 = vld [vmem:[%s9630 + $0x14] sm:$0xf]
      %v9637 = vld [vmem:[%s9630 + $0x18] sm:$0xf]
      %v9638 = vld [vmem:[%s9630 + $0x1c] sm:$0xf]
      %v9639 = vld [vmem:[%s9630 + $0x20] sm:$0xf]
      %v9640 = vld [vmem:[%s9630 + $0x24] sm:$0xf]
      %v9641 = vld [vmem:[%s9630 + $0x28] sm:$0xf]
      %v9642 = vld [vmem:[%s9630 + $0x2c] sm:$0xf]
      %v9643 = vld [vmem:[%s9630 + $0x30] sm:$0xf]
      %v9644 = vld [vmem:[%s9630 + $0x34] sm:$0xf]
      %v9645 = vld [vmem:[%s9630 + $0x38] sm:$0xf]
      %v9646 = vld [vmem:[%s9630 + $0x3c] sm:$0xf]
      %v9647 = vld [vmem:[%s9630 + $0x40] sm:$0xf]
      %v9648 = vld [vmem:[%s9630 + $0x44] sm:$0xf]
      %v9649 = vld [vmem:[%s9630 + $0x48] sm:$0xf]
      %v9650 = vld [vmem:[%s9630 + $0x4c] sm:$0xf]
      %v9651 = vld [vmem:[%s9630 + $0x50] sm:$0xf]
      %v9652 = vld [vmem:[%s9630 + $0x54] sm:$0xf]
      %v9653 = vld [vmem:[%s9630 + $0x58] sm:$0xf]
      %v9654 = vld [vmem:[%s9630 + $0x5c] sm:$0xf]
      %v9655 = vunpack.c.l.b16 %v9521
      %v9656 = vunpack.c.h.b16 %v9521
      %v9657 = vunpack.c.l.b16 %v9524
      %v9658 = vunpack.c.h.b16 %v9524
      %v9659 = vunpack.c.l.b16 %v9528
      %v9660 = vunpack.c.h.b16 %v9528
      %v9661 = vunpack.c.l.b16 %v9531
      %v9662 = vunpack.c.h.b16 %v9531
      %v9663 = vunpack.c.l.b16 %v9535
      %v9664 = vunpack.c.h.b16 %v9535
      %v9665 = vunpack.c.l.b16 %v9538
      %v9666 = vunpack.c.h.b16 %v9538
      %v9667 = vunpack.c.l.b16 %v9542
      %v9668 = vunpack.c.h.b16 %v9542
      %v9669 = vunpack.c.l.b16 %v9545
      %v9670 = vunpack.c.h.b16 %v9545
      %v9671 = vunpack.c.l.b16 %v9549
      %v9672 = vunpack.c.h.b16 %v9549
      %v9673 = vunpack.c.l.b16 %v9552
      %v9674 = vunpack.c.h.b16 %v9552
      %v9675 = vunpack.c.l.b16 %v9556
      %v9676 = vunpack.c.h.b16 %v9556
      %v9677 = vunpack.c.l.b16 %v9559
      %v9678 = vunpack.c.h.b16 %v9559
      %v9679 = vunpack.c.l.b16 %v9563
      %v9680 = vunpack.c.h.b16 %v9563
      %v9681 = vunpack.c.l.b16 %v9566
      %v9682 = vunpack.c.h.b16 %v9566
      %v9683 = vunpack.c.l.b16 %v9570
      %v9684 = vunpack.c.h.b16 %v9570
      %v9685 = vunpack.c.l.b16 %v9573
      %v9686 = vunpack.c.h.b16 %v9573
      %v9687 = vunpack.c.l.b16 %v9577
      %v9688 = vunpack.c.h.b16 %v9577
      %v9689 = vunpack.c.l.b16 %v9580
      %v9690 = vunpack.c.h.b16 %v9580
      %v9691 = vunpack.c.l.b16 %v9584
      %v9692 = vunpack.c.h.b16 %v9584
      %v9693 = vunpack.c.l.b16 %v9587
      %v9694 = vunpack.c.h.b16 %v9587
      %v9695 = vunpack.c.l.b16 %v9591
      %v9696 = vunpack.c.h.b16 %v9591
      %v9697 = vunpack.c.l.b16 %v9594
      %v9698 = vunpack.c.h.b16 %v9594
      %v9699 = vunpack.c.l.b16 %v9598
      %v9700 = vunpack.c.h.b16 %v9598
      %v9701 = vunpack.c.l.b16 %v9601
      %v9702 = vunpack.c.h.b16 %v9601
      %v9703 = vunpack.c.l.b16 %v9605
      %v9704 = vunpack.c.h.b16 %v9605
      %v9705 = vunpack.c.l.b16 %v9608
      %v9706 = vunpack.c.h.b16 %v9608
      %v9707 = vunpack.c.l.b16 %v9612
      %v9708 = vunpack.c.h.b16 %v9612
      %v9709 = vunpack.c.l.b16 %v9615
      %v9710 = vunpack.c.h.b16 %v9615
      %v9711 = vunpack.c.l.b16 %v9619
      %v9712 = vunpack.c.h.b16 %v9619
      %v9713 = vunpack.c.l.b16 %v9622
      %v9714 = vunpack.c.h.b16 %v9622
      %v9715 = vunpack.c.l.b16 %v9626
      %v9716 = vunpack.c.h.b16 %v9626
      %v9717 = vunpack.c.l.b16 %v9629
      %v9718 = vunpack.c.h.b16 %v9629
      %v9719 = vpack.c.b16 %v9657, %v9655
      %v9720 = vpack.c.b16 %v9658, %v9656
      %v9721 = vpack.c.b16 %v9661, %v9659
      %v9722 = vpack.c.b16 %v9662, %v9660
      %v9723 = vpack.c.b16 %v9665, %v9663
      %v9724 = vpack.c.b16 %v9666, %v9664
      %v9725 = vpack.c.b16 %v9669, %v9667
      %v9726 = vpack.c.b16 %v9670, %v9668
      %v9727 = vpack.c.b16 %v9673, %v9671
      %v9728 = vpack.c.b16 %v9674, %v9672
      %v9729 = vpack.c.b16 %v9677, %v9675
      %v9730 = vpack.c.b16 %v9678, %v9676
      %v9731 = vpack.c.b16 %v9681, %v9679
      %v9732 = vpack.c.b16 %v9682, %v9680
      %v9733 = vpack.c.b16 %v9685, %v9683
      %v9734 = vpack.c.b16 %v9686, %v9684
      %v9735 = vpack.c.b16 %v9689, %v9687
      %v9736 = vpack.c.b16 %v9690, %v9688
      %v9737 = vpack.c.b16 %v9693, %v9691
      %v9738 = vpack.c.b16 %v9694, %v9692
      %v9739 = vpack.c.b16 %v9697, %v9695
      %v9740 = vpack.c.b16 %v9698, %v9696
      %v9741 = vpack.c.b16 %v9701, %v9699
      %v9742 = vpack.c.b16 %v9702, %v9700
      %v9743 = vpack.c.b16 %v9705, %v9703
      %v9744 = vpack.c.b16 %v9706, %v9704
      %v9745 = vpack.c.b16 %v9709, %v9707
      %v9746 = vpack.c.b16 %v9710, %v9708
      %v9747 = vpack.c.b16 %v9713, %v9711
      %v9748 = vpack.c.b16 %v9714, %v9712
      %v9749 = vpack.c.b16 %v9717, %v9715
      %v9750 = vpack.c.b16 %v9718, %v9716
      %v9791 = vunpack.c.l.b16 %v9631
      %v9792 = vunpack.c.l.b16 %v9632
      %v9793 = vunpack.c.l.b16 %v9633
      %v9794 = vunpack.c.l.b16 %v9634
      %v9795 = vunpack.c.l.b16 %v9635
      %v9796 = vunpack.c.l.b16 %v9636
      %v9797 = vunpack.c.l.b16 %v9637
      %v9798 = vunpack.c.l.b16 %v9638
      %v9799 = vunpack.c.l.b16 %v9639
      %v9800 = vunpack.c.l.b16 %v9640
      %v9801 = vunpack.c.l.b16 %v9641
      %v9802 = vunpack.c.l.b16 %v9642
      %v9803 = vunpack.c.l.b16 %v9643
      %v9804 = vunpack.c.l.b16 %v9644
      %v9805 = vunpack.c.l.b16 %v9645
      %v9806 = vunpack.c.l.b16 %v9646
      %v9807 = vunpack.c.l.b16 %v9647
      %v9808 = vunpack.c.l.b16 %v9648
      %v9809 = vunpack.c.l.b16 %v9649
      %v9810 = vunpack.c.l.b16 %v9650
      %v9811 = vunpack.c.l.b16 %v9651
      %v9812 = vunpack.c.l.b16 %v9652
      %v9813 = vunpack.c.l.b16 %v9653
      %v9814 = vunpack.c.l.b16 %v9654
      %v9815 = vpack.c.b16 %v9792, %v9791
      %v9816 = vpack.c.b16 %v9794, %v9793
      %v9817 = vpack.c.b16 %v9796, %v9795
      %v9818 = vpack.c.b16 %v9798, %v9797
      %v9819 = vpack.c.b16 %v9800, %v9799
      %v9820 = vpack.c.b16 %v9802, %v9801
      %v9821 = vpack.c.b16 %v9804, %v9803
      %v9822 = vpack.c.b16 %v9806, %v9805
      %v9823 = vpack.c.b16 %v9808, %v9807
      %v9824 = vpack.c.b16 %v9810, %v9809
      %v9825 = vpack.c.b16 %v9812, %v9811
      %v9826 = vpack.c.b16 %v9814, %v9813
      %v9840 = vsel %vm6648, %v9720, 0
      %v9843 = vsel %vm6648, %v9722, 0
      %v9846 = vsel %vm6648, %v9724, 0
      %v9849 = vsel %vm6648, %v9726, 0
      %v9852 = vsel %vm6648, %v9728, 0
      %v9855 = vsel %vm6648, %v9730, 0
      %v9858 = vsel %vm6648, %v9732, 0
      %v9861 = vsel %vm6648, %v9734, 0
      %v9864 = vsel %vm6648, %v9736, 0
      %v9867 = vsel %vm6648, %v9738, 0
      %v9870 = vsel %vm6648, %v9740, 0
      %v9873 = vsel %vm6648, %v9742, 0
      %v9876 = vsel %vm6648, %v9744, 0
      %v9879 = vsel %vm6648, %v9746, 0
      %v9882 = vsel %vm6648, %v9748, 0
      %v9885 = vsel %vm6648, %v9750, 0
      %9887 = vmatprep.subr.bf16.mxu0 0
      %9888 = vmatpush1.bf16.msra.mxu0 %v9815
      %9889 = vmatprep.subr.bf16.mxu0 0
      %9890 = vmatpush1.bf16.msra.mxu0 %v9816
      %9891 = vmatprep.subr.bf16.mxu0 0
      %9892 = vmatpush1.bf16.msra.mxu0 %v9817
      %9893 = vmatprep.subr.bf16.mxu0 0
      %9894 = vmatpush1.bf16.msra.mxu0 %v9818
      %9895 = vmatprep.subr.bf16.mxu0 0
      %9896 = vmatpush1.bf16.msra.mxu0 %v9819
      %9897 = vmatprep.subr.bf16.mxu0 0
      %9898 = vmatpush1.bf16.msra.mxu0 %v9820
      %9899 = vmatprep.subr.bf16.mxu0 0
      %9900 = vmatpush1.bf16.msra.mxu0 %v9821
      %9901 = vmatprep.subr.bf16.mxu0 0
      %9902 = vmatpush1.bf16.msra.mxu0 %v9822
      %9903 = vmatprep.subr.bf16.mxu0 0
      %9904 = vmatpush1.bf16.msra.mxu0 %v9823
      %9905 = vmatprep.subr.bf16.mxu0 0
      %9906 = vmatpush1.bf16.msra.mxu0 %v9824
      %9907 = vmatprep.subr.bf16.mxu0 0
      %9908 = vmatpush1.bf16.msra.mxu0 %v9825
      %9909 = vmatprep.subr.bf16.mxu0 0
      %9910 = vmatpush1.bf16.msra.mxu0 %v9826
      %9911 = vmatprep.subr.bf16.mxu0 0
      %9912 = vmatpush1.bf16.msra.mxu0 0
      %9913 = vmatprep.subr.bf16.mxu0 0
      %9914 = vmatpush1.bf16.msra.mxu0 0
      %9915 = vmatprep.subr.bf16.mxu0 0
      %9916 = vmatpush1.bf16.msra.mxu0 0
      %9917 = vmatprep.subr.bf16.mxu0 0
      %9918 = vmatpush1.bf16.msra.mxu0 0
      %9919 = vmatprep.mubr.bf16.mxu0 %v9840
      %9920 = vmatmul.mubr.bf16.gmra.mrb[0].mxu0 %v9719
      %v9921 = vpop.f32.mrb[0].mxu0
      %v9922 = vadd.f32 0.0, %v9921
      %v9923 = vpop.f32.mrb[0].mxu0
      %v9924 = vpop.f32.mrb[0].mxu0
      %v9925 = vadd.f32 0.0, %v9924
      %v9926 = vpop.f32.mrb[0].mxu0
      %9927 = vmatprep.mubr.bf16.mxu0 %v9843
      %9928 = vmatmul.mubr.bf16.gmra.mrb[0].mxu0 %v9721
      %v9929 = vpop.f32.mrb[0].mxu0
      %v9930 = vadd.f32 0.0, %v9929
      %v9931 = vpop.f32.mrb[0].mxu0
      %v9932 = vpop.f32.mrb[0].mxu0
      %v9933 = vadd.f32 0.0, %v9932
      %v9934 = vpop.f32.mrb[0].mxu0
      %9935 = vmatprep.mubr.bf16.mxu0 %v9846
      %9936 = vmatmul.mubr.bf16.gmra.mrb[0].mxu0 %v9723
      %v9937 = vpop.f32.mrb[0].mxu0
      %v9938 = vadd.f32 0.0, %v9937
      %v9939 = vpop.f32.mrb[0].mxu0
      %v9940 = vpop.f32.mrb[0].mxu0
      %v9941 = vadd.f32 0.0, %v9940
      %v9942 = vpop.f32.mrb[0].mxu0
      %9943 = vmatprep.mubr.bf16.mxu0 %v9849
      %9944 = vmatmul.mubr.bf16.gmra.mrb[0].mxu0 %v9725
      %v9945 = vpop.f32.mrb[0].mxu0
      %v9946 = vadd.f32 0.0, %v9945
      %v9947 = vpop.f32.mrb[0].mxu0
      %v9948 = vpop.f32.mrb[0].mxu0
      %v9949 = vadd.f32 0.0, %v9948
      %v9950 = vpop.f32.mrb[0].mxu0
      %9951 = vmatprep.mubr.bf16.mxu0 %v9852
      %9952 = vmatmul.mubr.bf16.gmra.mrb[0].mxu0 %v9727
      %v9953 = vpop.f32.mrb[0].mxu0
      %v9954 = vadd.f32 0.0, %v9953
      %v9955 = vpop.f32.mrb[0].mxu0
      %v9956 = vpop.f32.mrb[0].mxu0
      %v9957 = vadd.f32 0.0, %v9956
      %v9958 = vpop.f32.mrb[0].mxu0
      %9959 = vmatprep.mubr.bf16.mxu0 %v9855
      %9960 = vmatmul.mubr.bf16.gmra.mrb[0].mxu0 %v9729
      %v9961 = vpop.f32.mrb[0].mxu0
      %v9962 = vadd.f32 0.0, %v9961
      %v9963 = vpop.f32.mrb[0].mxu0
      %v9964 = vpop.f32.mrb[0].mxu0
      %v9965 = vadd.f32 0.0, %v9964
      %v9966 = vpop.f32.mrb[0].mxu0
      %9967 = vmatprep.mubr.bf16.mxu0 %v9858
      %9968 = vmatmul.mubr.bf16.gmra.mrb[0].mxu0 %v9731
      %v9969 = vpop.f32.mrb[0].mxu0
      %v9970 = vadd.f32 0.0, %v9969
      %v9971 = vpop.f32.mrb[0].mxu0
      %v9972 = vpop.f32.mrb[0].mxu0
      %v9973 = vadd.f32 0.0, %v9972
      %v9974 = vpop.f32.mrb[0].mxu0
      %9975 = vmatprep.mubr.bf16.mxu0 %v9861
      %9976 = vmatmul.mubr.bf16.gmra.mrb[0].mxu0 %v9733
      %v9977 = vpop.f32.mrb[0].mxu0
      %v9978 = vadd.f32 0.0, %v9977
      %v9979 = vpop.f32.mrb[0].mxu0
      %v9980 = vpop.f32.mrb[0].mxu0
      %v9981 = vadd.f32 0.0, %v9980
      %v9982 = vpop.f32.mrb[0].mxu0
      %9983 = vmatprep.mubr.bf16.mxu0 %v9864
      %9984 = vmatmul.mubr.bf16.gmra.mrb[0].mxu0 %v9735
      %v9985 = vpop.f32.mrb[0].mxu0
      %v9986 = vadd.f32 0.0, %v9985
      %v9987 = vpop.f32.mrb[0].mxu0
      %v9988 = vpop.f32.mrb[0].mxu0
      %v9989 = vadd.f32 0.0, %v9988
      %v9990 = vpop.f32.mrb[0].mxu0
      %9991 = vmatprep.mubr.bf16.mxu0 %v9867
      %9992 = vmatmul.mubr.bf16.gmra.mrb[0].mxu0 %v9737
      %v9993 = vpop.f32.mrb[0].mxu0
      %v9994 = vadd.f32 0.0, %v9993
      %v9995 = vpop.f32.mrb[0].mxu0
      %v9996 = vpop.f32.mrb[0].mxu0
      %v9997 = vadd.f32 0.0, %v9996
      %v9998 = vpop.f32.mrb[0].mxu0
      %9999 = vmatprep.mubr.bf16.mxu0 %v9870
      %10000 = vmatmul.mubr.bf16.gmra.mrb[0].mxu0 %v9739
      %v10001 = vpop.f32.mrb[0].mxu0
      %v10002 = vadd.f32 0.0, %v10001
      %v10003 = vpop.f32.mrb[0].mxu0
      %v10004 = vpop.f32.mrb[0].mxu0
      %v10005 = vadd.f32 0.0, %v10004
      %v10006 = vpop.f32.mrb[0].mxu0
      %10007 = vmatprep.mubr.bf16.mxu0 %v9873
      %10008 = vmatmul.mubr.bf16.gmra.mrb[0].mxu0 %v9741
      %v10009 = vpop.f32.mrb[0].mxu0
      %v10010 = vadd.f32 0.0, %v10009
      %v10011 = vpop.f32.mrb[0].mxu0
      %v10012 = vpop.f32.mrb[0].mxu0
      %v10013 = vadd.f32 0.0, %v10012
      %v10014 = vpop.f32.mrb[0].mxu0
      %10015 = vmatprep.mubr.bf16.mxu0 %v9876
      %10016 = vmatmul.mubr.bf16.gmra.mrb[0].mxu0 %v9743
      %v10017 = vpop.f32.mrb[0].mxu0
      %v10018 = vadd.f32 0.0, %v10017
      %v10019 = vpop.f32.mrb[0].mxu0
      %v10020 = vpop.f32.mrb[0].mxu0
      %v10021 = vadd.f32 0.0, %v10020
      %v10022 = vpop.f32.mrb[0].mxu0
      %10023 = vmatprep.mubr.bf16.mxu0 %v9879
      %10024 = vmatmul.mubr.bf16.gmra.mrb[0].mxu0 %v9745
      %v10025 = vpop.f32.mrb[0].mxu0
      %v10026 = vadd.f32 0.0, %v10025
      %v10027 = vpop.f32.mrb[0].mxu0
      %v10028 = vpop.f32.mrb[0].mxu0
      %v10029 = vadd.f32 0.0, %v10028
      %v10030 = vpop.f32.mrb[0].mxu0
      %10031 = vmatprep.mubr.bf16.mxu0 %v9882
      %10032 = vmatmul.mubr.bf16.gmra.mrb[0].mxu0 %v9747
      %v10033 = vpop.f32.mrb[0].mxu0
      %v10034 = vadd.f32 0.0, %v10033
      %v10035 = vpop.f32.mrb[0].mxu0
      %v10036 = vpop.f32.mrb[0].mxu0
      %v10037 = vadd.f32 0.0, %v10036
      %v10038 = vpop.f32.mrb[0].mxu0
      %10039 = vmatprep.mubr.bf16.mxu0 %v9885
      %10040 = vmatmul.mubr.bf16.gmra.mrb[0].mxu0 %v9749
      %v10041 = vpop.f32.mrb[0].mxu0
      %v10042 = vadd.f32 0.0, %v10041
      %v10043 = vpop.f32.mrb[0].mxu0
      %v10044 = vpop.f32.mrb[0].mxu0
      %v10045 = vadd.f32 0.0, %v10044
      %v10046 = vpop.f32.mrb[0].mxu0
      %10047 = vdwg.mxu0
      %v10048 = vadd.f32 %v9344, %v9922
      %v10049 = vadd.f32 %v9347, %v9925
      %v10050 = vadd.f32 %v9352, %v9930
      %v10051 = vadd.f32 %v9355, %v9933
      %v10052 = vadd.f32 %v9360, %v9938
      %v10053 = vadd.f32 %v9363, %v9941
      %v10054 = vadd.f32 %v9368, %v9946
      %v10055 = vadd.f32 %v9371, %v9949
      %v10056 = vadd.f32 %v9376, %v9954
      %v10057 = vadd.f32 %v9379, %v9957
      %v10058 = vadd.f32 %v9384, %v9962
      %v10059 = vadd.f32 %v9387, %v9965
      %v10060 = vadd.f32 %v9392, %v9970
      %v10061 = vadd.f32 %v9395, %v9973
      %v10062 = vadd.f32 %v9400, %v9978
      %v10063 = vadd.f32 %v9403, %v9981
      %v10064 = vadd.f32 %v9408, %v9986
      %v10065 = vadd.f32 %v9411, %v9989
      %v10066 = vadd.f32 %v9416, %v9994
      %v10067 = vadd.f32 %v9419, %v9997
      %v10068 = vadd.f32 %v9424, %v10002
      %v10069 = vadd.f32 %v9427, %v10005
      %v10070 = vadd.f32 %v9432, %v10010
      %v10071 = vadd.f32 %v9435, %v10013
      %v10072 = vadd.f32 %v9440, %v10018
      %v10073 = vadd.f32 %v9443, %v10021
      %v10074 = vadd.f32 %v9448, %v10026
      %v10075 = vadd.f32 %v9451, %v10029
      %v10076 = vadd.f32 %v9456, %v10034
      %v10077 = vadd.f32 %v9459, %v10037
      %v10078 = vadd.f32 %v9464, %v10042
      %v10079 = vadd.f32 %v9467, %v10045
      %v10080 = vld [vmem:[%s6] sm:$0x1]
      %v10082 = vlaneseq
      %v10083 = vshrl.u32 %v10082, 7
      %v10084 = vsub.s32 0, %v10083
      %v10085 = vrot.slane %v10080, %v10084
      %v10087 = vadd.f32 %v10048, %v10085
      %v10088 = vadd.f32 %v10049, %v10085
      %v10089 = vadd.f32 %v10050, %v10085
      %v10090 = vadd.f32 %v10051, %v10085
      %v10091 = vadd.f32 %v10052, %v10085
      %v10092 = vadd.f32 %v10053, %v10085
      %v10093 = vadd.f32 %v10054, %v10085
      %v10094 = vadd.f32 %v10055, %v10085
      %v10095 = vadd.f32 %v10056, %v10085
      %v10096 = vadd.f32 %v10057, %v10085
      %v10097 = vadd.f32 %v10058, %v10085
      %v10098 = vadd.f32 %v10059, %v10085
      %v10099 = vadd.f32 %v10060, %v10085
      %v10100 = vadd.f32 %v10061, %v10085
      %v10101 = vadd.f32 %v10062, %v10085
      %v10102 = vadd.f32 %v10063, %v10085
      %v10103 = vadd.f32 %v10064, %v10085
      %v10104 = vadd.f32 %v10065, %v10085
      %v10105 = vadd.f32 %v10066, %v10085
      %v10106 = vadd.f32 %v10067, %v10085
      %v10107 = vadd.f32 %v10068, %v10085
      %v10108 = vadd.f32 %v10069, %v10085
      %v10109 = vadd.f32 %v10070, %v10085
      %v10110 = vadd.f32 %v10071, %v10085
      %v10111 = vadd.f32 %v10072, %v10085
      %v10112 = vadd.f32 %v10073, %v10085
      %v10113 = vadd.f32 %v10074, %v10085
      %v10114 = vadd.f32 %v10075, %v10085
      %v10115 = vadd.f32 %v10076, %v10085
      %v10116 = vadd.f32 %v10077, %v10085
      %v10117 = vadd.f32 %v10078, %v10085
      %v10118 = vadd.f32 %v10079, %v10085
      %10119 = vxpose.xlu0.b32.start [1/16] %v10087, 128
      %10120 = vxpose.xlu0.b32.cont [2/16] %v10088, 128
      %10121 = vxpose.xlu0.b32.cont [3/16] %v10089, 128
      %10122 = vxpose.xlu0.b32.cont [4/16] %v10090, 128
      %10123 = vxpose.xlu0.b32.cont [5/16] %v10091, 128
      %10124 = vxpose.xlu0.b32.cont [6/16] %v10092, 128
      %10125 = vxpose.xlu0.b32.cont [7/16] %v10093, 128
      %10126 = vxpose.xlu0.b32.cont [8/16] %v10094, 128
      %10127 = vxpose.xlu0.b32.cont [9/16] %v10095, 128
      %10128 = vxpose.xlu0.b32.cont [10/16] %v10096, 128
      %10129 = vxpose.xlu0.b32.cont [11/16] %v10097, 128
      %10130 = vxpose.xlu0.b32.cont [12/16] %v10098, 128
      %10131 = vxpose.xlu0.b32.cont [13/16] %v10099, 128
      %10132 = vxpose.xlu0.b32.cont [14/16] %v10100, 128
      %10133 = vxpose.xlu0.b32.cont [15/16] %v10101, 128
      %10134 = vxpose.xlu0.b32.end [16/16] %v10102, 128
      %v10135 = vpop.trf.xlu0
      %v10136 = vpop.trf.xlu0
      %v10137 = vpop.trf.xlu0
      %v10138 = vpop.trf.xlu0
      %v10139 = vpop.trf.xlu0
      %v10140 = vpop.trf.xlu0
      %v10141 = vpop.trf.xlu0
      %v10142 = vpop.trf.xlu0
      %v10143 = vpop.trf.xlu0
      %v10144 = vpop.trf.xlu0
      %v10145 = vpop.trf.xlu0
      %v10146 = vpop.trf.xlu0
      %v10147 = vpop.trf.xlu0
      %v10148 = vpop.trf.xlu0
      %v10149 = vpop.trf.xlu0
      %v10150 = vpop.trf.xlu0
      %10151 = vxpose.xlu0.b32.start [1/16] %v10103, 128
      %10152 = vxpose.xlu0.b32.cont [2/16] %v10104, 128
      %10153 = vxpose.xlu0.b32.cont [3/16] %v10105, 128
      %10154 = vxpose.xlu0.b32.cont [4/16] %v10106, 128
      %10155 = vxpose.xlu0.b32.cont [5/16] %v10107, 128
      %10156 = vxpose.xlu0.b32.cont [6/16] %v10108, 128
      %10157 = vxpose.xlu0.b32.cont [7/16] %v10109, 128
      %10158 = vxpose.xlu0.b32.cont [8/16] %v10110, 128
      %10159 = vxpose.xlu0.b32.cont [9/16] %v10111, 128
      %10160 = vxpose.xlu0.b32.cont [10/16] %v10112, 128
      %10161 = vxpose.xlu0.b32.cont [11/16] %v10113, 128
      %10162 = vxpose.xlu0.b32.cont [12/16] %v10114, 128
      %10163 = vxpose.xlu0.b32.cont [13/16] %v10115, 128
      %10164 = vxpose.xlu0.b32.cont [14/16] %v10116, 128
      %10165 = vxpose.xlu0.b32.cont [15/16] %v10117, 128
      %10166 = vxpose.xlu0.b32.end [16/16] %v10118, 128
      %v10167 = vpop.trf.xlu0
      %v10168 = vpop.trf.xlu0
      %v10169 = vpop.trf.xlu0
      %v10170 = vpop.trf.xlu0
      %v10171 = vpop.trf.xlu0
      %v10172 = vpop.trf.xlu0
      %v10173 = vpop.trf.xlu0
      %v10174 = vpop.trf.xlu0
      %v10175 = vpop.trf.xlu0
      %v10176 = vpop.trf.xlu0
      %v10177 = vpop.trf.xlu0
      %v10178 = vpop.trf.xlu0
      %v10179 = vpop.trf.xlu0
      %v10180 = vpop.trf.xlu0
      %v10181 = vpop.trf.xlu0
      %v10182 = vpop.trf.xlu0
      %v10185 = vcombine.low %v10135, %v10167
      %v10187 = vadd.f32 %v280, %v10185
      %v10188 = vmax.f32 %v10187, 0.0
      %v10189 = vmin.f32 %v10188, 1.0
      %10190 = vst [vmem:[%s278] sm:$0x77] %v10189
      %p10191 = scmp.lt.s32.totalorder %s18, 1
      %s10192 = scalar_select %p10191, %s18, 1
      %s10193 = smul.addr %s10192, 2
      %s10194 = smul.addr %s10193, 4
      %s10195 = scalar_lea.vmem %s7, %s10194
      // Predicated region
      $region49: #{tpu_custom_call.1} parent=47 // pred_check
        %p10196 = pneg %p188
      $region50: #{tpu_custom_call.1} parent=47 // pred_check_branch
        %10198 = sbr.rel (%p10196) target = $region52
      $region51: #{tpu_custom_call.1} parent=47 // pred_region
        _
      $region52: #{tpu_custom_call.1} parent=47 // pred_fallthru
        _
    $region48: #{tpu_custom_call.1} parent=5 // pred_fallthru
      _
    %p10199 = scmp.le.s32.totalorder 2, %s13
    // Predicated region
    $region53: #{tpu_custom_call.1} parent=5 // pred_check
      %p10200 = pneg %p10199
    $region54: #{tpu_custom_call.1} parent=5 // pred_check_branch
      %10202 = sbr.rel (%p10200) target = $region56
    $region55: #{tpu_custom_call.1} parent=5 // pred_region
      %s10203 = ssub.s32 %s13, 2
      // Predicated region
      $region57: #{tpu_custom_call.1} parent=55 // pred_check
        %p10204 = pneg %p194
      $region58: #{tpu_custom_call.1} parent=55 // pred_check_branch
        %10206 = sbr.rel (%p10204) target = $region60
      $region59: #{tpu_custom_call.1} parent=55 // pred_region
        %p10207 = scmp.lt.s32.totalorder %s19, 1
        %s10208 = scalar_select %p10207, %s19, 1
        %s10209 = smul.addr %s10208, 2
        %s10210 = smul.addr %s10209, 4
        %s10211 = scalar_lea.vmem %s7, %s10210
      $region60: #{tpu_custom_call.1} parent=55 // pred_fallthru
        _
    $region56: #{tpu_custom_call.1} parent=5 // pred_fallthru
      _
  $region6: #{tpu_custom_call.1} parent=0 // loop_footer
    %s17 = sadd.s32 1, %s13
  $region7: #{tpu_custom_call.1} parent=0 // loop_footer_branch
    %12 = sbr.rel target = $region3
  $region8: #{tpu_custom_call.1} parent=0 // loop_exit
    _

</llo_original>
